<compile_context>
chip_gen: v6e
topology: v6e:2x2x1
jax: 0.10.0
libtpu: 0.0.40
codegen_flags: <defaults>
</compile_context>

<pallas_src>
import functools

import jax
import jax.numpy as jnp
from jax.experimental import pallas as pl
from jax.experimental.pallas import tpu as pltpu

CPAD = 128  # padded channel width for lane-dense conv GEMM outputs


# ----------------------------------------------------------------------------
# Kernel 1: single-block fused  out = relu?(x @ w + b)   (conv GEMMs)
# ----------------------------------------------------------------------------
def _linear_kernel(x_ref, w_ref, b_ref, o_ref, *, relu):
    acc = jnp.dot(x_ref[...].astype(jnp.bfloat16), w_ref[...],
                  preferred_element_type=jnp.float32)
    acc = acc + b_ref[...]          # b is (1, N) f32 -> broadcasts over rows
    if relu:
        acc = jnp.maximum(acc, 0.0)
    o_ref[...] = acc.astype(o_ref.dtype)


def fused_linear(x, w, b, *, relu=False, out_dtype=jnp.float32):
    """x: (M, K), w: (K, N) bf16, b: (1, N) f32 -> (M, N) out_dtype.

    Single full-array block (no grid): only used for the small conv GEMMs
    (a few hundred KB of VMEM at these shapes).
    """
    M, K = x.shape
    K2, N = w.shape
    assert K == K2, (K, K2)
    return pl.pallas_call(
        functools.partial(_linear_kernel, relu=relu),
        out_shape=jax.ShapeDtypeStruct((M, N), out_dtype),
        in_specs=[pl.BlockSpec(memory_space=pltpu.MemorySpace.VMEM)] * 3,
        out_specs=pl.BlockSpec(memory_space=pltpu.MemorySpace.VMEM),
    )(x, w, b)


# ----------------------------------------------------------------------------
# Kernel 2: fully fused MLP head (actor + critic), K-tiled with f32 accumulator
#   hidden = relu(flat @ W1 + b1)     (W1 = [a1 | v1], streamed bf16, K-tiled)
#   out    = hidden @ W2 + b2         (W2 = blockdiag(a2, v2), last grid step)
# ----------------------------------------------------------------------------
def _head_kernel(x_ref, w1_ref, b1_ref, w2_ref, b2_ref, o_ref, acc_ref):
    k = pl.program_id(0)

    @pl.when(k == 0)
    def _():
        acc_ref[...] = jnp.zeros_like(acc_ref)

    acc_ref[...] += jnp.dot(x_ref[...].astype(jnp.bfloat16), w1_ref[...],
                            preferred_element_type=jnp.float32)

    @pl.when(k == pl.num_programs(0) - 1)
    def _():
        hidden = jnp.maximum(acc_ref[...] + b1_ref[...], 0.0)     # (M, 512) f32
        out = jnp.dot(hidden.astype(jnp.bfloat16), w2_ref[...],
                      preferred_element_type=jnp.float32) + b2_ref[...]
        o_ref[...] = out.astype(o_ref.dtype)


def _pick_tk(k, target=2048):
    """Largest multiple of 128 that divides k and is <= target."""
    best, t = 128, 128
    while t <= min(k, target):
        if k % t == 0:
            best = t
        t += 128
    return best


def fused_head(x, w1, b1, w2, b2):
    """x: (M, K) bf16, w1: (K, H2) bf16, b1: (1, H2) f32,
       w2: (H2, NOUT) bf16, b2: (1, NOUT) f32 -> (M, NOUT) f32."""
    M, K = x.shape
    K2, H2 = w1.shape
    H2b, NOUT = w2.shape
    assert K == K2 and H2 == H2b
    assert K % 128 == 0 and H2 % 128 == 0 and NOUT % 128 == 0
    tk = _pick_tk(K)
    return pl.pallas_call(
        _head_kernel,
        out_shape=jax.ShapeDtypeStruct((M, NOUT), jnp.float32),
        grid_spec=pltpu.PrefetchScalarGridSpec(
            num_scalar_prefetch=0,
            grid=(K // tk,),
            in_specs=[
                pl.BlockSpec((M, tk), lambda k: (0, k)),     # activations
                pl.BlockSpec((tk, H2), lambda k: (k, 0)),    # big weight, streamed
                pl.BlockSpec((1, H2), lambda k: (0, 0)),     # b1 (resident)
                pl.BlockSpec((H2, NOUT), lambda k: (0, 0)),  # W2 (resident)
                pl.BlockSpec((1, NOUT), lambda k: (0, 0)),   # b2 (resident)
            ],
            out_specs=pl.BlockSpec((M, NOUT), lambda k: (0, 0)),
            scratch_shapes=[pltpu.VMEM((M, H2), jnp.float32)],
        ),
        compiler_params=pltpu.CompilerParams(
            dimension_semantics=("arbitrary",)),   # single axis is a reduction
    )(x, w1, b1, w2, b2)


# ----------------------------------------------------------------------------
# Glue: NHWC im2col (slicing + concat only, no transposes) + conv wrapper
# ----------------------------------------------------------------------------
def _im2col_nhwc(x, kh, kw):
    """x: (N, H, W, C) -> (N*OH*OW, KH*KW*C), feature order (kh, kw, c)."""
    n, h, w, c = x.shape
    oh, ow = h - kh + 1, w - kw + 1
    cols = [x[:, i:i + oh, j:j + ow, :] for i in range(kh) for j in range(kw)]
    p = jnp.concatenate(cols, axis=-1)                 # (N, OH, OW, KH*KW*C)
    return p.reshape(n * oh * ow, kh * kw * c), (n, oh, ow)


def conv2d_relu_nhwc(x, wmat, b, *, kh=3, kw=3):
    """VALID 3x3 stride-1 conv + ReLU on an NHWC activation.

    wmat: (K_pad, OutC_pad) bf16, rows ordered (kh, kw, c) and zero-padded;
    b: (1, OutC_pad) f32. Output stays NHWC, bf16, padded channels are zero.
    """
    patches, (n, oh, ow) = _im2col_nhwc(x, kh, kw)
    k = patches.shape[1]
    k_pad = wmat.shape[0]
    if k_pad > k:                                      # only conv1 (K=9*C_in<128)
        patches = jnp.pad(patches, ((0, 0), (0, k_pad - k)))
    y = fused_linear(patches, wmat, b, relu=True, out_dtype=jnp.bfloat16)
    return y.reshape(n, oh, ow, wmat.shape[1])


# ----------------------------------------------------------------------------
# Parameters: PyTorch-layout synthetic init + offline repack for the kernels
# ----------------------------------------------------------------------------
def init_torch_params(key, input_shape, n_actions, hidden_size=256):
    """Deterministic synthetic parameters in PyTorch layout (state_dict-like)."""
    c, h, w = input_shape
    conv_out = 64 * (h - 6) * (w - 6)
    ks = jax.random.split(key, 14)

    def dense(kw_, kb_, fan_out, fan_in):        # torch Linear: (out, in)
        s = 1.0 / jnp.sqrt(jnp.float32(fan_in))
        return (jax.random.normal(kw_, (fan_out, fan_in), jnp.float32) * s,
                jax.random.normal(kb_, (fan_out,), jnp.float32) * s)

    def conv(kw_, kb_, outc, inc):
        s = 1.0 / jnp.sqrt(jnp.float32(inc * 9))
        return (jax.random.normal(kw_, (outc, inc, 3, 3), jnp.float32) * s,
                jax.random.normal(kb_, (outc,), jnp.float32) * s)

    c1_w, c1_b = conv(ks[0], ks[1], 32, c)
    c2_w, c2_b = conv(ks[2], ks[3], 64, 32)
    c3_w, c3_b = conv(ks[4], ks[5], 64, 64)
    a1_w, a1_b = dense(ks[6], ks[7], hidden_size, conv_out)
    a2_w, a2_b = dense(ks[8], ks[9], n_actions, hidden_size)
    v1_w, v1_b = dense(ks[10], ks[11], hidden_size, conv_out)
    v2_w, v2_b = dense(ks[12], ks[13], 1, hidden_size)
    return {"c1_w": c1_w, "c1_b": c1_b, "c2_w": c2_w, "c2_b": c2_b,
            "c3_w": c3_w, "c3_b": c3_b,
            "a1_w": a1_w, "a1_b": a1_b, "a2_w": a2_w, "a2_b": a2_b,
            "v1_w": v1_w, "v1_b": v1_b, "v2_w": v2_w, "v2_b": v2_b}


def prepare_params(tp, input_shape, n_actions, hidden_size=256):
    """One-time repack of PyTorch-layout params into kernel-friendly layouts."""
    c_in, h, w = input_shape
    oh, ow = h - 6, w - 6
    conv_out = 64 * oh * ow
    assert conv_out % 128 == 0, "head reduction dim must be a multiple of 128"

    def conv_gemm_w(wt, in_c_pad, out_c_pad):
        # (OutC, InC, kh, kw) -> (kh*kw*in_c_pad, out_c_pad), rows (kh, kw, c)
        outc, inc, kh, kw = wt.shape
        m = wt.transpose(2, 3, 1, 0)                       # (kh, kw, inc, outc)
        m = jnp.pad(m, ((0, 0), (0, 0), (0, in_c_pad - inc), (0, out_c_pad - outc)))
        return m.reshape(kh * kw * in_c_pad, out_c_pad).astype(jnp.bfloat16)

    def conv_bias(b, out_c_pad):
        return jnp.pad(b, (0, out_c_pad - b.shape[0])).reshape(1, out_c_pad)

    # conv1: K = 9*C_in (e.g. 36) -> rows padded up to 128; OutC 32 -> 128
    k1 = 9 * c_in
    k1_pad = max(((k1 + 127) // 128) * 128, 128)
    c1m = tp["c1_w"].transpose(2, 3, 1, 0).reshape(k1, 32)
    c1m = jnp.pad(c1m, ((0, k1_pad - k1), (0, CPAD - 32))).astype(jnp.bfloat16)

    params = {
        "c1_w": c1m,                           "c1_b": conv_bias(tp["c1_b"], CPAD),
        "c2_w": conv_gemm_w(tp["c2_w"], CPAD, CPAD), "c2_b": conv_bias(tp["c2_b"], CPAD),
        # conv3 keeps OutC = 64 so the flattened size matches PyTorch's conv_out
        "c3_w": conv_gemm_w(tp["c3_w"], CPAD, 64),   "c3_b": conv_bias(tp["c3_b"], 64),
    }

    # Fused head layer 1: [actor | critic]; rows permuted (c,oh,ow) -> (oh,ow,c)
    # so the NHWC flatten used here reproduces PyTorch's NCHW .view(B, -1).
    def permute_rows(w_t):                     # torch (hidden, conv_out)
        m = w_t.T.reshape(64, oh, ow, hidden_size)
        return m.transpose(1, 2, 0, 3).reshape(conv_out, hidden_size)

    h1_w = jnp.concatenate([permute_rows(tp["a1_w"]), permute_rows(tp["v1_w"])],
                           axis=1).astype(jnp.bfloat16)            # (conv_out, 512)
    h1_b = jnp.concatenate([tp["a1_b"], tp["v1_b"]]).reshape(1, 2 * hidden_size)

    # Fused head layer 2: block-diagonal [a2 ; v2] into a lane-dense (512, 128)
    n_out_pad = ((n_actions + 1 + 127) // 128) * 128
    h2_w = jnp.zeros((2 * hidden_size, n_out_pad), jnp.float32)
    h2_w = h2_w.at[:hidden_size, :n_actions].set(tp["a2_w"].T)
    h2_w = h2_w.at[hidden_size:, n_actions:n_actions + 1].set(tp["v2_w"].T)
    h2_b = jnp.zeros((1, n_out_pad), jnp.float32)
    h2_b = h2_b.at[0, :n_actions].set(tp["a2_b"])
    h2_b = h2_b.at[0, n_actions].set(tp["v2_b"][0])

    params.update({"h1_w": h1_w, "h1_b": h1_b,
                   "h2_w": h2_w.astype(jnp.bfloat16), "h2_b": h2_b})
    return params


# ----------------------------------------------------------------------------
# Forward pass (mirrors PPO.forward)
# ----------------------------------------------------------------------------
def _ppo_forward(params, x, *, n_actions):
    # One NCHW -> NHWC transpose at the boundary; everything after stays NHWC.
    xh = jnp.transpose(x, (0, 2, 3, 1))
    h = conv2d_relu_nhwc(xh, params["c1_w"], params["c1_b"])
    h = conv2d_relu_nhwc(h, params["c2_w"], params["c2_b"])
    h = conv2d_relu_nhwc(h, params["c3_w"], params["c3_b"])
    n = x.shape[0]
    flat = h.reshape(n, -1)          # NHWC flatten; h1_w rows were pre-permuted

    out = fused_head(flat, params["h1_w"], params["h1_b"],
                     params["h2_w"], params["h2_b"])   # (N, 128): [logits|value|0]
    logits = out[:, :n_actions]
    value = out[:, n_actions:n_actions + 1]
    return logits, value


if __name__ == "__main__":
    input_shape = (4, 16, 16)   # (C, H, W)
    n_actions = 6
    batch = 2

    key = jax.random.PRNGKey(0)
    pkey, xkey = jax.random.split(key)
    torch_params = init_torch_params(pkey, input_shape, n_actions)
    params = prepare_params(torch_params, input_shape, n_actions)
    x = jax.random.normal(xkey, (batch,) + input_shape, jnp.float32)

    ppo_forward = jax.jit(functools.partial(_ppo_forward, n_actions=n_actions))
    logits, value = ppo_forward(params, x)
    jax.block_until_ready((logits, value))

    assert logits.shape == (batch, n_actions), logits.shape
    assert value.shape == (batch, 1), value.shape
    print("KERNEL_OK")
</pallas_src>

<mosaic_0001>
module attributes {stable_mosaic.version = 11 : i64} {
  func.func @_linear_kernel(%arg0: memref<392x128xf32, #tpu.memory_space<vmem>>, %arg1: memref<128x128xbf16, #tpu.memory_space<vmem>>, %arg2: memref<1x128xf32, #tpu.memory_space<vmem>>, %arg3: memref<392x128xbf16, #tpu.memory_space<vmem>>) attributes {dimension_semantics = [], scalar_prefetch = 0 : i64, scratch_operands = 0 : i64, tpu.core_type = #tpu.core_type<tc>} {
    %c0 = arith.constant 0 : index
    %c0_0 = arith.constant 0 : index
    %0 = vector.load %arg0[%c0, %c0_0] : memref<392x128xf32, #tpu.memory_space<vmem>>, vector<392x128xf32>
    %1 = arith.truncf %0 : vector<392x128xf32> to vector<392x128xbf16>
    %c0_1 = arith.constant 0 : index
    %c0_2 = arith.constant 0 : index
    %2 = vector.load %arg1[%c0_1, %c0_2] : memref<128x128xbf16, #tpu.memory_space<vmem>>, vector<128x128xbf16>
    %cst = arith.constant dense<0.000000e+00> : vector<392x128xf32>
    %3 = tpu.matmul %1, %2, %cst {dimension_numbers = #tpu.dot_dimension_numbers<[1], [0], [0], [1], [0, 0, 1, 1], [], []>} : vector<392x128xbf16>, vector<128x128xbf16>, vector<392x128xf32> -> vector<392x128xf32>
    %c0_3 = arith.constant 0 : index
    %c0_4 = arith.constant 0 : index
    %4 = vector.load %arg2[%c0_3, %c0_4] : memref<1x128xf32, #tpu.memory_space<vmem>>, vector<1x128xf32>
    %5 = vector.broadcast %4 : vector<1x128xf32> to vector<392x128xf32>
    %6 = arith.addf %3, %5 : vector<392x128xf32>
    %cst_5 = arith.constant 0.000000e+00 : f32
    %7 = vector.broadcast %cst_5 : f32 to vector<392x128xf32>
    %8 = arith.maximumf %6, %7 : vector<392x128xf32>
    %9 = arith.truncf %8 : vector<392x128xf32> to vector<392x128xbf16>
    %c0_6 = arith.constant 0 : index
    %c0_7 = arith.constant 0 : index
    %10 = vector.load %arg3[%c0_6, %c0_7] : memref<392x128xbf16, #tpu.memory_space<vmem>>, vector<392x128xbf16>
    tpu.vector_store %arg3[%c0_6, %c0_7], %9 {strides = array<i32>} : memref<392x128xbf16, #tpu.memory_space<vmem>>, vector<392x128xbf16>,
    return
  }
}

module attributes {stable_mosaic.version = 11 : i64} {
  func.func @_linear_kernel(%arg0: memref<288x1152xbf16, #tpu.memory_space<vmem>>, %arg1: memref<1152x128xbf16, #tpu.memory_space<vmem>>, %arg2: memref<1x128xf32, #tpu.memory_space<vmem>>, %arg3: memref<288x128xbf16, #tpu.memory_space<vmem>>) attributes {dimension_semantics = [], scalar_prefetch = 0 : i64, scratch_operands = 0 : i64, tpu.core_type = #tpu.core_type<tc>} {
    %c0 = arith.constant 0 : index
    %c0_0 = arith.constant 0 : index
    %0 = vector.load %arg0[%c0, %c0_0] : memref<288x1152xbf16, #tpu.memory_space<vmem>>, vector<288x1152xbf16>
    %c0_1 = arith.constant 0 : index
    %c0_2 = arith.constant 0 : index
    %1 = vector.load %arg1[%c0_1, %c0_2] : memref<1152x128xbf16, #tpu.memory_space<vmem>>, vector<1152x128xbf16>
    %cst = arith.constant dense<0.000000e+00> : vector<288x128xf32>
    %2 = tpu.matmul %0, %1, %cst {dimension_numbers = #tpu.dot_dimension_numbers<[1], [0], [0], [1], [0, 0, 1, 1], [], []>} : vector<288x1152xbf16>, vector<1152x128xbf16>, vector<288x128xf32> -> vector<288x128xf32>
    %c0_3 = arith.constant 0 : index
    %c0_4 = arith.constant 0 : index
    %3 = vector.load %arg2[%c0_3, %c0_4] : memref<1x128xf32, #tpu.memory_space<vmem>>, vector<1x128xf32>
    %4 = vector.broadcast %3 : vector<1x128xf32> to vector<288x128xf32>
    %5 = arith.addf %2, %4 : vector<288x128xf32>
    %cst_5 = arith.constant 0.000000e+00 : f32
    %6 = vector.broadcast %cst_5 : f32 to vector<288x128xf32>
    %7 = arith.maximumf %5, %6 : vector<288x128xf32>
    %8 = arith.truncf %7 : vector<288x128xf32> to vector<288x128xbf16>
    %c0_6 = arith.constant 0 : index
    %c0_7 = arith.constant 0 : index
    %9 = vector.load %arg3[%c0_6, %c0_7] : memref<288x128xbf16, #tpu.memory_space<vmem>>, vector<288x128xbf16>
    tpu.vector_store %arg3[%c0_6, %c0_7], %8 {strides = array<i32>} : memref<288x128xbf16, #tpu.memory_space<vmem>>, vector<288x128xbf16>,
    return
  }
}

module attributes {stable_mosaic.version = 11 : i64} {
  func.func @_linear_kernel(%arg0: memref<200x1152xbf16, #tpu.memory_space<vmem>>, %arg1: memref<1152x64xbf16, #tpu.memory_space<vmem>>, %arg2: memref<1x64xf32, #tpu.memory_space<vmem>>, %arg3: memref<200x64xbf16, #tpu.memory_space<vmem>>) attributes {dimension_semantics = [], scalar_prefetch = 0 : i64, scratch_operands = 0 : i64, tpu.core_type = #tpu.core_type<tc>} {
    %c0 = arith.constant 0 : index
    %c0_0 = arith.constant 0 : index
    %0 = vector.load %arg0[%c0, %c0_0] : memref<200x1152xbf16, #tpu.memory_space<vmem>>, vector<200x1152xbf16>
    %c0_1 = arith.constant 0 : index
    %c0_2 = arith.constant 0 : index
    %1 = vector.load %arg1[%c0_1, %c0_2] : memref<1152x64xbf16, #tpu.memory_space<vmem>>, vector<1152x64xbf16>
    %cst = arith.constant dense<0.000000e+00> : vector<200x64xf32>
    %2 = tpu.matmul %0, %1, %cst {dimension_numbers = #tpu.dot_dimension_numbers<[1], [0], [0], [1], [0, 0, 1, 1], [], []>} : vector<200x1152xbf16>, vector<1152x64xbf16>, vector<200x64xf32> -> vector<200x64xf32>
    %c0_3 = arith.constant 0 : index
    %c0_4 = arith.constant 0 : index
    %3 = vector.load %arg2[%c0_3, %c0_4] : memref<1x64xf32, #tpu.memory_space<vmem>>, vector<1x64xf32>
    %4 = vector.broadcast %3 : vector<1x64xf32> to vector<200x64xf32>
    %5 = arith.addf %2, %4 : vector<200x64xf32>
    %cst_5 = arith.constant 0.000000e+00 : f32
    %6 = vector.broadcast %cst_5 : f32 to vector<200x64xf32>
    %7 = arith.maximumf %5, %6 : vector<200x64xf32>
    %8 = arith.truncf %7 : vector<200x64xf32> to vector<200x64xbf16>
    %c0_6 = arith.constant 0 : index
    %c0_7 = arith.constant 0 : index
    %9 = vector.load %arg3[%c0_6, %c0_7] : memref<200x64xbf16, #tpu.memory_space<vmem>>, vector<200x64xbf16>
    tpu.vector_store %arg3[%c0_6, %c0_7], %8 {strides = array<i32>} : memref<200x64xbf16, #tpu.memory_space<vmem>>, vector<200x64xbf16>,
    return
  }
}

module attributes {stable_mosaic.version = 11 : i64} {
  func.func @_head_kernel(%arg0: i32, %arg1: memref<2x1280xbf16, #tpu.memory_space<vmem>>, %arg2: memref<1280x512xbf16, #tpu.memory_space<vmem>>, %arg3: memref<1x512xf32, #tpu.memory_space<vmem>>, %arg4: memref<512x128xbf16, #tpu.memory_space<vmem>>, %arg5: memref<1x128xf32, #tpu.memory_space<vmem>>, %arg6: memref<2x128xf32, #tpu.memory_space<vmem>>, %arg7: memref<2x512xf32, #tpu.memory_space<vmem>>) attributes {dimension_semantics = [#tpu.dimension_semantics<arbitrary>], iteration_bounds = array<i64: 5>, scalar_prefetch = 0 : i64, scratch_operands = 1 : i64, tpu.core_type = #tpu.core_type<tc>, window_params = [{transform_indices = @transform_0, window_bounds = array<i64: 2, 1280>}, {transform_indices = @transform_1, window_bounds = array<i64: 1280, 512>}, {pipeline_mode = #tpu.pipeline_mode<synchronous>, transform_indices = @transform_2, window_bounds = array<i64: 1, 512>}, {pipeline_mode = #tpu.pipeline_mode<synchronous>, transform_indices = @transform_3, window_bounds = array<i64: 512, 128>}, {pipeline_mode = #tpu.pipeline_mode<synchronous>, transform_indices = @transform_4, window_bounds = array<i64: 1, 128>}, {pipeline_mode = #tpu.pipeline_mode<synchronous>, transform_indices = @transform_5, window_bounds = array<i64: 2, 128>}]} {
    %c0_i32 = arith.constant 0 : i32
    %0 = arith.cmpi eq, %arg0, %c0_i32 : i32
    %1 = arith.extui %0 : i1 to i32
    %c0_i32_0 = arith.constant 0 : i32
    %2 = arith.cmpi ne, %1, %c0_i32_0 : i32
    scf.if %2 {
      %cst_9 = arith.constant 0.000000e+00 : f32
      %12 = vector.broadcast %cst_9 : f32 to vector<2x512xf32>
      %c0_10 = arith.constant 0 : index
      %c0_11 = arith.constant 0 : index
      %13 = vector.load %arg7[%c0_10, %c0_11] : memref<2x512xf32, #tpu.memory_space<vmem>>, vector<2x512xf32>
      tpu.vector_store %arg7[%c0_10, %c0_11], %12 {strides = array<i32>} : memref<2x512xf32, #tpu.memory_space<vmem>>, vector<2x512xf32>,
    } else {
    }
    %c0 = arith.constant 0 : index
    %c0_1 = arith.constant 0 : index
    %3 = vector.load %arg7[%c0, %c0_1] : memref<2x512xf32, #tpu.memory_space<vmem>>, vector<2x512xf32>
    %c0_2 = arith.constant 0 : index
    %c0_3 = arith.constant 0 : index
    %4 = vector.load %arg1[%c0_2, %c0_3] : memref<2x1280xbf16, #tpu.memory_space<vmem>>, vector<2x1280xbf16>
    %c0_4 = arith.constant 0 : index
    %c0_5 = arith.constant 0 : index
    %5 = vector.load %arg2[%c0_4, %c0_5] : memref<1280x512xbf16, #tpu.memory_space<vmem>>, vector<1280x512xbf16>
    %cst = arith.constant dense<0.000000e+00> : vector<2x512xf32>
    %6 = tpu.matmul %4, %5, %cst {dimension_numbers = #tpu.dot_dimension_numbers<[1], [0], [0], [1], [0, 0, 1, 1], [], []>} : vector<2x1280xbf16>, vector<1280x512xbf16>, vector<2x512xf32> -> vector<2x512xf32>
    %7 = arith.addf %3, %6 : vector<2x512xf32>
    %c0_6 = arith.constant 0 : index
    %c0_7 = arith.constant 0 : index
    %8 = vector.load %arg7[%c0_6, %c0_7] : memref<2x512xf32, #tpu.memory_space<vmem>>, vector<2x512xf32>
    tpu.vector_store %arg7[%c0_6, %c0_7], %7 {strides = array<i32>} : memref<2x512xf32, #tpu.memory_space<vmem>>, vector<2x512xf32>,
    %c4_i32 = arith.constant 4 : i32
    %9 = arith.cmpi eq, %arg0, %c4_i32 : i32
    %10 = arith.extui %9 : i1 to i32
    %c0_i32_8 = arith.constant 0 : i32
    %11 = arith.cmpi ne, %10, %c0_i32_8 : i32
    scf.if %11 {
      %c0_9 = arith.constant 0 : index
      %c0_10 = arith.constant 0 : index
      %12 = vector.load %arg7[%c0_9, %c0_10] : memref<2x512xf32, #tpu.memory_space<vmem>>, vector<2x512xf32>
      %c0_11 = arith.constant 0 : index
      %c0_12 = arith.constant 0 : index
      %13 = vector.load %arg3[%c0_11, %c0_12] : memref<1x512xf32, #tpu.memory_space<vmem>>, vector<1x512xf32>
      %14 = vector.broadcast %13 : vector<1x512xf32> to vector<2x512xf32>
      %15 = arith.addf %12, %14 : vector<2x512xf32>
      %cst_13 = arith.constant 0.000000e+00 : f32
      %16 = vector.broadcast %cst_13 : f32 to vector<2x512xf32>
      %17 = arith.maximumf %15, %16 : vector<2x512xf32>
      %18 = arith.truncf %17 : vector<2x512xf32> to vector<2x512xbf16>
      %c0_14 = arith.constant 0 : index
      %c0_15 = arith.constant 0 : index
      %19 = vector.load %arg4[%c0_14, %c0_15] : memref<512x128xbf16, #tpu.memory_space<vmem>>, vector<512x128xbf16>
      %cst_16 = arith.constant dense<0.000000e+00> : vector<2x128xf32>
      %20 = tpu.matmul %18, %19, %cst_16 {dimension_numbers = #tpu.dot_dimension_numbers<[1], [0], [0], [1], [0, 0, 1, 1], [], []>} : vector<2x512xbf16>, vector<512x128xbf16>, vector<2x128xf32> -> vector<2x128xf32>
      %c0_17 = arith.constant 0 : index
      %c0_18 = arith.constant 0 : index
      %21 = vector.load %arg5[%c0_17, %c0_18] : memref<1x128xf32, #tpu.memory_space<vmem>>, vector<1x128xf32>
      %22 = vector.broadcast %21 : vector<1x128xf32> to vector<2x128xf32>
      %23 = arith.addf %20, %22 : vector<2x128xf32>
      %c0_19 = arith.constant 0 : index
      %c0_20 = arith.constant 0 : index
      %24 = vector.load %arg6[%c0_19, %c0_20] : memref<2x128xf32, #tpu.memory_space<vmem>>, vector<2x128xf32>
      tpu.vector_store %arg6[%c0_19, %c0_20], %23 {strides = array<i32>} : memref<2x128xf32, #tpu.memory_space<vmem>>, vector<2x128xf32>,
    } else {
    }
    return
  }
  func.func @transform_0(%arg0: i32) -> (i32, i32) {
    %c0_i32 = arith.constant 0 : i32
    %c0_i32_0 = arith.constant 0 : i32
    return %c0_i32, %arg0 : i32, i32
  }
  func.func @transform_1(%arg0: i32) -> (i32, i32) {
    %c0_i32 = arith.constant 0 : i32
    %c0_i32_0 = arith.constant 0 : i32
    return %arg0, %c0_i32 : i32, i32
  }
  func.func @transform_2(%arg0: i32) -> (i32, i32) {
    %c0_i32 = arith.constant 0 : i32
    %c0_i32_0 = arith.constant 0 : i32
    %c0_i32_1 = arith.constant 0 : i32
    return %c0_i32, %c0_i32_0 : i32, i32
  }
  func.func @transform_3(%arg0: i32) -> (i32, i32) {
    %c0_i32 = arith.constant 0 : i32
    %c0_i32_0 = arith.constant 0 : i32
    %c0_i32_1 = arith.constant 0 : i32
    return %c0_i32, %c0_i32_0 : i32, i32
  }
  func.func @transform_4(%arg0: i32) -> (i32, i32) {
    %c0_i32 = arith.constant 0 : i32
    %c0_i32_0 = arith.constant 0 : i32
    %c0_i32_1 = arith.constant 0 : i32
    return %c0_i32, %c0_i32_0 : i32, i32
  }
  func.func @transform_5(%arg0: i32) -> (i32, i32) {
    %c0_i32 = arith.constant 0 : i32
    %c0_i32_0 = arith.constant 0 : i32
    %c0_i32_1 = arith.constant 0 : i32
    return %c0_i32, %c0_i32_0 : i32, i32
  }
}

</mosaic_0001>

<llo_original>
// kernel: _ppo_forward.4
$region0: #{_ppo_forward.4}
  #allocation0 [shape = 'u32[]', space=smem, size = 0x4, offset = 0x4, fixed_abs, tag = 'smem constant byte address 0x4 - core index']
  #allocation1 [shape = 'u32[144,128]{1,0:T(1,128)}', space=vmem, size = 0x12000, scoped, tag = 'internal scratch']
  %s0 = inlined_call_operand.vmem [shape: f32[392,128], index: 0, kind: input, shape index: {}]
  %s1 = inlined_call_operand.vmem [shape: bf16[128,128], index: 1, kind: input, shape index: {}]
  %s2 = inlined_call_operand.vmem [shape: f32[1,128], index: 2, kind: input, shape index: {}]
  %s3 = inlined_call_operand.vmem [shape: bf16[392,128], index: 3, kind: output, shape index: {}]
  %s4 = sld [smem:[#allocation0]]
  $region22: #{_ppo_forward.4} parent=0
    _
  %s6 = ssub.s32 1, %s4
  %s7 = scalar_select 0, %s6, %s4
  // Predicated region
  $region2: #{_ppo_forward.4} parent=0 // pred_check
    _
  $region3: #{_ppo_forward.4} parent=0 // pred_check_branch
    %9 = sbr.rel (0) target = $region5
  $region4: #{_ppo_forward.4} parent=0 // pred_region
    _
  $region5: #{_ppo_forward.4} parent=0 // pred_fallthru
    _
  // Predicated region
  $region6: #{_ppo_forward.4} parent=0 // pred_check
    _
  $region7: #{_ppo_forward.4} parent=0 // pred_check_branch
    %11 = sbr.rel (0) target = $region9
  $region8: #{_ppo_forward.4} parent=0 // pred_region
    _
  $region9: #{_ppo_forward.4} parent=0 // pred_fallthru
    _
  // Predicated region
  $region10: #{_ppo_forward.4} parent=0 // pred_check
    _
  $region11: #{_ppo_forward.4} parent=0 // pred_check_branch
    %13 = sbr.rel (0) target = $region13
  $region12: #{_ppo_forward.4} parent=0 // pred_region
    _
  $region13: #{_ppo_forward.4} parent=0 // pred_fallthru
    _
  %v15 = vld [vmem:[%s0] sm:$0xff]
  %v16 = vld [vmem:[%s0 + $0x8] sm:$0xff]
  %v17 = vld [vmem:[%s0 + $0x10] sm:$0xff]
  %v18 = vld [vmem:[%s0 + $0x18] sm:$0xff]
  %v19 = vld [vmem:[%s0 + $0x20] sm:$0xff]
  %v20 = vld [vmem:[%s0 + $0x28] sm:$0xff]
  %v21 = vld [vmem:[%s0 + $0x30] sm:$0xff]
  %v22 = vld [vmem:[%s0 + $0x38] sm:$0xff]
  %v23 = vld [vmem:[%s0 + $0x40] sm:$0xff]
  %v24 = vld [vmem:[%s0 + $0x48] sm:$0xff]
  %v25 = vld [vmem:[%s0 + $0x50] sm:$0xff]
  %v26 = vld [vmem:[%s0 + $0x58] sm:$0xff]
  %v27 = vld [vmem:[%s0 + $0x60] sm:$0xff]
  %v28 = vld [vmem:[%s0 + $0x68] sm:$0xff]
  %v29 = vld [vmem:[%s0 + $0x70] sm:$0xff]
  %v30 = vld [vmem:[%s0 + $0x78] sm:$0xff]
  %v31 = vld [vmem:[%s0 + $0x80] sm:$0xff]
  %v32 = vld [vmem:[%s0 + $0x88] sm:$0xff]
  %v33 = vld [vmem:[%s0 + $0x90] sm:$0xff]
  %v34 = vld [vmem:[%s0 + $0x98] sm:$0xff]
  %v35 = vld [vmem:[%s0 + $0xa0] sm:$0xff]
  %v36 = vld [vmem:[%s0 + $0xa8] sm:$0xff]
  %v37 = vld [vmem:[%s0 + $0xb0] sm:$0xff]
  %v38 = vld [vmem:[%s0 + $0xb8] sm:$0xff]
  %v39 = vld [vmem:[%s0 + $0xc0] sm:$0xff]
  %v40 = vld [vmem:[%s0 + $0xc8] sm:$0xff]
  %v41 = vld [vmem:[%s0 + $0xd0] sm:$0xff]
  %v42 = vld [vmem:[%s0 + $0xd8] sm:$0xff]
  %v43 = vld [vmem:[%s0 + $0xe0] sm:$0xff]
  %v44 = vld [vmem:[%s0 + $0xe8] sm:$0xff]
  %v45 = vld [vmem:[%s0 + $0xf0] sm:$0xff]
  %v46 = vld [vmem:[%s0 + $0xf8] sm:$0xff]
  %v47 = vld [vmem:[%s0 + $0x100] sm:$0xff]
  %v48 = vld [vmem:[%s0 + $0x108] sm:$0xff]
  %v49 = vld [vmem:[%s0 + $0x110] sm:$0xff]
  %v50 = vld [vmem:[%s0 + $0x118] sm:$0xff]
  %v51 = vld [vmem:[%s0 + $0x120] sm:$0xff]
  %v52 = vld [vmem:[%s0 + $0x128] sm:$0xff]
  %v53 = vld [vmem:[%s0 + $0x130] sm:$0xff]
  %v54 = vld [vmem:[%s0 + $0x138] sm:$0xff]
  %v55 = vld [vmem:[%s0 + $0x140] sm:$0xff]
  %v56 = vld [vmem:[%s0 + $0x148] sm:$0xff]
  %v57 = vld [vmem:[%s0 + $0x150] sm:$0xff]
  %v58 = vld [vmem:[%s0 + $0x158] sm:$0xff]
  %v59 = vld [vmem:[%s0 + $0x160] sm:$0xff]
  %v60 = vld [vmem:[%s0 + $0x168] sm:$0xff]
  %v61 = vld [vmem:[%s0 + $0x170] sm:$0xff]
  %v62 = vld [vmem:[%s0 + $0x178] sm:$0xff]
  %v63 = vld [vmem:[%s0 + $0x180] sm:$0xff]
  %v64 = vpack.c.bf16 %v16, %v15
  %v65 = vpack.c.bf16 %v18, %v17
  %v66 = vpack.c.bf16 %v20, %v19
  %v67 = vpack.c.bf16 %v22, %v21
  %v68 = vpack.c.bf16 %v24, %v23
  %v69 = vpack.c.bf16 %v26, %v25
  %v70 = vpack.c.bf16 %v28, %v27
  %v71 = vpack.c.bf16 %v30, %v29
  %v72 = vpack.c.bf16 %v32, %v31
  %v73 = vpack.c.bf16 %v34, %v33
  %v74 = vpack.c.bf16 %v36, %v35
  %v75 = vpack.c.bf16 %v38, %v37
  %v76 = vpack.c.bf16 %v40, %v39
  %v77 = vpack.c.bf16 %v42, %v41
  %v78 = vpack.c.bf16 %v44, %v43
  %v79 = vpack.c.bf16 %v46, %v45
  %v80 = vpack.c.bf16 %v48, %v47
  %v81 = vpack.c.bf16 %v50, %v49
  %v82 = vpack.c.bf16 %v52, %v51
  %v83 = vpack.c.bf16 %v54, %v53
  %v84 = vpack.c.bf16 %v56, %v55
  %v85 = vpack.c.bf16 %v58, %v57
  %v86 = vpack.c.bf16 %v60, %v59
  %v87 = vpack.c.bf16 %v62, %v61
  %v88 = vpack.c.bf16 %v63, %v63
  %v89 = vld [vmem:[%s1] sm:$0xf]
  %v90 = vld [vmem:[%s1 + $0x4] sm:$0xf]
  %v91 = vld [vmem:[%s1 + $0x8] sm:$0xf]
  %v92 = vld [vmem:[%s1 + $0xc] sm:$0xf]
  %v93 = vld [vmem:[%s1 + $0x10] sm:$0xf]
  %v94 = vld [vmem:[%s1 + $0x14] sm:$0xf]
  %v95 = vld [vmem:[%s1 + $0x18] sm:$0xf]
  %v96 = vld [vmem:[%s1 + $0x1c] sm:$0xf]
  %v97 = vld [vmem:[%s1 + $0x20] sm:$0xf]
  %v98 = vld [vmem:[%s1 + $0x24] sm:$0xf]
  %v99 = vld [vmem:[%s1 + $0x28] sm:$0xf]
  %v100 = vld [vmem:[%s1 + $0x2c] sm:$0xf]
  %v101 = vld [vmem:[%s1 + $0x30] sm:$0xf]
  %v102 = vld [vmem:[%s1 + $0x34] sm:$0xf]
  %v103 = vld [vmem:[%s1 + $0x38] sm:$0xf]
  %v104 = vld [vmem:[%s1 + $0x3c] sm:$0xf]
  %v105 = vld [vmem:[%s2] sm:$0x1]
  %v107 = vlaneseq
  %v108 = vshrl.u32 %v107, 7
  %v109 = vsub.s32 0, %v108
  %v110 = vrot.slane %v105, %v109
  %v128 = vunpack.c.l.b16 %v89
  %v129 = vunpack.c.l.b16 %v90
  %v130 = vunpack.c.l.b16 %v91
  %v131 = vunpack.c.l.b16 %v92
  %v132 = vunpack.c.l.b16 %v93
  %v133 = vunpack.c.l.b16 %v94
  %v134 = vunpack.c.l.b16 %v95
  %v135 = vunpack.c.l.b16 %v96
  %v136 = vunpack.c.l.b16 %v97
  %v137 = vunpack.c.l.b16 %v98
  %v138 = vunpack.c.l.b16 %v99
  %v139 = vunpack.c.l.b16 %v100
  %v140 = vunpack.c.l.b16 %v101
  %v141 = vunpack.c.l.b16 %v102
  %v142 = vunpack.c.l.b16 %v103
  %v143 = vunpack.c.l.b16 %v104
  %v144 = vpack.c.b16 %v129, %v128
  %v145 = vpack.c.b16 %v131, %v130
  %v146 = vpack.c.b16 %v133, %v132
  %v147 = vpack.c.b16 %v135, %v134
  %v148 = vpack.c.b16 %v137, %v136
  %v149 = vpack.c.b16 %v139, %v138
  %v150 = vpack.c.b16 %v141, %v140
  %v151 = vpack.c.b16 %v143, %v142
  %160 = vmatprep.subr.bf16.mxu0 0
  %161 = vmatpush1.bf16.msra.mxu0 %v151
  %162 = vmatprep.subr.bf16.mxu0 0
  %163 = vmatpush1.bf16.msra.mxu0 %v150
  %164 = vmatprep.subr.bf16.mxu0 0
  %165 = vmatpush1.bf16.msra.mxu0 %v149
  %166 = vmatprep.subr.bf16.mxu0 0
  %167 = vmatpush1.bf16.msra.mxu0 %v148
  %168 = vmatprep.subr.bf16.mxu0 0
  %169 = vmatpush1.bf16.msra.mxu0 %v147
  %170 = vmatprep.subr.bf16.mxu0 0
  %171 = vmatpush1.bf16.msra.mxu0 %v146
  %172 = vmatprep.subr.bf16.mxu0 0
  %173 = vmatpush1.bf16.msra.mxu0 %v145
  %174 = vmatprep.subr.bf16.mxu0 0
  %175 = vmatpush1.bf16.msra.mxu0 %v144
  %176 = vmatprep.subr.bf16.mxu0 0
  %177 = vmatpush2.bf16.msra.mxu0 0
  %178 = vmatprep.subr.bf16.mxu0 0
  %179 = vmatpush2.bf16.msra.mxu0 0
  %180 = vmatprep.subr.bf16.mxu0 0
  %181 = vmatpush2.bf16.msra.mxu0 0
  %182 = vmatprep.subr.bf16.mxu0 0
  %183 = vmatpush2.bf16.msra.mxu0 0
  %184 = vmatprep.subr.bf16.mxu0 0
  %185 = vmatpush2.bf16.msra.mxu0 0
  %186 = vmatprep.subr.bf16.mxu0 0
  %187 = vmatpush2.bf16.msra.mxu0 0
  %188 = vmatprep.subr.bf16.mxu0 0
  %189 = vmatpush2.bf16.msra.mxu0 0
  %190 = vmatprep.subr.bf16.mxu0 0
  %191 = vmatpush2.bf16.msra.mxu0 0
  %192 = vmatprep.mubr.bf16.mxu0 0
  %193 = vmatmul.mubr.bf16.gmra.mxu0 %v64
  %v194 = vpop.f32.mrf.mxu0
  %v195 = vadd.f32 %v110, %v194
  %v196 = vpop.f32.mrf.mxu0
  %v197 = vpop.f32.mrf.mxu0
  %v198 = vadd.f32 %v110, %v197
  %v199 = vpop.f32.mrf.mxu0
  %200 = vmatprep.mubr.bf16.mxu0 0
  %201 = vmatmul.mubr.bf16.gmra.mxu0 %v65
  %v202 = vpop.f32.mrf.mxu0
  %v203 = vadd.f32 %v110, %v202
  %v204 = vpop.f32.mrf.mxu0
  %v205 = vpop.f32.mrf.mxu0
  %v206 = vadd.f32 %v110, %v205
  %v207 = vpop.f32.mrf.mxu0
  %208 = vmatprep.mubr.bf16.mxu0 0
  %209 = vmatmul.mubr.bf16.gmra.mxu0 %v66
  %v210 = vpop.f32.mrf.mxu0
  %v211 = vadd.f32 %v110, %v210
  %v212 = vpop.f32.mrf.mxu0
  %v213 = vpop.f32.mrf.mxu0
  %v214 = vadd.f32 %v110, %v213
  %v215 = vpop.f32.mrf.mxu0
  %216 = vmatprep.mubr.bf16.mxu0 0
  %217 = vmatmul.mubr.bf16.gmra.mxu0 %v67
  %v218 = vpop.f32.mrf.mxu0
  %v219 = vadd.f32 %v110, %v218
  %v220 = vpop.f32.mrf.mxu0
  %v221 = vpop.f32.mrf.mxu0
  %v222 = vadd.f32 %v110, %v221
  %v223 = vpop.f32.mrf.mxu0
  %224 = vmatprep.mubr.bf16.mxu0 0
  %225 = vmatmul.mubr.bf16.gmra.mxu0 %v68
  %v226 = vpop.f32.mrf.mxu0
  %v227 = vadd.f32 %v110, %v226
  %v228 = vpop.f32.mrf.mxu0
  %v229 = vpop.f32.mrf.mxu0
  %v230 = vadd.f32 %v110, %v229
  %v231 = vpop.f32.mrf.mxu0
  %232 = vmatprep.mubr.bf16.mxu0 0
  %233 = vmatmul.mubr.bf16.gmra.mxu0 %v69
  %v234 = vpop.f32.mrf.mxu0
  %v235 = vadd.f32 %v110, %v234
  %v236 = vpop.f32.mrf.mxu0
  %v237 = vpop.f32.mrf.mxu0
  %v238 = vadd.f32 %v110, %v237
  %v239 = vpop.f32.mrf.mxu0
  %240 = vmatprep.mubr.bf16.mxu0 0
  %241 = vmatmul.mubr.bf16.gmra.mxu0 %v70
  %v242 = vpop.f32.mrf.mxu0
  %v243 = vadd.f32 %v110, %v242
  %v244 = vpop.f32.mrf.mxu0
  %v245 = vpop.f32.mrf.mxu0
  %v246 = vadd.f32 %v110, %v245
  %v247 = vpop.f32.mrf.mxu0
  %248 = vmatprep.mubr.bf16.mxu0 0
  %249 = vmatmul.mubr.bf16.gmra.mxu0 %v71
  %v250 = vpop.f32.mrf.mxu0
  %v251 = vadd.f32 %v110, %v250
  %v252 = vpop.f32.mrf.mxu0
  %v253 = vpop.f32.mrf.mxu0
  %v254 = vadd.f32 %v110, %v253
  %v255 = vpop.f32.mrf.mxu0
  %256 = vmatprep.mubr.bf16.mxu0 0
  %257 = vmatmul.mubr.bf16.gmra.mxu0 %v72
  %v258 = vpop.f32.mrf.mxu0
  %v259 = vadd.f32 %v110, %v258
  %v260 = vpop.f32.mrf.mxu0
  %v261 = vpop.f32.mrf.mxu0
  %v262 = vadd.f32 %v110, %v261
  %v263 = vpop.f32.mrf.mxu0
  %264 = vmatprep.mubr.bf16.mxu0 0
  %265 = vmatmul.mubr.bf16.gmra.mxu0 %v73
  %v266 = vpop.f32.mrf.mxu0
  %v267 = vadd.f32 %v110, %v266
  %v268 = vpop.f32.mrf.mxu0
  %v269 = vpop.f32.mrf.mxu0
  %v270 = vadd.f32 %v110, %v269
  %v271 = vpop.f32.mrf.mxu0
  %272 = vmatprep.mubr.bf16.mxu0 0
  %273 = vmatmul.mubr.bf16.gmra.mxu0 %v74
  %v274 = vpop.f32.mrf.mxu0
  %v275 = vadd.f32 %v110, %v274
  %v276 = vpop.f32.mrf.mxu0
  %v277 = vpop.f32.mrf.mxu0
  %v278 = vadd.f32 %v110, %v277
  %v279 = vpop.f32.mrf.mxu0
  %280 = vmatprep.mubr.bf16.mxu0 0
  %281 = vmatmul.mubr.bf16.gmra.mxu0 %v75
  %v282 = vpop.f32.mrf.mxu0
  %v283 = vadd.f32 %v110, %v282
  %v284 = vpop.f32.mrf.mxu0
  %v285 = vpop.f32.mrf.mxu0
  %v286 = vadd.f32 %v110, %v285
  %v287 = vpop.f32.mrf.mxu0
  %288 = vmatprep.mubr.bf16.mxu0 0
  %289 = vmatmul.mubr.bf16.gmra.mxu0 %v76
  %v290 = vpop.f32.mrf.mxu0
  %v291 = vadd.f32 %v110, %v290
  %v292 = vpop.f32.mrf.mxu0
  %v293 = vpop.f32.mrf.mxu0
  %v294 = vadd.f32 %v110, %v293
  %v295 = vpop.f32.mrf.mxu0
  %296 = vmatprep.mubr.bf16.mxu0 0
  %297 = vmatmul.mubr.bf16.gmra.mxu0 %v77
  %v298 = vpop.f32.mrf.mxu0
  %v299 = vadd.f32 %v110, %v298
  %v300 = vpop.f32.mrf.mxu0
  %v301 = vpop.f32.mrf.mxu0
  %v302 = vadd.f32 %v110, %v301
  %v303 = vpop.f32.mrf.mxu0
  %304 = vmatprep.mubr.bf16.mxu0 0
  %305 = vmatmul.mubr.bf16.gmra.mxu0 %v78
  %v306 = vpop.f32.mrf.mxu0
  %v307 = vadd.f32 %v110, %v306
  %v308 = vpop.f32.mrf.mxu0
  %v309 = vpop.f32.mrf.mxu0
  %v310 = vadd.f32 %v110, %v309
  %v311 = vpop.f32.mrf.mxu0
  %312 = vmatprep.mubr.bf16.mxu0 0
  %313 = vmatmul.mubr.bf16.gmra.mxu0 %v79
  %v314 = vpop.f32.mrf.mxu0
  %v315 = vadd.f32 %v110, %v314
  %v316 = vpop.f32.mrf.mxu0
  %v317 = vpop.f32.mrf.mxu0
  %v318 = vadd.f32 %v110, %v317
  %v319 = vpop.f32.mrf.mxu0
  %320 = vmatprep.mubr.bf16.mxu0 0
  %321 = vmatmul.mubr.bf16.gmra.mxu0 %v80
  %v322 = vpop.f32.mrf.mxu0
  %v323 = vadd.f32 %v110, %v322
  %v324 = vpop.f32.mrf.mxu0
  %v325 = vpop.f32.mrf.mxu0
  %v326 = vadd.f32 %v110, %v325
  %v327 = vpop.f32.mrf.mxu0
  %328 = vmatprep.mubr.bf16.mxu0 0
  %329 = vmatmul.mubr.bf16.gmra.mxu0 %v81
  %v330 = vpop.f32.mrf.mxu0
  %v331 = vadd.f32 %v110, %v330
  %v332 = vpop.f32.mrf.mxu0
  %v333 = vpop.f32.mrf.mxu0
  %v334 = vadd.f32 %v110, %v333
  %v335 = vpop.f32.mrf.mxu0
  %336 = vmatprep.mubr.bf16.mxu0 0
  %337 = vmatmul.mubr.bf16.gmra.mxu0 %v82
  %v338 = vpop.f32.mrf.mxu0
  %v339 = vadd.f32 %v110, %v338
  %v340 = vpop.f32.mrf.mxu0
  %v341 = vpop.f32.mrf.mxu0
  %v342 = vadd.f32 %v110, %v341
  %v343 = vpop.f32.mrf.mxu0
  %344 = vmatprep.mubr.bf16.mxu0 0
  %345 = vmatmul.mubr.bf16.gmra.mxu0 %v83
  %v346 = vpop.f32.mrf.mxu0
  %v347 = vadd.f32 %v110, %v346
  %v348 = vpop.f32.mrf.mxu0
  %v349 = vpop.f32.mrf.mxu0
  %v350 = vadd.f32 %v110, %v349
  %v351 = vpop.f32.mrf.mxu0
  %352 = vmatprep.mubr.bf16.mxu0 0
  %353 = vmatmul.mubr.bf16.gmra.mxu0 %v84
  %v354 = vpop.f32.mrf.mxu0
  %v355 = vadd.f32 %v110, %v354
  %v356 = vpop.f32.mrf.mxu0
  %v357 = vpop.f32.mrf.mxu0
  %v358 = vadd.f32 %v110, %v357
  %v359 = vpop.f32.mrf.mxu0
  %360 = vmatprep.mubr.bf16.mxu0 0
  %361 = vmatmul.mubr.bf16.gmra.mxu0 %v85
  %v362 = vpop.f32.mrf.mxu0
  %v363 = vadd.f32 %v110, %v362
  %v364 = vpop.f32.mrf.mxu0
  %v365 = vpop.f32.mrf.mxu0
  %v366 = vadd.f32 %v110, %v365
  %v367 = vpop.f32.mrf.mxu0
  %368 = vmatprep.mubr.bf16.mxu0 0
  %369 = vmatmul.mubr.bf16.gmra.mxu0 %v86
  %v370 = vpop.f32.mrf.mxu0
  %v371 = vadd.f32 %v110, %v370
  %v372 = vpop.f32.mrf.mxu0
  %v373 = vpop.f32.mrf.mxu0
  %v374 = vadd.f32 %v110, %v373
  %v375 = vpop.f32.mrf.mxu0
  %376 = vmatprep.mubr.bf16.mxu0 0
  %377 = vmatmul.mubr.bf16.gmra.mxu0 %v87
  %v378 = vpop.f32.mrf.mxu0
  %v379 = vadd.f32 %v110, %v378
  %v380 = vpop.f32.mrf.mxu0
  %v381 = vpop.f32.mrf.mxu0
  %v382 = vadd.f32 %v110, %v381
  %v383 = vpop.f32.mrf.mxu0
  %384 = vmatprep.mubr.bf16.mxu0 0
  %385 = vmatmul.mubr.bf16.gmra.mxu0 %v88
  %v386 = vpop.f32.mrf.mxu0
  %v387 = vadd.f32 %v110, %v386
  %v388 = vpop.f32.mrf.mxu0
  %v389 = vpop.f32.mrf.mxu0
  %v390 = vpop.f32.mrf.mxu0
  %391 = vdwg.mxu0
  %v392 = vmax.f32 %v195, 0.0
  %v393 = vmax.f32 %v198, 0.0
  %v394 = vmax.f32 %v203, 0.0
  %v395 = vmax.f32 %v206, 0.0
  %v396 = vmax.f32 %v211, 0.0
  %v397 = vmax.f32 %v214, 0.0
  %v398 = vmax.f32 %v219, 0.0
  %v399 = vmax.f32 %v222, 0.0
  %v400 = vmax.f32 %v227, 0.0
  %v401 = vmax.f32 %v230, 0.0
  %v402 = vmax.f32 %v235, 0.0
  %v403 = vmax.f32 %v238, 0.0
  %v404 = vmax.f32 %v243, 0.0
  %v405 = vmax.f32 %v246, 0.0
  %v406 = vmax.f32 %v251, 0.0
  %v407 = vmax.f32 %v254, 0.0
  %v408 = vmax.f32 %v259, 0.0
  %v409 = vmax.f32 %v262, 0.0
  %v410 = vmax.f32 %v267, 0.0
  %v411 = vmax.f32 %v270, 0.0
  %v412 = vmax.f32 %v275, 0.0
  %v413 = vmax.f32 %v278, 0.0
  %v414 = vmax.f32 %v283, 0.0
  %v415 = vmax.f32 %v286, 0.0
  %v416 = vmax.f32 %v291, 0.0
  %v417 = vmax.f32 %v294, 0.0
  %v418 = vmax.f32 %v299, 0.0
  %v419 = vmax.f32 %v302, 0.0
  %v420 = vmax.f32 %v307, 0.0
  %v421 = vmax.f32 %v310, 0.0
  %v422 = vmax.f32 %v315, 0.0
  %v423 = vmax.f32 %v318, 0.0
  %v424 = vmax.f32 %v323, 0.0
  %v425 = vmax.f32 %v326, 0.0
  %v426 = vmax.f32 %v331, 0.0
  %v427 = vmax.f32 %v334, 0.0
  %v428 = vmax.f32 %v339, 0.0
  %v429 = vmax.f32 %v342, 0.0
  %v430 = vmax.f32 %v347, 0.0
  %v431 = vmax.f32 %v350, 0.0
  %v432 = vmax.f32 %v355, 0.0
  %v433 = vmax.f32 %v358, 0.0
  %v434 = vmax.f32 %v363, 0.0
  %v435 = vmax.f32 %v366, 0.0
  %v436 = vmax.f32 %v371, 0.0
  %v437 = vmax.f32 %v374, 0.0
  %v438 = vmax.f32 %v379, 0.0
  %v439 = vmax.f32 %v382, 0.0
  %v440 = vmax.f32 %v387, 0.0
  %v441 = vpack.c.bf16 %v393, %v392
  %v442 = vpack.c.bf16 %v395, %v394
  %v443 = vpack.c.bf16 %v397, %v396
  %v444 = vpack.c.bf16 %v399, %v398
  %v445 = vpack.c.bf16 %v401, %v400
  %v446 = vpack.c.bf16 %v403, %v402
  %v447 = vpack.c.bf16 %v405, %v404
  %v448 = vpack.c.bf16 %v407, %v406
  %v449 = vpack.c.bf16 %v409, %v408
  %v450 = vpack.c.bf16 %v411, %v410
  %v451 = vpack.c.bf16 %v413, %v412
  %v452 = vpack.c.bf16 %v415, %v414
  %v453 = vpack.c.bf16 %v417, %v416
  %v454 = vpack.c.bf16 %v419, %v418
  %v455 = vpack.c.bf16 %v421, %v420
  %v456 = vpack.c.bf16 %v423, %v422
  %v457 = vpack.c.bf16 %v425, %v424
  %v458 = vpack.c.bf16 %v427, %v426
  %v459 = vpack.c.bf16 %v429, %v428
  %v460 = vpack.c.bf16 %v431, %v430
  %v461 = vpack.c.bf16 %v433, %v432
  %v462 = vpack.c.bf16 %v435, %v434
  %v463 = vpack.c.bf16 %v437, %v436
  %v464 = vpack.c.bf16 %v439, %v438
  %v465 = vpack.c.bf16 %v440, %v440
  %v491 = vunpack.c.l.b16 %v441
  %v492 = vunpack.c.h.b16 %v441
  %v493 = vunpack.c.l.b16 %v442
  %v494 = vunpack.c.h.b16 %v442
  %v495 = vunpack.c.l.b16 %v443
  %v496 = vunpack.c.h.b16 %v443
  %v497 = vunpack.c.l.b16 %v444
  %v498 = vunpack.c.h.b16 %v444
  %v499 = vunpack.c.l.b16 %v445
  %v500 = vunpack.c.h.b16 %v445
  %v501 = vunpack.c.l.b16 %v446
  %v502 = vunpack.c.h.b16 %v446
  %v503 = vunpack.c.l.b16 %v447
  %v504 = vunpack.c.h.b16 %v447
  %v505 = vunpack.c.l.b16 %v448
  %v506 = vunpack.c.h.b16 %v448
  %v507 = vunpack.c.l.b16 %v449
  %v508 = vunpack.c.h.b16 %v449
  %v509 = vunpack.c.l.b16 %v450
  %v510 = vunpack.c.h.b16 %v450
  %v511 = vunpack.c.l.b16 %v451
  %v512 = vunpack.c.h.b16 %v451
  %v513 = vunpack.c.l.b16 %v452
  %v514 = vunpack.c.h.b16 %v452
  %v515 = vunpack.c.l.b16 %v453
  %v516 = vunpack.c.h.b16 %v453
  %v517 = vunpack.c.l.b16 %v454
  %v518 = vunpack.c.h.b16 %v454
  %v519 = vunpack.c.l.b16 %v455
  %v520 = vunpack.c.h.b16 %v455
  %v521 = vunpack.c.l.b16 %v456
  %v522 = vunpack.c.h.b16 %v456
  %v523 = vunpack.c.l.b16 %v457
  %v524 = vunpack.c.h.b16 %v457
  %v525 = vunpack.c.l.b16 %v458
  %v526 = vunpack.c.h.b16 %v458
  %v527 = vunpack.c.l.b16 %v459
  %v528 = vunpack.c.h.b16 %v459
  %v529 = vunpack.c.l.b16 %v460
  %v530 = vunpack.c.h.b16 %v460
  %v531 = vunpack.c.l.b16 %v461
  %v532 = vunpack.c.h.b16 %v461
  %v533 = vunpack.c.l.b16 %v462
  %v534 = vunpack.c.h.b16 %v462
  %v535 = vunpack.c.l.b16 %v463
  %v536 = vunpack.c.h.b16 %v463
  %v537 = vunpack.c.l.b16 %v464
  %v538 = vunpack.c.h.b16 %v464
  %v539 = vunpack.c.l.b16 %v465
  %v540 = vpack.c.b16 %v491, %v491
  %v541 = vpack.c.b16 %v492, %v492
  %v542 = vpack.c.b16 %v493, %v493
  %v543 = vpack.c.b16 %v494, %v494
  %v544 = vpack.c.b16 %v495, %v495
  %v545 = vpack.c.b16 %v496, %v496
  %v546 = vpack.c.b16 %v497, %v497
  %v547 = vpack.c.b16 %v498, %v498
  %v548 = vpack.c.b16 %v499, %v499
  %v549 = vpack.c.b16 %v500, %v500
  %v550 = vpack.c.b16 %v501, %v501
  %v551 = vpack.c.b16 %v502, %v502
  %v552 = vpack.c.b16 %v503, %v503
  %v553 = vpack.c.b16 %v504, %v504
  %v554 = vpack.c.b16 %v505, %v505
  %v555 = vpack.c.b16 %v506, %v506
  %v556 = vpack.c.b16 %v507, %v507
  %v557 = vpack.c.b16 %v508, %v508
  %v558 = vpack.c.b16 %v509, %v509
  %v559 = vpack.c.b16 %v510, %v510
  %v560 = vpack.c.b16 %v511, %v511
  %v561 = vpack.c.b16 %v512, %v512
  %v562 = vpack.c.b16 %v513, %v513
  %v563 = vpack.c.b16 %v514, %v514
  %v564 = vpack.c.b16 %v515, %v515
  %v565 = vpack.c.b16 %v516, %v516
  %v566 = vpack.c.b16 %v517, %v517
  %v567 = vpack.c.b16 %v518, %v518
  %v568 = vpack.c.b16 %v519, %v519
  %v569 = vpack.c.b16 %v520, %v520
  %v570 = vpack.c.b16 %v521, %v521
  %v571 = vpack.c.b16 %v522, %v522
  %v572 = vpack.c.b16 %v523, %v523
  %v573 = vpack.c.b16 %v524, %v524
  %v574 = vpack.c.b16 %v525, %v525
  %v575 = vpack.c.b16 %v526, %v526
  %v576 = vpack.c.b16 %v527, %v527
  %v577 = vpack.c.b16 %v528, %v528
  %v578 = vpack.c.b16 %v529, %v529
  %v579 = vpack.c.b16 %v530, %v530
  %v580 = vpack.c.b16 %v531, %v531
  %v581 = vpack.c.b16 %v532, %v532
  %v582 = vpack.c.b16 %v533, %v533
  %v583 = vpack.c.b16 %v534, %v534
  %v584 = vpack.c.b16 %v535, %v535
  %v585 = vpack.c.b16 %v536, %v536
  %v586 = vpack.c.b16 %v537, %v537
  %v587 = vpack.c.b16 %v538, %v538
  %v588 = vpack.c.b16 %v539, %v539
  %638 = vst [vmem:[%s3] sm:$0xf] %v540
  %639 = vst [vmem:[%s3 + $0x4] sm:$0xf] %v541
  %640 = vst [vmem:[%s3 + $0x8] sm:$0xf] %v542
  %641 = vst [vmem:[%s3 + $0xc] sm:$0xf] %v543
  %642 = vst [vmem:[%s3 + $0x10] sm:$0xf] %v544
  %643 = vst [vmem:[%s3 + $0x14] sm:$0xf] %v545
  %644 = vst [vmem:[%s3 + $0x18] sm:$0xf] %v546
  %645 = vst [vmem:[%s3 + $0x1c] sm:$0xf] %v547
  %646 = vst [vmem:[%s3 + $0x20] sm:$0xf] %v548
  %647 = vst [vmem:[%s3 + $0x24] sm:$0xf] %v549
  %648 = vst [vmem:[%s3 + $0x28] sm:$0xf] %v550
  %649 = vst [vmem:[%s3 + $0x2c] sm:$0xf] %v551
  %650 = vst [vmem:[%s3 + $0x30] sm:$0xf] %v552
  %651 = vst [vmem:[%s3 + $0x34] sm:$0xf] %v553
  %652 = vst [vmem:[%s3 + $0x38] sm:$0xf] %v554
  %653 = vst [vmem:[%s3 + $0x3c] sm:$0xf] %v555
  %654 = vst [vmem:[%s3 + $0x40] sm:$0xf] %v556
  %655 = vst [vmem:[%s3 + $0x44] sm:$0xf] %v557
  %656 = vst [vmem:[%s3 + $0x48] sm:$0xf] %v558
  %657 = vst [vmem:[%s3 + $0x4c] sm:$0xf] %v559
  %658 = vst [vmem:[%s3 + $0x50] sm:$0xf] %v560
  %659 = vst [vmem:[%s3 + $0x54] sm:$0xf] %v561
  %660 = vst [vmem:[%s3 + $0x58] sm:$0xf] %v562
  %661 = vst [vmem:[%s3 + $0x5c] sm:$0xf] %v563
  %662 = vst [vmem:[%s3 + $0x60] sm:$0xf] %v564
  %663 = vst [vmem:[%s3 + $0x64] sm:$0xf] %v565
  %664 = vst [vmem:[%s3 + $0x68] sm:$0xf] %v566
  %665 = vst [vmem:[%s3 + $0x6c] sm:$0xf] %v567
  %666 = vst [vmem:[%s3 + $0x70] sm:$0xf] %v568
  %667 = vst [vmem:[%s3 + $0x74] sm:$0xf] %v569
  %668 = vst [vmem:[%s3 + $0x78] sm:$0xf] %v570
  %669 = vst [vmem:[%s3 + $0x7c] sm:$0xf] %v571
  %670 = vst [vmem:[%s3 + $0x80] sm:$0xf] %v572
  %671 = vst [vmem:[%s3 + $0x84] sm:$0xf] %v573
  %672 = vst [vmem:[%s3 + $0x88] sm:$0xf] %v574
  %673 = vst [vmem:[%s3 + $0x8c] sm:$0xf] %v575
  %674 = vst [vmem:[%s3 + $0x90] sm:$0xf] %v576
  %675 = vst [vmem:[%s3 + $0x94] sm:$0xf] %v577
  %676 = vst [vmem:[%s3 + $0x98] sm:$0xf] %v578
  %677 = vst [vmem:[%s3 + $0x9c] sm:$0xf] %v579
  %678 = vst [vmem:[%s3 + $0xa0] sm:$0xf] %v580
  %679 = vst [vmem:[%s3 + $0xa4] sm:$0xf] %v581
  %680 = vst [vmem:[%s3 + $0xa8] sm:$0xf] %v582
  %681 = vst [vmem:[%s3 + $0xac] sm:$0xf] %v583
  %682 = vst [vmem:[%s3 + $0xb0] sm:$0xf] %v584
  %683 = vst [vmem:[%s3 + $0xb4] sm:$0xf] %v585
  %684 = vst [vmem:[%s3 + $0xb8] sm:$0xf] %v586
  %685 = vst [vmem:[%s3 + $0xbc] sm:$0xf] %v587
  %686 = vst [vmem:[%s3 + $0xc0] sm:$0xf] %v588
  // Predicated region
  $region14: #{_ppo_forward.4} parent=0 // pred_check
    _
  $region15: #{_ppo_forward.4} parent=0 // pred_check_branch
    %688 = sbr.rel (0) target = $region17
  $region16: #{_ppo_forward.4} parent=0 // pred_region
    _
  $region17: #{_ppo_forward.4} parent=0 // pred_fallthru
    _
  // Predicated region
  $region18: #{_ppo_forward.4} parent=0 // pred_check
    _
  $region19: #{_ppo_forward.4} parent=0 // pred_check_branch
    %690 = sbr.rel (0) target = $region21
  $region20: #{_ppo_forward.4} parent=0 // pred_region
    _
  $region21: #{_ppo_forward.4} parent=0 // pred_fallthru
    _

// kernel: _ppo_forward.5
$region0: #{_ppo_forward.5}
  #allocation0 [shape = 'u32[]', space=smem, size = 0x4, offset = 0x4, fixed_abs, tag = 'smem constant byte address 0x4 - core index']
  #allocation1 [shape = 'u32[144,128]{1,0:T(1,128)}', space=vmem, size = 0x12000, scoped, tag = 'internal scratch']
  %s0 = inlined_call_operand.vmem [shape: bf16[288,1152], index: 0, kind: input, shape index: {}]
  %s1 = inlined_call_operand.vmem [shape: bf16[1152,128], index: 1, kind: input, shape index: {}]
  %s2 = inlined_call_operand.vmem [shape: f32[1,128], index: 2, kind: input, shape index: {}]
  %s3 = inlined_call_operand.vmem [shape: bf16[288,128], index: 3, kind: output, shape index: {}]
  %s4 = sld [smem:[#allocation0]]
  $region22: #{_ppo_forward.5} parent=0
    _
  %s6 = ssub.s32 1, %s4
  %s7 = scalar_select 0, %s6, %s4
  // Predicated region
  $region2: #{_ppo_forward.5} parent=0 // pred_check
    _
  $region3: #{_ppo_forward.5} parent=0 // pred_check_branch
    %9 = sbr.rel (0) target = $region5
  $region4: #{_ppo_forward.5} parent=0 // pred_region
    _
  $region5: #{_ppo_forward.5} parent=0 // pred_fallthru
    _
  // Predicated region
  $region6: #{_ppo_forward.5} parent=0 // pred_check
    _
  $region7: #{_ppo_forward.5} parent=0 // pred_check_branch
    %11 = sbr.rel (0) target = $region9
  $region8: #{_ppo_forward.5} parent=0 // pred_region
    _
  $region9: #{_ppo_forward.5} parent=0 // pred_fallthru
    _
  // Predicated region
  $region10: #{_ppo_forward.5} parent=0 // pred_check
    _
  $region11: #{_ppo_forward.5} parent=0 // pred_check_branch
    %13 = sbr.rel (0) target = $region13
  $region12: #{_ppo_forward.5} parent=0 // pred_region
    _
  $region13: #{_ppo_forward.5} parent=0 // pred_fallthru
    _
  %v15 = vld [vmem:[%s0] sm:$0xff]
  %v16 = vld [vmem:[%s0 + $0x8] sm:$0xff]
  %v17 = vld [vmem:[%s0 + $0x10] sm:$0xff]
  %v18 = vld [vmem:[%s0 + $0x18] sm:$0xff]
  %v19 = vld [vmem:[%s0 + $0x20] sm:$0xf]
  %v20 = vld [vmem:[%s0 + $0x24] sm:$0xff]
  %v21 = vld [vmem:[%s0 + $0x2c] sm:$0xff]
  %v22 = vld [vmem:[%s0 + $0x34] sm:$0xff]
  %v23 = vld [vmem:[%s0 + $0x3c] sm:$0xff]
  %v24 = vld [vmem:[%s0 + $0x44] sm:$0xf]
  %v25 = vld [vmem:[%s0 + $0x48] sm:$0xff]
  %v26 = vld [vmem:[%s0 + $0x50] sm:$0xff]
  %v27 = vld [vmem:[%s0 + $0x58] sm:$0xff]
  %v28 = vld [vmem:[%s0 + $0x60] sm:$0xff]
  %v29 = vld [vmem:[%s0 + $0x68] sm:$0xf]
  %v30 = vld [vmem:[%s0 + $0x6c] sm:$0xff]
  %v31 = vld [vmem:[%s0 + $0x74] sm:$0xff]
  %v32 = vld [vmem:[%s0 + $0x7c] sm:$0xff]
  %v33 = vld [vmem:[%s0 + $0x84] sm:$0xff]
  %v34 = vld [vmem:[%s0 + $0x8c] sm:$0xf]
  %v35 = vld [vmem:[%s0 + $0x90] sm:$0xff]
  %v36 = vld [vmem:[%s0 + $0x98] sm:$0xff]
  %v37 = vld [vmem:[%s0 + $0xa0] sm:$0xff]
  %v38 = vld [vmem:[%s0 + $0xa8] sm:$0xff]
  %v39 = vld [vmem:[%s0 + $0xb0] sm:$0xf]
  %v40 = vld [vmem:[%s0 + $0xb4] sm:$0xff]
  %v41 = vld [vmem:[%s0 + $0xbc] sm:$0xff]
  %v42 = vld [vmem:[%s0 + $0xc4] sm:$0xff]
  %v43 = vld [vmem:[%s0 + $0xcc] sm:$0xff]
  %v44 = vld [vmem:[%s0 + $0xd4] sm:$0xf]
  %v45 = vld [vmem:[%s0 + $0xd8] sm:$0xff]
  %v46 = vld [vmem:[%s0 + $0xe0] sm:$0xff]
  %v47 = vld [vmem:[%s0 + $0xe8] sm:$0xff]
  %v48 = vld [vmem:[%s0 + $0xf0] sm:$0xff]
  %v49 = vld [vmem:[%s0 + $0xf8] sm:$0xf]
  %v50 = vld [vmem:[%s0 + $0xfc] sm:$0xff]
  %v51 = vld [vmem:[%s0 + $0x104] sm:$0xff]
  %v52 = vld [vmem:[%s0 + $0x10c] sm:$0xff]
  %v53 = vld [vmem:[%s0 + $0x114] sm:$0xff]
  %v54 = vld [vmem:[%s0 + $0x11c] sm:$0xf]
  %v55 = vld [vmem:[%s0 + $0x120] sm:$0xff]
  %v56 = vld [vmem:[%s0 + $0x128] sm:$0xff]
  %v57 = vld [vmem:[%s0 + $0x130] sm:$0xff]
  %v58 = vld [vmem:[%s0 + $0x138] sm:$0xff]
  %v59 = vld [vmem:[%s0 + $0x140] sm:$0xf]
  %v60 = vld [vmem:[%s0 + $0x144] sm:$0xff]
  %v61 = vld [vmem:[%s0 + $0x14c] sm:$0xff]
  %v62 = vld [vmem:[%s0 + $0x154] sm:$0xff]
  %v63 = vld [vmem:[%s0 + $0x15c] sm:$0xff]
  %v64 = vld [vmem:[%s0 + $0x164] sm:$0xf]
  %v65 = vld [vmem:[%s0 + $0x168] sm:$0xff]
  %v66 = vld [vmem:[%s0 + $0x170] sm:$0xff]
  %v67 = vld [vmem:[%s0 + $0x178] sm:$0xff]
  %v68 = vld [vmem:[%s0 + $0x180] sm:$0xff]
  %v69 = vld [vmem:[%s0 + $0x188] sm:$0xf]
  %v70 = vld [vmem:[%s0 + $0x18c] sm:$0xff]
  %v71 = vld [vmem:[%s0 + $0x194] sm:$0xff]
  %v72 = vld [vmem:[%s0 + $0x19c] sm:$0xff]
  %v73 = vld [vmem:[%s0 + $0x1a4] sm:$0xff]
  %v74 = vld [vmem:[%s0 + $0x1ac] sm:$0xf]
  %v75 = vld [vmem:[%s0 + $0x1b0] sm:$0xff]
  %v76 = vld [vmem:[%s0 + $0x1b8] sm:$0xff]
  %v77 = vld [vmem:[%s0 + $0x1c0] sm:$0xff]
  %v78 = vld [vmem:[%s0 + $0x1c8] sm:$0xff]
  %v79 = vld [vmem:[%s0 + $0x1d0] sm:$0xf]
  %v80 = vld [vmem:[%s0 + $0x1d4] sm:$0xff]
  %v81 = vld [vmem:[%s0 + $0x1dc] sm:$0xff]
  %v82 = vld [vmem:[%s0 + $0x1e4] sm:$0xff]
  %v83 = vld [vmem:[%s0 + $0x1ec] sm:$0xff]
  %v84 = vld [vmem:[%s0 + $0x1f4] sm:$0xf]
  %v85 = vld [vmem:[%s0 + $0x1f8] sm:$0xff]
  %v86 = vld [vmem:[%s0 + $0x200] sm:$0xff]
  %v87 = vld [vmem:[%s0 + $0x208] sm:$0xff]
  %v88 = vld [vmem:[%s0 + $0x210] sm:$0xff]
  %v89 = vld [vmem:[%s0 + $0x218] sm:$0xf]
  %v90 = vld [vmem:[%s0 + $0x21c] sm:$0xff]
  %v91 = vld [vmem:[%s0 + $0x224] sm:$0xff]
  %v92 = vld [vmem:[%s0 + $0x22c] sm:$0xff]
  %v93 = vld [vmem:[%s0 + $0x234] sm:$0xff]
  %v94 = vld [vmem:[%s0 + $0x23c] sm:$0xf]
  %v95 = vld [vmem:[%s0 + $0x240] sm:$0xff]
  %v96 = vld [vmem:[%s0 + $0x248] sm:$0xff]
  %v97 = vld [vmem:[%s0 + $0x250] sm:$0xff]
  %v98 = vld [vmem:[%s0 + $0x258] sm:$0xff]
  %v99 = vld [vmem:[%s0 + $0x260] sm:$0xf]
  %v100 = vld [vmem:[%s0 + $0x264] sm:$0xff]
  %v101 = vld [vmem:[%s0 + $0x26c] sm:$0xff]
  %v102 = vld [vmem:[%s0 + $0x274] sm:$0xff]
  %v103 = vld [vmem:[%s0 + $0x27c] sm:$0xff]
  %v104 = vld [vmem:[%s0 + $0x284] sm:$0xf]
  %v105 = vld [vmem:[%s0 + $0x288] sm:$0xff]
  %v106 = vld [vmem:[%s0 + $0x290] sm:$0xff]
  %v107 = vld [vmem:[%s0 + $0x298] sm:$0xff]
  %v108 = vld [vmem:[%s0 + $0x2a0] sm:$0xff]
  %v109 = vld [vmem:[%s0 + $0x2a8] sm:$0xf]
  %v110 = vld [vmem:[%s0 + $0x2ac] sm:$0xff]
  %v111 = vld [vmem:[%s0 + $0x2b4] sm:$0xff]
  %v112 = vld [vmem:[%s0 + $0x2bc] sm:$0xff]
  %v113 = vld [vmem:[%s0 + $0x2c4] sm:$0xff]
  %v114 = vld [vmem:[%s0 + $0x2cc] sm:$0xf]
  %v115 = vld [vmem:[%s0 + $0x2d0] sm:$0xff]
  %v116 = vld [vmem:[%s0 + $0x2d8] sm:$0xff]
  %v117 = vld [vmem:[%s0 + $0x2e0] sm:$0xff]
  %v118 = vld [vmem:[%s0 + $0x2e8] sm:$0xff]
  %v119 = vld [vmem:[%s0 + $0x2f0] sm:$0xf]
  %v120 = vld [vmem:[%s0 + $0x2f4] sm:$0xff]
  %v121 = vld [vmem:[%s0 + $0x2fc] sm:$0xff]
  %v122 = vld [vmem:[%s0 + $0x304] sm:$0xff]
  %v123 = vld [vmem:[%s0 + $0x30c] sm:$0xff]
  %v124 = vld [vmem:[%s0 + $0x314] sm:$0xf]
  %v125 = vld [vmem:[%s0 + $0x318] sm:$0xff]
  %v126 = vld [vmem:[%s0 + $0x320] sm:$0xff]
  %v127 = vld [vmem:[%s0 + $0x328] sm:$0xff]
  %v128 = vld [vmem:[%s0 + $0x330] sm:$0xff]
  %v129 = vld [vmem:[%s0 + $0x338] sm:$0xf]
  %v130 = vld [vmem:[%s0 + $0x33c] sm:$0xff]
  %v131 = vld [vmem:[%s0 + $0x344] sm:$0xff]
  %v132 = vld [vmem:[%s0 + $0x34c] sm:$0xff]
  %v133 = vld [vmem:[%s0 + $0x354] sm:$0xff]
  %v134 = vld [vmem:[%s0 + $0x35c] sm:$0xf]
  %v135 = vld [vmem:[%s0 + $0x360] sm:$0xff]
  %v136 = vld [vmem:[%s0 + $0x368] sm:$0xff]
  %v137 = vld [vmem:[%s0 + $0x370] sm:$0xff]
  %v138 = vld [vmem:[%s0 + $0x378] sm:$0xff]
  %v139 = vld [vmem:[%s0 + $0x380] sm:$0xf]
  %v140 = vld [vmem:[%s0 + $0x384] sm:$0xff]
  %v141 = vld [vmem:[%s0 + $0x38c] sm:$0xff]
  %v142 = vld [vmem:[%s0 + $0x394] sm:$0xff]
  %v143 = vld [vmem:[%s0 + $0x39c] sm:$0xff]
  %v144 = vld [vmem:[%s0 + $0x3a4] sm:$0xf]
  %v145 = vld [vmem:[%s0 + $0x3a8] sm:$0xff]
  %v146 = vld [vmem:[%s0 + $0x3b0] sm:$0xff]
  %v147 = vld [vmem:[%s0 + $0x3b8] sm:$0xff]
  %v148 = vld [vmem:[%s0 + $0x3c0] sm:$0xff]
  %v149 = vld [vmem:[%s0 + $0x3c8] sm:$0xf]
  %v150 = vld [vmem:[%s0 + $0x3cc] sm:$0xff]
  %v151 = vld [vmem:[%s0 + $0x3d4] sm:$0xff]
  %v152 = vld [vmem:[%s0 + $0x3dc] sm:$0xff]
  %v153 = vld [vmem:[%s0 + $0x3e4] sm:$0xff]
  %v154 = vld [vmem:[%s0 + $0x3ec] sm:$0xf]
  %v155 = vld [vmem:[%s0 + $0x3f0] sm:$0xff]
  %v156 = vld [vmem:[%s0 + $0x3f8] sm:$0xff]
  %v157 = vld [vmem:[%s0 + $0x400] sm:$0xff]
  %v158 = vld [vmem:[%s0 + $0x408] sm:$0xff]
  %v159 = vld [vmem:[%s0 + $0x410] sm:$0xf]
  %v160 = vld [vmem:[%s0 + $0x414] sm:$0xff]
  %v161 = vld [vmem:[%s0 + $0x41c] sm:$0xff]
  %v162 = vld [vmem:[%s0 + $0x424] sm:$0xff]
  %v163 = vld [vmem:[%s0 + $0x42c] sm:$0xff]
  %v164 = vld [vmem:[%s0 + $0x434] sm:$0xf]
  %v165 = vld [vmem:[%s0 + $0x438] sm:$0xff]
  %v166 = vld [vmem:[%s0 + $0x440] sm:$0xff]
  %v167 = vld [vmem:[%s0 + $0x448] sm:$0xff]
  %v168 = vld [vmem:[%s0 + $0x450] sm:$0xff]
  %v169 = vld [vmem:[%s0 + $0x458] sm:$0xf]
  %v170 = vld [vmem:[%s0 + $0x45c] sm:$0xff]
  %v171 = vld [vmem:[%s0 + $0x464] sm:$0xff]
  %v172 = vld [vmem:[%s0 + $0x46c] sm:$0xff]
  %v173 = vld [vmem:[%s0 + $0x474] sm:$0xff]
  %v174 = vld [vmem:[%s0 + $0x47c] sm:$0xf]
  %v175 = vld [vmem:[%s0 + $0x480] sm:$0xff]
  %v176 = vld [vmem:[%s0 + $0x488] sm:$0xff]
  %v177 = vld [vmem:[%s0 + $0x490] sm:$0xff]
  %v178 = vld [vmem:[%s0 + $0x498] sm:$0xff]
  %v179 = vld [vmem:[%s0 + $0x4a0] sm:$0xf]
  %v180 = vld [vmem:[%s0 + $0x4a4] sm:$0xff]
  %v181 = vld [vmem:[%s0 + $0x4ac] sm:$0xff]
  %v182 = vld [vmem:[%s0 + $0x4b4] sm:$0xff]
  %v183 = vld [vmem:[%s0 + $0x4bc] sm:$0xff]
  %v184 = vld [vmem:[%s0 + $0x4c4] sm:$0xf]
  %v185 = vld [vmem:[%s0 + $0x4c8] sm:$0xff]
  %v186 = vld [vmem:[%s0 + $0x4d0] sm:$0xff]
  %v187 = vld [vmem:[%s0 + $0x4d8] sm:$0xff]
  %v188 = vld [vmem:[%s0 + $0x4e0] sm:$0xff]
  %v189 = vld [vmem:[%s0 + $0x4e8] sm:$0xf]
  %v190 = vld [vmem:[%s0 + $0x4ec] sm:$0xff]
  %v191 = vld [vmem:[%s0 + $0x4f4] sm:$0xff]
  %v192 = vld [vmem:[%s0 + $0x4fc] sm:$0xff]
  %v193 = vld [vmem:[%s0 + $0x504] sm:$0xff]
  %v194 = vld [vmem:[%s0 + $0x50c] sm:$0xf]
  %v195 = vld [vmem:[%s1] sm:$0xf]
  %v196 = vld [vmem:[%s1 + $0x4] sm:$0xf]
  %v197 = vld [vmem:[%s1 + $0x8] sm:$0xf]
  %v198 = vld [vmem:[%s1 + $0xc] sm:$0xf]
  %v199 = vld [vmem:[%s1 + $0x10] sm:$0xf]
  %v200 = vld [vmem:[%s1 + $0x14] sm:$0xf]
  %v201 = vld [vmem:[%s1 + $0x18] sm:$0xf]
  %v202 = vld [vmem:[%s1 + $0x1c] sm:$0xf]
  %v203 = vld [vmem:[%s1 + $0x20] sm:$0xf]
  %v204 = vld [vmem:[%s1 + $0x24] sm:$0xf]
  %v205 = vld [vmem:[%s1 + $0x28] sm:$0xf]
  %v206 = vld [vmem:[%s1 + $0x2c] sm:$0xf]
  %v207 = vld [vmem:[%s1 + $0x30] sm:$0xf]
  %v208 = vld [vmem:[%s1 + $0x34] sm:$0xf]
  %v209 = vld [vmem:[%s1 + $0x38] sm:$0xf]
  %v210 = vld [vmem:[%s1 + $0x3c] sm:$0xf]
  %v211 = vld [vmem:[%s1 + $0x40] sm:$0xf]
  %v212 = vld [vmem:[%s1 + $0x44] sm:$0xf]
  %v213 = vld [vmem:[%s1 + $0x48] sm:$0xf]
  %v214 = vld [vmem:[%s1 + $0x4c] sm:$0xf]
  %v215 = vld [vmem:[%s1 + $0x50] sm:$0xf]
  %v216 = vld [vmem:[%s1 + $0x54] sm:$0xf]
  %v217 = vld [vmem:[%s1 + $0x58] sm:$0xf]
  %v218 = vld [vmem:[%s1 + $0x5c] sm:$0xf]
  %v219 = vld [vmem:[%s1 + $0x60] sm:$0xf]
  %v220 = vld [vmem:[%s1 + $0x64] sm:$0xf]
  %v221 = vld [vmem:[%s1 + $0x68] sm:$0xf]
  %v222 = vld [vmem:[%s1 + $0x6c] sm:$0xf]
  %v223 = vld [vmem:[%s1 + $0x70] sm:$0xf]
  %v224 = vld [vmem:[%s1 + $0x74] sm:$0xf]
  %v225 = vld [vmem:[%s1 + $0x78] sm:$0xf]
  %v226 = vld [vmem:[%s1 + $0x7c] sm:$0xf]
  %v227 = vld [vmem:[%s1 + $0x80] sm:$0xf]
  %v228 = vld [vmem:[%s1 + $0x84] sm:$0xf]
  %v229 = vld [vmem:[%s1 + $0x88] sm:$0xf]
  %v230 = vld [vmem:[%s1 + $0x8c] sm:$0xf]
  %v231 = vld [vmem:[%s1 + $0x90] sm:$0xf]
  %v232 = vld [vmem:[%s1 + $0x94] sm:$0xf]
  %v233 = vld [vmem:[%s1 + $0x98] sm:$0xf]
  %v234 = vld [vmem:[%s1 + $0x9c] sm:$0xf]
  %v235 = vld [vmem:[%s1 + $0xa0] sm:$0xf]
  %v236 = vld [vmem:[%s1 + $0xa4] sm:$0xf]
  %v237 = vld [vmem:[%s1 + $0xa8] sm:$0xf]
  %v238 = vld [vmem:[%s1 + $0xac] sm:$0xf]
  %v239 = vld [vmem:[%s1 + $0xb0] sm:$0xf]
  %v240 = vld [vmem:[%s1 + $0xb4] sm:$0xf]
  %v241 = vld [vmem:[%s1 + $0xb8] sm:$0xf]
  %v242 = vld [vmem:[%s1 + $0xbc] sm:$0xf]
  %v243 = vld [vmem:[%s1 + $0xc0] sm:$0xf]
  %v244 = vld [vmem:[%s1 + $0xc4] sm:$0xf]
  %v245 = vld [vmem:[%s1 + $0xc8] sm:$0xf]
  %v246 = vld [vmem:[%s1 + $0xcc] sm:$0xf]
  %v247 = vld [vmem:[%s1 + $0xd0] sm:$0xf]
  %v248 = vld [vmem:[%s1 + $0xd4] sm:$0xf]
  %v249 = vld [vmem:[%s1 + $0xd8] sm:$0xf]
  %v250 = vld [vmem:[%s1 + $0xdc] sm:$0xf]
  %v251 = vld [vmem:[%s1 + $0xe0] sm:$0xf]
  %v252 = vld [vmem:[%s1 + $0xe4] sm:$0xf]
  %v253 = vld [vmem:[%s1 + $0xe8] sm:$0xf]
  %v254 = vld [vmem:[%s1 + $0xec] sm:$0xf]
  %v255 = vld [vmem:[%s1 + $0xf0] sm:$0xf]
  %v256 = vld [vmem:[%s1 + $0xf4] sm:$0xf]
  %v257 = vld [vmem:[%s1 + $0xf8] sm:$0xf]
  %v258 = vld [vmem:[%s1 + $0xfc] sm:$0xf]
  %v259 = vld [vmem:[%s1 + $0x100] sm:$0xf]
  %v260 = vld [vmem:[%s1 + $0x104] sm:$0xf]
  %v261 = vld [vmem:[%s1 + $0x108] sm:$0xf]
  %v262 = vld [vmem:[%s1 + $0x10c] sm:$0xf]
  %v263 = vld [vmem:[%s1 + $0x110] sm:$0xf]
  %v264 = vld [vmem:[%s1 + $0x114] sm:$0xf]
  %v265 = vld [vmem:[%s1 + $0x118] sm:$0xf]
  %v266 = vld [vmem:[%s1 + $0x11c] sm:$0xf]
  %v267 = vld [vmem:[%s1 + $0x120] sm:$0xf]
  %v268 = vld [vmem:[%s1 + $0x124] sm:$0xf]
  %v269 = vld [vmem:[%s1 + $0x128] sm:$0xf]
  %v270 = vld [vmem:[%s1 + $0x12c] sm:$0xf]
  %v271 = vld [vmem:[%s1 + $0x130] sm:$0xf]
  %v272 = vld [vmem:[%s1 + $0x134] sm:$0xf]
  %v273 = vld [vmem:[%s1 + $0x138] sm:$0xf]
  %v274 = vld [vmem:[%s1 + $0x13c] sm:$0xf]
  %v275 = vld [vmem:[%s1 + $0x140] sm:$0xf]
  %v276 = vld [vmem:[%s1 + $0x144] sm:$0xf]
  %v277 = vld [vmem:[%s1 + $0x148] sm:$0xf]
  %v278 = vld [vmem:[%s1 + $0x14c] sm:$0xf]
  %v279 = vld [vmem:[%s1 + $0x150] sm:$0xf]
  %v280 = vld [vmem:[%s1 + $0x154] sm:$0xf]
  %v281 = vld [vmem:[%s1 + $0x158] sm:$0xf]
  %v282 = vld [vmem:[%s1 + $0x15c] sm:$0xf]
  %v283 = vld [vmem:[%s1 + $0x160] sm:$0xf]
  %v284 = vld [vmem:[%s1 + $0x164] sm:$0xf]
  %v285 = vld [vmem:[%s1 + $0x168] sm:$0xf]
  %v286 = vld [vmem:[%s1 + $0x16c] sm:$0xf]
  %v287 = vld [vmem:[%s1 + $0x170] sm:$0xf]
  %v288 = vld [vmem:[%s1 + $0x174] sm:$0xf]
  %v289 = vld [vmem:[%s1 + $0x178] sm:$0xf]
  %v290 = vld [vmem:[%s1 + $0x17c] sm:$0xf]
  %v291 = vld [vmem:[%s1 + $0x180] sm:$0xf]
  %v292 = vld [vmem:[%s1 + $0x184] sm:$0xf]
  %v293 = vld [vmem:[%s1 + $0x188] sm:$0xf]
  %v294 = vld [vmem:[%s1 + $0x18c] sm:$0xf]
  %v295 = vld [vmem:[%s1 + $0x190] sm:$0xf]
  %v296 = vld [vmem:[%s1 + $0x194] sm:$0xf]
  %v297 = vld [vmem:[%s1 + $0x198] sm:$0xf]
  %v298 = vld [vmem:[%s1 + $0x19c] sm:$0xf]
  %v299 = vld [vmem:[%s1 + $0x1a0] sm:$0xf]
  %v300 = vld [vmem:[%s1 + $0x1a4] sm:$0xf]
  %v301 = vld [vmem:[%s1 + $0x1a8] sm:$0xf]
  %v302 = vld [vmem:[%s1 + $0x1ac] sm:$0xf]
  %v303 = vld [vmem:[%s1 + $0x1b0] sm:$0xf]
  %v304 = vld [vmem:[%s1 + $0x1b4] sm:$0xf]
  %v305 = vld [vmem:[%s1 + $0x1b8] sm:$0xf]
  %v306 = vld [vmem:[%s1 + $0x1bc] sm:$0xf]
  %v307 = vld [vmem:[%s1 + $0x1c0] sm:$0xf]
  %v308 = vld [vmem:[%s1 + $0x1c4] sm:$0xf]
  %v309 = vld [vmem:[%s1 + $0x1c8] sm:$0xf]
  %v310 = vld [vmem:[%s1 + $0x1cc] sm:$0xf]
  %v311 = vld [vmem:[%s1 + $0x1d0] sm:$0xf]
  %v312 = vld [vmem:[%s1 + $0x1d4] sm:$0xf]
  %v313 = vld [vmem:[%s1 + $0x1d8] sm:$0xf]
  %v314 = vld [vmem:[%s1 + $0x1dc] sm:$0xf]
  %v315 = vld [vmem:[%s1 + $0x1e0] sm:$0xf]
  %v316 = vld [vmem:[%s1 + $0x1e4] sm:$0xf]
  %v317 = vld [vmem:[%s1 + $0x1e8] sm:$0xf]
  %v318 = vld [vmem:[%s1 + $0x1ec] sm:$0xf]
  %v319 = vld [vmem:[%s1 + $0x1f0] sm:$0xf]
  %v320 = vld [vmem:[%s1 + $0x1f4] sm:$0xf]
  %v321 = vld [vmem:[%s1 + $0x1f8] sm:$0xf]
  %v322 = vld [vmem:[%s1 + $0x1fc] sm:$0xf]
  %v323 = vld [vmem:[%s1 + $0x200] sm:$0xf]
  %v324 = vld [vmem:[%s1 + $0x204] sm:$0xf]
  %v325 = vld [vmem:[%s1 + $0x208] sm:$0xf]
  %v326 = vld [vmem:[%s1 + $0x20c] sm:$0xf]
  %v327 = vld [vmem:[%s1 + $0x210] sm:$0xf]
  %v328 = vld [vmem:[%s1 + $0x214] sm:$0xf]
  %v329 = vld [vmem:[%s1 + $0x218] sm:$0xf]
  %v330 = vld [vmem:[%s1 + $0x21c] sm:$0xf]
  %v331 = vld [vmem:[%s1 + $0x220] sm:$0xf]
  %v332 = vld [vmem:[%s1 + $0x224] sm:$0xf]
  %v333 = vld [vmem:[%s1 + $0x228] sm:$0xf]
  %v334 = vld [vmem:[%s1 + $0x22c] sm:$0xf]
  %v335 = vld [vmem:[%s1 + $0x230] sm:$0xf]
  %v336 = vld [vmem:[%s1 + $0x234] sm:$0xf]
  %v337 = vld [vmem:[%s1 + $0x238] sm:$0xf]
  %v338 = vld [vmem:[%s1 + $0x23c] sm:$0xf]
  %v339 = vld [vmem:[%s2] sm:$0x1]
  %v341 = vlaneseq
  %v342 = vshrl.u32 %v341, 7
  %v343 = vsub.s32 0, %v342
  %v344 = vrot.slane %v339, %v343
  %v526 = vunpack.c.l.b16 %v15
  %v527 = vunpack.c.h.b16 %v15
  %v528 = vunpack.c.l.b16 %v16
  %v529 = vunpack.c.h.b16 %v16
  %v530 = vunpack.c.l.b16 %v17
  %v531 = vunpack.c.h.b16 %v17
  %v532 = vunpack.c.l.b16 %v18
  %v533 = vunpack.c.h.b16 %v18
  %v534 = vunpack.c.l.b16 %v19
  %v535 = vunpack.c.l.b16 %v20
  %v536 = vunpack.c.h.b16 %v20
  %v537 = vunpack.c.l.b16 %v21
  %v538 = vunpack.c.h.b16 %v21
  %v539 = vunpack.c.l.b16 %v22
  %v540 = vunpack.c.h.b16 %v22
  %v541 = vunpack.c.l.b16 %v23
  %v542 = vunpack.c.h.b16 %v23
  %v543 = vunpack.c.l.b16 %v24
  %v544 = vunpack.c.l.b16 %v25
  %v545 = vunpack.c.h.b16 %v25
  %v546 = vunpack.c.l.b16 %v26
  %v547 = vunpack.c.h.b16 %v26
  %v548 = vunpack.c.l.b16 %v27
  %v549 = vunpack.c.h.b16 %v27
  %v550 = vunpack.c.l.b16 %v28
  %v551 = vunpack.c.h.b16 %v28
  %v552 = vunpack.c.l.b16 %v29
  %v553 = vunpack.c.l.b16 %v30
  %v554 = vunpack.c.h.b16 %v30
  %v555 = vunpack.c.l.b16 %v31
  %v556 = vunpack.c.h.b16 %v31
  %v557 = vunpack.c.l.b16 %v32
  %v558 = vunpack.c.h.b16 %v32
  %v559 = vunpack.c.l.b16 %v33
  %v560 = vunpack.c.h.b16 %v33
  %v561 = vunpack.c.l.b16 %v34
  %v562 = vunpack.c.l.b16 %v35
  %v563 = vunpack.c.h.b16 %v35
  %v564 = vunpack.c.l.b16 %v36
  %v565 = vunpack.c.h.b16 %v36
  %v566 = vunpack.c.l.b16 %v37
  %v567 = vunpack.c.h.b16 %v37
  %v568 = vunpack.c.l.b16 %v38
  %v569 = vunpack.c.h.b16 %v38
  %v570 = vunpack.c.l.b16 %v39
  %v571 = vunpack.c.l.b16 %v40
  %v572 = vunpack.c.h.b16 %v40
  %v573 = vunpack.c.l.b16 %v41
  %v574 = vunpack.c.h.b16 %v41
  %v575 = vunpack.c.l.b16 %v42
  %v576 = vunpack.c.h.b16 %v42
  %v577 = vunpack.c.l.b16 %v43
  %v578 = vunpack.c.h.b16 %v43
  %v579 = vunpack.c.l.b16 %v44
  %v580 = vunpack.c.l.b16 %v45
  %v581 = vunpack.c.h.b16 %v45
  %v582 = vunpack.c.l.b16 %v46
  %v583 = vunpack.c.h.b16 %v46
  %v584 = vunpack.c.l.b16 %v47
  %v585 = vunpack.c.h.b16 %v47
  %v586 = vunpack.c.l.b16 %v48
  %v587 = vunpack.c.h.b16 %v48
  %v588 = vunpack.c.l.b16 %v49
  %v589 = vunpack.c.l.b16 %v50
  %v590 = vunpack.c.h.b16 %v50
  %v591 = vunpack.c.l.b16 %v51
  %v592 = vunpack.c.h.b16 %v51
  %v593 = vunpack.c.l.b16 %v52
  %v594 = vunpack.c.h.b16 %v52
  %v595 = vunpack.c.l.b16 %v53
  %v596 = vunpack.c.h.b16 %v53
  %v597 = vunpack.c.l.b16 %v54
  %v598 = vunpack.c.l.b16 %v55
  %v599 = vunpack.c.h.b16 %v55
  %v600 = vunpack.c.l.b16 %v56
  %v601 = vunpack.c.h.b16 %v56
  %v602 = vunpack.c.l.b16 %v57
  %v603 = vunpack.c.h.b16 %v57
  %v604 = vunpack.c.l.b16 %v58
  %v605 = vunpack.c.h.b16 %v58
  %v606 = vunpack.c.l.b16 %v59
  %v607 = vunpack.c.l.b16 %v60
  %v608 = vunpack.c.h.b16 %v60
  %v609 = vunpack.c.l.b16 %v61
  %v610 = vunpack.c.h.b16 %v61
  %v611 = vunpack.c.l.b16 %v62
  %v612 = vunpack.c.h.b16 %v62
  %v613 = vunpack.c.l.b16 %v63
  %v614 = vunpack.c.h.b16 %v63
  %v615 = vunpack.c.l.b16 %v64
  %v616 = vunpack.c.l.b16 %v65
  %v617 = vunpack.c.h.b16 %v65
  %v618 = vunpack.c.l.b16 %v66
  %v619 = vunpack.c.h.b16 %v66
  %v620 = vunpack.c.l.b16 %v67
  %v621 = vunpack.c.h.b16 %v67
  %v622 = vunpack.c.l.b16 %v68
  %v623 = vunpack.c.h.b16 %v68
  %v624 = vunpack.c.l.b16 %v69
  %v625 = vunpack.c.l.b16 %v70
  %v626 = vunpack.c.h.b16 %v70
  %v627 = vunpack.c.l.b16 %v71
  %v628 = vunpack.c.h.b16 %v71
  %v629 = vunpack.c.l.b16 %v72
  %v630 = vunpack.c.h.b16 %v72
  %v631 = vunpack.c.l.b16 %v73
  %v632 = vunpack.c.h.b16 %v73
  %v633 = vunpack.c.l.b16 %v74
  %v634 = vunpack.c.l.b16 %v75
  %v635 = vunpack.c.h.b16 %v75
  %v636 = vunpack.c.l.b16 %v76
  %v637 = vunpack.c.h.b16 %v76
  %v638 = vunpack.c.l.b16 %v77
  %v639 = vunpack.c.h.b16 %v77
  %v640 = vunpack.c.l.b16 %v78
  %v641 = vunpack.c.h.b16 %v78
  %v642 = vunpack.c.l.b16 %v79
  %v643 = vunpack.c.l.b16 %v80
  %v644 = vunpack.c.h.b16 %v80
  %v645 = vunpack.c.l.b16 %v81
  %v646 = vunpack.c.h.b16 %v81
  %v647 = vunpack.c.l.b16 %v82
  %v648 = vunpack.c.h.b16 %v82
  %v649 = vunpack.c.l.b16 %v83
  %v650 = vunpack.c.h.b16 %v83
  %v651 = vunpack.c.l.b16 %v84
  %v652 = vunpack.c.l.b16 %v85
  %v653 = vunpack.c.h.b16 %v85
  %v654 = vunpack.c.l.b16 %v86
  %v655 = vunpack.c.h.b16 %v86
  %v656 = vunpack.c.l.b16 %v87
  %v657 = vunpack.c.h.b16 %v87
  %v658 = vunpack.c.l.b16 %v88
  %v659 = vunpack.c.h.b16 %v88
  %v660 = vunpack.c.l.b16 %v89
  %v661 = vunpack.c.l.b16 %v90
  %v662 = vunpack.c.h.b16 %v90
  %v663 = vunpack.c.l.b16 %v91
  %v664 = vunpack.c.h.b16 %v91
  %v665 = vunpack.c.l.b16 %v92
  %v666 = vunpack.c.h.b16 %v92
  %v667 = vunpack.c.l.b16 %v93
  %v668 = vunpack.c.h.b16 %v93
  %v669 = vunpack.c.l.b16 %v94
  %v670 = vunpack.c.l.b16 %v95
  %v671 = vunpack.c.h.b16 %v95
  %v672 = vunpack.c.l.b16 %v96
  %v673 = vunpack.c.h.b16 %v96
  %v674 = vunpack.c.l.b16 %v97
  %v675 = vunpack.c.h.b16 %v97
  %v676 = vunpack.c.l.b16 %v98
  %v677 = vunpack.c.h.b16 %v98
  %v678 = vunpack.c.l.b16 %v99
  %v679 = vunpack.c.l.b16 %v100
  %v680 = vunpack.c.h.b16 %v100
  %v681 = vunpack.c.l.b16 %v101
  %v682 = vunpack.c.h.b16 %v101
  %v683 = vunpack.c.l.b16 %v102
  %v684 = vunpack.c.h.b16 %v102
  %v685 = vunpack.c.l.b16 %v103
  %v686 = vunpack.c.h.b16 %v103
  %v687 = vunpack.c.l.b16 %v104
  %v688 = vunpack.c.l.b16 %v105
  %v689 = vunpack.c.h.b16 %v105
  %v690 = vunpack.c.l.b16 %v106
  %v691 = vunpack.c.h.b16 %v106
  %v692 = vunpack.c.l.b16 %v107
  %v693 = vunpack.c.h.b16 %v107
  %v694 = vunpack.c.l.b16 %v108
  %v695 = vunpack.c.h.b16 %v108
  %v696 = vunpack.c.l.b16 %v109
  %v697 = vunpack.c.l.b16 %v110
  %v698 = vunpack.c.h.b16 %v110
  %v699 = vunpack.c.l.b16 %v111
  %v700 = vunpack.c.h.b16 %v111
  %v701 = vunpack.c.l.b16 %v112
  %v702 = vunpack.c.h.b16 %v112
  %v703 = vunpack.c.l.b16 %v113
  %v704 = vunpack.c.h.b16 %v113
  %v705 = vunpack.c.l.b16 %v114
  %v706 = vunpack.c.l.b16 %v115
  %v707 = vunpack.c.h.b16 %v115
  %v708 = vunpack.c.l.b16 %v116
  %v709 = vunpack.c.h.b16 %v116
  %v710 = vunpack.c.l.b16 %v117
  %v711 = vunpack.c.h.b16 %v117
  %v712 = vunpack.c.l.b16 %v118
  %v713 = vunpack.c.h.b16 %v118
  %v714 = vunpack.c.l.b16 %v119
  %v715 = vunpack.c.l.b16 %v120
  %v716 = vunpack.c.h.b16 %v120
  %v717 = vunpack.c.l.b16 %v121
  %v718 = vunpack.c.h.b16 %v121
  %v719 = vunpack.c.l.b16 %v122
  %v720 = vunpack.c.h.b16 %v122
  %v721 = vunpack.c.l.b16 %v123
  %v722 = vunpack.c.h.b16 %v123
  %v723 = vunpack.c.l.b16 %v124
  %v724 = vunpack.c.l.b16 %v125
  %v725 = vunpack.c.h.b16 %v125
  %v726 = vunpack.c.l.b16 %v126
  %v727 = vunpack.c.h.b16 %v126
  %v728 = vunpack.c.l.b16 %v127
  %v729 = vunpack.c.h.b16 %v127
  %v730 = vunpack.c.l.b16 %v128
  %v731 = vunpack.c.h.b16 %v128
  %v732 = vunpack.c.l.b16 %v129
  %v733 = vunpack.c.l.b16 %v130
  %v734 = vunpack.c.h.b16 %v130
  %v735 = vunpack.c.l.b16 %v131
  %v736 = vunpack.c.h.b16 %v131
  %v737 = vunpack.c.l.b16 %v132
  %v738 = vunpack.c.h.b16 %v132
  %v739 = vunpack.c.l.b16 %v133
  %v740 = vunpack.c.h.b16 %v133
  %v741 = vunpack.c.l.b16 %v134
  %v742 = vunpack.c.l.b16 %v135
  %v743 = vunpack.c.h.b16 %v135
  %v744 = vunpack.c.l.b16 %v136
  %v745 = vunpack.c.h.b16 %v136
  %v746 = vunpack.c.l.b16 %v137
  %v747 = vunpack.c.h.b16 %v137
  %v748 = vunpack.c.l.b16 %v138
  %v749 = vunpack.c.h.b16 %v138
  %v750 = vunpack.c.l.b16 %v139
  %v751 = vunpack.c.l.b16 %v140
  %v752 = vunpack.c.h.b16 %v140
  %v753 = vunpack.c.l.b16 %v141
  %v754 = vunpack.c.h.b16 %v141
  %v755 = vunpack.c.l.b16 %v142
  %v756 = vunpack.c.h.b16 %v142
  %v757 = vunpack.c.l.b16 %v143
  %v758 = vunpack.c.h.b16 %v143
  %v759 = vunpack.c.l.b16 %v144
  %v760 = vunpack.c.l.b16 %v145
  %v761 = vunpack.c.h.b16 %v145
  %v762 = vunpack.c.l.b16 %v146
  %v763 = vunpack.c.h.b16 %v146
  %v764 = vunpack.c.l.b16 %v147
  %v765 = vunpack.c.h.b16 %v147
  %v766 = vunpack.c.l.b16 %v148
  %v767 = vunpack.c.h.b16 %v148
  %v768 = vunpack.c.l.b16 %v149
  %v769 = vunpack.c.l.b16 %v150
  %v770 = vunpack.c.h.b16 %v150
  %v771 = vunpack.c.l.b16 %v151
  %v772 = vunpack.c.h.b16 %v151
  %v773 = vunpack.c.l.b16 %v152
  %v774 = vunpack.c.h.b16 %v152
  %v775 = vunpack.c.l.b16 %v153
  %v776 = vunpack.c.h.b16 %v153
  %v777 = vunpack.c.l.b16 %v154
  %v778 = vunpack.c.l.b16 %v155
  %v779 = vunpack.c.h.b16 %v155
  %v780 = vunpack.c.l.b16 %v156
  %v781 = vunpack.c.h.b16 %v156
  %v782 = vunpack.c.l.b16 %v157
  %v783 = vunpack.c.h.b16 %v157
  %v784 = vunpack.c.l.b16 %v158
  %v785 = vunpack.c.h.b16 %v158
  %v786 = vunpack.c.l.b16 %v159
  %v787 = vunpack.c.l.b16 %v160
  %v788 = vunpack.c.h.b16 %v160
  %v789 = vunpack.c.l.b16 %v161
  %v790 = vunpack.c.h.b16 %v161
  %v791 = vunpack.c.l.b16 %v162
  %v792 = vunpack.c.h.b16 %v162
  %v793 = vunpack.c.l.b16 %v163
  %v794 = vunpack.c.h.b16 %v163
  %v795 = vunpack.c.l.b16 %v164
  %v796 = vunpack.c.l.b16 %v165
  %v797 = vunpack.c.h.b16 %v165
  %v798 = vunpack.c.l.b16 %v166
  %v799 = vunpack.c.h.b16 %v166
  %v800 = vunpack.c.l.b16 %v167
  %v801 = vunpack.c.h.b16 %v167
  %v802 = vunpack.c.l.b16 %v168
  %v803 = vunpack.c.h.b16 %v168
  %v804 = vunpack.c.l.b16 %v169
  %v805 = vunpack.c.l.b16 %v170
  %v806 = vunpack.c.h.b16 %v170
  %v807 = vunpack.c.l.b16 %v171
  %v808 = vunpack.c.h.b16 %v171
  %v809 = vunpack.c.l.b16 %v172
  %v810 = vunpack.c.h.b16 %v172
  %v811 = vunpack.c.l.b16 %v173
  %v812 = vunpack.c.h.b16 %v173
  %v813 = vunpack.c.l.b16 %v174
  %v814 = vunpack.c.l.b16 %v175
  %v815 = vunpack.c.h.b16 %v175
  %v816 = vunpack.c.l.b16 %v176
  %v817 = vunpack.c.h.b16 %v176
  %v818 = vunpack.c.l.b16 %v177
  %v819 = vunpack.c.h.b16 %v177
  %v820 = vunpack.c.l.b16 %v178
  %v821 = vunpack.c.h.b16 %v178
  %v822 = vunpack.c.l.b16 %v179
  %v823 = vunpack.c.l.b16 %v180
  %v824 = vunpack.c.h.b16 %v180
  %v825 = vunpack.c.l.b16 %v181
  %v826 = vunpack.c.h.b16 %v181
  %v827 = vunpack.c.l.b16 %v182
  %v828 = vunpack.c.h.b16 %v182
  %v829 = vunpack.c.l.b16 %v183
  %v830 = vunpack.c.h.b16 %v183
  %v831 = vunpack.c.l.b16 %v184
  %v832 = vunpack.c.l.b16 %v185
  %v833 = vunpack.c.h.b16 %v185
  %v834 = vunpack.c.l.b16 %v186
  %v835 = vunpack.c.h.b16 %v186
  %v836 = vunpack.c.l.b16 %v187
  %v837 = vunpack.c.h.b16 %v187
  %v838 = vunpack.c.l.b16 %v188
  %v839 = vunpack.c.h.b16 %v188
  %v840 = vunpack.c.l.b16 %v189
  %v841 = vunpack.c.l.b16 %v190
  %v842 = vunpack.c.h.b16 %v190
  %v843 = vunpack.c.l.b16 %v191
  %v844 = vunpack.c.h.b16 %v191
  %v845 = vunpack.c.l.b16 %v192
  %v846 = vunpack.c.h.b16 %v192
  %v847 = vunpack.c.l.b16 %v193
  %v848 = vunpack.c.h.b16 %v193
  %v849 = vunpack.c.l.b16 %v194
  %v850 = vpack.c.b16 %v535, %v526
  %v851 = vpack.c.b16 %v536, %v527
  %v852 = vpack.c.b16 %v537, %v528
  %v853 = vpack.c.b16 %v538, %v529
  %v854 = vpack.c.b16 %v539, %v530
  %v855 = vpack.c.b16 %v540, %v531
  %v856 = vpack.c.b16 %v541, %v532
  %v857 = vpack.c.b16 %v542, %v533
  %v858 = vpack.c.b16 %v543, %v534
  %v859 = vpack.c.b16 %v553, %v544
  %v860 = vpack.c.b16 %v554, %v545
  %v861 = vpack.c.b16 %v555, %v546
  %v862 = vpack.c.b16 %v556, %v547
  %v863 = vpack.c.b16 %v557, %v548
  %v864 = vpack.c.b16 %v558, %v549
  %v865 = vpack.c.b16 %v559, %v550
  %v866 = vpack.c.b16 %v560, %v551
  %v867 = vpack.c.b16 %v561, %v552
  %v868 = vpack.c.b16 %v571, %v562
  %v869 = vpack.c.b16 %v572, %v563
  %v870 = vpack.c.b16 %v573, %v564
  %v871 = vpack.c.b16 %v574, %v565
  %v872 = vpack.c.b16 %v575, %v566
  %v873 = vpack.c.b16 %v576, %v567
  %v874 = vpack.c.b16 %v577, %v568
  %v875 = vpack.c.b16 %v578, %v569
  %v876 = vpack.c.b16 %v579, %v570
  %v877 = vpack.c.b16 %v589, %v580
  %v878 = vpack.c.b16 %v590, %v581
  %v879 = vpack.c.b16 %v591, %v582
  %v880 = vpack.c.b16 %v592, %v583
  %v881 = vpack.c.b16 %v593, %v584
  %v882 = vpack.c.b16 %v594, %v585
  %v883 = vpack.c.b16 %v595, %v586
  %v884 = vpack.c.b16 %v596, %v587
  %v885 = vpack.c.b16 %v597, %v588
  %v886 = vpack.c.b16 %v607, %v598
  %v887 = vpack.c.b16 %v608, %v599
  %v888 = vpack.c.b16 %v609, %v600
  %v889 = vpack.c.b16 %v610, %v601
  %v890 = vpack.c.b16 %v611, %v602
  %v891 = vpack.c.b16 %v612, %v603
  %v892 = vpack.c.b16 %v613, %v604
  %v893 = vpack.c.b16 %v614, %v605
  %v894 = vpack.c.b16 %v615, %v606
  %v895 = vpack.c.b16 %v625, %v616
  %v896 = vpack.c.b16 %v626, %v617
  %v897 = vpack.c.b16 %v627, %v618
  %v898 = vpack.c.b16 %v628, %v619
  %v899 = vpack.c.b16 %v629, %v620
  %v900 = vpack.c.b16 %v630, %v621
  %v901 = vpack.c.b16 %v631, %v622
  %v902 = vpack.c.b16 %v632, %v623
  %v903 = vpack.c.b16 %v633, %v624
  %v904 = vpack.c.b16 %v643, %v634
  %v905 = vpack.c.b16 %v644, %v635
  %v906 = vpack.c.b16 %v645, %v636
  %v907 = vpack.c.b16 %v646, %v637
  %v908 = vpack.c.b16 %v647, %v638
  %v909 = vpack.c.b16 %v648, %v639
  %v910 = vpack.c.b16 %v649, %v640
  %v911 = vpack.c.b16 %v650, %v641
  %v912 = vpack.c.b16 %v651, %v642
  %v913 = vpack.c.b16 %v661, %v652
  %v914 = vpack.c.b16 %v662, %v653
  %v915 = vpack.c.b16 %v663, %v654
  %v916 = vpack.c.b16 %v664, %v655
  %v917 = vpack.c.b16 %v665, %v656
  %v918 = vpack.c.b16 %v666, %v657
  %v919 = vpack.c.b16 %v667, %v658
  %v920 = vpack.c.b16 %v668, %v659
  %v921 = vpack.c.b16 %v669, %v660
  %v922 = vpack.c.b16 %v679, %v670
  %v923 = vpack.c.b16 %v680, %v671
  %v924 = vpack.c.b16 %v681, %v672
  %v925 = vpack.c.b16 %v682, %v673
  %v926 = vpack.c.b16 %v683, %v674
  %v927 = vpack.c.b16 %v684, %v675
  %v928 = vpack.c.b16 %v685, %v676
  %v929 = vpack.c.b16 %v686, %v677
  %v930 = vpack.c.b16 %v687, %v678
  %v931 = vpack.c.b16 %v697, %v688
  %v932 = vpack.c.b16 %v698, %v689
  %v933 = vpack.c.b16 %v699, %v690
  %v934 = vpack.c.b16 %v700, %v691
  %v935 = vpack.c.b16 %v701, %v692
  %v936 = vpack.c.b16 %v702, %v693
  %v937 = vpack.c.b16 %v703, %v694
  %v938 = vpack.c.b16 %v704, %v695
  %v939 = vpack.c.b16 %v705, %v696
  %v940 = vpack.c.b16 %v715, %v706
  %v941 = vpack.c.b16 %v716, %v707
  %v942 = vpack.c.b16 %v717, %v708
  %v943 = vpack.c.b16 %v718, %v709
  %v944 = vpack.c.b16 %v719, %v710
  %v945 = vpack.c.b16 %v720, %v711
  %v946 = vpack.c.b16 %v721, %v712
  %v947 = vpack.c.b16 %v722, %v713
  %v948 = vpack.c.b16 %v723, %v714
  %v949 = vpack.c.b16 %v733, %v724
  %v950 = vpack.c.b16 %v734, %v725
  %v951 = vpack.c.b16 %v735, %v726
  %v952 = vpack.c.b16 %v736, %v727
  %v953 = vpack.c.b16 %v737, %v728
  %v954 = vpack.c.b16 %v738, %v729
  %v955 = vpack.c.b16 %v739, %v730
  %v956 = vpack.c.b16 %v740, %v731
  %v957 = vpack.c.b16 %v741, %v732
  %v958 = vpack.c.b16 %v751, %v742
  %v959 = vpack.c.b16 %v752, %v743
  %v960 = vpack.c.b16 %v753, %v744
  %v961 = vpack.c.b16 %v754, %v745
  %v962 = vpack.c.b16 %v755, %v746
  %v963 = vpack.c.b16 %v756, %v747
  %v964 = vpack.c.b16 %v757, %v748
  %v965 = vpack.c.b16 %v758, %v749
  %v966 = vpack.c.b16 %v759, %v750
  %v967 = vpack.c.b16 %v769, %v760
  %v968 = vpack.c.b16 %v770, %v761
  %v969 = vpack.c.b16 %v771, %v762
  %v970 = vpack.c.b16 %v772, %v763
  %v971 = vpack.c.b16 %v773, %v764
  %v972 = vpack.c.b16 %v774, %v765
  %v973 = vpack.c.b16 %v775, %v766
  %v974 = vpack.c.b16 %v776, %v767
  %v975 = vpack.c.b16 %v777, %v768
  %v976 = vpack.c.b16 %v787, %v778
  %v977 = vpack.c.b16 %v788, %v779
  %v978 = vpack.c.b16 %v789, %v780
  %v979 = vpack.c.b16 %v790, %v781
  %v980 = vpack.c.b16 %v791, %v782
  %v981 = vpack.c.b16 %v792, %v783
  %v982 = vpack.c.b16 %v793, %v784
  %v983 = vpack.c.b16 %v794, %v785
  %v984 = vpack.c.b16 %v795, %v786
  %v985 = vpack.c.b16 %v805, %v796
  %v986 = vpack.c.b16 %v806, %v797
  %v987 = vpack.c.b16 %v807, %v798
  %v988 = vpack.c.b16 %v808, %v799
  %v989 = vpack.c.b16 %v809, %v800
  %v990 = vpack.c.b16 %v810, %v801
  %v991 = vpack.c.b16 %v811, %v802
  %v992 = vpack.c.b16 %v812, %v803
  %v993 = vpack.c.b16 %v813, %v804
  %v994 = vpack.c.b16 %v823, %v814
  %v995 = vpack.c.b16 %v824, %v815
  %v996 = vpack.c.b16 %v825, %v816
  %v997 = vpack.c.b16 %v826, %v817
  %v998 = vpack.c.b16 %v827, %v818
  %v999 = vpack.c.b16 %v828, %v819
  %v1000 = vpack.c.b16 %v829, %v820
  %v1001 = vpack.c.b16 %v830, %v821
  %v1002 = vpack.c.b16 %v831, %v822
  %v1003 = vpack.c.b16 %v841, %v832
  %v1004 = vpack.c.b16 %v842, %v833
  %v1005 = vpack.c.b16 %v843, %v834
  %v1006 = vpack.c.b16 %v844, %v835
  %v1007 = vpack.c.b16 %v845, %v836
  %v1008 = vpack.c.b16 %v846, %v837
  %v1009 = vpack.c.b16 %v847, %v838
  %v1010 = vpack.c.b16 %v848, %v839
  %v1011 = vpack.c.b16 %v849, %v840
  %v1318 = vunpack.c.l.b16 %v195
  %v1319 = vunpack.c.l.b16 %v196
  %v1320 = vunpack.c.l.b16 %v197
  %v1321 = vunpack.c.l.b16 %v198
  %v1322 = vunpack.c.l.b16 %v199
  %v1323 = vunpack.c.l.b16 %v200
  %v1324 = vunpack.c.l.b16 %v201
  %v1325 = vunpack.c.l.b16 %v202
  %v1326 = vunpack.c.l.b16 %v203
  %v1327 = vunpack.c.l.b16 %v204
  %v1328 = vunpack.c.l.b16 %v205
  %v1329 = vunpack.c.l.b16 %v206
  %v1330 = vunpack.c.l.b16 %v207
  %v1331 = vunpack.c.l.b16 %v208
  %v1332 = vunpack.c.l.b16 %v209
  %v1333 = vunpack.c.l.b16 %v210
  %v1334 = vunpack.c.l.b16 %v211
  %v1335 = vunpack.c.l.b16 %v212
  %v1336 = vunpack.c.l.b16 %v213
  %v1337 = vunpack.c.l.b16 %v214
  %v1338 = vunpack.c.l.b16 %v215
  %v1339 = vunpack.c.l.b16 %v216
  %v1340 = vunpack.c.l.b16 %v217
  %v1341 = vunpack.c.l.b16 %v218
  %v1342 = vunpack.c.l.b16 %v219
  %v1343 = vunpack.c.l.b16 %v220
  %v1344 = vunpack.c.l.b16 %v221
  %v1345 = vunpack.c.l.b16 %v222
  %v1346 = vunpack.c.l.b16 %v223
  %v1347 = vunpack.c.l.b16 %v224
  %v1348 = vunpack.c.l.b16 %v225
  %v1349 = vunpack.c.l.b16 %v226
  %v1350 = vunpack.c.l.b16 %v227
  %v1351 = vunpack.c.l.b16 %v228
  %v1352 = vunpack.c.l.b16 %v229
  %v1353 = vunpack.c.l.b16 %v230
  %v1354 = vunpack.c.l.b16 %v231
  %v1355 = vunpack.c.l.b16 %v232
  %v1356 = vunpack.c.l.b16 %v233
  %v1357 = vunpack.c.l.b16 %v234
  %v1358 = vunpack.c.l.b16 %v235
  %v1359 = vunpack.c.l.b16 %v236
  %v1360 = vunpack.c.l.b16 %v237
  %v1361 = vunpack.c.l.b16 %v238
  %v1362 = vunpack.c.l.b16 %v239
  %v1363 = vunpack.c.l.b16 %v240
  %v1364 = vunpack.c.l.b16 %v241
  %v1365 = vunpack.c.l.b16 %v242
  %v1366 = vunpack.c.l.b16 %v243
  %v1367 = vunpack.c.l.b16 %v244
  %v1368 = vunpack.c.l.b16 %v245
  %v1369 = vunpack.c.l.b16 %v246
  %v1370 = vunpack.c.l.b16 %v247
  %v1371 = vunpack.c.l.b16 %v248
  %v1372 = vunpack.c.l.b16 %v249
  %v1373 = vunpack.c.l.b16 %v250
  %v1374 = vunpack.c.l.b16 %v251
  %v1375 = vunpack.c.l.b16 %v252
  %v1376 = vunpack.c.l.b16 %v253
  %v1377 = vunpack.c.l.b16 %v254
  %v1378 = vunpack.c.l.b16 %v255
  %v1379 = vunpack.c.l.b16 %v256
  %v1380 = vunpack.c.l.b16 %v257
  %v1381 = vunpack.c.l.b16 %v258
  %v1382 = vunpack.c.l.b16 %v259
  %v1383 = vunpack.c.l.b16 %v260
  %v1384 = vunpack.c.l.b16 %v261
  %v1385 = vunpack.c.l.b16 %v262
  %v1386 = vunpack.c.l.b16 %v263
  %v1387 = vunpack.c.l.b16 %v264
  %v1388 = vunpack.c.l.b16 %v265
  %v1389 = vunpack.c.l.b16 %v266
  %v1390 = vunpack.c.l.b16 %v267
  %v1391 = vunpack.c.l.b16 %v268
  %v1392 = vunpack.c.l.b16 %v269
  %v1393 = vunpack.c.l.b16 %v270
  %v1394 = vunpack.c.l.b16 %v271
  %v1395 = vunpack.c.l.b16 %v272
  %v1396 = vunpack.c.l.b16 %v273
  %v1397 = vunpack.c.l.b16 %v274
  %v1398 = vunpack.c.l.b16 %v275
  %v1399 = vunpack.c.l.b16 %v276
  %v1400 = vunpack.c.l.b16 %v277
  %v1401 = vunpack.c.l.b16 %v278
  %v1402 = vunpack.c.l.b16 %v279
  %v1403 = vunpack.c.l.b16 %v280
  %v1404 = vunpack.c.l.b16 %v281
  %v1405 = vunpack.c.l.b16 %v282
  %v1406 = vunpack.c.l.b16 %v283
  %v1407 = vunpack.c.l.b16 %v284
  %v1408 = vunpack.c.l.b16 %v285
  %v1409 = vunpack.c.l.b16 %v286
  %v1410 = vunpack.c.l.b16 %v287
  %v1411 = vunpack.c.l.b16 %v288
  %v1412 = vunpack.c.l.b16 %v289
  %v1413 = vunpack.c.l.b16 %v290
  %v1414 = vunpack.c.l.b16 %v291
  %v1415 = vunpack.c.l.b16 %v292
  %v1416 = vunpack.c.l.b16 %v293
  %v1417 = vunpack.c.l.b16 %v294
  %v1418 = vunpack.c.l.b16 %v295
  %v1419 = vunpack.c.l.b16 %v296
  %v1420 = vunpack.c.l.b16 %v297
  %v1421 = vunpack.c.l.b16 %v298
  %v1422 = vunpack.c.l.b16 %v299
  %v1423 = vunpack.c.l.b16 %v300
  %v1424 = vunpack.c.l.b16 %v301
  %v1425 = vunpack.c.l.b16 %v302
  %v1426 = vunpack.c.l.b16 %v303
  %v1427 = vunpack.c.l.b16 %v304
  %v1428 = vunpack.c.l.b16 %v305
  %v1429 = vunpack.c.l.b16 %v306
  %v1430 = vunpack.c.l.b16 %v307
  %v1431 = vunpack.c.l.b16 %v308
  %v1432 = vunpack.c.l.b16 %v309
  %v1433 = vunpack.c.l.b16 %v310
  %v1434 = vunpack.c.l.b16 %v311
  %v1435 = vunpack.c.l.b16 %v312
  %v1436 = vunpack.c.l.b16 %v313
  %v1437 = vunpack.c.l.b16 %v314
  %v1438 = vunpack.c.l.b16 %v315
  %v1439 = vunpack.c.l.b16 %v316
  %v1440 = vunpack.c.l.b16 %v317
  %v1441 = vunpack.c.l.b16 %v318
  %v1442 = vunpack.c.l.b16 %v319
  %v1443 = vunpack.c.l.b16 %v320
  %v1444 = vunpack.c.l.b16 %v321
  %v1445 = vunpack.c.l.b16 %v322
  %v1446 = vunpack.c.l.b16 %v323
  %v1447 = vunpack.c.l.b16 %v324
  %v1448 = vunpack.c.l.b16 %v325
  %v1449 = vunpack.c.l.b16 %v326
  %v1450 = vunpack.c.l.b16 %v327
  %v1451 = vunpack.c.l.b16 %v328
  %v1452 = vunpack.c.l.b16 %v329
  %v1453 = vunpack.c.l.b16 %v330
  %v1454 = vunpack.c.l.b16 %v331
  %v1455 = vunpack.c.l.b16 %v332
  %v1456 = vunpack.c.l.b16 %v333
  %v1457 = vunpack.c.l.b16 %v334
  %v1458 = vunpack.c.l.b16 %v335
  %v1459 = vunpack.c.l.b16 %v336
  %v1460 = vunpack.c.l.b16 %v337
  %v1461 = vunpack.c.l.b16 %v338
  %v1462 = vpack.c.b16 %v1319, %v1318
  %v1463 = vpack.c.b16 %v1321, %v1320
  %v1464 = vpack.c.b16 %v1323, %v1322
  %v1465 = vpack.c.b16 %v1325, %v1324
  %v1466 = vpack.c.b16 %v1327, %v1326
  %v1467 = vpack.c.b16 %v1329, %v1328
  %v1468 = vpack.c.b16 %v1331, %v1330
  %v1469 = vpack.c.b16 %v1333, %v1332
  %v1470 = vpack.c.b16 %v1335, %v1334
  %v1471 = vpack.c.b16 %v1337, %v1336
  %v1472 = vpack.c.b16 %v1339, %v1338
  %v1473 = vpack.c.b16 %v1341, %v1340
  %v1474 = vpack.c.b16 %v1343, %v1342
  %v1475 = vpack.c.b16 %v1345, %v1344
  %v1476 = vpack.c.b16 %v1347, %v1346
  %v1477 = vpack.c.b16 %v1349, %v1348
  %v1478 = vpack.c.b16 %v1351, %v1350
  %v1479 = vpack.c.b16 %v1353, %v1352
  %v1480 = vpack.c.b16 %v1355, %v1354
  %v1481 = vpack.c.b16 %v1357, %v1356
  %v1482 = vpack.c.b16 %v1359, %v1358
  %v1483 = vpack.c.b16 %v1361, %v1360
  %v1484 = vpack.c.b16 %v1363, %v1362
  %v1485 = vpack.c.b16 %v1365, %v1364
  %v1486 = vpack.c.b16 %v1367, %v1366
  %v1487 = vpack.c.b16 %v1369, %v1368
  %v1488 = vpack.c.b16 %v1371, %v1370
  %v1489 = vpack.c.b16 %v1373, %v1372
  %v1490 = vpack.c.b16 %v1375, %v1374
  %v1491 = vpack.c.b16 %v1377, %v1376
  %v1492 = vpack.c.b16 %v1379, %v1378
  %v1493 = vpack.c.b16 %v1381, %v1380
  %v1494 = vpack.c.b16 %v1383, %v1382
  %v1495 = vpack.c.b16 %v1385, %v1384
  %v1496 = vpack.c.b16 %v1387, %v1386
  %v1497 = vpack.c.b16 %v1389, %v1388
  %v1498 = vpack.c.b16 %v1391, %v1390
  %v1499 = vpack.c.b16 %v1393, %v1392
  %v1500 = vpack.c.b16 %v1395, %v1394
  %v1501 = vpack.c.b16 %v1397, %v1396
  %v1502 = vpack.c.b16 %v1399, %v1398
  %v1503 = vpack.c.b16 %v1401, %v1400
  %v1504 = vpack.c.b16 %v1403, %v1402
  %v1505 = vpack.c.b16 %v1405, %v1404
  %v1506 = vpack.c.b16 %v1407, %v1406
  %v1507 = vpack.c.b16 %v1409, %v1408
  %v1508 = vpack.c.b16 %v1411, %v1410
  %v1509 = vpack.c.b16 %v1413, %v1412
  %v1510 = vpack.c.b16 %v1415, %v1414
  %v1511 = vpack.c.b16 %v1417, %v1416
  %v1512 = vpack.c.b16 %v1419, %v1418
  %v1513 = vpack.c.b16 %v1421, %v1420
  %v1514 = vpack.c.b16 %v1423, %v1422
  %v1515 = vpack.c.b16 %v1425, %v1424
  %v1516 = vpack.c.b16 %v1427, %v1426
  %v1517 = vpack.c.b16 %v1429, %v1428
  %v1518 = vpack.c.b16 %v1431, %v1430
  %v1519 = vpack.c.b16 %v1433, %v1432
  %v1520 = vpack.c.b16 %v1435, %v1434
  %v1521 = vpack.c.b16 %v1437, %v1436
  %v1522 = vpack.c.b16 %v1439, %v1438
  %v1523 = vpack.c.b16 %v1441, %v1440
  %v1524 = vpack.c.b16 %v1443, %v1442
  %v1525 = vpack.c.b16 %v1445, %v1444
  %v1526 = vpack.c.b16 %v1447, %v1446
  %v1527 = vpack.c.b16 %v1449, %v1448
  %v1528 = vpack.c.b16 %v1451, %v1450
  %v1529 = vpack.c.b16 %v1453, %v1452
  %v1530 = vpack.c.b16 %v1455, %v1454
  %v1531 = vpack.c.b16 %v1457, %v1456
  %v1532 = vpack.c.b16 %v1459, %v1458
  %v1533 = vpack.c.b16 %v1461, %v1460
  %1606 = vmatprep.subr.bf16.mxu0 0
  %1607 = vmatpush1.bf16.msra.mxu0 %v1469
  %1608 = vmatprep.subr.bf16.mxu0 0
  %1609 = vmatpush1.bf16.msra.mxu0 %v1468
  %1610 = vmatprep.subr.bf16.mxu0 0
  %1611 = vmatpush1.bf16.msra.mxu0 %v1467
  %1612 = vmatprep.subr.bf16.mxu0 0
  %1613 = vmatpush1.bf16.msra.mxu0 %v1466
  %1614 = vmatprep.subr.bf16.mxu0 0
  %1615 = vmatpush1.bf16.msra.mxu0 %v1465
  %1616 = vmatprep.subr.bf16.mxu0 0
  %1617 = vmatpush1.bf16.msra.mxu0 %v1464
  %1618 = vmatprep.subr.bf16.mxu0 0
  %1619 = vmatpush1.bf16.msra.mxu0 %v1463
  %1620 = vmatprep.subr.bf16.mxu0 0
  %1621 = vmatpush1.bf16.msra.mxu0 %v1462
  %1622 = vmatprep.subr.bf16.mxu0 0
  %1623 = vmatpush2.bf16.msra.mxu0 %v1477
  %1624 = vmatprep.subr.bf16.mxu0 0
  %1625 = vmatpush2.bf16.msra.mxu0 %v1476
  %1626 = vmatprep.subr.bf16.mxu0 0
  %1627 = vmatpush2.bf16.msra.mxu0 %v1475
  %1628 = vmatprep.subr.bf16.mxu0 0
  %1629 = vmatpush2.bf16.msra.mxu0 %v1474
  %1630 = vmatprep.subr.bf16.mxu0 0
  %1631 = vmatpush2.bf16.msra.mxu0 %v1473
  %1632 = vmatprep.subr.bf16.mxu0 0
  %1633 = vmatpush2.bf16.msra.mxu0 %v1472
  %1634 = vmatprep.subr.bf16.mxu0 0
  %1635 = vmatpush2.bf16.msra.mxu0 %v1471
  %1636 = vmatprep.subr.bf16.mxu0 0
  %1637 = vmatpush2.bf16.msra.mxu0 %v1470
  %1638 = vmatprep.mubr.bf16.mxu0 %v851
  %1639 = vmatmul.mubr.bf16.gmra.mxu0 %v850
  %v1640 = vpop.f32.mrf.mxu0
  %v1641 = vadd.f32 %v344, %v1640
  %v1642 = vpop.f32.mrf.mxu0
  %v1643 = vpop.f32.mrf.mxu0
  %v1644 = vadd.f32 %v344, %v1643
  %v1645 = vpop.f32.mrf.mxu0
  %1646 = vmatprep.mubr.bf16.mxu0 %v860
  %1647 = vmatmul.mubr.bf16.gmra.mxu0 %v859
  %v1648 = vpop.f32.mrf.mxu0
  %v1649 = vadd.f32 %v344, %v1648
  %v1650 = vpop.f32.mrf.mxu0
  %v1651 = vpop.f32.mrf.mxu0
  %v1652 = vadd.f32 %v344, %v1651
  %v1653 = vpop.f32.mrf.mxu0
  %1654 = vmatprep.mubr.bf16.mxu0 %v869
  %1655 = vmatmul.mubr.bf16.gmra.mxu0 %v868
  %v1656 = vpop.f32.mrf.mxu0
  %v1657 = vadd.f32 %v344, %v1656
  %v1658 = vpop.f32.mrf.mxu0
  %v1659 = vpop.f32.mrf.mxu0
  %v1660 = vadd.f32 %v344, %v1659
  %v1661 = vpop.f32.mrf.mxu0
  %1662 = vmatprep.mubr.bf16.mxu0 %v878
  %1663 = vmatmul.mubr.bf16.gmra.mxu0 %v877
  %v1664 = vpop.f32.mrf.mxu0
  %v1665 = vadd.f32 %v344, %v1664
  %v1666 = vpop.f32.mrf.mxu0
  %v1667 = vpop.f32.mrf.mxu0
  %v1668 = vadd.f32 %v344, %v1667
  %v1669 = vpop.f32.mrf.mxu0
  %1670 = vmatprep.mubr.bf16.mxu0 %v887
  %1671 = vmatmul.mubr.bf16.gmra.mxu0 %v886
  %v1672 = vpop.f32.mrf.mxu0
  %v1673 = vadd.f32 %v344, %v1672
  %v1674 = vpop.f32.mrf.mxu0
  %v1675 = vpop.f32.mrf.mxu0
  %v1676 = vadd.f32 %v344, %v1675
  %v1677 = vpop.f32.mrf.mxu0
  %1678 = vmatprep.mubr.bf16.mxu0 %v896
  %1679 = vmatmul.mubr.bf16.gmra.mxu0 %v895
  %v1680 = vpop.f32.mrf.mxu0
  %v1681 = vadd.f32 %v344, %v1680
  %v1682 = vpop.f32.mrf.mxu0
  %v1683 = vpop.f32.mrf.mxu0
  %v1684 = vadd.f32 %v344, %v1683
  %v1685 = vpop.f32.mrf.mxu0
  %1686 = vmatprep.mubr.bf16.mxu0 %v905
  %1687 = vmatmul.mubr.bf16.gmra.mxu0 %v904
  %v1688 = vpop.f32.mrf.mxu0
  %v1689 = vadd.f32 %v344, %v1688
  %v1690 = vpop.f32.mrf.mxu0
  %v1691 = vpop.f32.mrf.mxu0
  %v1692 = vadd.f32 %v344, %v1691
  %v1693 = vpop.f32.mrf.mxu0
  %1694 = vmatprep.mubr.bf16.mxu0 %v914
  %1695 = vmatmul.mubr.bf16.gmra.mxu0 %v913
  %v1696 = vpop.f32.mrf.mxu0
  %v1697 = vadd.f32 %v344, %v1696
  %v1698 = vpop.f32.mrf.mxu0
  %v1699 = vpop.f32.mrf.mxu0
  %v1700 = vadd.f32 %v344, %v1699
  %v1701 = vpop.f32.mrf.mxu0
  %1702 = vmatprep.mubr.bf16.mxu0 %v923
  %1703 = vmatmul.mubr.bf16.gmra.mxu0 %v922
  %v1704 = vpop.f32.mrf.mxu0
  %v1705 = vadd.f32 %v344, %v1704
  %v1706 = vpop.f32.mrf.mxu0
  %v1707 = vpop.f32.mrf.mxu0
  %v1708 = vadd.f32 %v344, %v1707
  %v1709 = vpop.f32.mrf.mxu0
  %1710 = vmatprep.mubr.bf16.mxu0 %v932
  %1711 = vmatmul.mubr.bf16.gmra.mxu0 %v931
  %v1712 = vpop.f32.mrf.mxu0
  %v1713 = vadd.f32 %v344, %v1712
  %v1714 = vpop.f32.mrf.mxu0
  %v1715 = vpop.f32.mrf.mxu0
  %v1716 = vadd.f32 %v344, %v1715
  %v1717 = vpop.f32.mrf.mxu0
  %1718 = vmatprep.mubr.bf16.mxu0 %v941
  %1719 = vmatmul.mubr.bf16.gmra.mxu0 %v940
  %v1720 = vpop.f32.mrf.mxu0
  %v1721 = vadd.f32 %v344, %v1720
  %v1722 = vpop.f32.mrf.mxu0
  %v1723 = vpop.f32.mrf.mxu0
  %v1724 = vadd.f32 %v344, %v1723
  %v1725 = vpop.f32.mrf.mxu0
  %1726 = vmatprep.mubr.bf16.mxu0 %v950
  %1727 = vmatmul.mubr.bf16.gmra.mxu0 %v949
  %v1728 = vpop.f32.mrf.mxu0
  %v1729 = vadd.f32 %v344, %v1728
  %v1730 = vpop.f32.mrf.mxu0
  %v1731 = vpop.f32.mrf.mxu0
  %v1732 = vadd.f32 %v344, %v1731
  %v1733 = vpop.f32.mrf.mxu0
  %1734 = vmatprep.mubr.bf16.mxu0 %v959
  %1735 = vmatmul.mubr.bf16.gmra.mxu0 %v958
  %v1736 = vpop.f32.mrf.mxu0
  %v1737 = vadd.f32 %v344, %v1736
  %v1738 = vpop.f32.mrf.mxu0
  %v1739 = vpop.f32.mrf.mxu0
  %v1740 = vadd.f32 %v344, %v1739
  %v1741 = vpop.f32.mrf.mxu0
  %1742 = vmatprep.mubr.bf16.mxu0 %v968
  %1743 = vmatmul.mubr.bf16.gmra.mxu0 %v967
  %v1744 = vpop.f32.mrf.mxu0
  %v1745 = vadd.f32 %v344, %v1744
  %v1746 = vpop.f32.mrf.mxu0
  %v1747 = vpop.f32.mrf.mxu0
  %v1748 = vadd.f32 %v344, %v1747
  %v1749 = vpop.f32.mrf.mxu0
  %1750 = vmatprep.mubr.bf16.mxu0 %v977
  %1751 = vmatmul.mubr.bf16.gmra.mxu0 %v976
  %v1752 = vpop.f32.mrf.mxu0
  %v1753 = vadd.f32 %v344, %v1752
  %v1754 = vpop.f32.mrf.mxu0
  %v1755 = vpop.f32.mrf.mxu0
  %v1756 = vadd.f32 %v344, %v1755
  %v1757 = vpop.f32.mrf.mxu0
  %1758 = vmatprep.mubr.bf16.mxu0 %v986
  %1759 = vmatmul.mubr.bf16.gmra.mxu0 %v985
  %v1760 = vpop.f32.mrf.mxu0
  %v1761 = vadd.f32 %v344, %v1760
  %v1762 = vpop.f32.mrf.mxu0
  %v1763 = vpop.f32.mrf.mxu0
  %v1764 = vadd.f32 %v344, %v1763
  %v1765 = vpop.f32.mrf.mxu0
  %1766 = vmatprep.mubr.bf16.mxu0 %v995
  %1767 = vmatmul.mubr.bf16.gmra.mxu0 %v994
  %v1768 = vpop.f32.mrf.mxu0
  %v1769 = vadd.f32 %v344, %v1768
  %v1770 = vpop.f32.mrf.mxu0
  %v1771 = vpop.f32.mrf.mxu0
  %v1772 = vadd.f32 %v344, %v1771
  %v1773 = vpop.f32.mrf.mxu0
  %1774 = vmatprep.mubr.bf16.mxu0 %v1004
  %1775 = vmatmul.mubr.bf16.gmra.mxu0 %v1003
  %v1776 = vpop.f32.mrf.mxu0
  %v1777 = vadd.f32 %v344, %v1776
  %v1778 = vpop.f32.mrf.mxu0
  %v1779 = vpop.f32.mrf.mxu0
  %v1780 = vadd.f32 %v344, %v1779
  %v1781 = vpop.f32.mrf.mxu0
  %1782 = vdwg.mxu0
  %1783 = vmatprep.subr.bf16.mxu0 0
  %1784 = vmatpush1.bf16.msra.mxu0 %v1485
  %1785 = vmatprep.subr.bf16.mxu0 0
  %1786 = vmatpush1.bf16.msra.mxu0 %v1484
  %1787 = vmatprep.subr.bf16.mxu0 0
  %1788 = vmatpush1.bf16.msra.mxu0 %v1483
  %1789 = vmatprep.subr.bf16.mxu0 0
  %1790 = vmatpush1.bf16.msra.mxu0 %v1482
  %1791 = vmatprep.subr.bf16.mxu0 0
  %1792 = vmatpush1.bf16.msra.mxu0 %v1481
  %1793 = vmatprep.subr.bf16.mxu0 0
  %1794 = vmatpush1.bf16.msra.mxu0 %v1480
  %1795 = vmatprep.subr.bf16.mxu0 0
  %1796 = vmatpush1.bf16.msra.mxu0 %v1479
  %1797 = vmatprep.subr.bf16.mxu0 0
  %1798 = vmatpush1.bf16.msra.mxu0 %v1478
  %1799 = vmatprep.subr.bf16.mxu0 0
  %1800 = vmatpush2.bf16.msra.mxu0 %v1493
  %1801 = vmatprep.subr.bf16.mxu0 0
  %1802 = vmatpush2.bf16.msra.mxu0 %v1492
  %1803 = vmatprep.subr.bf16.mxu0 0
  %1804 = vmatpush2.bf16.msra.mxu0 %v1491
  %1805 = vmatprep.subr.bf16.mxu0 0
  %1806 = vmatpush2.bf16.msra.mxu0 %v1490
  %1807 = vmatprep.subr.bf16.mxu0 0
  %1808 = vmatpush2.bf16.msra.mxu0 %v1489
  %1809 = vmatprep.subr.bf16.mxu0 0
  %1810 = vmatpush2.bf16.msra.mxu0 %v1488
  %1811 = vmatprep.subr.bf16.mxu0 0
  %1812 = vmatpush2.bf16.msra.mxu0 %v1487
  %1813 = vmatprep.subr.bf16.mxu0 0
  %1814 = vmatpush2.bf16.msra.mxu0 %v1486
  %1815 = vmatprep.mubr.bf16.mxu0 %v853
  %1816 = vmatmul.mubr.bf16.gmra.mxu0 %v852
  %v1817 = vpop.f32.mrf.mxu0
  %v1818 = vadd.f32 %v1641, %v1817
  %v1819 = vpop.f32.mrf.mxu0
  %v1820 = vpop.f32.mrf.mxu0
  %v1821 = vadd.f32 %v1644, %v1820
  %v1822 = vpop.f32.mrf.mxu0
  %1823 = vmatprep.mubr.bf16.mxu0 %v862
  %1824 = vmatmul.mubr.bf16.gmra.mxu0 %v861
  %v1825 = vpop.f32.mrf.mxu0
  %v1826 = vadd.f32 %v1649, %v1825
  %v1827 = vpop.f32.mrf.mxu0
  %v1828 = vpop.f32.mrf.mxu0
  %v1829 = vadd.f32 %v1652, %v1828
  %v1830 = vpop.f32.mrf.mxu0
  %1831 = vmatprep.mubr.bf16.mxu0 %v871
  %1832 = vmatmul.mubr.bf16.gmra.mxu0 %v870
  %v1833 = vpop.f32.mrf.mxu0
  %v1834 = vadd.f32 %v1657, %v1833
  %v1835 = vpop.f32.mrf.mxu0
  %v1836 = vpop.f32.mrf.mxu0
  %v1837 = vadd.f32 %v1660, %v1836
  %v1838 = vpop.f32.mrf.mxu0
  %1839 = vmatprep.mubr.bf16.mxu0 %v880
  %1840 = vmatmul.mubr.bf16.gmra.mxu0 %v879
  %v1841 = vpop.f32.mrf.mxu0
  %v1842 = vadd.f32 %v1665, %v1841
  %v1843 = vpop.f32.mrf.mxu0
  %v1844 = vpop.f32.mrf.mxu0
  %v1845 = vadd.f32 %v1668, %v1844
  %v1846 = vpop.f32.mrf.mxu0
  %1847 = vmatprep.mubr.bf16.mxu0 %v889
  %1848 = vmatmul.mubr.bf16.gmra.mxu0 %v888
  %v1849 = vpop.f32.mrf.mxu0
  %v1850 = vadd.f32 %v1673, %v1849
  %v1851 = vpop.f32.mrf.mxu0
  %v1852 = vpop.f32.mrf.mxu0
  %v1853 = vadd.f32 %v1676, %v1852
  %v1854 = vpop.f32.mrf.mxu0
  %1855 = vmatprep.mubr.bf16.mxu0 %v898
  %1856 = vmatmul.mubr.bf16.gmra.mxu0 %v897
  %v1857 = vpop.f32.mrf.mxu0
  %v1858 = vadd.f32 %v1681, %v1857
  %v1859 = vpop.f32.mrf.mxu0
  %v1860 = vpop.f32.mrf.mxu0
  %v1861 = vadd.f32 %v1684, %v1860
  %v1862 = vpop.f32.mrf.mxu0
  %1863 = vmatprep.mubr.bf16.mxu0 %v907
  %1864 = vmatmul.mubr.bf16.gmra.mxu0 %v906
  %v1865 = vpop.f32.mrf.mxu0
  %v1866 = vadd.f32 %v1689, %v1865
  %v1867 = vpop.f32.mrf.mxu0
  %v1868 = vpop.f32.mrf.mxu0
  %v1869 = vadd.f32 %v1692, %v1868
  %v1870 = vpop.f32.mrf.mxu0
  %1871 = vmatprep.mubr.bf16.mxu0 %v916
  %1872 = vmatmul.mubr.bf16.gmra.mxu0 %v915
  %v1873 = vpop.f32.mrf.mxu0
  %v1874 = vadd.f32 %v1697, %v1873
  %v1875 = vpop.f32.mrf.mxu0
  %v1876 = vpop.f32.mrf.mxu0
  %v1877 = vadd.f32 %v1700, %v1876
  %v1878 = vpop.f32.mrf.mxu0
  %1879 = vmatprep.mubr.bf16.mxu0 %v925
  %1880 = vmatmul.mubr.bf16.gmra.mxu0 %v924
  %v1881 = vpop.f32.mrf.mxu0
  %v1882 = vadd.f32 %v1705, %v1881
  %v1883 = vpop.f32.mrf.mxu0
  %v1884 = vpop.f32.mrf.mxu0
  %v1885 = vadd.f32 %v1708, %v1884
  %v1886 = vpop.f32.mrf.mxu0
  %1887 = vmatprep.mubr.bf16.mxu0 %v934
  %1888 = vmatmul.mubr.bf16.gmra.mxu0 %v933
  %v1889 = vpop.f32.mrf.mxu0
  %v1890 = vadd.f32 %v1713, %v1889
  %v1891 = vpop.f32.mrf.mxu0
  %v1892 = vpop.f32.mrf.mxu0
  %v1893 = vadd.f32 %v1716, %v1892
  %v1894 = vpop.f32.mrf.mxu0
  %1895 = vmatprep.mubr.bf16.mxu0 %v943
  %1896 = vmatmul.mubr.bf16.gmra.mxu0 %v942
  %v1897 = vpop.f32.mrf.mxu0
  %v1898 = vadd.f32 %v1721, %v1897
  %v1899 = vpop.f32.mrf.mxu0
  %v1900 = vpop.f32.mrf.mxu0
  %v1901 = vadd.f32 %v1724, %v1900
  %v1902 = vpop.f32.mrf.mxu0
  %1903 = vmatprep.mubr.bf16.mxu0 %v952
  %1904 = vmatmul.mubr.bf16.gmra.mxu0 %v951
  %v1905 = vpop.f32.mrf.mxu0
  %v1906 = vadd.f32 %v1729, %v1905
  %v1907 = vpop.f32.mrf.mxu0
  %v1908 = vpop.f32.mrf.mxu0
  %v1909 = vadd.f32 %v1732, %v1908
  %v1910 = vpop.f32.mrf.mxu0
  %1911 = vmatprep.mubr.bf16.mxu0 %v961
  %1912 = vmatmul.mubr.bf16.gmra.mxu0 %v960
  %v1913 = vpop.f32.mrf.mxu0
  %v1914 = vadd.f32 %v1737, %v1913
  %v1915 = vpop.f32.mrf.mxu0
  %v1916 = vpop.f32.mrf.mxu0
  %v1917 = vadd.f32 %v1740, %v1916
  %v1918 = vpop.f32.mrf.mxu0
  %1919 = vmatprep.mubr.bf16.mxu0 %v970
  %1920 = vmatmul.mubr.bf16.gmra.mxu0 %v969
  %v1921 = vpop.f32.mrf.mxu0
  %v1922 = vadd.f32 %v1745, %v1921
  %v1923 = vpop.f32.mrf.mxu0
  %v1924 = vpop.f32.mrf.mxu0
  %v1925 = vadd.f32 %v1748, %v1924
  %v1926 = vpop.f32.mrf.mxu0
  %1927 = vmatprep.mubr.bf16.mxu0 %v979
  %1928 = vmatmul.mubr.bf16.gmra.mxu0 %v978
  %v1929 = vpop.f32.mrf.mxu0
  %v1930 = vadd.f32 %v1753, %v1929
  %v1931 = vpop.f32.mrf.mxu0
  %v1932 = vpop.f32.mrf.mxu0
  %v1933 = vadd.f32 %v1756, %v1932
  %v1934 = vpop.f32.mrf.mxu0
  %1935 = vmatprep.mubr.bf16.mxu0 %v988
  %1936 = vmatmul.mubr.bf16.gmra.mxu0 %v987
  %v1937 = vpop.f32.mrf.mxu0
  %v1938 = vadd.f32 %v1761, %v1937
  %v1939 = vpop.f32.mrf.mxu0
  %v1940 = vpop.f32.mrf.mxu0
  %v1941 = vadd.f32 %v1764, %v1940
  %v1942 = vpop.f32.mrf.mxu0
  %1943 = vmatprep.mubr.bf16.mxu0 %v997
  %1944 = vmatmul.mubr.bf16.gmra.mxu0 %v996
  %v1945 = vpop.f32.mrf.mxu0
  %v1946 = vadd.f32 %v1769, %v1945
  %v1947 = vpop.f32.mrf.mxu0
  %v1948 = vpop.f32.mrf.mxu0
  %v1949 = vadd.f32 %v1772, %v1948
  %v1950 = vpop.f32.mrf.mxu0
  %1951 = vmatprep.mubr.bf16.mxu0 %v1006
  %1952 = vmatmul.mubr.bf16.gmra.mxu0 %v1005
  %v1953 = vpop.f32.mrf.mxu0
  %v1954 = vadd.f32 %v1777, %v1953
  %v1955 = vpop.f32.mrf.mxu0
  %v1956 = vpop.f32.mrf.mxu0
  %v1957 = vadd.f32 %v1780, %v1956
  %v1958 = vpop.f32.mrf.mxu0
  %1959 = vdwg.mxu0
  %1960 = vmatprep.subr.bf16.mxu0 0
  %1961 = vmatpush1.bf16.msra.mxu0 %v1501
  %1962 = vmatprep.subr.bf16.mxu0 0
  %1963 = vmatpush1.bf16.msra.mxu0 %v1500
  %1964 = vmatprep.subr.bf16.mxu0 0
  %1965 = vmatpush1.bf16.msra.mxu0 %v1499
  %1966 = vmatprep.subr.bf16.mxu0 0
  %1967 = vmatpush1.bf16.msra.mxu0 %v1498
  %1968 = vmatprep.subr.bf16.mxu0 0
  %1969 = vmatpush1.bf16.msra.mxu0 %v1497
  %1970 = vmatprep.subr.bf16.mxu0 0
  %1971 = vmatpush1.bf16.msra.mxu0 %v1496
  %1972 = vmatprep.subr.bf16.mxu0 0
  %1973 = vmatpush1.bf16.msra.mxu0 %v1495
  %1974 = vmatprep.subr.bf16.mxu0 0
  %1975 = vmatpush1.bf16.msra.mxu0 %v1494
  %1976 = vmatprep.subr.bf16.mxu0 0
  %1977 = vmatpush2.bf16.msra.mxu0 %v1509
  %1978 = vmatprep.subr.bf16.mxu0 0
  %1979 = vmatpush2.bf16.msra.mxu0 %v1508
  %1980 = vmatprep.subr.bf16.mxu0 0
  %1981 = vmatpush2.bf16.msra.mxu0 %v1507
  %1982 = vmatprep.subr.bf16.mxu0 0
  %1983 = vmatpush2.bf16.msra.mxu0 %v1506
  %1984 = vmatprep.subr.bf16.mxu0 0
  %1985 = vmatpush2.bf16.msra.mxu0 %v1505
  %1986 = vmatprep.subr.bf16.mxu0 0
  %1987 = vmatpush2.bf16.msra.mxu0 %v1504
  %1988 = vmatprep.subr.bf16.mxu0 0
  %1989 = vmatpush2.bf16.msra.mxu0 %v1503
  %1990 = vmatprep.subr.bf16.mxu0 0
  %1991 = vmatpush2.bf16.msra.mxu0 %v1502
  %1992 = vmatprep.mubr.bf16.mxu0 %v855
  %1993 = vmatmul.mubr.bf16.gmra.mxu0 %v854
  %v1994 = vpop.f32.mrf.mxu0
  %v1995 = vadd.f32 %v1818, %v1994
  %v1996 = vpop.f32.mrf.mxu0
  %v1997 = vpop.f32.mrf.mxu0
  %v1998 = vadd.f32 %v1821, %v1997
  %v1999 = vpop.f32.mrf.mxu0
  %2000 = vmatprep.mubr.bf16.mxu0 %v864
  %2001 = vmatmul.mubr.bf16.gmra.mxu0 %v863
  %v2002 = vpop.f32.mrf.mxu0
  %v2003 = vadd.f32 %v1826, %v2002
  %v2004 = vpop.f32.mrf.mxu0
  %v2005 = vpop.f32.mrf.mxu0
  %v2006 = vadd.f32 %v1829, %v2005
  %v2007 = vpop.f32.mrf.mxu0
  %2008 = vmatprep.mubr.bf16.mxu0 %v873
  %2009 = vmatmul.mubr.bf16.gmra.mxu0 %v872
  %v2010 = vpop.f32.mrf.mxu0
  %v2011 = vadd.f32 %v1834, %v2010
  %v2012 = vpop.f32.mrf.mxu0
  %v2013 = vpop.f32.mrf.mxu0
  %v2014 = vadd.f32 %v1837, %v2013
  %v2015 = vpop.f32.mrf.mxu0
  %2016 = vmatprep.mubr.bf16.mxu0 %v882
  %2017 = vmatmul.mubr.bf16.gmra.mxu0 %v881
  %v2018 = vpop.f32.mrf.mxu0
  %v2019 = vadd.f32 %v1842, %v2018
  %v2020 = vpop.f32.mrf.mxu0
  %v2021 = vpop.f32.mrf.mxu0
  %v2022 = vadd.f32 %v1845, %v2021
  %v2023 = vpop.f32.mrf.mxu0
  %2024 = vmatprep.mubr.bf16.mxu0 %v891
  %2025 = vmatmul.mubr.bf16.gmra.mxu0 %v890
  %v2026 = vpop.f32.mrf.mxu0
  %v2027 = vadd.f32 %v1850, %v2026
  %v2028 = vpop.f32.mrf.mxu0
  %v2029 = vpop.f32.mrf.mxu0
  %v2030 = vadd.f32 %v1853, %v2029
  %v2031 = vpop.f32.mrf.mxu0
  %2032 = vmatprep.mubr.bf16.mxu0 %v900
  %2033 = vmatmul.mubr.bf16.gmra.mxu0 %v899
  %v2034 = vpop.f32.mrf.mxu0
  %v2035 = vadd.f32 %v1858, %v2034
  %v2036 = vpop.f32.mrf.mxu0
  %v2037 = vpop.f32.mrf.mxu0
  %v2038 = vadd.f32 %v1861, %v2037
  %v2039 = vpop.f32.mrf.mxu0
  %2040 = vmatprep.mubr.bf16.mxu0 %v909
  %2041 = vmatmul.mubr.bf16.gmra.mxu0 %v908
  %v2042 = vpop.f32.mrf.mxu0
  %v2043 = vadd.f32 %v1866, %v2042
  %v2044 = vpop.f32.mrf.mxu0
  %v2045 = vpop.f32.mrf.mxu0
  %v2046 = vadd.f32 %v1869, %v2045
  %v2047 = vpop.f32.mrf.mxu0
  %2048 = vmatprep.mubr.bf16.mxu0 %v918
  %2049 = vmatmul.mubr.bf16.gmra.mxu0 %v917
  %v2050 = vpop.f32.mrf.mxu0
  %v2051 = vadd.f32 %v1874, %v2050
  %v2052 = vpop.f32.mrf.mxu0
  %v2053 = vpop.f32.mrf.mxu0
  %v2054 = vadd.f32 %v1877, %v2053
  %v2055 = vpop.f32.mrf.mxu0
  %2056 = vmatprep.mubr.bf16.mxu0 %v927
  %2057 = vmatmul.mubr.bf16.gmra.mxu0 %v926
  %v2058 = vpop.f32.mrf.mxu0
  %v2059 = vadd.f32 %v1882, %v2058
  %v2060 = vpop.f32.mrf.mxu0
  %v2061 = vpop.f32.mrf.mxu0
  %v2062 = vadd.f32 %v1885, %v2061
  %v2063 = vpop.f32.mrf.mxu0
  %2064 = vmatprep.mubr.bf16.mxu0 %v936
  %2065 = vmatmul.mubr.bf16.gmra.mxu0 %v935
  %v2066 = vpop.f32.mrf.mxu0
  %v2067 = vadd.f32 %v1890, %v2066
  %v2068 = vpop.f32.mrf.mxu0
  %v2069 = vpop.f32.mrf.mxu0
  %v2070 = vadd.f32 %v1893, %v2069
  %v2071 = vpop.f32.mrf.mxu0
  %2072 = vmatprep.mubr.bf16.mxu0 %v945
  %2073 = vmatmul.mubr.bf16.gmra.mxu0 %v944
  %v2074 = vpop.f32.mrf.mxu0
  %v2075 = vadd.f32 %v1898, %v2074
  %v2076 = vpop.f32.mrf.mxu0
  %v2077 = vpop.f32.mrf.mxu0
  %v2078 = vadd.f32 %v1901, %v2077
  %v2079 = vpop.f32.mrf.mxu0
  %2080 = vmatprep.mubr.bf16.mxu0 %v954
  %2081 = vmatmul.mubr.bf16.gmra.mxu0 %v953
  %v2082 = vpop.f32.mrf.mxu0
  %v2083 = vadd.f32 %v1906, %v2082
  %v2084 = vpop.f32.mrf.mxu0
  %v2085 = vpop.f32.mrf.mxu0
  %v2086 = vadd.f32 %v1909, %v2085
  %v2087 = vpop.f32.mrf.mxu0
  %2088 = vmatprep.mubr.bf16.mxu0 %v963
  %2089 = vmatmul.mubr.bf16.gmra.mxu0 %v962
  %v2090 = vpop.f32.mrf.mxu0
  %v2091 = vadd.f32 %v1914, %v2090
  %v2092 = vpop.f32.mrf.mxu0
  %v2093 = vpop.f32.mrf.mxu0
  %v2094 = vadd.f32 %v1917, %v2093
  %v2095 = vpop.f32.mrf.mxu0
  %2096 = vmatprep.mubr.bf16.mxu0 %v972
  %2097 = vmatmul.mubr.bf16.gmra.mxu0 %v971
  %v2098 = vpop.f32.mrf.mxu0
  %v2099 = vadd.f32 %v1922, %v2098
  %v2100 = vpop.f32.mrf.mxu0
  %v2101 = vpop.f32.mrf.mxu0
  %v2102 = vadd.f32 %v1925, %v2101
  %v2103 = vpop.f32.mrf.mxu0
  %2104 = vmatprep.mubr.bf16.mxu0 %v981
  %2105 = vmatmul.mubr.bf16.gmra.mxu0 %v980
  %v2106 = vpop.f32.mrf.mxu0
  %v2107 = vadd.f32 %v1930, %v2106
  %v2108 = vpop.f32.mrf.mxu0
  %v2109 = vpop.f32.mrf.mxu0
  %v2110 = vadd.f32 %v1933, %v2109
  %v2111 = vpop.f32.mrf.mxu0
  %2112 = vmatprep.mubr.bf16.mxu0 %v990
  %2113 = vmatmul.mubr.bf16.gmra.mxu0 %v989
  %v2114 = vpop.f32.mrf.mxu0
  %v2115 = vadd.f32 %v1938, %v2114
  %v2116 = vpop.f32.mrf.mxu0
  %v2117 = vpop.f32.mrf.mxu0
  %v2118 = vadd.f32 %v1941, %v2117
  %v2119 = vpop.f32.mrf.mxu0
  %2120 = vmatprep.mubr.bf16.mxu0 %v999
  %2121 = vmatmul.mubr.bf16.gmra.mxu0 %v998
  %v2122 = vpop.f32.mrf.mxu0
  %v2123 = vadd.f32 %v1946, %v2122
  %v2124 = vpop.f32.mrf.mxu0
  %v2125 = vpop.f32.mrf.mxu0
  %v2126 = vadd.f32 %v1949, %v2125
  %v2127 = vpop.f32.mrf.mxu0
  %2128 = vmatprep.mubr.bf16.mxu0 %v1008
  %2129 = vmatmul.mubr.bf16.gmra.mxu0 %v1007
  %v2130 = vpop.f32.mrf.mxu0
  %v2131 = vadd.f32 %v1954, %v2130
  %v2132 = vpop.f32.mrf.mxu0
  %v2133 = vpop.f32.mrf.mxu0
  %v2134 = vadd.f32 %v1957, %v2133
  %v2135 = vpop.f32.mrf.mxu0
  %2136 = vdwg.mxu0
  %2137 = vmatprep.subr.bf16.mxu0 0
  %2138 = vmatpush1.bf16.msra.mxu0 %v1517
  %2139 = vmatprep.subr.bf16.mxu0 0
  %2140 = vmatpush1.bf16.msra.mxu0 %v1516
  %2141 = vmatprep.subr.bf16.mxu0 0
  %2142 = vmatpush1.bf16.msra.mxu0 %v1515
  %2143 = vmatprep.subr.bf16.mxu0 0
  %2144 = vmatpush1.bf16.msra.mxu0 %v1514
  %2145 = vmatprep.subr.bf16.mxu0 0
  %2146 = vmatpush1.bf16.msra.mxu0 %v1513
  %2147 = vmatprep.subr.bf16.mxu0 0
  %2148 = vmatpush1.bf16.msra.mxu0 %v1512
  %2149 = vmatprep.subr.bf16.mxu0 0
  %2150 = vmatpush1.bf16.msra.mxu0 %v1511
  %2151 = vmatprep.subr.bf16.mxu0 0
  %2152 = vmatpush1.bf16.msra.mxu0 %v1510
  %2153 = vmatprep.subr.bf16.mxu0 0
  %2154 = vmatpush2.bf16.msra.mxu0 %v1525
  %2155 = vmatprep.subr.bf16.mxu0 0
  %2156 = vmatpush2.bf16.msra.mxu0 %v1524
  %2157 = vmatprep.subr.bf16.mxu0 0
  %2158 = vmatpush2.bf16.msra.mxu0 %v1523
  %2159 = vmatprep.subr.bf16.mxu0 0
  %2160 = vmatpush2.bf16.msra.mxu0 %v1522
  %2161 = vmatprep.subr.bf16.mxu0 0
  %2162 = vmatpush2.bf16.msra.mxu0 %v1521
  %2163 = vmatprep.subr.bf16.mxu0 0
  %2164 = vmatpush2.bf16.msra.mxu0 %v1520
  %2165 = vmatprep.subr.bf16.mxu0 0
  %2166 = vmatpush2.bf16.msra.mxu0 %v1519
  %2167 = vmatprep.subr.bf16.mxu0 0
  %2168 = vmatpush2.bf16.msra.mxu0 %v1518
  %2169 = vmatprep.mubr.bf16.mxu0 %v857
  %2170 = vmatmul.mubr.bf16.gmra.mxu0 %v856
  %v2171 = vpop.f32.mrf.mxu0
  %v2172 = vadd.f32 %v1995, %v2171
  %v2173 = vpop.f32.mrf.mxu0
  %v2174 = vpop.f32.mrf.mxu0
  %v2175 = vadd.f32 %v1998, %v2174
  %v2176 = vpop.f32.mrf.mxu0
  %2177 = vmatprep.mubr.bf16.mxu0 %v866
  %2178 = vmatmul.mubr.bf16.gmra.mxu0 %v865
  %v2179 = vpop.f32.mrf.mxu0
  %v2180 = vadd.f32 %v2003, %v2179
  %v2181 = vpop.f32.mrf.mxu0
  %v2182 = vpop.f32.mrf.mxu0
  %v2183 = vadd.f32 %v2006, %v2182
  %v2184 = vpop.f32.mrf.mxu0
  %2185 = vmatprep.mubr.bf16.mxu0 %v875
  %2186 = vmatmul.mubr.bf16.gmra.mxu0 %v874
  %v2187 = vpop.f32.mrf.mxu0
  %v2188 = vadd.f32 %v2011, %v2187
  %v2189 = vpop.f32.mrf.mxu0
  %v2190 = vpop.f32.mrf.mxu0
  %v2191 = vadd.f32 %v2014, %v2190
  %v2192 = vpop.f32.mrf.mxu0
  %2193 = vmatprep.mubr.bf16.mxu0 %v884
  %2194 = vmatmul.mubr.bf16.gmra.mxu0 %v883
  %v2195 = vpop.f32.mrf.mxu0
  %v2196 = vadd.f32 %v2019, %v2195
  %v2197 = vpop.f32.mrf.mxu0
  %v2198 = vpop.f32.mrf.mxu0
  %v2199 = vadd.f32 %v2022, %v2198
  %v2200 = vpop.f32.mrf.mxu0
  %2201 = vmatprep.mubr.bf16.mxu0 %v893
  %2202 = vmatmul.mubr.bf16.gmra.mxu0 %v892
  %v2203 = vpop.f32.mrf.mxu0
  %v2204 = vadd.f32 %v2027, %v2203
  %v2205 = vpop.f32.mrf.mxu0
  %v2206 = vpop.f32.mrf.mxu0
  %v2207 = vadd.f32 %v2030, %v2206
  %v2208 = vpop.f32.mrf.mxu0
  %2209 = vmatprep.mubr.bf16.mxu0 %v902
  %2210 = vmatmul.mubr.bf16.gmra.mxu0 %v901
  %v2211 = vpop.f32.mrf.mxu0
  %v2212 = vadd.f32 %v2035, %v2211
  %v2213 = vpop.f32.mrf.mxu0
  %v2214 = vpop.f32.mrf.mxu0
  %v2215 = vadd.f32 %v2038, %v2214
  %v2216 = vpop.f32.mrf.mxu0
  %2217 = vmatprep.mubr.bf16.mxu0 %v911
  %2218 = vmatmul.mubr.bf16.gmra.mxu0 %v910
  %v2219 = vpop.f32.mrf.mxu0
  %v2220 = vadd.f32 %v2043, %v2219
  %v2221 = vpop.f32.mrf.mxu0
  %v2222 = vpop.f32.mrf.mxu0
  %v2223 = vadd.f32 %v2046, %v2222
  %v2224 = vpop.f32.mrf.mxu0
  %2225 = vmatprep.mubr.bf16.mxu0 %v920
  %2226 = vmatmul.mubr.bf16.gmra.mxu0 %v919
  %v2227 = vpop.f32.mrf.mxu0
  %v2228 = vadd.f32 %v2051, %v2227
  %v2229 = vpop.f32.mrf.mxu0
  %v2230 = vpop.f32.mrf.mxu0
  %v2231 = vadd.f32 %v2054, %v2230
  %v2232 = vpop.f32.mrf.mxu0
  %2233 = vmatprep.mubr.bf16.mxu0 %v929
  %2234 = vmatmul.mubr.bf16.gmra.mxu0 %v928
  %v2235 = vpop.f32.mrf.mxu0
  %v2236 = vadd.f32 %v2059, %v2235
  %v2237 = vpop.f32.mrf.mxu0
  %v2238 = vpop.f32.mrf.mxu0
  %v2239 = vadd.f32 %v2062, %v2238
  %v2240 = vpop.f32.mrf.mxu0
  %2241 = vmatprep.mubr.bf16.mxu0 %v938
  %2242 = vmatmul.mubr.bf16.gmra.mxu0 %v937
  %v2243 = vpop.f32.mrf.mxu0
  %v2244 = vadd.f32 %v2067, %v2243
  %v2245 = vpop.f32.mrf.mxu0
  %v2246 = vpop.f32.mrf.mxu0
  %v2247 = vadd.f32 %v2070, %v2246
  %v2248 = vpop.f32.mrf.mxu0
  %2249 = vmatprep.mubr.bf16.mxu0 %v947
  %2250 = vmatmul.mubr.bf16.gmra.mxu0 %v946
  %v2251 = vpop.f32.mrf.mxu0
  %v2252 = vadd.f32 %v2075, %v2251
  %v2253 = vpop.f32.mrf.mxu0
  %v2254 = vpop.f32.mrf.mxu0
  %v2255 = vadd.f32 %v2078, %v2254
  %v2256 = vpop.f32.mrf.mxu0
  %2257 = vmatprep.mubr.bf16.mxu0 %v956
  %2258 = vmatmul.mubr.bf16.gmra.mxu0 %v955
  %v2259 = vpop.f32.mrf.mxu0
  %v2260 = vadd.f32 %v2083, %v2259
  %v2261 = vpop.f32.mrf.mxu0
  %v2262 = vpop.f32.mrf.mxu0
  %v2263 = vadd.f32 %v2086, %v2262
  %v2264 = vpop.f32.mrf.mxu0
  %2265 = vmatprep.mubr.bf16.mxu0 %v965
  %2266 = vmatmul.mubr.bf16.gmra.mxu0 %v964
  %v2267 = vpop.f32.mrf.mxu0
  %v2268 = vadd.f32 %v2091, %v2267
  %v2269 = vpop.f32.mrf.mxu0
  %v2270 = vpop.f32.mrf.mxu0
  %v2271 = vadd.f32 %v2094, %v2270
  %v2272 = vpop.f32.mrf.mxu0
  %2273 = vmatprep.mubr.bf16.mxu0 %v974
  %2274 = vmatmul.mubr.bf16.gmra.mxu0 %v973
  %v2275 = vpop.f32.mrf.mxu0
  %v2276 = vadd.f32 %v2099, %v2275
  %v2277 = vpop.f32.mrf.mxu0
  %v2278 = vpop.f32.mrf.mxu0
  %v2279 = vadd.f32 %v2102, %v2278
  %v2280 = vpop.f32.mrf.mxu0
  %2281 = vmatprep.mubr.bf16.mxu0 %v983
  %2282 = vmatmul.mubr.bf16.gmra.mxu0 %v982
  %v2283 = vpop.f32.mrf.mxu0
  %v2284 = vadd.f32 %v2107, %v2283
  %v2285 = vpop.f32.mrf.mxu0
  %v2286 = vpop.f32.mrf.mxu0
  %v2287 = vadd.f32 %v2110, %v2286
  %v2288 = vpop.f32.mrf.mxu0
  %2289 = vmatprep.mubr.bf16.mxu0 %v992
  %2290 = vmatmul.mubr.bf16.gmra.mxu0 %v991
  %v2291 = vpop.f32.mrf.mxu0
  %v2292 = vadd.f32 %v2115, %v2291
  %v2293 = vpop.f32.mrf.mxu0
  %v2294 = vpop.f32.mrf.mxu0
  %v2295 = vadd.f32 %v2118, %v2294
  %v2296 = vpop.f32.mrf.mxu0
  %2297 = vmatprep.mubr.bf16.mxu0 %v1001
  %2298 = vmatmul.mubr.bf16.gmra.mxu0 %v1000
  %v2299 = vpop.f32.mrf.mxu0
  %v2300 = vadd.f32 %v2123, %v2299
  %v2301 = vpop.f32.mrf.mxu0
  %v2302 = vpop.f32.mrf.mxu0
  %v2303 = vadd.f32 %v2126, %v2302
  %v2304 = vpop.f32.mrf.mxu0
  %2305 = vmatprep.mubr.bf16.mxu0 %v1010
  %2306 = vmatmul.mubr.bf16.gmra.mxu0 %v1009
  %v2307 = vpop.f32.mrf.mxu0
  %v2308 = vadd.f32 %v2131, %v2307
  %v2309 = vpop.f32.mrf.mxu0
  %v2310 = vpop.f32.mrf.mxu0
  %v2311 = vadd.f32 %v2134, %v2310
  %v2312 = vpop.f32.mrf.mxu0
  %2313 = vdwg.mxu0
  %2314 = vmatprep.subr.bf16.mxu0 0
  %2315 = vmatpush1.bf16.msra.mxu0 %v1533
  %2316 = vmatprep.subr.bf16.mxu0 0
  %2317 = vmatpush1.bf16.msra.mxu0 %v1532
  %2318 = vmatprep.subr.bf16.mxu0 0
  %2319 = vmatpush1.bf16.msra.mxu0 %v1531
  %2320 = vmatprep.subr.bf16.mxu0 0
  %2321 = vmatpush1.bf16.msra.mxu0 %v1530
  %2322 = vmatprep.subr.bf16.mxu0 0
  %2323 = vmatpush1.bf16.msra.mxu0 %v1529
  %2324 = vmatprep.subr.bf16.mxu0 0
  %2325 = vmatpush1.bf16.msra.mxu0 %v1528
  %2326 = vmatprep.subr.bf16.mxu0 0
  %2327 = vmatpush1.bf16.msra.mxu0 %v1527
  %2328 = vmatprep.subr.bf16.mxu0 0
  %2329 = vmatpush1.bf16.msra.mxu0 %v1526
  %2330 = vmatprep.subr.bf16.mxu0 0
  %2331 = vmatpush2.bf16.msra.mxu0 0
  %2332 = vmatprep.subr.bf16.mxu0 0
  %2333 = vmatpush2.bf16.msra.mxu0 0
  %2334 = vmatprep.subr.bf16.mxu0 0
  %2335 = vmatpush2.bf16.msra.mxu0 0
  %2336 = vmatprep.subr.bf16.mxu0 0
  %2337 = vmatpush2.bf16.msra.mxu0 0
  %2338 = vmatprep.subr.bf16.mxu0 0
  %2339 = vmatpush2.bf16.msra.mxu0 0
  %2340 = vmatprep.subr.bf16.mxu0 0
  %2341 = vmatpush2.bf16.msra.mxu0 0
  %2342 = vmatprep.subr.bf16.mxu0 0
  %2343 = vmatpush2.bf16.msra.mxu0 0
  %2344 = vmatprep.subr.bf16.mxu0 0
  %2345 = vmatpush2.bf16.msra.mxu0 0
  %2346 = vmatprep.mubr.bf16.mxu0 0
  %2347 = vmatmul.mubr.bf16.gmra.mxu0 %v858
  %v2348 = vpop.f32.mrf.mxu0
  %v2349 = vadd.f32 %v2172, %v2348
  %v2350 = vpop.f32.mrf.mxu0
  %v2351 = vpop.f32.mrf.mxu0
  %v2352 = vadd.f32 %v2175, %v2351
  %v2353 = vpop.f32.mrf.mxu0
  %2354 = vmatprep.mubr.bf16.mxu0 0
  %2355 = vmatmul.mubr.bf16.gmra.mxu0 %v867
  %v2356 = vpop.f32.mrf.mxu0
  %v2357 = vadd.f32 %v2180, %v2356
  %v2358 = vpop.f32.mrf.mxu0
  %v2359 = vpop.f32.mrf.mxu0
  %v2360 = vadd.f32 %v2183, %v2359
  %v2361 = vpop.f32.mrf.mxu0
  %2362 = vmatprep.mubr.bf16.mxu0 0
  %2363 = vmatmul.mubr.bf16.gmra.mxu0 %v876
  %v2364 = vpop.f32.mrf.mxu0
  %v2365 = vadd.f32 %v2188, %v2364
  %v2366 = vpop.f32.mrf.mxu0
  %v2367 = vpop.f32.mrf.mxu0
  %v2368 = vadd.f32 %v2191, %v2367
  %v2369 = vpop.f32.mrf.mxu0
  %2370 = vmatprep.mubr.bf16.mxu0 0
  %2371 = vmatmul.mubr.bf16.gmra.mxu0 %v885
  %v2372 = vpop.f32.mrf.mxu0
  %v2373 = vadd.f32 %v2196, %v2372
  %v2374 = vpop.f32.mrf.mxu0
  %v2375 = vpop.f32.mrf.mxu0
  %v2376 = vadd.f32 %v2199, %v2375
  %v2377 = vpop.f32.mrf.mxu0
  %2378 = vmatprep.mubr.bf16.mxu0 0
  %2379 = vmatmul.mubr.bf16.gmra.mxu0 %v894
  %v2380 = vpop.f32.mrf.mxu0
  %v2381 = vadd.f32 %v2204, %v2380
  %v2382 = vpop.f32.mrf.mxu0
  %v2383 = vpop.f32.mrf.mxu0
  %v2384 = vadd.f32 %v2207, %v2383
  %v2385 = vpop.f32.mrf.mxu0
  %2386 = vmatprep.mubr.bf16.mxu0 0
  %2387 = vmatmul.mubr.bf16.gmra.mxu0 %v903
  %v2388 = vpop.f32.mrf.mxu0
  %v2389 = vadd.f32 %v2212, %v2388
  %v2390 = vpop.f32.mrf.mxu0
  %v2391 = vpop.f32.mrf.mxu0
  %v2392 = vadd.f32 %v2215, %v2391
  %v2393 = vpop.f32.mrf.mxu0
  %2394 = vmatprep.mubr.bf16.mxu0 0
  %2395 = vmatmul.mubr.bf16.gmra.mxu0 %v912
  %v2396 = vpop.f32.mrf.mxu0
  %v2397 = vadd.f32 %v2220, %v2396
  %v2398 = vpop.f32.mrf.mxu0
  %v2399 = vpop.f32.mrf.mxu0
  %v2400 = vadd.f32 %v2223, %v2399
  %v2401 = vpop.f32.mrf.mxu0
  %2402 = vmatprep.mubr.bf16.mxu0 0
  %2403 = vmatmul.mubr.bf16.gmra.mxu0 %v921
  %v2404 = vpop.f32.mrf.mxu0
  %v2405 = vadd.f32 %v2228, %v2404
  %v2406 = vpop.f32.mrf.mxu0
  %v2407 = vpop.f32.mrf.mxu0
  %v2408 = vadd.f32 %v2231, %v2407
  %v2409 = vpop.f32.mrf.mxu0
  %2410 = vmatprep.mubr.bf16.mxu0 0
  %2411 = vmatmul.mubr.bf16.gmra.mxu0 %v930
  %v2412 = vpop.f32.mrf.mxu0
  %v2413 = vadd.f32 %v2236, %v2412
  %v2414 = vpop.f32.mrf.mxu0
  %v2415 = vpop.f32.mrf.mxu0
  %v2416 = vadd.f32 %v2239, %v2415
  %v2417 = vpop.f32.mrf.mxu0
  %2418 = vmatprep.mubr.bf16.mxu0 0
  %2419 = vmatmul.mubr.bf16.gmra.mxu0 %v939
  %v2420 = vpop.f32.mrf.mxu0
  %v2421 = vadd.f32 %v2244, %v2420
  %v2422 = vpop.f32.mrf.mxu0
  %v2423 = vpop.f32.mrf.mxu0
  %v2424 = vadd.f32 %v2247, %v2423
  %v2425 = vpop.f32.mrf.mxu0
  %2426 = vmatprep.mubr.bf16.mxu0 0
  %2427 = vmatmul.mubr.bf16.gmra.mxu0 %v948
  %v2428 = vpop.f32.mrf.mxu0
  %v2429 = vadd.f32 %v2252, %v2428
  %v2430 = vpop.f32.mrf.mxu0
  %v2431 = vpop.f32.mrf.mxu0
  %v2432 = vadd.f32 %v2255, %v2431
  %v2433 = vpop.f32.mrf.mxu0
  %2434 = vmatprep.mubr.bf16.mxu0 0
  %2435 = vmatmul.mubr.bf16.gmra.mxu0 %v957
  %v2436 = vpop.f32.mrf.mxu0
  %v2437 = vadd.f32 %v2260, %v2436
  %v2438 = vpop.f32.mrf.mxu0
  %v2439 = vpop.f32.mrf.mxu0
  %v2440 = vadd.f32 %v2263, %v2439
  %v2441 = vpop.f32.mrf.mxu0
  %2442 = vmatprep.mubr.bf16.mxu0 0
  %2443 = vmatmul.mubr.bf16.gmra.mxu0 %v966
  %v2444 = vpop.f32.mrf.mxu0
  %v2445 = vadd.f32 %v2268, %v2444
  %v2446 = vpop.f32.mrf.mxu0
  %v2447 = vpop.f32.mrf.mxu0
  %v2448 = vadd.f32 %v2271, %v2447
  %v2449 = vpop.f32.mrf.mxu0
  %2450 = vmatprep.mubr.bf16.mxu0 0
  %2451 = vmatmul.mubr.bf16.gmra.mxu0 %v975
  %v2452 = vpop.f32.mrf.mxu0
  %v2453 = vadd.f32 %v2276, %v2452
  %v2454 = vpop.f32.mrf.mxu0
  %v2455 = vpop.f32.mrf.mxu0
  %v2456 = vadd.f32 %v2279, %v2455
  %v2457 = vpop.f32.mrf.mxu0
  %2458 = vmatprep.mubr.bf16.mxu0 0
  %2459 = vmatmul.mubr.bf16.gmra.mxu0 %v984
  %v2460 = vpop.f32.mrf.mxu0
  %v2461 = vadd.f32 %v2284, %v2460
  %v2462 = vpop.f32.mrf.mxu0
  %v2463 = vpop.f32.mrf.mxu0
  %v2464 = vadd.f32 %v2287, %v2463
  %v2465 = vpop.f32.mrf.mxu0
  %2466 = vmatprep.mubr.bf16.mxu0 0
  %2467 = vmatmul.mubr.bf16.gmra.mxu0 %v993
  %v2468 = vpop.f32.mrf.mxu0
  %v2469 = vadd.f32 %v2292, %v2468
  %v2470 = vpop.f32.mrf.mxu0
  %v2471 = vpop.f32.mrf.mxu0
  %v2472 = vadd.f32 %v2295, %v2471
  %v2473 = vpop.f32.mrf.mxu0
  %2474 = vmatprep.mubr.bf16.mxu0 0
  %2475 = vmatmul.mubr.bf16.gmra.mxu0 %v1002
  %v2476 = vpop.f32.mrf.mxu0
  %v2477 = vadd.f32 %v2300, %v2476
  %v2478 = vpop.f32.mrf.mxu0
  %v2479 = vpop.f32.mrf.mxu0
  %v2480 = vadd.f32 %v2303, %v2479
  %v2481 = vpop.f32.mrf.mxu0
  %2482 = vmatprep.mubr.bf16.mxu0 0
  %2483 = vmatmul.mubr.bf16.gmra.mxu0 %v1011
  %v2484 = vpop.f32.mrf.mxu0
  %v2485 = vadd.f32 %v2308, %v2484
  %v2486 = vpop.f32.mrf.mxu0
  %v2487 = vpop.f32.mrf.mxu0
  %v2488 = vadd.f32 %v2311, %v2487
  %v2489 = vpop.f32.mrf.mxu0
  %2490 = vdwg.mxu0
  %v2491 = vmax.f32 %v2349, 0.0
  %v2492 = vmax.f32 %v2352, 0.0
  %v2493 = vmax.f32 %v2357, 0.0
  %v2494 = vmax.f32 %v2360, 0.0
  %v2495 = vmax.f32 %v2365, 0.0
  %v2496 = vmax.f32 %v2368, 0.0
  %v2497 = vmax.f32 %v2373, 0.0
  %v2498 = vmax.f32 %v2376, 0.0
  %v2499 = vmax.f32 %v2381, 0.0
  %v2500 = vmax.f32 %v2384, 0.0
  %v2501 = vmax.f32 %v2389, 0.0
  %v2502 = vmax.f32 %v2392, 0.0
  %v2503 = vmax.f32 %v2397, 0.0
  %v2504 = vmax.f32 %v2400, 0.0
  %v2505 = vmax.f32 %v2405, 0.0
  %v2506 = vmax.f32 %v2408, 0.0
  %v2507 = vmax.f32 %v2413, 0.0
  %v2508 = vmax.f32 %v2416, 0.0
  %v2509 = vmax.f32 %v2421, 0.0
  %v2510 = vmax.f32 %v2424, 0.0
  %v2511 = vmax.f32 %v2429, 0.0
  %v2512 = vmax.f32 %v2432, 0.0
  %v2513 = vmax.f32 %v2437, 0.0
  %v2514 = vmax.f32 %v2440, 0.0
  %v2515 = vmax.f32 %v2445, 0.0
  %v2516 = vmax.f32 %v2448, 0.0
  %v2517 = vmax.f32 %v2453, 0.0
  %v2518 = vmax.f32 %v2456, 0.0
  %v2519 = vmax.f32 %v2461, 0.0
  %v2520 = vmax.f32 %v2464, 0.0
  %v2521 = vmax.f32 %v2469, 0.0
  %v2522 = vmax.f32 %v2472, 0.0
  %v2523 = vmax.f32 %v2477, 0.0
  %v2524 = vmax.f32 %v2480, 0.0
  %v2525 = vmax.f32 %v2485, 0.0
  %v2526 = vmax.f32 %v2488, 0.0
  %v2527 = vpack.c.bf16 %v2492, %v2491
  %v2528 = vpack.c.bf16 %v2494, %v2493
  %v2529 = vpack.c.bf16 %v2496, %v2495
  %v2530 = vpack.c.bf16 %v2498, %v2497
  %v2531 = vpack.c.bf16 %v2500, %v2499
  %v2532 = vpack.c.bf16 %v2502, %v2501
  %v2533 = vpack.c.bf16 %v2504, %v2503
  %v2534 = vpack.c.bf16 %v2506, %v2505
  %v2535 = vpack.c.bf16 %v2508, %v2507
  %v2536 = vpack.c.bf16 %v2510, %v2509
  %v2537 = vpack.c.bf16 %v2512, %v2511
  %v2538 = vpack.c.bf16 %v2514, %v2513
  %v2539 = vpack.c.bf16 %v2516, %v2515
  %v2540 = vpack.c.bf16 %v2518, %v2517
  %v2541 = vpack.c.bf16 %v2520, %v2519
  %v2542 = vpack.c.bf16 %v2522, %v2521
  %v2543 = vpack.c.bf16 %v2524, %v2523
  %v2544 = vpack.c.bf16 %v2526, %v2525
  %v2563 = vunpack.c.l.b16 %v2527
  %v2564 = vunpack.c.h.b16 %v2527
  %v2565 = vunpack.c.l.b16 %v2528
  %v2566 = vunpack.c.h.b16 %v2528
  %v2567 = vunpack.c.l.b16 %v2529
  %v2568 = vunpack.c.h.b16 %v2529
  %v2569 = vunpack.c.l.b16 %v2530
  %v2570 = vunpack.c.h.b16 %v2530
  %v2571 = vunpack.c.l.b16 %v2531
  %v2572 = vunpack.c.h.b16 %v2531
  %v2573 = vunpack.c.l.b16 %v2532
  %v2574 = vunpack.c.h.b16 %v2532
  %v2575 = vunpack.c.l.b16 %v2533
  %v2576 = vunpack.c.h.b16 %v2533
  %v2577 = vunpack.c.l.b16 %v2534
  %v2578 = vunpack.c.h.b16 %v2534
  %v2579 = vunpack.c.l.b16 %v2535
  %v2580 = vunpack.c.h.b16 %v2535
  %v2581 = vunpack.c.l.b16 %v2536
  %v2582 = vunpack.c.h.b16 %v2536
  %v2583 = vunpack.c.l.b16 %v2537
  %v2584 = vunpack.c.h.b16 %v2537
  %v2585 = vunpack.c.l.b16 %v2538
  %v2586 = vunpack.c.h.b16 %v2538
  %v2587 = vunpack.c.l.b16 %v2539
  %v2588 = vunpack.c.h.b16 %v2539
  %v2589 = vunpack.c.l.b16 %v2540
  %v2590 = vunpack.c.h.b16 %v2540
  %v2591 = vunpack.c.l.b16 %v2541
  %v2592 = vunpack.c.h.b16 %v2541
  %v2593 = vunpack.c.l.b16 %v2542
  %v2594 = vunpack.c.h.b16 %v2542
  %v2595 = vunpack.c.l.b16 %v2543
  %v2596 = vunpack.c.h.b16 %v2543
  %v2597 = vunpack.c.l.b16 %v2544
  %v2598 = vunpack.c.h.b16 %v2544
  %v2599 = vpack.c.b16 %v2563, %v2563
  %v2600 = vpack.c.b16 %v2564, %v2564
  %v2601 = vpack.c.b16 %v2565, %v2565
  %v2602 = vpack.c.b16 %v2566, %v2566
  %v2603 = vpack.c.b16 %v2567, %v2567
  %v2604 = vpack.c.b16 %v2568, %v2568
  %v2605 = vpack.c.b16 %v2569, %v2569
  %v2606 = vpack.c.b16 %v2570, %v2570
  %v2607 = vpack.c.b16 %v2571, %v2571
  %v2608 = vpack.c.b16 %v2572, %v2572
  %v2609 = vpack.c.b16 %v2573, %v2573
  %v2610 = vpack.c.b16 %v2574, %v2574
  %v2611 = vpack.c.b16 %v2575, %v2575
  %v2612 = vpack.c.b16 %v2576, %v2576
  %v2613 = vpack.c.b16 %v2577, %v2577
  %v2614 = vpack.c.b16 %v2578, %v2578
  %v2615 = vpack.c.b16 %v2579, %v2579
  %v2616 = vpack.c.b16 %v2580, %v2580
  %v2617 = vpack.c.b16 %v2581, %v2581
  %v2618 = vpack.c.b16 %v2582, %v2582
  %v2619 = vpack.c.b16 %v2583, %v2583
  %v2620 = vpack.c.b16 %v2584, %v2584
  %v2621 = vpack.c.b16 %v2585, %v2585
  %v2622 = vpack.c.b16 %v2586, %v2586
  %v2623 = vpack.c.b16 %v2587, %v2587
  %v2624 = vpack.c.b16 %v2588, %v2588
  %v2625 = vpack.c.b16 %v2589, %v2589
  %v2626 = vpack.c.b16 %v2590, %v2590
  %v2627 = vpack.c.b16 %v2591, %v2591
  %v2628 = vpack.c.b16 %v2592, %v2592
  %v2629 = vpack.c.b16 %v2593, %v2593
  %v2630 = vpack.c.b16 %v2594, %v2594
  %v2631 = vpack.c.b16 %v2595, %v2595
  %v2632 = vpack.c.b16 %v2596, %v2596
  %v2633 = vpack.c.b16 %v2597, %v2597
  %v2634 = vpack.c.b16 %v2598, %v2598
  %2671 = vst [vmem:[%s3] sm:$0xf] %v2599
  %2672 = vst [vmem:[%s3 + $0x4] sm:$0xf] %v2600
  %2673 = vst [vmem:[%s3 + $0x8] sm:$0xf] %v2601
  %2674 = vst [vmem:[%s3 + $0xc] sm:$0xf] %v2602
  %2675 = vst [vmem:[%s3 + $0x10] sm:$0xf] %v2603
  %2676 = vst [vmem:[%s3 + $0x14] sm:$0xf] %v2604
  %2677 = vst [vmem:[%s3 + $0x18] sm:$0xf] %v2605
  %2678 = vst [vmem:[%s3 + $0x1c] sm:$0xf] %v2606
  %2679 = vst [vmem:[%s3 + $0x20] sm:$0xf] %v2607
  %2680 = vst [vmem:[%s3 + $0x24] sm:$0xf] %v2608
  %2681 = vst [vmem:[%s3 + $0x28] sm:$0xf] %v2609
  %2682 = vst [vmem:[%s3 + $0x2c] sm:$0xf] %v2610
  %2683 = vst [vmem:[%s3 + $0x30] sm:$0xf] %v2611
  %2684 = vst [vmem:[%s3 + $0x34] sm:$0xf] %v2612
  %2685 = vst [vmem:[%s3 + $0x38] sm:$0xf] %v2613
  %2686 = vst [vmem:[%s3 + $0x3c] sm:$0xf] %v2614
  %2687 = vst [vmem:[%s3 + $0x40] sm:$0xf] %v2615
  %2688 = vst [vmem:[%s3 + $0x44] sm:$0xf] %v2616
  %2689 = vst [vmem:[%s3 + $0x48] sm:$0xf] %v2617
  %2690 = vst [vmem:[%s3 + $0x4c] sm:$0xf] %v2618
  %2691 = vst [vmem:[%s3 + $0x50] sm:$0xf] %v2619
  %2692 = vst [vmem:[%s3 + $0x54] sm:$0xf] %v2620
  %2693 = vst [vmem:[%s3 + $0x58] sm:$0xf] %v2621
  %2694 = vst [vmem:[%s3 + $0x5c] sm:$0xf] %v2622
  %2695 = vst [vmem:[%s3 + $0x60] sm:$0xf] %v2623
  %2696 = vst [vmem:[%s3 + $0x64] sm:$0xf] %v2624
  %2697 = vst [vmem:[%s3 + $0x68] sm:$0xf] %v2625
  %2698 = vst [vmem:[%s3 + $0x6c] sm:$0xf] %v2626
  %2699 = vst [vmem:[%s3 + $0x70] sm:$0xf] %v2627
  %2700 = vst [vmem:[%s3 + $0x74] sm:$0xf] %v2628
  %2701 = vst [vmem:[%s3 + $0x78] sm:$0xf] %v2629
  %2702 = vst [vmem:[%s3 + $0x7c] sm:$0xf] %v2630
  %2703 = vst [vmem:[%s3 + $0x80] sm:$0xf] %v2631
  %2704 = vst [vmem:[%s3 + $0x84] sm:$0xf] %v2632
  %2705 = vst [vmem:[%s3 + $0x88] sm:$0xf] %v2633
  %2706 = vst [vmem:[%s3 + $0x8c] sm:$0xf] %v2634
  // Predicated region
  $region14: #{_ppo_forward.5} parent=0 // pred_check
    _
  $region15: #{_ppo_forward.5} parent=0 // pred_check_branch
    %2708 = sbr.rel (0) target = $region17
  $region16: #{_ppo_forward.5} parent=0 // pred_region
    _
  $region17: #{_ppo_forward.5} parent=0 // pred_fallthru
    _
  // Predicated region
  $region18: #{_ppo_forward.5} parent=0 // pred_check
    _
  $region19: #{_ppo_forward.5} parent=0 // pred_check_branch
    %2710 = sbr.rel (0) target = $region21
  $region20: #{_ppo_forward.5} parent=0 // pred_region
    _
  $region21: #{_ppo_forward.5} parent=0 // pred_fallthru
    _

// kernel: _ppo_forward.6
$region0: #{_ppo_forward.6}
  #allocation0 [shape = 'u32[]', space=smem, size = 0x4, offset = 0x4, fixed_abs, tag = 'smem constant byte address 0x4 - core index']
  #allocation1 [shape = 'u32[144,128]{1,0:T(1,128)}', space=vmem, size = 0x12000, scoped, tag = 'internal scratch']
  %s0 = inlined_call_operand.vmem [shape: bf16[200,1152], index: 0, kind: input, shape index: {}]
  %s1 = inlined_call_operand.vmem [shape: bf16[1152,64], index: 1, kind: input, shape index: {}]
  %s2 = inlined_call_operand.vmem [shape: f32[1,64], index: 2, kind: input, shape index: {}]
  %s3 = inlined_call_operand.vmem [shape: bf16[200,64], index: 3, kind: output, shape index: {}]
  %s4 = sld [smem:[#allocation0]]
  $region22: #{_ppo_forward.6} parent=0
    _
  %s6 = ssub.s32 1, %s4
  %s7 = scalar_select 0, %s6, %s4
  // Predicated region
  $region2: #{_ppo_forward.6} parent=0 // pred_check
    _
  $region3: #{_ppo_forward.6} parent=0 // pred_check_branch
    %9 = sbr.rel (0) target = $region5
  $region4: #{_ppo_forward.6} parent=0 // pred_region
    _
  $region5: #{_ppo_forward.6} parent=0 // pred_fallthru
    _
  // Predicated region
  $region6: #{_ppo_forward.6} parent=0 // pred_check
    _
  $region7: #{_ppo_forward.6} parent=0 // pred_check_branch
    %11 = sbr.rel (0) target = $region9
  $region8: #{_ppo_forward.6} parent=0 // pred_region
    _
  $region9: #{_ppo_forward.6} parent=0 // pred_fallthru
    _
  // Predicated region
  $region10: #{_ppo_forward.6} parent=0 // pred_check
    _
  $region11: #{_ppo_forward.6} parent=0 // pred_check_branch
    %13 = sbr.rel (0) target = $region13
  $region12: #{_ppo_forward.6} parent=0 // pred_region
    _
  $region13: #{_ppo_forward.6} parent=0 // pred_fallthru
    _
  %v15 = vld [vmem:[%s0] sm:$0xff]
  %v16 = vld [vmem:[%s0 + $0x8] sm:$0xff]
  %v17 = vld [vmem:[%s0 + $0x10] sm:$0xff]
  %v18 = vld [vmem:[%s0 + $0x18] sm:$0xff]
  %v19 = vld [vmem:[%s0 + $0x20] sm:$0xf]
  %v20 = vld [vmem:[%s0 + $0x24] sm:$0xff]
  %v21 = vld [vmem:[%s0 + $0x2c] sm:$0xff]
  %v22 = vld [vmem:[%s0 + $0x34] sm:$0xff]
  %v23 = vld [vmem:[%s0 + $0x3c] sm:$0xff]
  %v24 = vld [vmem:[%s0 + $0x44] sm:$0xf]
  %v25 = vld [vmem:[%s0 + $0x48] sm:$0xff]
  %v26 = vld [vmem:[%s0 + $0x50] sm:$0xff]
  %v27 = vld [vmem:[%s0 + $0x58] sm:$0xff]
  %v28 = vld [vmem:[%s0 + $0x60] sm:$0xff]
  %v29 = vld [vmem:[%s0 + $0x68] sm:$0xf]
  %v30 = vld [vmem:[%s0 + $0x6c] sm:$0xff]
  %v31 = vld [vmem:[%s0 + $0x74] sm:$0xff]
  %v32 = vld [vmem:[%s0 + $0x7c] sm:$0xff]
  %v33 = vld [vmem:[%s0 + $0x84] sm:$0xff]
  %v34 = vld [vmem:[%s0 + $0x8c] sm:$0xf]
  %v35 = vld [vmem:[%s0 + $0x90] sm:$0xff]
  %v36 = vld [vmem:[%s0 + $0x98] sm:$0xff]
  %v37 = vld [vmem:[%s0 + $0xa0] sm:$0xff]
  %v38 = vld [vmem:[%s0 + $0xa8] sm:$0xff]
  %v39 = vld [vmem:[%s0 + $0xb0] sm:$0xf]
  %v40 = vld [vmem:[%s0 + $0xb4] sm:$0xff]
  %v41 = vld [vmem:[%s0 + $0xbc] sm:$0xff]
  %v42 = vld [vmem:[%s0 + $0xc4] sm:$0xff]
  %v43 = vld [vmem:[%s0 + $0xcc] sm:$0xff]
  %v44 = vld [vmem:[%s0 + $0xd4] sm:$0xf]
  %v45 = vld [vmem:[%s0 + $0xd8] sm:$0xff]
  %v46 = vld [vmem:[%s0 + $0xe0] sm:$0xff]
  %v47 = vld [vmem:[%s0 + $0xe8] sm:$0xff]
  %v48 = vld [vmem:[%s0 + $0xf0] sm:$0xff]
  %v49 = vld [vmem:[%s0 + $0xf8] sm:$0xf]
  %v50 = vld [vmem:[%s0 + $0xfc] sm:$0xff]
  %v51 = vld [vmem:[%s0 + $0x104] sm:$0xff]
  %v52 = vld [vmem:[%s0 + $0x10c] sm:$0xff]
  %v53 = vld [vmem:[%s0 + $0x114] sm:$0xff]
  %v54 = vld [vmem:[%s0 + $0x11c] sm:$0xf]
  %v55 = vld [vmem:[%s0 + $0x120] sm:$0xff]
  %v56 = vld [vmem:[%s0 + $0x128] sm:$0xff]
  %v57 = vld [vmem:[%s0 + $0x130] sm:$0xff]
  %v58 = vld [vmem:[%s0 + $0x138] sm:$0xff]
  %v59 = vld [vmem:[%s0 + $0x140] sm:$0xf]
  %v60 = vld [vmem:[%s0 + $0x144] sm:$0xff]
  %v61 = vld [vmem:[%s0 + $0x14c] sm:$0xff]
  %v62 = vld [vmem:[%s0 + $0x154] sm:$0xff]
  %v63 = vld [vmem:[%s0 + $0x15c] sm:$0xff]
  %v64 = vld [vmem:[%s0 + $0x164] sm:$0xf]
  %v65 = vld [vmem:[%s0 + $0x168] sm:$0xff]
  %v66 = vld [vmem:[%s0 + $0x170] sm:$0xff]
  %v67 = vld [vmem:[%s0 + $0x178] sm:$0xff]
  %v68 = vld [vmem:[%s0 + $0x180] sm:$0xff]
  %v69 = vld [vmem:[%s0 + $0x188] sm:$0xf]
  %v70 = vld [vmem:[%s0 + $0x18c] sm:$0xff]
  %v71 = vld [vmem:[%s0 + $0x194] sm:$0xff]
  %v72 = vld [vmem:[%s0 + $0x19c] sm:$0xff]
  %v73 = vld [vmem:[%s0 + $0x1a4] sm:$0xff]
  %v74 = vld [vmem:[%s0 + $0x1ac] sm:$0xf]
  %v75 = vld [vmem:[%s0 + $0x1b0] sm:$0xff]
  %v76 = vld [vmem:[%s0 + $0x1b8] sm:$0xff]
  %v77 = vld [vmem:[%s0 + $0x1c0] sm:$0xff]
  %v78 = vld [vmem:[%s0 + $0x1c8] sm:$0xff]
  %v79 = vld [vmem:[%s0 + $0x1d0] sm:$0xf]
  %v80 = vld [vmem:[%s0 + $0x1d4] sm:$0xff]
  %v81 = vld [vmem:[%s0 + $0x1dc] sm:$0xff]
  %v82 = vld [vmem:[%s0 + $0x1e4] sm:$0xff]
  %v83 = vld [vmem:[%s0 + $0x1ec] sm:$0xff]
  %v84 = vld [vmem:[%s0 + $0x1f4] sm:$0xf]
  %v85 = vld [vmem:[%s0 + $0x1f8] sm:$0xff]
  %v86 = vld [vmem:[%s0 + $0x200] sm:$0xff]
  %v87 = vld [vmem:[%s0 + $0x208] sm:$0xff]
  %v88 = vld [vmem:[%s0 + $0x210] sm:$0xff]
  %v89 = vld [vmem:[%s0 + $0x218] sm:$0xf]
  %v90 = vld [vmem:[%s0 + $0x21c] sm:$0xff]
  %v91 = vld [vmem:[%s0 + $0x224] sm:$0xff]
  %v92 = vld [vmem:[%s0 + $0x22c] sm:$0xff]
  %v93 = vld [vmem:[%s0 + $0x234] sm:$0xff]
  %v94 = vld [vmem:[%s0 + $0x23c] sm:$0xf]
  %v95 = vld [vmem:[%s0 + $0x240] sm:$0xff]
  %v96 = vld [vmem:[%s0 + $0x248] sm:$0xff]
  %v97 = vld [vmem:[%s0 + $0x250] sm:$0xff]
  %v98 = vld [vmem:[%s0 + $0x258] sm:$0xff]
  %v99 = vld [vmem:[%s0 + $0x260] sm:$0xf]
  %v100 = vld [vmem:[%s0 + $0x264] sm:$0xff]
  %v101 = vld [vmem:[%s0 + $0x26c] sm:$0xff]
  %v102 = vld [vmem:[%s0 + $0x274] sm:$0xff]
  %v103 = vld [vmem:[%s0 + $0x27c] sm:$0xff]
  %v104 = vld [vmem:[%s0 + $0x284] sm:$0xf]
  %v105 = vld [vmem:[%s0 + $0x288] sm:$0xff]
  %v106 = vld [vmem:[%s0 + $0x290] sm:$0xff]
  %v107 = vld [vmem:[%s0 + $0x298] sm:$0xff]
  %v108 = vld [vmem:[%s0 + $0x2a0] sm:$0xff]
  %v109 = vld [vmem:[%s0 + $0x2a8] sm:$0xf]
  %v110 = vld [vmem:[%s0 + $0x2ac] sm:$0xff]
  %v111 = vld [vmem:[%s0 + $0x2b4] sm:$0xff]
  %v112 = vld [vmem:[%s0 + $0x2bc] sm:$0xff]
  %v113 = vld [vmem:[%s0 + $0x2c4] sm:$0xff]
  %v114 = vld [vmem:[%s0 + $0x2cc] sm:$0xf]
  %v115 = vld [vmem:[%s0 + $0x2d0] sm:$0xff]
  %v116 = vld [vmem:[%s0 + $0x2d8] sm:$0xff]
  %v117 = vld [vmem:[%s0 + $0x2e0] sm:$0xff]
  %v118 = vld [vmem:[%s0 + $0x2e8] sm:$0xff]
  %v119 = vld [vmem:[%s0 + $0x2f0] sm:$0xf]
  %v120 = vld [vmem:[%s0 + $0x2f4] sm:$0xff]
  %v121 = vld [vmem:[%s0 + $0x2fc] sm:$0xff]
  %v122 = vld [vmem:[%s0 + $0x304] sm:$0xff]
  %v123 = vld [vmem:[%s0 + $0x30c] sm:$0xff]
  %v124 = vld [vmem:[%s0 + $0x314] sm:$0xf]
  %v125 = vld [vmem:[%s0 + $0x318] sm:$0xff]
  %v126 = vld [vmem:[%s0 + $0x320] sm:$0xff]
  %v127 = vld [vmem:[%s0 + $0x328] sm:$0xff]
  %v128 = vld [vmem:[%s0 + $0x330] sm:$0xff]
  %v129 = vld [vmem:[%s0 + $0x338] sm:$0xf]
  %v130 = vld [vmem:[%s0 + $0x33c] sm:$0xff]
  %v131 = vld [vmem:[%s0 + $0x344] sm:$0xff]
  %v132 = vld [vmem:[%s0 + $0x34c] sm:$0xff]
  %v133 = vld [vmem:[%s0 + $0x354] sm:$0xff]
  %v134 = vld [vmem:[%s0 + $0x35c] sm:$0xf]
  %v135 = vld [vmem:[%s0 + $0x360] sm:$0xff]
  %v136 = vld [vmem:[%s0 + $0x368] sm:$0xff]
  %v137 = vld [vmem:[%s0 + $0x370] sm:$0xff]
  %v138 = vld [vmem:[%s0 + $0x378] sm:$0xff]
  %v139 = vld [vmem:[%s0 + $0x380] sm:$0xf]
  %v140 = vld [vmem:[%s1] sm:$0xf]
  %v141 = vld [vmem:[%s1 + $0x4] sm:$0xf]
  %v142 = vld [vmem:[%s1 + $0x8] sm:$0xf]
  %v143 = vld [vmem:[%s1 + $0xc] sm:$0xf]
  %v144 = vld [vmem:[%s1 + $0x10] sm:$0xf]
  %v145 = vld [vmem:[%s1 + $0x14] sm:$0xf]
  %v146 = vld [vmem:[%s1 + $0x18] sm:$0xf]
  %v147 = vld [vmem:[%s1 + $0x1c] sm:$0xf]
  %v148 = vld [vmem:[%s1 + $0x20] sm:$0xf]
  %v149 = vld [vmem:[%s1 + $0x24] sm:$0xf]
  %v150 = vld [vmem:[%s1 + $0x28] sm:$0xf]
  %v151 = vld [vmem:[%s1 + $0x2c] sm:$0xf]
  %v152 = vld [vmem:[%s1 + $0x30] sm:$0xf]
  %v153 = vld [vmem:[%s1 + $0x34] sm:$0xf]
  %v154 = vld [vmem:[%s1 + $0x38] sm:$0xf]
  %v155 = vld [vmem:[%s1 + $0x3c] sm:$0xf]
  %v156 = vld [vmem:[%s1 + $0x40] sm:$0xf]
  %v157 = vld [vmem:[%s1 + $0x44] sm:$0xf]
  %v158 = vld [vmem:[%s1 + $0x48] sm:$0xf]
  %v159 = vld [vmem:[%s1 + $0x4c] sm:$0xf]
  %v160 = vld [vmem:[%s1 + $0x50] sm:$0xf]
  %v161 = vld [vmem:[%s1 + $0x54] sm:$0xf]
  %v162 = vld [vmem:[%s1 + $0x58] sm:$0xf]
  %v163 = vld [vmem:[%s1 + $0x5c] sm:$0xf]
  %v164 = vld [vmem:[%s1 + $0x60] sm:$0xf]
  %v165 = vld [vmem:[%s1 + $0x64] sm:$0xf]
  %v166 = vld [vmem:[%s1 + $0x68] sm:$0xf]
  %v167 = vld [vmem:[%s1 + $0x6c] sm:$0xf]
  %v168 = vld [vmem:[%s1 + $0x70] sm:$0xf]
  %v169 = vld [vmem:[%s1 + $0x74] sm:$0xf]
  %v170 = vld [vmem:[%s1 + $0x78] sm:$0xf]
  %v171 = vld [vmem:[%s1 + $0x7c] sm:$0xf]
  %v172 = vld [vmem:[%s1 + $0x80] sm:$0xf]
  %v173 = vld [vmem:[%s1 + $0x84] sm:$0xf]
  %v174 = vld [vmem:[%s1 + $0x88] sm:$0xf]
  %v175 = vld [vmem:[%s1 + $0x8c] sm:$0xf]
  %v176 = vld [vmem:[%s1 + $0x90] sm:$0xf]
  %v177 = vld [vmem:[%s1 + $0x94] sm:$0xf]
  %v178 = vld [vmem:[%s1 + $0x98] sm:$0xf]
  %v179 = vld [vmem:[%s1 + $0x9c] sm:$0xf]
  %v180 = vld [vmem:[%s1 + $0xa0] sm:$0xf]
  %v181 = vld [vmem:[%s1 + $0xa4] sm:$0xf]
  %v182 = vld [vmem:[%s1 + $0xa8] sm:$0xf]
  %v183 = vld [vmem:[%s1 + $0xac] sm:$0xf]
  %v184 = vld [vmem:[%s1 + $0xb0] sm:$0xf]
  %v185 = vld [vmem:[%s1 + $0xb4] sm:$0xf]
  %v186 = vld [vmem:[%s1 + $0xb8] sm:$0xf]
  %v187 = vld [vmem:[%s1 + $0xbc] sm:$0xf]
  %v188 = vld [vmem:[%s1 + $0xc0] sm:$0xf]
  %v189 = vld [vmem:[%s1 + $0xc4] sm:$0xf]
  %v190 = vld [vmem:[%s1 + $0xc8] sm:$0xf]
  %v191 = vld [vmem:[%s1 + $0xcc] sm:$0xf]
  %v192 = vld [vmem:[%s1 + $0xd0] sm:$0xf]
  %v193 = vld [vmem:[%s1 + $0xd4] sm:$0xf]
  %v194 = vld [vmem:[%s1 + $0xd8] sm:$0xf]
  %v195 = vld [vmem:[%s1 + $0xdc] sm:$0xf]
  %v196 = vld [vmem:[%s1 + $0xe0] sm:$0xf]
  %v197 = vld [vmem:[%s1 + $0xe4] sm:$0xf]
  %v198 = vld [vmem:[%s1 + $0xe8] sm:$0xf]
  %v199 = vld [vmem:[%s1 + $0xec] sm:$0xf]
  %v200 = vld [vmem:[%s1 + $0xf0] sm:$0xf]
  %v201 = vld [vmem:[%s1 + $0xf4] sm:$0xf]
  %v202 = vld [vmem:[%s1 + $0xf8] sm:$0xf]
  %v203 = vld [vmem:[%s1 + $0xfc] sm:$0xf]
  %v204 = vld [vmem:[%s1 + $0x100] sm:$0xf]
  %v205 = vld [vmem:[%s1 + $0x104] sm:$0xf]
  %v206 = vld [vmem:[%s1 + $0x108] sm:$0xf]
  %v207 = vld [vmem:[%s1 + $0x10c] sm:$0xf]
  %v208 = vld [vmem:[%s1 + $0x110] sm:$0xf]
  %v209 = vld [vmem:[%s1 + $0x114] sm:$0xf]
  %v210 = vld [vmem:[%s1 + $0x118] sm:$0xf]
  %v211 = vld [vmem:[%s1 + $0x11c] sm:$0xf]
  %v212 = vld [vmem:[%s1 + $0x120] sm:$0xf]
  %v213 = vld [vmem:[%s1 + $0x124] sm:$0xf]
  %v214 = vld [vmem:[%s1 + $0x128] sm:$0xf]
  %v215 = vld [vmem:[%s1 + $0x12c] sm:$0xf]
  %v216 = vld [vmem:[%s1 + $0x130] sm:$0xf]
  %v217 = vld [vmem:[%s1 + $0x134] sm:$0xf]
  %v218 = vld [vmem:[%s1 + $0x138] sm:$0xf]
  %v219 = vld [vmem:[%s1 + $0x13c] sm:$0xf]
  %v220 = vld [vmem:[%s1 + $0x140] sm:$0xf]
  %v221 = vld [vmem:[%s1 + $0x144] sm:$0xf]
  %v222 = vld [vmem:[%s1 + $0x148] sm:$0xf]
  %v223 = vld [vmem:[%s1 + $0x14c] sm:$0xf]
  %v224 = vld [vmem:[%s1 + $0x150] sm:$0xf]
  %v225 = vld [vmem:[%s1 + $0x154] sm:$0xf]
  %v226 = vld [vmem:[%s1 + $0x158] sm:$0xf]
  %v227 = vld [vmem:[%s1 + $0x15c] sm:$0xf]
  %v228 = vld [vmem:[%s1 + $0x160] sm:$0xf]
  %v229 = vld [vmem:[%s1 + $0x164] sm:$0xf]
  %v230 = vld [vmem:[%s1 + $0x168] sm:$0xf]
  %v231 = vld [vmem:[%s1 + $0x16c] sm:$0xf]
  %v232 = vld [vmem:[%s1 + $0x170] sm:$0xf]
  %v233 = vld [vmem:[%s1 + $0x174] sm:$0xf]
  %v234 = vld [vmem:[%s1 + $0x178] sm:$0xf]
  %v235 = vld [vmem:[%s1 + $0x17c] sm:$0xf]
  %v236 = vld [vmem:[%s1 + $0x180] sm:$0xf]
  %v237 = vld [vmem:[%s1 + $0x184] sm:$0xf]
  %v238 = vld [vmem:[%s1 + $0x188] sm:$0xf]
  %v239 = vld [vmem:[%s1 + $0x18c] sm:$0xf]
  %v240 = vld [vmem:[%s1 + $0x190] sm:$0xf]
  %v241 = vld [vmem:[%s1 + $0x194] sm:$0xf]
  %v242 = vld [vmem:[%s1 + $0x198] sm:$0xf]
  %v243 = vld [vmem:[%s1 + $0x19c] sm:$0xf]
  %v244 = vld [vmem:[%s1 + $0x1a0] sm:$0xf]
  %v245 = vld [vmem:[%s1 + $0x1a4] sm:$0xf]
  %v246 = vld [vmem:[%s1 + $0x1a8] sm:$0xf]
  %v247 = vld [vmem:[%s1 + $0x1ac] sm:$0xf]
  %v248 = vld [vmem:[%s1 + $0x1b0] sm:$0xf]
  %v249 = vld [vmem:[%s1 + $0x1b4] sm:$0xf]
  %v250 = vld [vmem:[%s1 + $0x1b8] sm:$0xf]
  %v251 = vld [vmem:[%s1 + $0x1bc] sm:$0xf]
  %v252 = vld [vmem:[%s1 + $0x1c0] sm:$0xf]
  %v253 = vld [vmem:[%s1 + $0x1c4] sm:$0xf]
  %v254 = vld [vmem:[%s1 + $0x1c8] sm:$0xf]
  %v255 = vld [vmem:[%s1 + $0x1cc] sm:$0xf]
  %v256 = vld [vmem:[%s1 + $0x1d0] sm:$0xf]
  %v257 = vld [vmem:[%s1 + $0x1d4] sm:$0xf]
  %v258 = vld [vmem:[%s1 + $0x1d8] sm:$0xf]
  %v259 = vld [vmem:[%s1 + $0x1dc] sm:$0xf]
  %v260 = vld [vmem:[%s1 + $0x1e0] sm:$0xf]
  %v261 = vld [vmem:[%s1 + $0x1e4] sm:$0xf]
  %v262 = vld [vmem:[%s1 + $0x1e8] sm:$0xf]
  %v263 = vld [vmem:[%s1 + $0x1ec] sm:$0xf]
  %v264 = vld [vmem:[%s1 + $0x1f0] sm:$0xf]
  %v265 = vld [vmem:[%s1 + $0x1f4] sm:$0xf]
  %v266 = vld [vmem:[%s1 + $0x1f8] sm:$0xf]
  %v267 = vld [vmem:[%s1 + $0x1fc] sm:$0xf]
  %v268 = vld [vmem:[%s1 + $0x200] sm:$0xf]
  %v269 = vld [vmem:[%s1 + $0x204] sm:$0xf]
  %v270 = vld [vmem:[%s1 + $0x208] sm:$0xf]
  %v271 = vld [vmem:[%s1 + $0x20c] sm:$0xf]
  %v272 = vld [vmem:[%s1 + $0x210] sm:$0xf]
  %v273 = vld [vmem:[%s1 + $0x214] sm:$0xf]
  %v274 = vld [vmem:[%s1 + $0x218] sm:$0xf]
  %v275 = vld [vmem:[%s1 + $0x21c] sm:$0xf]
  %v276 = vld [vmem:[%s1 + $0x220] sm:$0xf]
  %v277 = vld [vmem:[%s1 + $0x224] sm:$0xf]
  %v278 = vld [vmem:[%s1 + $0x228] sm:$0xf]
  %v279 = vld [vmem:[%s1 + $0x22c] sm:$0xf]
  %v280 = vld [vmem:[%s1 + $0x230] sm:$0xf]
  %v281 = vld [vmem:[%s1 + $0x234] sm:$0xf]
  %v282 = vld [vmem:[%s1 + $0x238] sm:$0xf]
  %v283 = vld [vmem:[%s1 + $0x23c] sm:$0xf]
  %v284 = vld [vmem:[%s2] sm:$0x1]
  %v286 = vlaneseq
  %v287 = vshrl.u32 %v286, 7
  %v288 = vsub.s32 0, %v287
  %v289 = vrot.slane %v284, %v288
  %v416 = vunpack.c.l.b16 %v15
  %v417 = vunpack.c.h.b16 %v15
  %v418 = vunpack.c.l.b16 %v16
  %v419 = vunpack.c.h.b16 %v16
  %v420 = vunpack.c.l.b16 %v17
  %v421 = vunpack.c.h.b16 %v17
  %v422 = vunpack.c.l.b16 %v18
  %v423 = vunpack.c.h.b16 %v18
  %v424 = vunpack.c.l.b16 %v19
  %v425 = vunpack.c.l.b16 %v20
  %v426 = vunpack.c.h.b16 %v20
  %v427 = vunpack.c.l.b16 %v21
  %v428 = vunpack.c.h.b16 %v21
  %v429 = vunpack.c.l.b16 %v22
  %v430 = vunpack.c.h.b16 %v22
  %v431 = vunpack.c.l.b16 %v23
  %v432 = vunpack.c.h.b16 %v23
  %v433 = vunpack.c.l.b16 %v24
  %v434 = vunpack.c.l.b16 %v25
  %v435 = vunpack.c.h.b16 %v25
  %v436 = vunpack.c.l.b16 %v26
  %v437 = vunpack.c.h.b16 %v26
  %v438 = vunpack.c.l.b16 %v27
  %v439 = vunpack.c.h.b16 %v27
  %v440 = vunpack.c.l.b16 %v28
  %v441 = vunpack.c.h.b16 %v28
  %v442 = vunpack.c.l.b16 %v29
  %v443 = vunpack.c.l.b16 %v30
  %v444 = vunpack.c.h.b16 %v30
  %v445 = vunpack.c.l.b16 %v31
  %v446 = vunpack.c.h.b16 %v31
  %v447 = vunpack.c.l.b16 %v32
  %v448 = vunpack.c.h.b16 %v32
  %v449 = vunpack.c.l.b16 %v33
  %v450 = vunpack.c.h.b16 %v33
  %v451 = vunpack.c.l.b16 %v34
  %v452 = vunpack.c.l.b16 %v35
  %v453 = vunpack.c.h.b16 %v35
  %v454 = vunpack.c.l.b16 %v36
  %v455 = vunpack.c.h.b16 %v36
  %v456 = vunpack.c.l.b16 %v37
  %v457 = vunpack.c.h.b16 %v37
  %v458 = vunpack.c.l.b16 %v38
  %v459 = vunpack.c.h.b16 %v38
  %v460 = vunpack.c.l.b16 %v39
  %v461 = vunpack.c.l.b16 %v40
  %v462 = vunpack.c.h.b16 %v40
  %v463 = vunpack.c.l.b16 %v41
  %v464 = vunpack.c.h.b16 %v41
  %v465 = vunpack.c.l.b16 %v42
  %v466 = vunpack.c.h.b16 %v42
  %v467 = vunpack.c.l.b16 %v43
  %v468 = vunpack.c.h.b16 %v43
  %v469 = vunpack.c.l.b16 %v44
  %v470 = vunpack.c.l.b16 %v45
  %v471 = vunpack.c.h.b16 %v45
  %v472 = vunpack.c.l.b16 %v46
  %v473 = vunpack.c.h.b16 %v46
  %v474 = vunpack.c.l.b16 %v47
  %v475 = vunpack.c.h.b16 %v47
  %v476 = vunpack.c.l.b16 %v48
  %v477 = vunpack.c.h.b16 %v48
  %v478 = vunpack.c.l.b16 %v49
  %v479 = vunpack.c.l.b16 %v50
  %v480 = vunpack.c.h.b16 %v50
  %v481 = vunpack.c.l.b16 %v51
  %v482 = vunpack.c.h.b16 %v51
  %v483 = vunpack.c.l.b16 %v52
  %v484 = vunpack.c.h.b16 %v52
  %v485 = vunpack.c.l.b16 %v53
  %v486 = vunpack.c.h.b16 %v53
  %v487 = vunpack.c.l.b16 %v54
  %v488 = vunpack.c.l.b16 %v55
  %v489 = vunpack.c.h.b16 %v55
  %v490 = vunpack.c.l.b16 %v56
  %v491 = vunpack.c.h.b16 %v56
  %v492 = vunpack.c.l.b16 %v57
  %v493 = vunpack.c.h.b16 %v57
  %v494 = vunpack.c.l.b16 %v58
  %v495 = vunpack.c.h.b16 %v58
  %v496 = vunpack.c.l.b16 %v59
  %v497 = vunpack.c.l.b16 %v60
  %v498 = vunpack.c.h.b16 %v60
  %v499 = vunpack.c.l.b16 %v61
  %v500 = vunpack.c.h.b16 %v61
  %v501 = vunpack.c.l.b16 %v62
  %v502 = vunpack.c.h.b16 %v62
  %v503 = vunpack.c.l.b16 %v63
  %v504 = vunpack.c.h.b16 %v63
  %v505 = vunpack.c.l.b16 %v64
  %v506 = vunpack.c.l.b16 %v65
  %v507 = vunpack.c.h.b16 %v65
  %v508 = vunpack.c.l.b16 %v66
  %v509 = vunpack.c.h.b16 %v66
  %v510 = vunpack.c.l.b16 %v67
  %v511 = vunpack.c.h.b16 %v67
  %v512 = vunpack.c.l.b16 %v68
  %v513 = vunpack.c.h.b16 %v68
  %v514 = vunpack.c.l.b16 %v69
  %v515 = vunpack.c.l.b16 %v70
  %v516 = vunpack.c.h.b16 %v70
  %v517 = vunpack.c.l.b16 %v71
  %v518 = vunpack.c.h.b16 %v71
  %v519 = vunpack.c.l.b16 %v72
  %v520 = vunpack.c.h.b16 %v72
  %v521 = vunpack.c.l.b16 %v73
  %v522 = vunpack.c.h.b16 %v73
  %v523 = vunpack.c.l.b16 %v74
  %v524 = vunpack.c.l.b16 %v75
  %v525 = vunpack.c.h.b16 %v75
  %v526 = vunpack.c.l.b16 %v76
  %v527 = vunpack.c.h.b16 %v76
  %v528 = vunpack.c.l.b16 %v77
  %v529 = vunpack.c.h.b16 %v77
  %v530 = vunpack.c.l.b16 %v78
  %v531 = vunpack.c.h.b16 %v78
  %v532 = vunpack.c.l.b16 %v79
  %v533 = vunpack.c.l.b16 %v80
  %v534 = vunpack.c.h.b16 %v80
  %v535 = vunpack.c.l.b16 %v81
  %v536 = vunpack.c.h.b16 %v81
  %v537 = vunpack.c.l.b16 %v82
  %v538 = vunpack.c.h.b16 %v82
  %v539 = vunpack.c.l.b16 %v83
  %v540 = vunpack.c.h.b16 %v83
  %v541 = vunpack.c.l.b16 %v84
  %v542 = vunpack.c.l.b16 %v85
  %v543 = vunpack.c.h.b16 %v85
  %v544 = vunpack.c.l.b16 %v86
  %v545 = vunpack.c.h.b16 %v86
  %v546 = vunpack.c.l.b16 %v87
  %v547 = vunpack.c.h.b16 %v87
  %v548 = vunpack.c.l.b16 %v88
  %v549 = vunpack.c.h.b16 %v88
  %v550 = vunpack.c.l.b16 %v89
  %v551 = vunpack.c.l.b16 %v90
  %v552 = vunpack.c.h.b16 %v90
  %v553 = vunpack.c.l.b16 %v91
  %v554 = vunpack.c.h.b16 %v91
  %v555 = vunpack.c.l.b16 %v92
  %v556 = vunpack.c.h.b16 %v92
  %v557 = vunpack.c.l.b16 %v93
  %v558 = vunpack.c.h.b16 %v93
  %v559 = vunpack.c.l.b16 %v94
  %v560 = vunpack.c.l.b16 %v95
  %v561 = vunpack.c.h.b16 %v95
  %v562 = vunpack.c.l.b16 %v96
  %v563 = vunpack.c.h.b16 %v96
  %v564 = vunpack.c.l.b16 %v97
  %v565 = vunpack.c.h.b16 %v97
  %v566 = vunpack.c.l.b16 %v98
  %v567 = vunpack.c.h.b16 %v98
  %v568 = vunpack.c.l.b16 %v99
  %v569 = vunpack.c.l.b16 %v100
  %v570 = vunpack.c.h.b16 %v100
  %v571 = vunpack.c.l.b16 %v101
  %v572 = vunpack.c.h.b16 %v101
  %v573 = vunpack.c.l.b16 %v102
  %v574 = vunpack.c.h.b16 %v102
  %v575 = vunpack.c.l.b16 %v103
  %v576 = vunpack.c.h.b16 %v103
  %v577 = vunpack.c.l.b16 %v104
  %v578 = vunpack.c.l.b16 %v105
  %v579 = vunpack.c.h.b16 %v105
  %v580 = vunpack.c.l.b16 %v106
  %v581 = vunpack.c.h.b16 %v106
  %v582 = vunpack.c.l.b16 %v107
  %v583 = vunpack.c.h.b16 %v107
  %v584 = vunpack.c.l.b16 %v108
  %v585 = vunpack.c.h.b16 %v108
  %v586 = vunpack.c.l.b16 %v109
  %v587 = vunpack.c.l.b16 %v110
  %v588 = vunpack.c.h.b16 %v110
  %v589 = vunpack.c.l.b16 %v111
  %v590 = vunpack.c.h.b16 %v111
  %v591 = vunpack.c.l.b16 %v112
  %v592 = vunpack.c.h.b16 %v112
  %v593 = vunpack.c.l.b16 %v113
  %v594 = vunpack.c.h.b16 %v113
  %v595 = vunpack.c.l.b16 %v114
  %v596 = vunpack.c.l.b16 %v115
  %v597 = vunpack.c.h.b16 %v115
  %v598 = vunpack.c.l.b16 %v116
  %v599 = vunpack.c.h.b16 %v116
  %v600 = vunpack.c.l.b16 %v117
  %v601 = vunpack.c.h.b16 %v117
  %v602 = vunpack.c.l.b16 %v118
  %v603 = vunpack.c.h.b16 %v118
  %v604 = vunpack.c.l.b16 %v119
  %v605 = vunpack.c.l.b16 %v120
  %v606 = vunpack.c.h.b16 %v120
  %v607 = vunpack.c.l.b16 %v121
  %v608 = vunpack.c.h.b16 %v121
  %v609 = vunpack.c.l.b16 %v122
  %v610 = vunpack.c.h.b16 %v122
  %v611 = vunpack.c.l.b16 %v123
  %v612 = vunpack.c.h.b16 %v123
  %v613 = vunpack.c.l.b16 %v124
  %v614 = vunpack.c.l.b16 %v125
  %v615 = vunpack.c.h.b16 %v125
  %v616 = vunpack.c.l.b16 %v126
  %v617 = vunpack.c.h.b16 %v126
  %v618 = vunpack.c.l.b16 %v127
  %v619 = vunpack.c.h.b16 %v127
  %v620 = vunpack.c.l.b16 %v128
  %v621 = vunpack.c.h.b16 %v128
  %v622 = vunpack.c.l.b16 %v129
  %v623 = vunpack.c.l.b16 %v130
  %v624 = vunpack.c.h.b16 %v130
  %v625 = vunpack.c.l.b16 %v131
  %v626 = vunpack.c.h.b16 %v131
  %v627 = vunpack.c.l.b16 %v132
  %v628 = vunpack.c.h.b16 %v132
  %v629 = vunpack.c.l.b16 %v133
  %v630 = vunpack.c.h.b16 %v133
  %v631 = vunpack.c.l.b16 %v134
  %v632 = vunpack.c.l.b16 %v135
  %v633 = vunpack.c.h.b16 %v135
  %v634 = vunpack.c.l.b16 %v136
  %v635 = vunpack.c.h.b16 %v136
  %v636 = vunpack.c.l.b16 %v137
  %v637 = vunpack.c.h.b16 %v137
  %v638 = vunpack.c.l.b16 %v138
  %v639 = vunpack.c.h.b16 %v138
  %v640 = vunpack.c.l.b16 %v139
  %v641 = vpack.c.b16 %v425, %v416
  %v642 = vpack.c.b16 %v426, %v417
  %v643 = vpack.c.b16 %v427, %v418
  %v644 = vpack.c.b16 %v428, %v419
  %v645 = vpack.c.b16 %v429, %v420
  %v646 = vpack.c.b16 %v430, %v421
  %v647 = vpack.c.b16 %v431, %v422
  %v648 = vpack.c.b16 %v432, %v423
  %v649 = vpack.c.b16 %v433, %v424
  %v650 = vpack.c.b16 %v443, %v434
  %v651 = vpack.c.b16 %v444, %v435
  %v652 = vpack.c.b16 %v445, %v436
  %v653 = vpack.c.b16 %v446, %v437
  %v654 = vpack.c.b16 %v447, %v438
  %v655 = vpack.c.b16 %v448, %v439
  %v656 = vpack.c.b16 %v449, %v440
  %v657 = vpack.c.b16 %v450, %v441
  %v658 = vpack.c.b16 %v451, %v442
  %v659 = vpack.c.b16 %v461, %v452
  %v660 = vpack.c.b16 %v462, %v453
  %v661 = vpack.c.b16 %v463, %v454
  %v662 = vpack.c.b16 %v464, %v455
  %v663 = vpack.c.b16 %v465, %v456
  %v664 = vpack.c.b16 %v466, %v457
  %v665 = vpack.c.b16 %v467, %v458
  %v666 = vpack.c.b16 %v468, %v459
  %v667 = vpack.c.b16 %v469, %v460
  %v668 = vpack.c.b16 %v479, %v470
  %v669 = vpack.c.b16 %v480, %v471
  %v670 = vpack.c.b16 %v481, %v472
  %v671 = vpack.c.b16 %v482, %v473
  %v672 = vpack.c.b16 %v483, %v474
  %v673 = vpack.c.b16 %v484, %v475
  %v674 = vpack.c.b16 %v485, %v476
  %v675 = vpack.c.b16 %v486, %v477
  %v676 = vpack.c.b16 %v487, %v478
  %v677 = vpack.c.b16 %v497, %v488
  %v678 = vpack.c.b16 %v498, %v489
  %v679 = vpack.c.b16 %v499, %v490
  %v680 = vpack.c.b16 %v500, %v491
  %v681 = vpack.c.b16 %v501, %v492
  %v682 = vpack.c.b16 %v502, %v493
  %v683 = vpack.c.b16 %v503, %v494
  %v684 = vpack.c.b16 %v504, %v495
  %v685 = vpack.c.b16 %v505, %v496
  %v686 = vpack.c.b16 %v515, %v506
  %v687 = vpack.c.b16 %v516, %v507
  %v688 = vpack.c.b16 %v517, %v508
  %v689 = vpack.c.b16 %v518, %v509
  %v690 = vpack.c.b16 %v519, %v510
  %v691 = vpack.c.b16 %v520, %v511
  %v692 = vpack.c.b16 %v521, %v512
  %v693 = vpack.c.b16 %v522, %v513
  %v694 = vpack.c.b16 %v523, %v514
  %v695 = vpack.c.b16 %v533, %v524
  %v696 = vpack.c.b16 %v534, %v525
  %v697 = vpack.c.b16 %v535, %v526
  %v698 = vpack.c.b16 %v536, %v527
  %v699 = vpack.c.b16 %v537, %v528
  %v700 = vpack.c.b16 %v538, %v529
  %v701 = vpack.c.b16 %v539, %v530
  %v702 = vpack.c.b16 %v540, %v531
  %v703 = vpack.c.b16 %v541, %v532
  %v704 = vpack.c.b16 %v551, %v542
  %v705 = vpack.c.b16 %v552, %v543
  %v706 = vpack.c.b16 %v553, %v544
  %v707 = vpack.c.b16 %v554, %v545
  %v708 = vpack.c.b16 %v555, %v546
  %v709 = vpack.c.b16 %v556, %v547
  %v710 = vpack.c.b16 %v557, %v548
  %v711 = vpack.c.b16 %v558, %v549
  %v712 = vpack.c.b16 %v559, %v550
  %v713 = vpack.c.b16 %v569, %v560
  %v714 = vpack.c.b16 %v570, %v561
  %v715 = vpack.c.b16 %v571, %v562
  %v716 = vpack.c.b16 %v572, %v563
  %v717 = vpack.c.b16 %v573, %v564
  %v718 = vpack.c.b16 %v574, %v565
  %v719 = vpack.c.b16 %v575, %v566
  %v720 = vpack.c.b16 %v576, %v567
  %v721 = vpack.c.b16 %v577, %v568
  %v722 = vpack.c.b16 %v587, %v578
  %v723 = vpack.c.b16 %v588, %v579
  %v724 = vpack.c.b16 %v589, %v580
  %v725 = vpack.c.b16 %v590, %v581
  %v726 = vpack.c.b16 %v591, %v582
  %v727 = vpack.c.b16 %v592, %v583
  %v728 = vpack.c.b16 %v593, %v584
  %v729 = vpack.c.b16 %v594, %v585
  %v730 = vpack.c.b16 %v595, %v586
  %v731 = vpack.c.b16 %v605, %v596
  %v732 = vpack.c.b16 %v606, %v597
  %v733 = vpack.c.b16 %v607, %v598
  %v734 = vpack.c.b16 %v608, %v599
  %v735 = vpack.c.b16 %v609, %v600
  %v736 = vpack.c.b16 %v610, %v601
  %v737 = vpack.c.b16 %v611, %v602
  %v738 = vpack.c.b16 %v612, %v603
  %v739 = vpack.c.b16 %v613, %v604
  %v740 = vpack.c.b16 %v623, %v614
  %v741 = vpack.c.b16 %v624, %v615
  %v742 = vpack.c.b16 %v625, %v616
  %v743 = vpack.c.b16 %v626, %v617
  %v744 = vpack.c.b16 %v627, %v618
  %v745 = vpack.c.b16 %v628, %v619
  %v746 = vpack.c.b16 %v629, %v620
  %v747 = vpack.c.b16 %v630, %v621
  %v748 = vpack.c.b16 %v631, %v622
  %v749 = vpack.c.b16 %v632, %v632
  %v750 = vpack.c.b16 %v633, %v633
  %v751 = vpack.c.b16 %v634, %v634
  %v752 = vpack.c.b16 %v635, %v635
  %v753 = vpack.c.b16 %v636, %v636
  %v754 = vpack.c.b16 %v637, %v637
  %v755 = vpack.c.b16 %v638, %v638
  %v756 = vpack.c.b16 %v639, %v639
  %v757 = vpack.c.b16 %v640, %v640
  %v1019 = vunpack.c.l.b16 %v140
  %v1020 = vunpack.c.l.b16 %v141
  %v1021 = vunpack.c.l.b16 %v142
  %v1022 = vunpack.c.l.b16 %v143
  %v1023 = vunpack.c.l.b16 %v144
  %v1024 = vunpack.c.l.b16 %v145
  %v1025 = vunpack.c.l.b16 %v146
  %v1026 = vunpack.c.l.b16 %v147
  %v1027 = vunpack.c.l.b16 %v148
  %v1028 = vunpack.c.l.b16 %v149
  %v1029 = vunpack.c.l.b16 %v150
  %v1030 = vunpack.c.l.b16 %v151
  %v1031 = vunpack.c.l.b16 %v152
  %v1032 = vunpack.c.l.b16 %v153
  %v1033 = vunpack.c.l.b16 %v154
  %v1034 = vunpack.c.l.b16 %v155
  %v1035 = vunpack.c.l.b16 %v156
  %v1036 = vunpack.c.l.b16 %v157
  %v1037 = vunpack.c.l.b16 %v158
  %v1038 = vunpack.c.l.b16 %v159
  %v1039 = vunpack.c.l.b16 %v160
  %v1040 = vunpack.c.l.b16 %v161
  %v1041 = vunpack.c.l.b16 %v162
  %v1042 = vunpack.c.l.b16 %v163
  %v1043 = vunpack.c.l.b16 %v164
  %v1044 = vunpack.c.l.b16 %v165
  %v1045 = vunpack.c.l.b16 %v166
  %v1046 = vunpack.c.l.b16 %v167
  %v1047 = vunpack.c.l.b16 %v168
  %v1048 = vunpack.c.l.b16 %v169
  %v1049 = vunpack.c.l.b16 %v170
  %v1050 = vunpack.c.l.b16 %v171
  %v1051 = vunpack.c.l.b16 %v172
  %v1052 = vunpack.c.l.b16 %v173
  %v1053 = vunpack.c.l.b16 %v174
  %v1054 = vunpack.c.l.b16 %v175
  %v1055 = vunpack.c.l.b16 %v176
  %v1056 = vunpack.c.l.b16 %v177
  %v1057 = vunpack.c.l.b16 %v178
  %v1058 = vunpack.c.l.b16 %v179
  %v1059 = vunpack.c.l.b16 %v180
  %v1060 = vunpack.c.l.b16 %v181
  %v1061 = vunpack.c.l.b16 %v182
  %v1062 = vunpack.c.l.b16 %v183
  %v1063 = vunpack.c.l.b16 %v184
  %v1064 = vunpack.c.l.b16 %v185
  %v1065 = vunpack.c.l.b16 %v186
  %v1066 = vunpack.c.l.b16 %v187
  %v1067 = vunpack.c.l.b16 %v188
  %v1068 = vunpack.c.l.b16 %v189
  %v1069 = vunpack.c.l.b16 %v190
  %v1070 = vunpack.c.l.b16 %v191
  %v1071 = vunpack.c.l.b16 %v192
  %v1072 = vunpack.c.l.b16 %v193
  %v1073 = vunpack.c.l.b16 %v194
  %v1074 = vunpack.c.l.b16 %v195
  %v1075 = vunpack.c.l.b16 %v196
  %v1076 = vunpack.c.l.b16 %v197
  %v1077 = vunpack.c.l.b16 %v198
  %v1078 = vunpack.c.l.b16 %v199
  %v1079 = vunpack.c.l.b16 %v200
  %v1080 = vunpack.c.l.b16 %v201
  %v1081 = vunpack.c.l.b16 %v202
  %v1082 = vunpack.c.l.b16 %v203
  %v1083 = vunpack.c.l.b16 %v204
  %v1084 = vunpack.c.l.b16 %v205
  %v1085 = vunpack.c.l.b16 %v206
  %v1086 = vunpack.c.l.b16 %v207
  %v1087 = vunpack.c.l.b16 %v208
  %v1088 = vunpack.c.l.b16 %v209
  %v1089 = vunpack.c.l.b16 %v210
  %v1090 = vunpack.c.l.b16 %v211
  %v1091 = vunpack.c.l.b16 %v212
  %v1092 = vunpack.c.l.b16 %v213
  %v1093 = vunpack.c.l.b16 %v214
  %v1094 = vunpack.c.l.b16 %v215
  %v1095 = vunpack.c.l.b16 %v216
  %v1096 = vunpack.c.l.b16 %v217
  %v1097 = vunpack.c.l.b16 %v218
  %v1098 = vunpack.c.l.b16 %v219
  %v1099 = vunpack.c.l.b16 %v220
  %v1100 = vunpack.c.l.b16 %v221
  %v1101 = vunpack.c.l.b16 %v222
  %v1102 = vunpack.c.l.b16 %v223
  %v1103 = vunpack.c.l.b16 %v224
  %v1104 = vunpack.c.l.b16 %v225
  %v1105 = vunpack.c.l.b16 %v226
  %v1106 = vunpack.c.l.b16 %v227
  %v1107 = vunpack.c.l.b16 %v228
  %v1108 = vunpack.c.l.b16 %v229
  %v1109 = vunpack.c.l.b16 %v230
  %v1110 = vunpack.c.l.b16 %v231
  %v1111 = vunpack.c.l.b16 %v232
  %v1112 = vunpack.c.l.b16 %v233
  %v1113 = vunpack.c.l.b16 %v234
  %v1114 = vunpack.c.l.b16 %v235
  %v1115 = vunpack.c.l.b16 %v236
  %v1116 = vunpack.c.l.b16 %v237
  %v1117 = vunpack.c.l.b16 %v238
  %v1118 = vunpack.c.l.b16 %v239
  %v1119 = vunpack.c.l.b16 %v240
  %v1120 = vunpack.c.l.b16 %v241
  %v1121 = vunpack.c.l.b16 %v242
  %v1122 = vunpack.c.l.b16 %v243
  %v1123 = vunpack.c.l.b16 %v244
  %v1124 = vunpack.c.l.b16 %v245
  %v1125 = vunpack.c.l.b16 %v246
  %v1126 = vunpack.c.l.b16 %v247
  %v1127 = vunpack.c.l.b16 %v248
  %v1128 = vunpack.c.l.b16 %v249
  %v1129 = vunpack.c.l.b16 %v250
  %v1130 = vunpack.c.l.b16 %v251
  %v1131 = vunpack.c.l.b16 %v252
  %v1132 = vunpack.c.l.b16 %v253
  %v1133 = vunpack.c.l.b16 %v254
  %v1134 = vunpack.c.l.b16 %v255
  %v1135 = vunpack.c.l.b16 %v256
  %v1136 = vunpack.c.l.b16 %v257
  %v1137 = vunpack.c.l.b16 %v258
  %v1138 = vunpack.c.l.b16 %v259
  %v1139 = vunpack.c.l.b16 %v260
  %v1140 = vunpack.c.l.b16 %v261
  %v1141 = vunpack.c.l.b16 %v262
  %v1142 = vunpack.c.l.b16 %v263
  %v1143 = vunpack.c.l.b16 %v264
  %v1144 = vunpack.c.l.b16 %v265
  %v1145 = vunpack.c.l.b16 %v266
  %v1146 = vunpack.c.l.b16 %v267
  %v1147 = vunpack.c.l.b16 %v268
  %v1148 = vunpack.c.l.b16 %v269
  %v1149 = vunpack.c.l.b16 %v270
  %v1150 = vunpack.c.l.b16 %v271
  %v1151 = vunpack.c.l.b16 %v272
  %v1152 = vunpack.c.l.b16 %v273
  %v1153 = vunpack.c.l.b16 %v274
  %v1154 = vunpack.c.l.b16 %v275
  %v1155 = vunpack.c.l.b16 %v276
  %v1156 = vunpack.c.l.b16 %v277
  %v1157 = vunpack.c.l.b16 %v278
  %v1158 = vunpack.c.l.b16 %v279
  %v1159 = vunpack.c.l.b16 %v280
  %v1160 = vunpack.c.l.b16 %v281
  %v1161 = vunpack.c.l.b16 %v282
  %v1162 = vunpack.c.l.b16 %v283
  %v1163 = vpack.c.b16 %v1020, %v1019
  %v1164 = vpack.c.b16 %v1022, %v1021
  %v1165 = vpack.c.b16 %v1024, %v1023
  %v1166 = vpack.c.b16 %v1026, %v1025
  %v1167 = vpack.c.b16 %v1028, %v1027
  %v1168 = vpack.c.b16 %v1030, %v1029
  %v1169 = vpack.c.b16 %v1032, %v1031
  %v1170 = vpack.c.b16 %v1034, %v1033
  %v1171 = vpack.c.b16 %v1036, %v1035
  %v1172 = vpack.c.b16 %v1038, %v1037
  %v1173 = vpack.c.b16 %v1040, %v1039
  %v1174 = vpack.c.b16 %v1042, %v1041
  %v1175 = vpack.c.b16 %v1044, %v1043
  %v1176 = vpack.c.b16 %v1046, %v1045
  %v1177 = vpack.c.b16 %v1048, %v1047
  %v1178 = vpack.c.b16 %v1050, %v1049
  %v1179 = vpack.c.b16 %v1052, %v1051
  %v1180 = vpack.c.b16 %v1054, %v1053
  %v1181 = vpack.c.b16 %v1056, %v1055
  %v1182 = vpack.c.b16 %v1058, %v1057
  %v1183 = vpack.c.b16 %v1060, %v1059
  %v1184 = vpack.c.b16 %v1062, %v1061
  %v1185 = vpack.c.b16 %v1064, %v1063
  %v1186 = vpack.c.b16 %v1066, %v1065
  %v1187 = vpack.c.b16 %v1068, %v1067
  %v1188 = vpack.c.b16 %v1070, %v1069
  %v1189 = vpack.c.b16 %v1072, %v1071
  %v1190 = vpack.c.b16 %v1074, %v1073
  %v1191 = vpack.c.b16 %v1076, %v1075
  %v1192 = vpack.c.b16 %v1078, %v1077
  %v1193 = vpack.c.b16 %v1080, %v1079
  %v1194 = vpack.c.b16 %v1082, %v1081
  %v1195 = vpack.c.b16 %v1084, %v1083
  %v1196 = vpack.c.b16 %v1086, %v1085
  %v1197 = vpack.c.b16 %v1088, %v1087
  %v1198 = vpack.c.b16 %v1090, %v1089
  %v1199 = vpack.c.b16 %v1092, %v1091
  %v1200 = vpack.c.b16 %v1094, %v1093
  %v1201 = vpack.c.b16 %v1096, %v1095
  %v1202 = vpack.c.b16 %v1098, %v1097
  %v1203 = vpack.c.b16 %v1100, %v1099
  %v1204 = vpack.c.b16 %v1102, %v1101
  %v1205 = vpack.c.b16 %v1104, %v1103
  %v1206 = vpack.c.b16 %v1106, %v1105
  %v1207 = vpack.c.b16 %v1108, %v1107
  %v1208 = vpack.c.b16 %v1110, %v1109
  %v1209 = vpack.c.b16 %v1112, %v1111
  %v1210 = vpack.c.b16 %v1114, %v1113
  %v1211 = vpack.c.b16 %v1116, %v1115
  %v1212 = vpack.c.b16 %v1118, %v1117
  %v1213 = vpack.c.b16 %v1120, %v1119
  %v1214 = vpack.c.b16 %v1122, %v1121
  %v1215 = vpack.c.b16 %v1124, %v1123
  %v1216 = vpack.c.b16 %v1126, %v1125
  %v1217 = vpack.c.b16 %v1128, %v1127
  %v1218 = vpack.c.b16 %v1130, %v1129
  %v1219 = vpack.c.b16 %v1132, %v1131
  %v1220 = vpack.c.b16 %v1134, %v1133
  %v1221 = vpack.c.b16 %v1136, %v1135
  %v1222 = vpack.c.b16 %v1138, %v1137
  %v1223 = vpack.c.b16 %v1140, %v1139
  %v1224 = vpack.c.b16 %v1142, %v1141
  %v1225 = vpack.c.b16 %v1144, %v1143
  %v1226 = vpack.c.b16 %v1146, %v1145
  %v1227 = vpack.c.b16 %v1148, %v1147
  %v1228 = vpack.c.b16 %v1150, %v1149
  %v1229 = vpack.c.b16 %v1152, %v1151
  %v1230 = vpack.c.b16 %v1154, %v1153
  %v1231 = vpack.c.b16 %v1156, %v1155
  %v1232 = vpack.c.b16 %v1158, %v1157
  %v1233 = vpack.c.b16 %v1160, %v1159
  %v1234 = vpack.c.b16 %v1162, %v1161
  %1307 = vmatprep.subr.bf16.mxu0 0
  %1308 = vmatpush1.bf16.msra.mxu0 %v1170
  %1309 = vmatprep.subr.bf16.mxu0 0
  %1310 = vmatpush1.bf16.msra.mxu0 %v1169
  %1311 = vmatprep.subr.bf16.mxu0 0
  %1312 = vmatpush1.bf16.msra.mxu0 %v1168
  %1313 = vmatprep.subr.bf16.mxu0 0
  %1314 = vmatpush1.bf16.msra.mxu0 %v1167
  %1315 = vmatprep.subr.bf16.mxu0 0
  %1316 = vmatpush1.bf16.msra.mxu0 %v1166
  %1317 = vmatprep.subr.bf16.mxu0 0
  %1318 = vmatpush1.bf16.msra.mxu0 %v1165
  %1319 = vmatprep.subr.bf16.mxu0 0
  %1320 = vmatpush1.bf16.msra.mxu0 %v1164
  %1321 = vmatprep.subr.bf16.mxu0 0
  %1322 = vmatpush1.bf16.msra.mxu0 %v1163
  %1323 = vmatprep.subr.bf16.mxu0 0
  %1324 = vmatpush2.bf16.msra.mxu0 %v1178
  %1325 = vmatprep.subr.bf16.mxu0 0
  %1326 = vmatpush2.bf16.msra.mxu0 %v1177
  %1327 = vmatprep.subr.bf16.mxu0 0
  %1328 = vmatpush2.bf16.msra.mxu0 %v1176
  %1329 = vmatprep.subr.bf16.mxu0 0
  %1330 = vmatpush2.bf16.msra.mxu0 %v1175
  %1331 = vmatprep.subr.bf16.mxu0 0
  %1332 = vmatpush2.bf16.msra.mxu0 %v1174
  %1333 = vmatprep.subr.bf16.mxu0 0
  %1334 = vmatpush2.bf16.msra.mxu0 %v1173
  %1335 = vmatprep.subr.bf16.mxu0 0
  %1336 = vmatpush2.bf16.msra.mxu0 %v1172
  %1337 = vmatprep.subr.bf16.mxu0 0
  %1338 = vmatpush2.bf16.msra.mxu0 %v1171
  %1339 = vmatprep.mubr.bf16.mxu0 %v642
  %1340 = vmatmul.mubr.bf16.gmra.mxu0 %v641
  %v1341 = vpop.f32.mrf.mxu0
  %v1342 = vadd.f32 %v289, %v1341
  %v1343 = vpop.f32.mrf.mxu0
  %v1344 = vpop.f32.mrf.mxu0
  %v1345 = vadd.f32 %v289, %v1344
  %v1346 = vpop.f32.mrf.mxu0
  %1347 = vmatprep.mubr.bf16.mxu0 %v651
  %1348 = vmatmul.mubr.bf16.gmra.mxu0 %v650
  %v1349 = vpop.f32.mrf.mxu0
  %v1350 = vadd.f32 %v289, %v1349
  %v1351 = vpop.f32.mrf.mxu0
  %v1352 = vpop.f32.mrf.mxu0
  %v1353 = vadd.f32 %v289, %v1352
  %v1354 = vpop.f32.mrf.mxu0
  %1355 = vmatprep.mubr.bf16.mxu0 %v660
  %1356 = vmatmul.mubr.bf16.gmra.mxu0 %v659
  %v1357 = vpop.f32.mrf.mxu0
  %v1358 = vadd.f32 %v289, %v1357
  %v1359 = vpop.f32.mrf.mxu0
  %v1360 = vpop.f32.mrf.mxu0
  %v1361 = vadd.f32 %v289, %v1360
  %v1362 = vpop.f32.mrf.mxu0
  %1363 = vmatprep.mubr.bf16.mxu0 %v669
  %1364 = vmatmul.mubr.bf16.gmra.mxu0 %v668
  %v1365 = vpop.f32.mrf.mxu0
  %v1366 = vadd.f32 %v289, %v1365
  %v1367 = vpop.f32.mrf.mxu0
  %v1368 = vpop.f32.mrf.mxu0
  %v1369 = vadd.f32 %v289, %v1368
  %v1370 = vpop.f32.mrf.mxu0
  %1371 = vmatprep.mubr.bf16.mxu0 %v678
  %1372 = vmatmul.mubr.bf16.gmra.mxu0 %v677
  %v1373 = vpop.f32.mrf.mxu0
  %v1374 = vadd.f32 %v289, %v1373
  %v1375 = vpop.f32.mrf.mxu0
  %v1376 = vpop.f32.mrf.mxu0
  %v1377 = vadd.f32 %v289, %v1376
  %v1378 = vpop.f32.mrf.mxu0
  %1379 = vmatprep.mubr.bf16.mxu0 %v687
  %1380 = vmatmul.mubr.bf16.gmra.mxu0 %v686
  %v1381 = vpop.f32.mrf.mxu0
  %v1382 = vadd.f32 %v289, %v1381
  %v1383 = vpop.f32.mrf.mxu0
  %v1384 = vpop.f32.mrf.mxu0
  %v1385 = vadd.f32 %v289, %v1384
  %v1386 = vpop.f32.mrf.mxu0
  %1387 = vmatprep.mubr.bf16.mxu0 %v696
  %1388 = vmatmul.mubr.bf16.gmra.mxu0 %v695
  %v1389 = vpop.f32.mrf.mxu0
  %v1390 = vadd.f32 %v289, %v1389
  %v1391 = vpop.f32.mrf.mxu0
  %v1392 = vpop.f32.mrf.mxu0
  %v1393 = vadd.f32 %v289, %v1392
  %v1394 = vpop.f32.mrf.mxu0
  %1395 = vmatprep.mubr.bf16.mxu0 %v705
  %1396 = vmatmul.mubr.bf16.gmra.mxu0 %v704
  %v1397 = vpop.f32.mrf.mxu0
  %v1398 = vadd.f32 %v289, %v1397
  %v1399 = vpop.f32.mrf.mxu0
  %v1400 = vpop.f32.mrf.mxu0
  %v1401 = vadd.f32 %v289, %v1400
  %v1402 = vpop.f32.mrf.mxu0
  %1403 = vmatprep.mubr.bf16.mxu0 %v714
  %1404 = vmatmul.mubr.bf16.gmra.mxu0 %v713
  %v1405 = vpop.f32.mrf.mxu0
  %v1406 = vadd.f32 %v289, %v1405
  %v1407 = vpop.f32.mrf.mxu0
  %v1408 = vpop.f32.mrf.mxu0
  %v1409 = vadd.f32 %v289, %v1408
  %v1410 = vpop.f32.mrf.mxu0
  %1411 = vmatprep.mubr.bf16.mxu0 %v723
  %1412 = vmatmul.mubr.bf16.gmra.mxu0 %v722
  %v1413 = vpop.f32.mrf.mxu0
  %v1414 = vadd.f32 %v289, %v1413
  %v1415 = vpop.f32.mrf.mxu0
  %v1416 = vpop.f32.mrf.mxu0
  %v1417 = vadd.f32 %v289, %v1416
  %v1418 = vpop.f32.mrf.mxu0
  %1419 = vmatprep.mubr.bf16.mxu0 %v732
  %1420 = vmatmul.mubr.bf16.gmra.mxu0 %v731
  %v1421 = vpop.f32.mrf.mxu0
  %v1422 = vadd.f32 %v289, %v1421
  %v1423 = vpop.f32.mrf.mxu0
  %v1424 = vpop.f32.mrf.mxu0
  %v1425 = vadd.f32 %v289, %v1424
  %v1426 = vpop.f32.mrf.mxu0
  %1427 = vmatprep.mubr.bf16.mxu0 %v741
  %1428 = vmatmul.mubr.bf16.gmra.mxu0 %v740
  %v1429 = vpop.f32.mrf.mxu0
  %v1430 = vadd.f32 %v289, %v1429
  %v1431 = vpop.f32.mrf.mxu0
  %v1432 = vpop.f32.mrf.mxu0
  %v1433 = vadd.f32 %v289, %v1432
  %v1434 = vpop.f32.mrf.mxu0
  %1435 = vmatprep.mubr.bf16.mxu0 %v750
  %1436 = vmatmul.mubr.bf16.gmra.mxu0 %v749
  %v1437 = vpop.f32.mrf.mxu0
  %v1438 = vadd.f32 %v289, %v1437
  %v1439 = vpop.f32.mrf.mxu0
  %v1440 = vpop.f32.mrf.mxu0
  %v1441 = vpop.f32.mrf.mxu0
  %1442 = vdwg.mxu0
  %1443 = vmatprep.subr.bf16.mxu0 0
  %1444 = vmatpush1.bf16.msra.mxu0 %v1186
  %1445 = vmatprep.subr.bf16.mxu0 0
  %1446 = vmatpush1.bf16.msra.mxu0 %v1185
  %1447 = vmatprep.subr.bf16.mxu0 0
  %1448 = vmatpush1.bf16.msra.mxu0 %v1184
  %1449 = vmatprep.subr.bf16.mxu0 0
  %1450 = vmatpush1.bf16.msra.mxu0 %v1183
  %1451 = vmatprep.subr.bf16.mxu0 0
  %1452 = vmatpush1.bf16.msra.mxu0 %v1182
  %1453 = vmatprep.subr.bf16.mxu0 0
  %1454 = vmatpush1.bf16.msra.mxu0 %v1181
  %1455 = vmatprep.subr.bf16.mxu0 0
  %1456 = vmatpush1.bf16.msra.mxu0 %v1180
  %1457 = vmatprep.subr.bf16.mxu0 0
  %1458 = vmatpush1.bf16.msra.mxu0 %v1179
  %1459 = vmatprep.subr.bf16.mxu0 0
  %1460 = vmatpush2.bf16.msra.mxu0 %v1194
  %1461 = vmatprep.subr.bf16.mxu0 0
  %1462 = vmatpush2.bf16.msra.mxu0 %v1193
  %1463 = vmatprep.subr.bf16.mxu0 0
  %1464 = vmatpush2.bf16.msra.mxu0 %v1192
  %1465 = vmatprep.subr.bf16.mxu0 0
  %1466 = vmatpush2.bf16.msra.mxu0 %v1191
  %1467 = vmatprep.subr.bf16.mxu0 0
  %1468 = vmatpush2.bf16.msra.mxu0 %v1190
  %1469 = vmatprep.subr.bf16.mxu0 0
  %1470 = vmatpush2.bf16.msra.mxu0 %v1189
  %1471 = vmatprep.subr.bf16.mxu0 0
  %1472 = vmatpush2.bf16.msra.mxu0 %v1188
  %1473 = vmatprep.subr.bf16.mxu0 0
  %1474 = vmatpush2.bf16.msra.mxu0 %v1187
  %1475 = vmatprep.mubr.bf16.mxu0 %v644
  %1476 = vmatmul.mubr.bf16.gmra.mxu0 %v643
  %v1477 = vpop.f32.mrf.mxu0
  %v1478 = vadd.f32 %v1342, %v1477
  %v1479 = vpop.f32.mrf.mxu0
  %v1480 = vpop.f32.mrf.mxu0
  %v1481 = vadd.f32 %v1345, %v1480
  %v1482 = vpop.f32.mrf.mxu0
  %1483 = vmatprep.mubr.bf16.mxu0 %v653
  %1484 = vmatmul.mubr.bf16.gmra.mxu0 %v652
  %v1485 = vpop.f32.mrf.mxu0
  %v1486 = vadd.f32 %v1350, %v1485
  %v1487 = vpop.f32.mrf.mxu0
  %v1488 = vpop.f32.mrf.mxu0
  %v1489 = vadd.f32 %v1353, %v1488
  %v1490 = vpop.f32.mrf.mxu0
  %1491 = vmatprep.mubr.bf16.mxu0 %v662
  %1492 = vmatmul.mubr.bf16.gmra.mxu0 %v661
  %v1493 = vpop.f32.mrf.mxu0
  %v1494 = vadd.f32 %v1358, %v1493
  %v1495 = vpop.f32.mrf.mxu0
  %v1496 = vpop.f32.mrf.mxu0
  %v1497 = vadd.f32 %v1361, %v1496
  %v1498 = vpop.f32.mrf.mxu0
  %1499 = vmatprep.mubr.bf16.mxu0 %v671
  %1500 = vmatmul.mubr.bf16.gmra.mxu0 %v670
  %v1501 = vpop.f32.mrf.mxu0
  %v1502 = vadd.f32 %v1366, %v1501
  %v1503 = vpop.f32.mrf.mxu0
  %v1504 = vpop.f32.mrf.mxu0
  %v1505 = vadd.f32 %v1369, %v1504
  %v1506 = vpop.f32.mrf.mxu0
  %1507 = vmatprep.mubr.bf16.mxu0 %v680
  %1508 = vmatmul.mubr.bf16.gmra.mxu0 %v679
  %v1509 = vpop.f32.mrf.mxu0
  %v1510 = vadd.f32 %v1374, %v1509
  %v1511 = vpop.f32.mrf.mxu0
  %v1512 = vpop.f32.mrf.mxu0
  %v1513 = vadd.f32 %v1377, %v1512
  %v1514 = vpop.f32.mrf.mxu0
  %1515 = vmatprep.mubr.bf16.mxu0 %v689
  %1516 = vmatmul.mubr.bf16.gmra.mxu0 %v688
  %v1517 = vpop.f32.mrf.mxu0
  %v1518 = vadd.f32 %v1382, %v1517
  %v1519 = vpop.f32.mrf.mxu0
  %v1520 = vpop.f32.mrf.mxu0
  %v1521 = vadd.f32 %v1385, %v1520
  %v1522 = vpop.f32.mrf.mxu0
  %1523 = vmatprep.mubr.bf16.mxu0 %v698
  %1524 = vmatmul.mubr.bf16.gmra.mxu0 %v697
  %v1525 = vpop.f32.mrf.mxu0
  %v1526 = vadd.f32 %v1390, %v1525
  %v1527 = vpop.f32.mrf.mxu0
  %v1528 = vpop.f32.mrf.mxu0
  %v1529 = vadd.f32 %v1393, %v1528
  %v1530 = vpop.f32.mrf.mxu0
  %1531 = vmatprep.mubr.bf16.mxu0 %v707
  %1532 = vmatmul.mubr.bf16.gmra.mxu0 %v706
  %v1533 = vpop.f32.mrf.mxu0
  %v1534 = vadd.f32 %v1398, %v1533
  %v1535 = vpop.f32.mrf.mxu0
  %v1536 = vpop.f32.mrf.mxu0
  %v1537 = vadd.f32 %v1401, %v1536
  %v1538 = vpop.f32.mrf.mxu0
  %1539 = vmatprep.mubr.bf16.mxu0 %v716
  %1540 = vmatmul.mubr.bf16.gmra.mxu0 %v715
  %v1541 = vpop.f32.mrf.mxu0
  %v1542 = vadd.f32 %v1406, %v1541
  %v1543 = vpop.f32.mrf.mxu0
  %v1544 = vpop.f32.mrf.mxu0
  %v1545 = vadd.f32 %v1409, %v1544
  %v1546 = vpop.f32.mrf.mxu0
  %1547 = vmatprep.mubr.bf16.mxu0 %v725
  %1548 = vmatmul.mubr.bf16.gmra.mxu0 %v724
  %v1549 = vpop.f32.mrf.mxu0
  %v1550 = vadd.f32 %v1414, %v1549
  %v1551 = vpop.f32.mrf.mxu0
  %v1552 = vpop.f32.mrf.mxu0
  %v1553 = vadd.f32 %v1417, %v1552
  %v1554 = vpop.f32.mrf.mxu0
  %1555 = vmatprep.mubr.bf16.mxu0 %v734
  %1556 = vmatmul.mubr.bf16.gmra.mxu0 %v733
  %v1557 = vpop.f32.mrf.mxu0
  %v1558 = vadd.f32 %v1422, %v1557
  %v1559 = vpop.f32.mrf.mxu0
  %v1560 = vpop.f32.mrf.mxu0
  %v1561 = vadd.f32 %v1425, %v1560
  %v1562 = vpop.f32.mrf.mxu0
  %1563 = vmatprep.mubr.bf16.mxu0 %v743
  %1564 = vmatmul.mubr.bf16.gmra.mxu0 %v742
  %v1565 = vpop.f32.mrf.mxu0
  %v1566 = vadd.f32 %v1430, %v1565
  %v1567 = vpop.f32.mrf.mxu0
  %v1568 = vpop.f32.mrf.mxu0
  %v1569 = vadd.f32 %v1433, %v1568
  %v1570 = vpop.f32.mrf.mxu0
  %1571 = vmatprep.mubr.bf16.mxu0 %v752
  %1572 = vmatmul.mubr.bf16.gmra.mxu0 %v751
  %v1573 = vpop.f32.mrf.mxu0
  %v1574 = vadd.f32 %v1438, %v1573
  %v1575 = vpop.f32.mrf.mxu0
  %v1576 = vpop.f32.mrf.mxu0
  %v1577 = vpop.f32.mrf.mxu0
  %1578 = vdwg.mxu0
  %1579 = vmatprep.subr.bf16.mxu0 0
  %1580 = vmatpush1.bf16.msra.mxu0 %v1202
  %1581 = vmatprep.subr.bf16.mxu0 0
  %1582 = vmatpush1.bf16.msra.mxu0 %v1201
  %1583 = vmatprep.subr.bf16.mxu0 0
  %1584 = vmatpush1.bf16.msra.mxu0 %v1200
  %1585 = vmatprep.subr.bf16.mxu0 0
  %1586 = vmatpush1.bf16.msra.mxu0 %v1199
  %1587 = vmatprep.subr.bf16.mxu0 0
  %1588 = vmatpush1.bf16.msra.mxu0 %v1198
  %1589 = vmatprep.subr.bf16.mxu0 0
  %1590 = vmatpush1.bf16.msra.mxu0 %v1197
  %1591 = vmatprep.subr.bf16.mxu0 0
  %1592 = vmatpush1.bf16.msra.mxu0 %v1196
  %1593 = vmatprep.subr.bf16.mxu0 0
  %1594 = vmatpush1.bf16.msra.mxu0 %v1195
  %1595 = vmatprep.subr.bf16.mxu0 0
  %1596 = vmatpush2.bf16.msra.mxu0 %v1210
  %1597 = vmatprep.subr.bf16.mxu0 0
  %1598 = vmatpush2.bf16.msra.mxu0 %v1209
  %1599 = vmatprep.subr.bf16.mxu0 0
  %1600 = vmatpush2.bf16.msra.mxu0 %v1208
  %1601 = vmatprep.subr.bf16.mxu0 0
  %1602 = vmatpush2.bf16.msra.mxu0 %v1207
  %1603 = vmatprep.subr.bf16.mxu0 0
  %1604 = vmatpush2.bf16.msra.mxu0 %v1206
  %1605 = vmatprep.subr.bf16.mxu0 0
  %1606 = vmatpush2.bf16.msra.mxu0 %v1205
  %1607 = vmatprep.subr.bf16.mxu0 0
  %1608 = vmatpush2.bf16.msra.mxu0 %v1204
  %1609 = vmatprep.subr.bf16.mxu0 0
  %1610 = vmatpush2.bf16.msra.mxu0 %v1203
  %1611 = vmatprep.mubr.bf16.mxu0 %v646
  %1612 = vmatmul.mubr.bf16.gmra.mxu0 %v645
  %v1613 = vpop.f32.mrf.mxu0
  %v1614 = vadd.f32 %v1478, %v1613
  %v1615 = vpop.f32.mrf.mxu0
  %v1616 = vpop.f32.mrf.mxu0
  %v1617 = vadd.f32 %v1481, %v1616
  %v1618 = vpop.f32.mrf.mxu0
  %1619 = vmatprep.mubr.bf16.mxu0 %v655
  %1620 = vmatmul.mubr.bf16.gmra.mxu0 %v654
  %v1621 = vpop.f32.mrf.mxu0
  %v1622 = vadd.f32 %v1486, %v1621
  %v1623 = vpop.f32.mrf.mxu0
  %v1624 = vpop.f32.mrf.mxu0
  %v1625 = vadd.f32 %v1489, %v1624
  %v1626 = vpop.f32.mrf.mxu0
  %1627 = vmatprep.mubr.bf16.mxu0 %v664
  %1628 = vmatmul.mubr.bf16.gmra.mxu0 %v663
  %v1629 = vpop.f32.mrf.mxu0
  %v1630 = vadd.f32 %v1494, %v1629
  %v1631 = vpop.f32.mrf.mxu0
  %v1632 = vpop.f32.mrf.mxu0
  %v1633 = vadd.f32 %v1497, %v1632
  %v1634 = vpop.f32.mrf.mxu0
  %1635 = vmatprep.mubr.bf16.mxu0 %v673
  %1636 = vmatmul.mubr.bf16.gmra.mxu0 %v672
  %v1637 = vpop.f32.mrf.mxu0
  %v1638 = vadd.f32 %v1502, %v1637
  %v1639 = vpop.f32.mrf.mxu0
  %v1640 = vpop.f32.mrf.mxu0
  %v1641 = vadd.f32 %v1505, %v1640
  %v1642 = vpop.f32.mrf.mxu0
  %1643 = vmatprep.mubr.bf16.mxu0 %v682
  %1644 = vmatmul.mubr.bf16.gmra.mxu0 %v681
  %v1645 = vpop.f32.mrf.mxu0
  %v1646 = vadd.f32 %v1510, %v1645
  %v1647 = vpop.f32.mrf.mxu0
  %v1648 = vpop.f32.mrf.mxu0
  %v1649 = vadd.f32 %v1513, %v1648
  %v1650 = vpop.f32.mrf.mxu0
  %1651 = vmatprep.mubr.bf16.mxu0 %v691
  %1652 = vmatmul.mubr.bf16.gmra.mxu0 %v690
  %v1653 = vpop.f32.mrf.mxu0
  %v1654 = vadd.f32 %v1518, %v1653
  %v1655 = vpop.f32.mrf.mxu0
  %v1656 = vpop.f32.mrf.mxu0
  %v1657 = vadd.f32 %v1521, %v1656
  %v1658 = vpop.f32.mrf.mxu0
  %1659 = vmatprep.mubr.bf16.mxu0 %v700
  %1660 = vmatmul.mubr.bf16.gmra.mxu0 %v699
  %v1661 = vpop.f32.mrf.mxu0
  %v1662 = vadd.f32 %v1526, %v1661
  %v1663 = vpop.f32.mrf.mxu0
  %v1664 = vpop.f32.mrf.mxu0
  %v1665 = vadd.f32 %v1529, %v1664
  %v1666 = vpop.f32.mrf.mxu0
  %1667 = vmatprep.mubr.bf16.mxu0 %v709
  %1668 = vmatmul.mubr.bf16.gmra.mxu0 %v708
  %v1669 = vpop.f32.mrf.mxu0
  %v1670 = vadd.f32 %v1534, %v1669
  %v1671 = vpop.f32.mrf.mxu0
  %v1672 = vpop.f32.mrf.mxu0
  %v1673 = vadd.f32 %v1537, %v1672
  %v1674 = vpop.f32.mrf.mxu0
  %1675 = vmatprep.mubr.bf16.mxu0 %v718
  %1676 = vmatmul.mubr.bf16.gmra.mxu0 %v717
  %v1677 = vpop.f32.mrf.mxu0
  %v1678 = vadd.f32 %v1542, %v1677
  %v1679 = vpop.f32.mrf.mxu0
  %v1680 = vpop.f32.mrf.mxu0
  %v1681 = vadd.f32 %v1545, %v1680
  %v1682 = vpop.f32.mrf.mxu0
  %1683 = vmatprep.mubr.bf16.mxu0 %v727
  %1684 = vmatmul.mubr.bf16.gmra.mxu0 %v726
  %v1685 = vpop.f32.mrf.mxu0
  %v1686 = vadd.f32 %v1550, %v1685
  %v1687 = vpop.f32.mrf.mxu0
  %v1688 = vpop.f32.mrf.mxu0
  %v1689 = vadd.f32 %v1553, %v1688
  %v1690 = vpop.f32.mrf.mxu0
  %1691 = vmatprep.mubr.bf16.mxu0 %v736
  %1692 = vmatmul.mubr.bf16.gmra.mxu0 %v735
  %v1693 = vpop.f32.mrf.mxu0
  %v1694 = vadd.f32 %v1558, %v1693
  %v1695 = vpop.f32.mrf.mxu0
  %v1696 = vpop.f32.mrf.mxu0
  %v1697 = vadd.f32 %v1561, %v1696
  %v1698 = vpop.f32.mrf.mxu0
  %1699 = vmatprep.mubr.bf16.mxu0 %v745
  %1700 = vmatmul.mubr.bf16.gmra.mxu0 %v744
  %v1701 = vpop.f32.mrf.mxu0
  %v1702 = vadd.f32 %v1566, %v1701
  %v1703 = vpop.f32.mrf.mxu0
  %v1704 = vpop.f32.mrf.mxu0
  %v1705 = vadd.f32 %v1569, %v1704
  %v1706 = vpop.f32.mrf.mxu0
  %1707 = vmatprep.mubr.bf16.mxu0 %v754
  %1708 = vmatmul.mubr.bf16.gmra.mxu0 %v753
  %v1709 = vpop.f32.mrf.mxu0
  %v1710 = vadd.f32 %v1574, %v1709
  %v1711 = vpop.f32.mrf.mxu0
  %v1712 = vpop.f32.mrf.mxu0
  %v1713 = vpop.f32.mrf.mxu0
  %1714 = vdwg.mxu0
  %1715 = vmatprep.subr.bf16.mxu0 0
  %1716 = vmatpush1.bf16.msra.mxu0 %v1218
  %1717 = vmatprep.subr.bf16.mxu0 0
  %1718 = vmatpush1.bf16.msra.mxu0 %v1217
  %1719 = vmatprep.subr.bf16.mxu0 0
  %1720 = vmatpush1.bf16.msra.mxu0 %v1216
  %1721 = vmatprep.subr.bf16.mxu0 0
  %1722 = vmatpush1.bf16.msra.mxu0 %v1215
  %1723 = vmatprep.subr.bf16.mxu0 0
  %1724 = vmatpush1.bf16.msra.mxu0 %v1214
  %1725 = vmatprep.subr.bf16.mxu0 0
  %1726 = vmatpush1.bf16.msra.mxu0 %v1213
  %1727 = vmatprep.subr.bf16.mxu0 0
  %1728 = vmatpush1.bf16.msra.mxu0 %v1212
  %1729 = vmatprep.subr.bf16.mxu0 0
  %1730 = vmatpush1.bf16.msra.mxu0 %v1211
  %1731 = vmatprep.subr.bf16.mxu0 0
  %1732 = vmatpush2.bf16.msra.mxu0 %v1226
  %1733 = vmatprep.subr.bf16.mxu0 0
  %1734 = vmatpush2.bf16.msra.mxu0 %v1225
  %1735 = vmatprep.subr.bf16.mxu0 0
  %1736 = vmatpush2.bf16.msra.mxu0 %v1224
  %1737 = vmatprep.subr.bf16.mxu0 0
  %1738 = vmatpush2.bf16.msra.mxu0 %v1223
  %1739 = vmatprep.subr.bf16.mxu0 0
  %1740 = vmatpush2.bf16.msra.mxu0 %v1222
  %1741 = vmatprep.subr.bf16.mxu0 0
  %1742 = vmatpush2.bf16.msra.mxu0 %v1221
  %1743 = vmatprep.subr.bf16.mxu0 0
  %1744 = vmatpush2.bf16.msra.mxu0 %v1220
  %1745 = vmatprep.subr.bf16.mxu0 0
  %1746 = vmatpush2.bf16.msra.mxu0 %v1219
  %1747 = vmatprep.mubr.bf16.mxu0 %v648
  %1748 = vmatmul.mubr.bf16.gmra.mxu0 %v647
  %v1749 = vpop.f32.mrf.mxu0
  %v1750 = vadd.f32 %v1614, %v1749
  %v1751 = vpop.f32.mrf.mxu0
  %v1752 = vpop.f32.mrf.mxu0
  %v1753 = vadd.f32 %v1617, %v1752
  %v1754 = vpop.f32.mrf.mxu0
  %1755 = vmatprep.mubr.bf16.mxu0 %v657
  %1756 = vmatmul.mubr.bf16.gmra.mxu0 %v656
  %v1757 = vpop.f32.mrf.mxu0
  %v1758 = vadd.f32 %v1622, %v1757
  %v1759 = vpop.f32.mrf.mxu0
  %v1760 = vpop.f32.mrf.mxu0
  %v1761 = vadd.f32 %v1625, %v1760
  %v1762 = vpop.f32.mrf.mxu0
  %1763 = vmatprep.mubr.bf16.mxu0 %v666
  %1764 = vmatmul.mubr.bf16.gmra.mxu0 %v665
  %v1765 = vpop.f32.mrf.mxu0
  %v1766 = vadd.f32 %v1630, %v1765
  %v1767 = vpop.f32.mrf.mxu0
  %v1768 = vpop.f32.mrf.mxu0
  %v1769 = vadd.f32 %v1633, %v1768
  %v1770 = vpop.f32.mrf.mxu0
  %1771 = vmatprep.mubr.bf16.mxu0 %v675
  %1772 = vmatmul.mubr.bf16.gmra.mxu0 %v674
  %v1773 = vpop.f32.mrf.mxu0
  %v1774 = vadd.f32 %v1638, %v1773
  %v1775 = vpop.f32.mrf.mxu0
  %v1776 = vpop.f32.mrf.mxu0
  %v1777 = vadd.f32 %v1641, %v1776
  %v1778 = vpop.f32.mrf.mxu0
  %1779 = vmatprep.mubr.bf16.mxu0 %v684
  %1780 = vmatmul.mubr.bf16.gmra.mxu0 %v683
  %v1781 = vpop.f32.mrf.mxu0
  %v1782 = vadd.f32 %v1646, %v1781
  %v1783 = vpop.f32.mrf.mxu0
  %v1784 = vpop.f32.mrf.mxu0
  %v1785 = vadd.f32 %v1649, %v1784
  %v1786 = vpop.f32.mrf.mxu0
  %1787 = vmatprep.mubr.bf16.mxu0 %v693
  %1788 = vmatmul.mubr.bf16.gmra.mxu0 %v692
  %v1789 = vpop.f32.mrf.mxu0
  %v1790 = vadd.f32 %v1654, %v1789
  %v1791 = vpop.f32.mrf.mxu0
  %v1792 = vpop.f32.mrf.mxu0
  %v1793 = vadd.f32 %v1657, %v1792
  %v1794 = vpop.f32.mrf.mxu0
  %1795 = vmatprep.mubr.bf16.mxu0 %v702
  %1796 = vmatmul.mubr.bf16.gmra.mxu0 %v701
  %v1797 = vpop.f32.mrf.mxu0
  %v1798 = vadd.f32 %v1662, %v1797
  %v1799 = vpop.f32.mrf.mxu0
  %v1800 = vpop.f32.mrf.mxu0
  %v1801 = vadd.f32 %v1665, %v1800
  %v1802 = vpop.f32.mrf.mxu0
  %1803 = vmatprep.mubr.bf16.mxu0 %v711
  %1804 = vmatmul.mubr.bf16.gmra.mxu0 %v710
  %v1805 = vpop.f32.mrf.mxu0
  %v1806 = vadd.f32 %v1670, %v1805
  %v1807 = vpop.f32.mrf.mxu0
  %v1808 = vpop.f32.mrf.mxu0
  %v1809 = vadd.f32 %v1673, %v1808
  %v1810 = vpop.f32.mrf.mxu0
  %1811 = vmatprep.mubr.bf16.mxu0 %v720
  %1812 = vmatmul.mubr.bf16.gmra.mxu0 %v719
  %v1813 = vpop.f32.mrf.mxu0
  %v1814 = vadd.f32 %v1678, %v1813
  %v1815 = vpop.f32.mrf.mxu0
  %v1816 = vpop.f32.mrf.mxu0
  %v1817 = vadd.f32 %v1681, %v1816
  %v1818 = vpop.f32.mrf.mxu0
  %1819 = vmatprep.mubr.bf16.mxu0 %v729
  %1820 = vmatmul.mubr.bf16.gmra.mxu0 %v728
  %v1821 = vpop.f32.mrf.mxu0
  %v1822 = vadd.f32 %v1686, %v1821
  %v1823 = vpop.f32.mrf.mxu0
  %v1824 = vpop.f32.mrf.mxu0
  %v1825 = vadd.f32 %v1689, %v1824
  %v1826 = vpop.f32.mrf.mxu0
  %1827 = vmatprep.mubr.bf16.mxu0 %v738
  %1828 = vmatmul.mubr.bf16.gmra.mxu0 %v737
  %v1829 = vpop.f32.mrf.mxu0
  %v1830 = vadd.f32 %v1694, %v1829
  %v1831 = vpop.f32.mrf.mxu0
  %v1832 = vpop.f32.mrf.mxu0
  %v1833 = vadd.f32 %v1697, %v1832
  %v1834 = vpop.f32.mrf.mxu0
  %1835 = vmatprep.mubr.bf16.mxu0 %v747
  %1836 = vmatmul.mubr.bf16.gmra.mxu0 %v746
  %v1837 = vpop.f32.mrf.mxu0
  %v1838 = vadd.f32 %v1702, %v1837
  %v1839 = vpop.f32.mrf.mxu0
  %v1840 = vpop.f32.mrf.mxu0
  %v1841 = vadd.f32 %v1705, %v1840
  %v1842 = vpop.f32.mrf.mxu0
  %1843 = vmatprep.mubr.bf16.mxu0 %v756
  %1844 = vmatmul.mubr.bf16.gmra.mxu0 %v755
  %v1845 = vpop.f32.mrf.mxu0
  %v1846 = vadd.f32 %v1710, %v1845
  %v1847 = vpop.f32.mrf.mxu0
  %v1848 = vpop.f32.mrf.mxu0
  %v1849 = vpop.f32.mrf.mxu0
  %1850 = vdwg.mxu0
  %1851 = vmatprep.subr.bf16.mxu0 0
  %1852 = vmatpush1.bf16.msra.mxu0 %v1234
  %1853 = vmatprep.subr.bf16.mxu0 0
  %1854 = vmatpush1.bf16.msra.mxu0 %v1233
  %1855 = vmatprep.subr.bf16.mxu0 0
  %1856 = vmatpush1.bf16.msra.mxu0 %v1232
  %1857 = vmatprep.subr.bf16.mxu0 0
  %1858 = vmatpush1.bf16.msra.mxu0 %v1231
  %1859 = vmatprep.subr.bf16.mxu0 0
  %1860 = vmatpush1.bf16.msra.mxu0 %v1230
  %1861 = vmatprep.subr.bf16.mxu0 0
  %1862 = vmatpush1.bf16.msra.mxu0 %v1229
  %1863 = vmatprep.subr.bf16.mxu0 0
  %1864 = vmatpush1.bf16.msra.mxu0 %v1228
  %1865 = vmatprep.subr.bf16.mxu0 0
  %1866 = vmatpush1.bf16.msra.mxu0 %v1227
  %1867 = vmatprep.subr.bf16.mxu0 0
  %1868 = vmatpush2.bf16.msra.mxu0 0
  %1869 = vmatprep.subr.bf16.mxu0 0
  %1870 = vmatpush2.bf16.msra.mxu0 0
  %1871 = vmatprep.subr.bf16.mxu0 0
  %1872 = vmatpush2.bf16.msra.mxu0 0
  %1873 = vmatprep.subr.bf16.mxu0 0
  %1874 = vmatpush2.bf16.msra.mxu0 0
  %1875 = vmatprep.subr.bf16.mxu0 0
  %1876 = vmatpush2.bf16.msra.mxu0 0
  %1877 = vmatprep.subr.bf16.mxu0 0
  %1878 = vmatpush2.bf16.msra.mxu0 0
  %1879 = vmatprep.subr.bf16.mxu0 0
  %1880 = vmatpush2.bf16.msra.mxu0 0
  %1881 = vmatprep.subr.bf16.mxu0 0
  %1882 = vmatpush2.bf16.msra.mxu0 0
  %1883 = vmatprep.mubr.bf16.mxu0 0
  %1884 = vmatmul.mubr.bf16.gmra.mxu0 %v649
  %v1885 = vpop.f32.mrf.mxu0
  %v1886 = vadd.f32 %v1750, %v1885
  %v1887 = vpop.f32.mrf.mxu0
  %v1888 = vpop.f32.mrf.mxu0
  %v1889 = vadd.f32 %v1753, %v1888
  %v1890 = vpop.f32.mrf.mxu0
  %1891 = vmatprep.mubr.bf16.mxu0 0
  %1892 = vmatmul.mubr.bf16.gmra.mxu0 %v658
  %v1893 = vpop.f32.mrf.mxu0
  %v1894 = vadd.f32 %v1758, %v1893
  %v1895 = vpop.f32.mrf.mxu0
  %v1896 = vpop.f32.mrf.mxu0
  %v1897 = vadd.f32 %v1761, %v1896
  %v1898 = vpop.f32.mrf.mxu0
  %1899 = vmatprep.mubr.bf16.mxu0 0
  %1900 = vmatmul.mubr.bf16.gmra.mxu0 %v667
  %v1901 = vpop.f32.mrf.mxu0
  %v1902 = vadd.f32 %v1766, %v1901
  %v1903 = vpop.f32.mrf.mxu0
  %v1904 = vpop.f32.mrf.mxu0
  %v1905 = vadd.f32 %v1769, %v1904
  %v1906 = vpop.f32.mrf.mxu0
  %1907 = vmatprep.mubr.bf16.mxu0 0
  %1908 = vmatmul.mubr.bf16.gmra.mxu0 %v676
  %v1909 = vpop.f32.mrf.mxu0
  %v1910 = vadd.f32 %v1774, %v1909
  %v1911 = vpop.f32.mrf.mxu0
  %v1912 = vpop.f32.mrf.mxu0
  %v1913 = vadd.f32 %v1777, %v1912
  %v1914 = vpop.f32.mrf.mxu0
  %1915 = vmatprep.mubr.bf16.mxu0 0
  %1916 = vmatmul.mubr.bf16.gmra.mxu0 %v685
  %v1917 = vpop.f32.mrf.mxu0
  %v1918 = vadd.f32 %v1782, %v1917
  %v1919 = vpop.f32.mrf.mxu0
  %v1920 = vpop.f32.mrf.mxu0
  %v1921 = vadd.f32 %v1785, %v1920
  %v1922 = vpop.f32.mrf.mxu0
  %1923 = vmatprep.mubr.bf16.mxu0 0
  %1924 = vmatmul.mubr.bf16.gmra.mxu0 %v694
  %v1925 = vpop.f32.mrf.mxu0
  %v1926 = vadd.f32 %v1790, %v1925
  %v1927 = vpop.f32.mrf.mxu0
  %v1928 = vpop.f32.mrf.mxu0
  %v1929 = vadd.f32 %v1793, %v1928
  %v1930 = vpop.f32.mrf.mxu0
  %1931 = vmatprep.mubr.bf16.mxu0 0
  %1932 = vmatmul.mubr.bf16.gmra.mxu0 %v703
  %v1933 = vpop.f32.mrf.mxu0
  %v1934 = vadd.f32 %v1798, %v1933
  %v1935 = vpop.f32.mrf.mxu0
  %v1936 = vpop.f32.mrf.mxu0
  %v1937 = vadd.f32 %v1801, %v1936
  %v1938 = vpop.f32.mrf.mxu0
  %1939 = vmatprep.mubr.bf16.mxu0 0
  %1940 = vmatmul.mubr.bf16.gmra.mxu0 %v712
  %v1941 = vpop.f32.mrf.mxu0
  %v1942 = vadd.f32 %v1806, %v1941
  %v1943 = vpop.f32.mrf.mxu0
  %v1944 = vpop.f32.mrf.mxu0
  %v1945 = vadd.f32 %v1809, %v1944
  %v1946 = vpop.f32.mrf.mxu0
  %1947 = vmatprep.mubr.bf16.mxu0 0
  %1948 = vmatmul.mubr.bf16.gmra.mxu0 %v721
  %v1949 = vpop.f32.mrf.mxu0
  %v1950 = vadd.f32 %v1814, %v1949
  %v1951 = vpop.f32.mrf.mxu0
  %v1952 = vpop.f32.mrf.mxu0
  %v1953 = vadd.f32 %v1817, %v1952
  %v1954 = vpop.f32.mrf.mxu0
  %1955 = vmatprep.mubr.bf16.mxu0 0
  %1956 = vmatmul.mubr.bf16.gmra.mxu0 %v730
  %v1957 = vpop.f32.mrf.mxu0
  %v1958 = vadd.f32 %v1822, %v1957
  %v1959 = vpop.f32.mrf.mxu0
  %v1960 = vpop.f32.mrf.mxu0
  %v1961 = vadd.f32 %v1825, %v1960
  %v1962 = vpop.f32.mrf.mxu0
  %1963 = vmatprep.mubr.bf16.mxu0 0
  %1964 = vmatmul.mubr.bf16.gmra.mxu0 %v739
  %v1965 = vpop.f32.mrf.mxu0
  %v1966 = vadd.f32 %v1830, %v1965
  %v1967 = vpop.f32.mrf.mxu0
  %v1968 = vpop.f32.mrf.mxu0
  %v1969 = vadd.f32 %v1833, %v1968
  %v1970 = vpop.f32.mrf.mxu0
  %1971 = vmatprep.mubr.bf16.mxu0 0
  %1972 = vmatmul.mubr.bf16.gmra.mxu0 %v748
  %v1973 = vpop.f32.mrf.mxu0
  %v1974 = vadd.f32 %v1838, %v1973
  %v1975 = vpop.f32.mrf.mxu0
  %v1976 = vpop.f32.mrf.mxu0
  %v1977 = vadd.f32 %v1841, %v1976
  %v1978 = vpop.f32.mrf.mxu0
  %1979 = vmatprep.mubr.bf16.mxu0 0
  %1980 = vmatmul.mubr.bf16.gmra.mxu0 %v757
  %v1981 = vpop.f32.mrf.mxu0
  %v1982 = vadd.f32 %v1846, %v1981
  %v1983 = vpop.f32.mrf.mxu0
  %v1984 = vpop.f32.mrf.mxu0
  %v1985 = vpop.f32.mrf.mxu0
  %1986 = vdwg.mxu0
  %v1987 = vmax.f32 %v1886, 0.0
  %v1988 = vmax.f32 %v1889, 0.0
  %v1989 = vmax.f32 %v1894, 0.0
  %v1990 = vmax.f32 %v1897, 0.0
  %v1991 = vmax.f32 %v1902, 0.0
  %v1992 = vmax.f32 %v1905, 0.0
  %v1993 = vmax.f32 %v1910, 0.0
  %v1994 = vmax.f32 %v1913, 0.0
  %v1995 = vmax.f32 %v1918, 0.0
  %v1996 = vmax.f32 %v1921, 0.0
  %v1997 = vmax.f32 %v1926, 0.0
  %v1998 = vmax.f32 %v1929, 0.0
  %v1999 = vmax.f32 %v1934, 0.0
  %v2000 = vmax.f32 %v1937, 0.0
  %v2001 = vmax.f32 %v1942, 0.0
  %v2002 = vmax.f32 %v1945, 0.0
  %v2003 = vmax.f32 %v1950, 0.0
  %v2004 = vmax.f32 %v1953, 0.0
  %v2005 = vmax.f32 %v1958, 0.0
  %v2006 = vmax.f32 %v1961, 0.0
  %v2007 = vmax.f32 %v1966, 0.0
  %v2008 = vmax.f32 %v1969, 0.0
  %v2009 = vmax.f32 %v1974, 0.0
  %v2010 = vmax.f32 %v1977, 0.0
  %v2011 = vmax.f32 %v1982, 0.0
  %v2012 = vpack.c.bf16 %v1988, %v1987
  %v2013 = vpack.c.bf16 %v1990, %v1989
  %v2014 = vpack.c.bf16 %v1992, %v1991
  %v2015 = vpack.c.bf16 %v1994, %v1993
  %v2016 = vpack.c.bf16 %v1996, %v1995
  %v2017 = vpack.c.bf16 %v1998, %v1997
  %v2018 = vpack.c.bf16 %v2000, %v1999
  %v2019 = vpack.c.bf16 %v2002, %v2001
  %v2020 = vpack.c.bf16 %v2004, %v2003
  %v2021 = vpack.c.bf16 %v2006, %v2005
  %v2022 = vpack.c.bf16 %v2008, %v2007
  %v2023 = vpack.c.bf16 %v2010, %v2009
  %v2024 = vpack.c.bf16 %v2011, %v2011
  %v2038 = vunpack.c.l.b16 %v2012
  %v2039 = vunpack.c.h.b16 %v2012
  %v2040 = vunpack.c.l.b16 %v2013
  %v2041 = vunpack.c.h.b16 %v2013
  %v2042 = vunpack.c.l.b16 %v2014
  %v2043 = vunpack.c.h.b16 %v2014
  %v2044 = vunpack.c.l.b16 %v2015
  %v2045 = vunpack.c.h.b16 %v2015
  %v2046 = vunpack.c.l.b16 %v2016
  %v2047 = vunpack.c.h.b16 %v2016
  %v2048 = vunpack.c.l.b16 %v2017
  %v2049 = vunpack.c.h.b16 %v2017
  %v2050 = vunpack.c.l.b16 %v2018
  %v2051 = vunpack.c.h.b16 %v2018
  %v2052 = vunpack.c.l.b16 %v2019
  %v2053 = vunpack.c.h.b16 %v2019
  %v2054 = vunpack.c.l.b16 %v2020
  %v2055 = vunpack.c.h.b16 %v2020
  %v2056 = vunpack.c.l.b16 %v2021
  %v2057 = vunpack.c.h.b16 %v2021
  %v2058 = vunpack.c.l.b16 %v2022
  %v2059 = vunpack.c.h.b16 %v2022
  %v2060 = vunpack.c.l.b16 %v2023
  %v2061 = vunpack.c.h.b16 %v2023
  %v2062 = vunpack.c.l.b16 %v2024
  %v2063 = vpack.c.b16 %v2038, %v2038
  %v2064 = vpack.c.b16 %v2039, %v2039
  %v2065 = vpack.c.b16 %v2040, %v2040
  %v2066 = vpack.c.b16 %v2041, %v2041
  %v2067 = vpack.c.b16 %v2042, %v2042
  %v2068 = vpack.c.b16 %v2043, %v2043
  %v2069 = vpack.c.b16 %v2044, %v2044
  %v2070 = vpack.c.b16 %v2045, %v2045
  %v2071 = vpack.c.b16 %v2046, %v2046
  %v2072 = vpack.c.b16 %v2047, %v2047
  %v2073 = vpack.c.b16 %v2048, %v2048
  %v2074 = vpack.c.b16 %v2049, %v2049
  %v2075 = vpack.c.b16 %v2050, %v2050
  %v2076 = vpack.c.b16 %v2051, %v2051
  %v2077 = vpack.c.b16 %v2052, %v2052
  %v2078 = vpack.c.b16 %v2053, %v2053
  %v2079 = vpack.c.b16 %v2054, %v2054
  %v2080 = vpack.c.b16 %v2055, %v2055
  %v2081 = vpack.c.b16 %v2056, %v2056
  %v2082 = vpack.c.b16 %v2057, %v2057
  %v2083 = vpack.c.b16 %v2058, %v2058
  %v2084 = vpack.c.b16 %v2059, %v2059
  %v2085 = vpack.c.b16 %v2060, %v2060
  %v2086 = vpack.c.b16 %v2061, %v2061
  %v2087 = vpack.c.b16 %v2062, %v2062
  %vm2113 = vcmask 519168
  %2114 = vst.msk [vmem:[%s3] sm:$0xf] %vm2113, %v2063
  %2115 = vst.msk [vmem:[%s3 + $0x4] sm:$0xf] %vm2113, %v2064
  %2116 = vst.msk [vmem:[%s3 + $0x8] sm:$0xf] %vm2113, %v2065
  %2117 = vst.msk [vmem:[%s3 + $0xc] sm:$0xf] %vm2113, %v2066
  %2118 = vst.msk [vmem:[%s3 + $0x10] sm:$0xf] %vm2113, %v2067
  %2119 = vst.msk [vmem:[%s3 + $0x14] sm:$0xf] %vm2113, %v2068
  %2120 = vst.msk [vmem:[%s3 + $0x18] sm:$0xf] %vm2113, %v2069
  %2121 = vst.msk [vmem:[%s3 + $0x1c] sm:$0xf] %vm2113, %v2070
  %2122 = vst.msk [vmem:[%s3 + $0x20] sm:$0xf] %vm2113, %v2071
  %2123 = vst.msk [vmem:[%s3 + $0x24] sm:$0xf] %vm2113, %v2072
  %2124 = vst.msk [vmem:[%s3 + $0x28] sm:$0xf] %vm2113, %v2073
  %2125 = vst.msk [vmem:[%s3 + $0x2c] sm:$0xf] %vm2113, %v2074
  %2126 = vst.msk [vmem:[%s3 + $0x30] sm:$0xf] %vm2113, %v2075
  %2127 = vst.msk [vmem:[%s3 + $0x34] sm:$0xf] %vm2113, %v2076
  %2128 = vst.msk [vmem:[%s3 + $0x38] sm:$0xf] %vm2113, %v2077
  %2129 = vst.msk [vmem:[%s3 + $0x3c] sm:$0xf] %vm2113, %v2078
  %2130 = vst.msk [vmem:[%s3 + $0x40] sm:$0xf] %vm2113, %v2079
  %2131 = vst.msk [vmem:[%s3 + $0x44] sm:$0xf] %vm2113, %v2080
  %2132 = vst.msk [vmem:[%s3 + $0x48] sm:$0xf] %vm2113, %v2081
  %2133 = vst.msk [vmem:[%s3 + $0x4c] sm:$0xf] %vm2113, %v2082
  %2134 = vst.msk [vmem:[%s3 + $0x50] sm:$0xf] %vm2113, %v2083
  %2135 = vst.msk [vmem:[%s3 + $0x54] sm:$0xf] %vm2113, %v2084
  %2136 = vst.msk [vmem:[%s3 + $0x58] sm:$0xf] %vm2113, %v2085
  %2137 = vst.msk [vmem:[%s3 + $0x5c] sm:$0xf] %vm2113, %v2086
  %2138 = vst.msk [vmem:[%s3 + $0x60] sm:$0xf] %vm2113, %v2087
  // Predicated region
  $region14: #{_ppo_forward.6} parent=0 // pred_check
    _
  $region15: #{_ppo_forward.6} parent=0 // pred_check_branch
    %2140 = sbr.rel (0) target = $region17
  $region16: #{_ppo_forward.6} parent=0 // pred_region
    _
  $region17: #{_ppo_forward.6} parent=0 // pred_fallthru
    _
  // Predicated region
  $region18: #{_ppo_forward.6} parent=0 // pred_check
    _
  $region19: #{_ppo_forward.6} parent=0 // pred_check_branch
    %2142 = sbr.rel (0) target = $region21
  $region20: #{_ppo_forward.6} parent=0 // pred_region
    _
  $region21: #{_ppo_forward.6} parent=0 // pred_fallthru
    _

// kernel: _ppo_forward.7
$region0: #{_ppo_forward.7}
  #allocation0 [shape = 'u32[]', space=smem, size = 0x4, offset = 0x4, fixed_abs, tag = 'smem constant byte address 0x4 - core index']
  #allocation1 [shape = 'u32[144,128]{1,0:T(1,128)}', space=vmem, size = 0x12000, scoped, tag = 'internal scratch']
  #allocation2 [shape = 'f32[2,512]{1,0:T(2,128)}', space=vmem, size = 0x1000, scoped, tag = 'scratch operand']
  %s0 = inlined_call_operand.vmem [shape: bf16[2,6400], index: 0, kind: input, shape index: {}]
  %s1 = inlined_call_operand.vmem [shape: bf16[6400,512], index: 1, kind: input, shape index: {}]
  %s2 = inlined_call_operand.vmem [shape: f32[1,512], index: 2, kind: input, shape index: {}]
  %s3 = inlined_call_operand.vmem [shape: bf16[512,128], index: 3, kind: input, shape index: {}]
  %s4 = inlined_call_operand.vmem [shape: f32[1,128], index: 4, kind: input, shape index: {}]
  %s5 = inlined_call_operand.vmem [shape: f32[2,128], index: 5, kind: output, shape index: {}]
  %s6 = sld [smem:[#allocation0]]
  $region61: #{_ppo_forward.7} parent=0
    _
  %s8 = ssub.s32 1, %s6
  %s9 = scalar_select 0, %s8, %s6
  loop: start=0, step=1, limit=7
  $region2: #{_ppo_forward.7} parent=0 // loop_pre_header
    _
  $region3: #{_ppo_forward.7} parent=0 // loop_header
    %s11 = sphi 0, %s15
    %p12 = scmp.ge.s32.totalorder %s11, 7
    %s21 = sphi 0, %s23
    %s24 = sphi 0, %s21
    %s25 = sphi 0, %s24
    %s41 = sphi 0, %s25
    %s47 = sphi 0, %s49
    %s50 = sphi 0, %s47
    %s51 = sphi 0, %s50
    %s67 = sphi 0, %s51
    %s71 = sphi 0, %s71
    %s73 = sphi 0, %s71
    %s74 = sphi 0, %s73
    %s88 = sphi 0, %s74
    %s92 = sphi 0, %s92
    %s94 = sphi 0, %s92
    %s95 = sphi 0, %s94
    %s109 = sphi 0, %s95
    %s113 = sphi 0, %s113
    %s115 = sphi 0, %s113
    %s116 = sphi 0, %s115
    %s130 = sphi 0, %s116
    %s134 = sphi 0, %s134
    %s136 = sphi 0, %s134
    %s137 = sphi 0, %s136
    %s151 = sphi 0, %s137
  $region4: #{_ppo_forward.7} parent=0 // loop_header_branch
    %14 = sbr.rel (%p12) target = $region8
  $region5: #{_ppo_forward.7} parent=0 // loop_body
    %s16 = ssub.s32 %s11, 1
    %s17 = ssub.s32 %s11, 2
    %s18 = sadd.s32 %s11, 1
    %s19 = ssub.s32 %s11, %s18
    %p20 = scmp.eq.s32.totalorder %s19, 0
    %s22 = sadd.s32 %s21, 1
    %s23 = scalar_select %p20, %s21, %s22
    %p26 = pneg %p20
    %p27 = scmp.eq.s32.totalorder %s11, 4
    %p28 = por %p26, %p27
    %p29 = scmp.ne.s32.totalorder %s21, %s24
    %p30 = scmp.eq.s32.totalorder %s11, 0
    %p31 = por %p29, %p30
    %p32 = scmp.ne.s32.totalorder %s21, %s24
    %p33 = scmp.eq.s32.totalorder %s16, 4
    %p34 = por %p32, %p33
    %p35 = scmp.ne.s32.totalorder %s24, %s25
    %p36 = scmp.eq.s32.totalorder %s16, 0
    %p37 = por %p35, %p36
    %p38 = scmp.ne.s32.totalorder %s24, %s25
    %p39 = scmp.eq.s32.totalorder %s17, 4
    %p40 = por %p38, %p39
    %p42 = scmp.ne.s32.totalorder %s25, %s41
    %p43 = scmp.eq.s32.totalorder %s17, 0
    %p44 = por %p42, %p43
    %s45 = ssub.s32 %s11, %s18
    %p46 = scmp.eq.s32.totalorder %s45, 0
    %s48 = sadd.s32 %s47, 1
    %s49 = scalar_select %p46, %s47, %s48
    %p52 = pneg %p46
    %p53 = scmp.eq.s32.totalorder %s11, 4
    %p54 = por %p52, %p53
    %p55 = scmp.ne.s32.totalorder %s47, %s50
    %p56 = scmp.eq.s32.totalorder %s11, 0
    %p57 = por %p55, %p56
    %p58 = scmp.ne.s32.totalorder %s47, %s50
    %p59 = scmp.eq.s32.totalorder %s16, 4
    %p60 = por %p58, %p59
    %p61 = scmp.ne.s32.totalorder %s50, %s51
    %p62 = scmp.eq.s32.totalorder %s16, 0
    %p63 = por %p61, %p62
    %p64 = scmp.ne.s32.totalorder %s50, %s51
    %p65 = scmp.eq.s32.totalorder %s17, 4
    %p66 = por %p64, %p65
    %p68 = scmp.ne.s32.totalorder %s51, %s67
    %p69 = scmp.eq.s32.totalorder %s17, 0
    %p70 = por %p68, %p69
    %s72 = sadd.s32 %s71, 1
    %p75 = scmp.eq.s32.totalorder %s11, 4
    %p76 = scmp.ne.s32.totalorder %s71, %s73
    %p77 = scmp.eq.s32.totalorder %s11, 0
    %p78 = por %p76, %p77
    %p79 = scmp.ne.s32.totalorder %s71, %s73
    %p80 = scmp.eq.s32.totalorder %s16, 4
    %p81 = por %p79, %p80
    %p82 = scmp.ne.s32.totalorder %s73, %s74
    %p83 = scmp.eq.s32.totalorder %s16, 0
    %p84 = por %p82, %p83
    %p85 = scmp.ne.s32.totalorder %s73, %s74
    %p86 = scmp.eq.s32.totalorder %s17, 4
    %p87 = por %p85, %p86
    %p89 = scmp.ne.s32.totalorder %s74, %s88
    %p90 = scmp.eq.s32.totalorder %s17, 0
    %p91 = por %p89, %p90
    %s93 = sadd.s32 %s92, 1
    %p96 = scmp.eq.s32.totalorder %s11, 4
    %p97 = scmp.ne.s32.totalorder %s92, %s94
    %p98 = scmp.eq.s32.totalorder %s11, 0
    %p99 = por %p97, %p98
    %p100 = scmp.ne.s32.totalorder %s92, %s94
    %p101 = scmp.eq.s32.totalorder %s16, 4
    %p102 = por %p100, %p101
    %p103 = scmp.ne.s32.totalorder %s94, %s95
    %p104 = scmp.eq.s32.totalorder %s16, 0
    %p105 = por %p103, %p104
    %p106 = scmp.ne.s32.totalorder %s94, %s95
    %p107 = scmp.eq.s32.totalorder %s17, 4
    %p108 = por %p106, %p107
    %p110 = scmp.ne.s32.totalorder %s95, %s109
    %p111 = scmp.eq.s32.totalorder %s17, 0
    %p112 = por %p110, %p111
    %s114 = sadd.s32 %s113, 1
    %p117 = scmp.eq.s32.totalorder %s11, 4
    %p118 = scmp.ne.s32.totalorder %s113, %s115
    %p119 = scmp.eq.s32.totalorder %s11, 0
    %p120 = por %p118, %p119
    %p121 = scmp.ne.s32.totalorder %s113, %s115
    %p122 = scmp.eq.s32.totalorder %s16, 4
    %p123 = por %p121, %p122
    %p124 = scmp.ne.s32.totalorder %s115, %s116
    %p125 = scmp.eq.s32.totalorder %s16, 0
    %p126 = por %p124, %p125
    %p127 = scmp.ne.s32.totalorder %s115, %s116
    %p128 = scmp.eq.s32.totalorder %s17, 4
    %p129 = por %p127, %p128
    %p131 = scmp.ne.s32.totalorder %s116, %s130
    %p132 = scmp.eq.s32.totalorder %s17, 0
    %p133 = por %p131, %p132
    %s135 = sadd.s32 %s134, 1
    %p138 = scmp.eq.s32.totalorder %s11, 4
    %p139 = scmp.ne.s32.totalorder %s134, %s136
    %p140 = scmp.eq.s32.totalorder %s11, 0
    %p141 = por %p139, %p140
    %p142 = scmp.ne.s32.totalorder %s134, %s136
    %p143 = scmp.eq.s32.totalorder %s16, 4
    %p144 = por %p142, %p143
    %p145 = scmp.ne.s32.totalorder %s136, %s137
    %p146 = scmp.eq.s32.totalorder %s16, 0
    %p147 = por %p145, %p146
    %p148 = scmp.ne.s32.totalorder %s136, %s137
    %p149 = scmp.eq.s32.totalorder %s17, 4
    %p150 = por %p148, %p149
    %p152 = scmp.ne.s32.totalorder %s137, %s151
    %p153 = scmp.eq.s32.totalorder %s17, 0
    %p154 = por %p152, %p153
    %p155 = scmp.le.s32.totalorder 1, %s11
    %p156 = scmp.lt.s32.totalorder %s11, 6
    %p157 = pnand %p155, %p156
    %p158 = pneg %p157
    // Predicated region
    $region9: #{_ppo_forward.7} parent=5 // pred_check
      _
    $region10: #{_ppo_forward.7} parent=5 // pred_check_branch
      %160 = sbr.rel (%p157) target = $region12
    $region11: #{_ppo_forward.7} parent=5 // pred_region
      %s161 = ssub.s32 %s11, 1
      // Predicated region
      $region13: #{_ppo_forward.7} parent=11 // pred_check
        %p162 = pneg %p84
      $region14: #{_ppo_forward.7} parent=11 // pred_check_branch
        %164 = sbr.rel (%p162) target = $region16
      $region15: #{_ppo_forward.7} parent=11 // pred_region
        _
      $region16: #{_ppo_forward.7} parent=11 // pred_fallthru
        _
      // Predicated region
      $region17: #{_ppo_forward.7} parent=11 // pred_check
        %p165 = pneg %p105
      $region18: #{_ppo_forward.7} parent=11 // pred_check_branch
        %167 = sbr.rel (%p165) target = $region20
      $region19: #{_ppo_forward.7} parent=11 // pred_region
        _
      $region20: #{_ppo_forward.7} parent=11 // pred_fallthru
        _
      // Predicated region
      $region21: #{_ppo_forward.7} parent=11 // pred_check
        %p168 = pneg %p126
      $region22: #{_ppo_forward.7} parent=11 // pred_check_branch
        %170 = sbr.rel (%p168) target = $region24
      $region23: #{_ppo_forward.7} parent=11 // pred_region
        _
      $region24: #{_ppo_forward.7} parent=11 // pred_fallthru
        _
    $region12: #{_ppo_forward.7} parent=5 // pred_fallthru
      _
    %p171 = scmp.lt.s32.totalorder %s11, 5
    // Predicated region
    $region25: #{_ppo_forward.7} parent=5 // pred_check
      %p172 = pneg %p171
    $region26: #{_ppo_forward.7} parent=5 // pred_check_branch
      %174 = sbr.rel (%p172) target = $region28
    $region27: #{_ppo_forward.7} parent=5 // pred_region
      // Predicated region
      $region29: #{_ppo_forward.7} parent=27 // pred_check
        %p175 = pneg %p31
      $region30: #{_ppo_forward.7} parent=27 // pred_check_branch
        %177 = sbr.rel (%p175) target = $region32
      $region31: #{_ppo_forward.7} parent=27 // pred_region
        %s178 = smul.u32 10, %s11
        %p179 = scmp.lt.s32.totalorder %s178, 49
        %s180 = scalar_select %p179, %s178, 49
        %s181 = scalar_lea.vmem %s0, %s180
        %s182 = smul.u32 10, %s11
      $region32: #{_ppo_forward.7} parent=27 // pred_fallthru
        _
      // Predicated region
      $region33: #{_ppo_forward.7} parent=27 // pred_check
        %p183 = pneg %p57
      $region34: #{_ppo_forward.7} parent=27 // pred_check_branch
        %185 = sbr.rel (%p183) target = $region36
      $region35: #{_ppo_forward.7} parent=27 // pred_region
        %s186 = smul.u32 160, %s11
        %p187 = scmp.lt.s32.totalorder %s186, 799
        %s188 = scalar_select %p187, %s186, 799
        %s189 = smul.addr %s188, 4
        %s190 = smul.addr %s189, 4
        %s191 = scalar_lea.vmem %s1, %s190
        %s192 = smul.u32 160, %s11
      $region36: #{_ppo_forward.7} parent=27 // pred_fallthru
        _
    $region28: #{_ppo_forward.7} parent=5 // pred_fallthru
      _
    %p193 = scmp.le.s32.totalorder 1, %s11
    %p194 = scmp.lt.s32.totalorder %s11, 6
    %p195 = pnand %p193, %p194
    %p196 = pneg %p195
    // Predicated region
    $region37: #{_ppo_forward.7} parent=5 // pred_check
      _
    $region38: #{_ppo_forward.7} parent=5 // pred_check_branch
      %198 = sbr.rel (%p195) target = $region40
    $region39: #{_ppo_forward.7} parent=5 // pred_region
      %s199 = ssub.s32 %s11, 1
      %s200 = smul.u32 10, %s16
      %p201 = scmp.lt.s32.totalorder %s200, 49
      %s202 = scalar_select %p201, %s200, 49
      %s203 = scalar_lea.vmem %s0, %s202
      %p204 = pneg %p37
      %p205 = pneg %p34
      %s206 = smul.u32 160, %s16
      %p207 = scmp.lt.s32.totalorder %s206, 799
      %s208 = scalar_select %p207, %s206, 799
      %s209 = smul.addr %s208, 4
      %s210 = smul.addr %s209, 4
      %s211 = scalar_lea.vmem %s1, %s210
      %p212 = pneg %p63
      %p213 = pneg %p60
      %p214 = pneg %p84
      %p215 = pneg %p81
      %p216 = pneg %p105
      %p217 = pneg %p102
      %p218 = pneg %p126
      %p219 = pneg %p123
      %p220 = pneg %p147
      %p221 = pneg %p144
      %s222 = smul.u32 10, %s16
      %p223 = scmp.lt.s32.totalorder %s222, 49
      %s224 = scalar_select %p223, %s222, 49
      %s225 = scalar_lea.vmem %s0, %s224
      %s226 = smul.u32 10, %s16
      %s227 = smul.u32 160, %s16
      %p228 = scmp.lt.s32.totalorder %s227, 799
      %s229 = scalar_select %p228, %s227, 799
      %s230 = smul.addr %s229, 4
      %s231 = smul.addr %s230, 4
      %s232 = scalar_lea.vmem %s1, %s231
      %s233 = smul.u32 160, %s16
      %p235 = scmp.eq.s32.totalorder %s16, 0
      // Predicated region
      $region41: #{_ppo_forward.7} parent=39 // pred_check
        %p236 = pneg %p235
      $region42: #{_ppo_forward.7} parent=39 // pred_check_branch
        %238 = sbr.rel (%p236) target = $region44
      $region43: #{_ppo_forward.7} parent=39 // pred_region
        %239 = vst [vmem:[#allocation2] sm:$0xff] 0.0
      $region44: #{_ppo_forward.7} parent=39 // pred_fallthru
        _
      %v240 = vld [vmem:[#allocation2] sm:$0xff]
      %v241 = vld [vmem:[%s225] sm:$0xff]
      %v242 = vld [vmem:[%s225 + $0x8] sm:$0x3]
      %v243 = vld [vmem:[%s232] sm:$0xff]
      %v244 = vld [vmem:[%s232 + $0x8] sm:$0xff]
      %v245 = vld [vmem:[%s232 + $0x10] sm:$0xff]
      %v246 = vld [vmem:[%s232 + $0x18] sm:$0xff]
      %v247 = vld [vmem:[%s232 + $0x20] sm:$0xff]
      %v248 = vld [vmem:[%s232 + $0x28] sm:$0xff]
      %v249 = vld [vmem:[%s232 + $0x30] sm:$0xff]
      %v250 = vld [vmem:[%s232 + $0x38] sm:$0xff]
      %v251 = vld [vmem:[%s232 + $0x40] sm:$0xff]
      %v252 = vld [vmem:[%s232 + $0x48] sm:$0xff]
      %v253 = vld [vmem:[%s232 + $0x50] sm:$0xff]
      %v254 = vld [vmem:[%s232 + $0x58] sm:$0xff]
      %v255 = vld [vmem:[%s232 + $0x60] sm:$0xff]
      %v256 = vld [vmem:[%s232 + $0x68] sm:$0xff]
      %v257 = vld [vmem:[%s232 + $0x70] sm:$0xff]
      %v258 = vld [vmem:[%s232 + $0x78] sm:$0xff]
      %v259 = vld [vmem:[%s232 + $0x80] sm:$0xff]
      %v260 = vld [vmem:[%s232 + $0x88] sm:$0xff]
      %v261 = vld [vmem:[%s232 + $0x90] sm:$0xff]
      %v262 = vld [vmem:[%s232 + $0x98] sm:$0xff]
      %v263 = vld [vmem:[%s232 + $0xa0] sm:$0xff]
      %v264 = vld [vmem:[%s232 + $0xa8] sm:$0xff]
      %v265 = vld [vmem:[%s232 + $0xb0] sm:$0xff]
      %v266 = vld [vmem:[%s232 + $0xb8] sm:$0xff]
      %v267 = vld [vmem:[%s232 + $0xc0] sm:$0xff]
      %v268 = vld [vmem:[%s232 + $0xc8] sm:$0xff]
      %v269 = vld [vmem:[%s232 + $0xd0] sm:$0xff]
      %v270 = vld [vmem:[%s232 + $0xd8] sm:$0xff]
      %v271 = vld [vmem:[%s232 + $0xe0] sm:$0xff]
      %v272 = vld [vmem:[%s232 + $0xe8] sm:$0xff]
      %v273 = vld [vmem:[%s232 + $0xf0] sm:$0xff]
      %v274 = vld [vmem:[%s232 + $0xf8] sm:$0xff]
      %v275 = vld [vmem:[%s232 + $0x100] sm:$0xff]
      %v276 = vld [vmem:[%s232 + $0x108] sm:$0xff]
      %v277 = vld [vmem:[%s232 + $0x110] sm:$0xff]
      %v278 = vld [vmem:[%s232 + $0x118] sm:$0xff]
      %v279 = vld [vmem:[%s232 + $0x120] sm:$0xff]
      %v280 = vld [vmem:[%s232 + $0x128] sm:$0xff]
      %v281 = vld [vmem:[%s232 + $0x130] sm:$0xff]
      %v282 = vld [vmem:[%s232 + $0x138] sm:$0xff]
      %v283 = vld [vmem:[%s232 + $0x140] sm:$0xff]
      %v284 = vld [vmem:[%s232 + $0x148] sm:$0xff]
      %v285 = vld [vmem:[%s232 + $0x150] sm:$0xff]
      %v286 = vld [vmem:[%s232 + $0x158] sm:$0xff]
      %v287 = vld [vmem:[%s232 + $0x160] sm:$0xff]
      %v288 = vld [vmem:[%s232 + $0x168] sm:$0xff]
      %v289 = vld [vmem:[%s232 + $0x170] sm:$0xff]
      %v290 = vld [vmem:[%s232 + $0x178] sm:$0xff]
      %v291 = vld [vmem:[%s232 + $0x180] sm:$0xff]
      %v292 = vld [vmem:[%s232 + $0x188] sm:$0xff]
      %v293 = vld [vmem:[%s232 + $0x190] sm:$0xff]
      %v294 = vld [vmem:[%s232 + $0x198] sm:$0xff]
      %v295 = vld [vmem:[%s232 + $0x1a0] sm:$0xff]
      %v296 = vld [vmem:[%s232 + $0x1a8] sm:$0xff]
      %v297 = vld [vmem:[%s232 + $0x1b0] sm:$0xff]
      %v298 = vld [vmem:[%s232 + $0x1b8] sm:$0xff]
      %v299 = vld [vmem:[%s232 + $0x1c0] sm:$0xff]
      %v300 = vld [vmem:[%s232 + $0x1c8] sm:$0xff]
      %v301 = vld [vmem:[%s232 + $0x1d0] sm:$0xff]
      %v302 = vld [vmem:[%s232 + $0x1d8] sm:$0xff]
      %v303 = vld [vmem:[%s232 + $0x1e0] sm:$0xff]
      %v304 = vld [vmem:[%s232 + $0x1e8] sm:$0xff]
      %v305 = vld [vmem:[%s232 + $0x1f0] sm:$0xff]
      %v306 = vld [vmem:[%s232 + $0x1f8] sm:$0xff]
      %v307 = vld [vmem:[%s232 + $0x200] sm:$0xff]
      %v308 = vld [vmem:[%s232 + $0x208] sm:$0xff]
      %v309 = vld [vmem:[%s232 + $0x210] sm:$0xff]
      %v310 = vld [vmem:[%s232 + $0x218] sm:$0xff]
      %v311 = vld [vmem:[%s232 + $0x220] sm:$0xff]
      %v312 = vld [vmem:[%s232 + $0x228] sm:$0xff]
      %v313 = vld [vmem:[%s232 + $0x230] sm:$0xff]
      %v314 = vld [vmem:[%s232 + $0x238] sm:$0xff]
      %v315 = vld [vmem:[%s232 + $0x240] sm:$0xff]
      %v316 = vld [vmem:[%s232 + $0x248] sm:$0xff]
      %v317 = vld [vmem:[%s232 + $0x250] sm:$0xff]
      %v318 = vld [vmem:[%s232 + $0x258] sm:$0xff]
      %v319 = vld [vmem:[%s232 + $0x260] sm:$0xff]
      %v320 = vld [vmem:[%s232 + $0x268] sm:$0xff]
      %v321 = vld [vmem:[%s232 + $0x270] sm:$0xff]
      %v322 = vld [vmem:[%s232 + $0x278] sm:$0xff]
      %v323 = vld [vmem:[%s232 + $0x280] sm:$0xff]
      %v324 = vld [vmem:[%s232 + $0x288] sm:$0xff]
      %v325 = vld [vmem:[%s232 + $0x290] sm:$0xff]
      %v326 = vld [vmem:[%s232 + $0x298] sm:$0xff]
      %v327 = vld [vmem:[%s232 + $0x2a0] sm:$0xff]
      %v328 = vld [vmem:[%s232 + $0x2a8] sm:$0xff]
      %v329 = vld [vmem:[%s232 + $0x2b0] sm:$0xff]
      %v330 = vld [vmem:[%s232 + $0x2b8] sm:$0xff]
      %v331 = vld [vmem:[%s232 + $0x2c0] sm:$0xff]
      %v332 = vld [vmem:[%s232 + $0x2c8] sm:$0xff]
      %v333 = vld [vmem:[%s232 + $0x2d0] sm:$0xff]
      %v334 = vld [vmem:[%s232 + $0x2d8] sm:$0xff]
      %v335 = vld [vmem:[%s232 + $0x2e0] sm:$0xff]
      %v336 = vld [vmem:[%s232 + $0x2e8] sm:$0xff]
      %v337 = vld [vmem:[%s232 + $0x2f0] sm:$0xff]
      %v338 = vld [vmem:[%s232 + $0x2f8] sm:$0xff]
      %v339 = vld [vmem:[%s232 + $0x300] sm:$0xff]
      %v340 = vld [vmem:[%s232 + $0x308] sm:$0xff]
      %v341 = vld [vmem:[%s232 + $0x310] sm:$0xff]
      %v342 = vld [vmem:[%s232 + $0x318] sm:$0xff]
      %v343 = vld [vmem:[%s232 + $0x320] sm:$0xff]
      %v344 = vld [vmem:[%s232 + $0x328] sm:$0xff]
      %v345 = vld [vmem:[%s232 + $0x330] sm:$0xff]
      %v346 = vld [vmem:[%s232 + $0x338] sm:$0xff]
      %v347 = vld [vmem:[%s232 + $0x340] sm:$0xff]
      %v348 = vld [vmem:[%s232 + $0x348] sm:$0xff]
      %v349 = vld [vmem:[%s232 + $0x350] sm:$0xff]
      %v350 = vld [vmem:[%s232 + $0x358] sm:$0xff]
      %v351 = vld [vmem:[%s232 + $0x360] sm:$0xff]
      %v352 = vld [vmem:[%s232 + $0x368] sm:$0xff]
      %v353 = vld [vmem:[%s232 + $0x370] sm:$0xff]
      %v354 = vld [vmem:[%s232 + $0x378] sm:$0xff]
      %v355 = vld [vmem:[%s232 + $0x380] sm:$0xff]
      %v356 = vld [vmem:[%s232 + $0x388] sm:$0xff]
      %v357 = vld [vmem:[%s232 + $0x390] sm:$0xff]
      %v358 = vld [vmem:[%s232 + $0x398] sm:$0xff]
      %v359 = vld [vmem:[%s232 + $0x3a0] sm:$0xff]
      %v360 = vld [vmem:[%s232 + $0x3a8] sm:$0xff]
      %v361 = vld [vmem:[%s232 + $0x3b0] sm:$0xff]
      %v362 = vld [vmem:[%s232 + $0x3b8] sm:$0xff]
      %v363 = vld [vmem:[%s232 + $0x3c0] sm:$0xff]
      %v364 = vld [vmem:[%s232 + $0x3c8] sm:$0xff]
      %v365 = vld [vmem:[%s232 + $0x3d0] sm:$0xff]
      %v366 = vld [vmem:[%s232 + $0x3d8] sm:$0xff]
      %v367 = vld [vmem:[%s232 + $0x3e0] sm:$0xff]
      %v368 = vld [vmem:[%s232 + $0x3e8] sm:$0xff]
      %v369 = vld [vmem:[%s232 + $0x3f0] sm:$0xff]
      %v370 = vld [vmem:[%s232 + $0x3f8] sm:$0xff]
      %v371 = vld [vmem:[%s232 + $0x400] sm:$0xff]
      %v372 = vld [vmem:[%s232 + $0x408] sm:$0xff]
      %v373 = vld [vmem:[%s232 + $0x410] sm:$0xff]
      %v374 = vld [vmem:[%s232 + $0x418] sm:$0xff]
      %v375 = vld [vmem:[%s232 + $0x420] sm:$0xff]
      %v376 = vld [vmem:[%s232 + $0x428] sm:$0xff]
      %v377 = vld [vmem:[%s232 + $0x430] sm:$0xff]
      %v378 = vld [vmem:[%s232 + $0x438] sm:$0xff]
      %v379 = vld [vmem:[%s232 + $0x440] sm:$0xff]
      %v380 = vld [vmem:[%s232 + $0x448] sm:$0xff]
      %v381 = vld [vmem:[%s232 + $0x450] sm:$0xff]
      %v382 = vld [vmem:[%s232 + $0x458] sm:$0xff]
      %v383 = vld [vmem:[%s232 + $0x460] sm:$0xff]
      %v384 = vld [vmem:[%s232 + $0x468] sm:$0xff]
      %v385 = vld [vmem:[%s232 + $0x470] sm:$0xff]
      %v386 = vld [vmem:[%s232 + $0x478] sm:$0xff]
      %v387 = vld [vmem:[%s232 + $0x480] sm:$0xff]
      %v388 = vld [vmem:[%s232 + $0x488] sm:$0xff]
      %v389 = vld [vmem:[%s232 + $0x490] sm:$0xff]
      %v390 = vld [vmem:[%s232 + $0x498] sm:$0xff]
      %v391 = vld [vmem:[%s232 + $0x4a0] sm:$0xff]
      %v392 = vld [vmem:[%s232 + $0x4a8] sm:$0xff]
      %v393 = vld [vmem:[%s232 + $0x4b0] sm:$0xff]
      %v394 = vld [vmem:[%s232 + $0x4b8] sm:$0xff]
      %v395 = vld [vmem:[%s232 + $0x4c0] sm:$0xff]
      %v396 = vld [vmem:[%s232 + $0x4c8] sm:$0xff]
      %v397 = vld [vmem:[%s232 + $0x4d0] sm:$0xff]
      %v398 = vld [vmem:[%s232 + $0x4d8] sm:$0xff]
      %v399 = vld [vmem:[%s232 + $0x4e0] sm:$0xff]
      %v400 = vld [vmem:[%s232 + $0x4e8] sm:$0xff]
      %v401 = vld [vmem:[%s232 + $0x4f0] sm:$0xff]
      %v402 = vld [vmem:[%s232 + $0x4f8] sm:$0xff]
      %v403 = vld [vmem:[%s232 + $0x500] sm:$0xff]
      %v404 = vld [vmem:[%s232 + $0x508] sm:$0xff]
      %v405 = vld [vmem:[%s232 + $0x510] sm:$0xff]
      %v406 = vld [vmem:[%s232 + $0x518] sm:$0xff]
      %v407 = vld [vmem:[%s232 + $0x520] sm:$0xff]
      %v408 = vld [vmem:[%s232 + $0x528] sm:$0xff]
      %v409 = vld [vmem:[%s232 + $0x530] sm:$0xff]
      %v410 = vld [vmem:[%s232 + $0x538] sm:$0xff]
      %v411 = vld [vmem:[%s232 + $0x540] sm:$0xff]
      %v412 = vld [vmem:[%s232 + $0x548] sm:$0xff]
      %v413 = vld [vmem:[%s232 + $0x550] sm:$0xff]
      %v414 = vld [vmem:[%s232 + $0x558] sm:$0xff]
      %v415 = vld [vmem:[%s232 + $0x560] sm:$0xff]
      %v416 = vld [vmem:[%s232 + $0x568] sm:$0xff]
      %v417 = vld [vmem:[%s232 + $0x570] sm:$0xff]
      %v418 = vld [vmem:[%s232 + $0x578] sm:$0xff]
      %v419 = vld [vmem:[%s232 + $0x580] sm:$0xff]
      %v420 = vld [vmem:[%s232 + $0x588] sm:$0xff]
      %v421 = vld [vmem:[%s232 + $0x590] sm:$0xff]
      %v422 = vld [vmem:[%s232 + $0x598] sm:$0xff]
      %v423 = vld [vmem:[%s232 + $0x5a0] sm:$0xff]
      %v424 = vld [vmem:[%s232 + $0x5a8] sm:$0xff]
      %v425 = vld [vmem:[%s232 + $0x5b0] sm:$0xff]
      %v426 = vld [vmem:[%s232 + $0x5b8] sm:$0xff]
      %v427 = vld [vmem:[%s232 + $0x5c0] sm:$0xff]
      %v428 = vld [vmem:[%s232 + $0x5c8] sm:$0xff]
      %v429 = vld [vmem:[%s232 + $0x5d0] sm:$0xff]
      %v430 = vld [vmem:[%s232 + $0x5d8] sm:$0xff]
      %v431 = vld [vmem:[%s232 + $0x5e0] sm:$0xff]
      %v432 = vld [vmem:[%s232 + $0x5e8] sm:$0xff]
      %v433 = vld [vmem:[%s232 + $0x5f0] sm:$0xff]
      %v434 = vld [vmem:[%s232 + $0x5f8] sm:$0xff]
      %v435 = vld [vmem:[%s232 + $0x600] sm:$0xff]
      %v436 = vld [vmem:[%s232 + $0x608] sm:$0xff]
      %v437 = vld [vmem:[%s232 + $0x610] sm:$0xff]
      %v438 = vld [vmem:[%s232 + $0x618] sm:$0xff]
      %v439 = vld [vmem:[%s232 + $0x620] sm:$0xff]
      %v440 = vld [vmem:[%s232 + $0x628] sm:$0xff]
      %v441 = vld [vmem:[%s232 + $0x630] sm:$0xff]
      %v442 = vld [vmem:[%s232 + $0x638] sm:$0xff]
      %v443 = vld [vmem:[%s232 + $0x640] sm:$0xff]
      %v444 = vld [vmem:[%s232 + $0x648] sm:$0xff]
      %v445 = vld [vmem:[%s232 + $0x650] sm:$0xff]
      %v446 = vld [vmem:[%s232 + $0x658] sm:$0xff]
      %v447 = vld [vmem:[%s232 + $0x660] sm:$0xff]
      %v448 = vld [vmem:[%s232 + $0x668] sm:$0xff]
      %v449 = vld [vmem:[%s232 + $0x670] sm:$0xff]
      %v450 = vld [vmem:[%s232 + $0x678] sm:$0xff]
      %v451 = vld [vmem:[%s232 + $0x680] sm:$0xff]
      %v452 = vld [vmem:[%s232 + $0x688] sm:$0xff]
      %v453 = vld [vmem:[%s232 + $0x690] sm:$0xff]
      %v454 = vld [vmem:[%s232 + $0x698] sm:$0xff]
      %v455 = vld [vmem:[%s232 + $0x6a0] sm:$0xff]
      %v456 = vld [vmem:[%s232 + $0x6a8] sm:$0xff]
      %v457 = vld [vmem:[%s232 + $0x6b0] sm:$0xff]
      %v458 = vld [vmem:[%s232 + $0x6b8] sm:$0xff]
      %v459 = vld [vmem:[%s232 + $0x6c0] sm:$0xff]
      %v460 = vld [vmem:[%s232 + $0x6c8] sm:$0xff]
      %v461 = vld [vmem:[%s232 + $0x6d0] sm:$0xff]
      %v462 = vld [vmem:[%s232 + $0x6d8] sm:$0xff]
      %v463 = vld [vmem:[%s232 + $0x6e0] sm:$0xff]
      %v464 = vld [vmem:[%s232 + $0x6e8] sm:$0xff]
      %v465 = vld [vmem:[%s232 + $0x6f0] sm:$0xff]
      %v466 = vld [vmem:[%s232 + $0x6f8] sm:$0xff]
      %v467 = vld [vmem:[%s232 + $0x700] sm:$0xff]
      %v468 = vld [vmem:[%s232 + $0x708] sm:$0xff]
      %v469 = vld [vmem:[%s232 + $0x710] sm:$0xff]
      %v470 = vld [vmem:[%s232 + $0x718] sm:$0xff]
      %v471 = vld [vmem:[%s232 + $0x720] sm:$0xff]
      %v472 = vld [vmem:[%s232 + $0x728] sm:$0xff]
      %v473 = vld [vmem:[%s232 + $0x730] sm:$0xff]
      %v474 = vld [vmem:[%s232 + $0x738] sm:$0xff]
      %v475 = vld [vmem:[%s232 + $0x740] sm:$0xff]
      %v476 = vld [vmem:[%s232 + $0x748] sm:$0xff]
      %v477 = vld [vmem:[%s232 + $0x750] sm:$0xff]
      %v478 = vld [vmem:[%s232 + $0x758] sm:$0xff]
      %v479 = vld [vmem:[%s232 + $0x760] sm:$0xff]
      %v480 = vld [vmem:[%s232 + $0x768] sm:$0xff]
      %v481 = vld [vmem:[%s232 + $0x770] sm:$0xff]
      %v482 = vld [vmem:[%s232 + $0x778] sm:$0xff]
      %v483 = vld [vmem:[%s232 + $0x780] sm:$0xff]
      %v484 = vld [vmem:[%s232 + $0x788] sm:$0xff]
      %v485 = vld [vmem:[%s232 + $0x790] sm:$0xff]
      %v486 = vld [vmem:[%s232 + $0x798] sm:$0xff]
      %v487 = vld [vmem:[%s232 + $0x7a0] sm:$0xff]
      %v488 = vld [vmem:[%s232 + $0x7a8] sm:$0xff]
      %v489 = vld [vmem:[%s232 + $0x7b0] sm:$0xff]
      %v490 = vld [vmem:[%s232 + $0x7b8] sm:$0xff]
      %v491 = vld [vmem:[%s232 + $0x7c0] sm:$0xff]
      %v492 = vld [vmem:[%s232 + $0x7c8] sm:$0xff]
      %v493 = vld [vmem:[%s232 + $0x7d0] sm:$0xff]
      %v494 = vld [vmem:[%s232 + $0x7d8] sm:$0xff]
      %v495 = vld [vmem:[%s232 + $0x7e0] sm:$0xff]
      %v496 = vld [vmem:[%s232 + $0x7e8] sm:$0xff]
      %v497 = vld [vmem:[%s232 + $0x7f0] sm:$0xff]
      %v498 = vld [vmem:[%s232 + $0x7f8] sm:$0xff]
      %v499 = vld [vmem:[%s232 + $0x800] sm:$0xff]
      %v500 = vld [vmem:[%s232 + $0x808] sm:$0xff]
      %v501 = vld [vmem:[%s232 + $0x810] sm:$0xff]
      %v502 = vld [vmem:[%s232 + $0x818] sm:$0xff]
      %v503 = vld [vmem:[%s232 + $0x820] sm:$0xff]
      %v504 = vld [vmem:[%s232 + $0x828] sm:$0xff]
      %v505 = vld [vmem:[%s232 + $0x830] sm:$0xff]
      %v506 = vld [vmem:[%s232 + $0x838] sm:$0xff]
      %v507 = vld [vmem:[%s232 + $0x840] sm:$0xff]
      %v508 = vld [vmem:[%s232 + $0x848] sm:$0xff]
      %v509 = vld [vmem:[%s232 + $0x850] sm:$0xff]
      %v510 = vld [vmem:[%s232 + $0x858] sm:$0xff]
      %v511 = vld [vmem:[%s232 + $0x860] sm:$0xff]
      %v512 = vld [vmem:[%s232 + $0x868] sm:$0xff]
      %v513 = vld [vmem:[%s232 + $0x870] sm:$0xff]
      %v514 = vld [vmem:[%s232 + $0x878] sm:$0xff]
      %v515 = vld [vmem:[%s232 + $0x880] sm:$0xff]
      %v516 = vld [vmem:[%s232 + $0x888] sm:$0xff]
      %v517 = vld [vmem:[%s232 + $0x890] sm:$0xff]
      %v518 = vld [vmem:[%s232 + $0x898] sm:$0xff]
      %v519 = vld [vmem:[%s232 + $0x8a0] sm:$0xff]
      %v520 = vld [vmem:[%s232 + $0x8a8] sm:$0xff]
      %v521 = vld [vmem:[%s232 + $0x8b0] sm:$0xff]
      %v522 = vld [vmem:[%s232 + $0x8b8] sm:$0xff]
      %v523 = vld [vmem:[%s232 + $0x8c0] sm:$0xff]
      %v524 = vld [vmem:[%s232 + $0x8c8] sm:$0xff]
      %v525 = vld [vmem:[%s232 + $0x8d0] sm:$0xff]
      %v526 = vld [vmem:[%s232 + $0x8d8] sm:$0xff]
      %v527 = vld [vmem:[%s232 + $0x8e0] sm:$0xff]
      %v528 = vld [vmem:[%s232 + $0x8e8] sm:$0xff]
      %v529 = vld [vmem:[%s232 + $0x8f0] sm:$0xff]
      %v530 = vld [vmem:[%s232 + $0x8f8] sm:$0xff]
      %v531 = vld [vmem:[%s232 + $0x900] sm:$0xff]
      %v532 = vld [vmem:[%s232 + $0x908] sm:$0xff]
      %v533 = vld [vmem:[%s232 + $0x910] sm:$0xff]
      %v534 = vld [vmem:[%s232 + $0x918] sm:$0xff]
      %v535 = vld [vmem:[%s232 + $0x920] sm:$0xff]
      %v536 = vld [vmem:[%s232 + $0x928] sm:$0xff]
      %v537 = vld [vmem:[%s232 + $0x930] sm:$0xff]
      %v538 = vld [vmem:[%s232 + $0x938] sm:$0xff]
      %v539 = vld [vmem:[%s232 + $0x940] sm:$0xff]
      %v540 = vld [vmem:[%s232 + $0x948] sm:$0xff]
      %v541 = vld [vmem:[%s232 + $0x950] sm:$0xff]
      %v542 = vld [vmem:[%s232 + $0x958] sm:$0xff]
      %v543 = vld [vmem:[%s232 + $0x960] sm:$0xff]
      %v544 = vld [vmem:[%s232 + $0x968] sm:$0xff]
      %v545 = vld [vmem:[%s232 + $0x970] sm:$0xff]
      %v546 = vld [vmem:[%s232 + $0x978] sm:$0xff]
      %v547 = vld [vmem:[%s232 + $0x980] sm:$0xff]
      %v548 = vld [vmem:[%s232 + $0x988] sm:$0xff]
      %v549 = vld [vmem:[%s232 + $0x990] sm:$0xff]
      %v550 = vld [vmem:[%s232 + $0x998] sm:$0xff]
      %v551 = vld [vmem:[%s232 + $0x9a0] sm:$0xff]
      %v552 = vld [vmem:[%s232 + $0x9a8] sm:$0xff]
      %v553 = vld [vmem:[%s232 + $0x9b0] sm:$0xff]
      %v554 = vld [vmem:[%s232 + $0x9b8] sm:$0xff]
      %v555 = vld [vmem:[%s232 + $0x9c0] sm:$0xff]
      %v556 = vld [vmem:[%s232 + $0x9c8] sm:$0xff]
      %v557 = vld [vmem:[%s232 + $0x9d0] sm:$0xff]
      %v558 = vld [vmem:[%s232 + $0x9d8] sm:$0xff]
      %v559 = vld [vmem:[%s232 + $0x9e0] sm:$0xff]
      %v560 = vld [vmem:[%s232 + $0x9e8] sm:$0xff]
      %v561 = vld [vmem:[%s232 + $0x9f0] sm:$0xff]
      %v562 = vld [vmem:[%s232 + $0x9f8] sm:$0xff]
      %v565 = vcombine.high %v241, %v241
      %v567 = vunpack.c.l.s4 1966171168
      %v568 = vunpack.c.0.s8 %v567
      %v569 = vlaneseq
      %v570 = vshrl.u32 %v569, 7
      %v571 = vsub.s32 %v568, %v570
      %v572 = vrot.slane %v241, %v571
      %v574 = vunpack.c.l.s4 1966171168
      %v575 = vunpack.c.0.s8 %v574
      %v576 = vlaneseq
      %v577 = vshrl.u32 %v576, 7
      %v578 = vsub.s32 %v575, %v577
      %v579 = vrot.slane %v565, %v578
      %v580 = vcombine.high %v572, %v572
      %v581 = vcombine.high %v579, %v579
      %v583 = vunpack.c.l.s4 1966171168
      %v584 = vunpack.c.0.s8 %v583
      %v585 = vlaneseq
      %v586 = vshrl.u32 %v585, 7
      %v587 = vsub.s32 %v584, %v586
      %v588 = vrot.slane %v572, %v587
      %v590 = vunpack.c.l.s4 1966171168
      %v591 = vunpack.c.0.s8 %v590
      %v592 = vlaneseq
      %v593 = vshrl.u32 %v592, 7
      %v594 = vsub.s32 %v591, %v593
      %v595 = vrot.slane %v579, %v594
      %v597 = vunpack.c.l.s4 1966171168
      %v598 = vunpack.c.0.s8 %v597
      %v599 = vlaneseq
      %v600 = vshrl.u32 %v599, 7
      %v601 = vsub.s32 %v598, %v600
      %v602 = vrot.slane %v580, %v601
      %v604 = vunpack.c.l.s4 1966171168
      %v605 = vunpack.c.0.s8 %v604
      %v606 = vlaneseq
      %v607 = vshrl.u32 %v606, 7
      %v608 = vsub.s32 %v605, %v607
      %v609 = vrot.slane %v581, %v608
      %v610 = vcombine.high %v588, %v588
      %v611 = vcombine.high %v595, %v595
      %v612 = vcombine.high %v602, %v602
      %v613 = vcombine.high %v609, %v609
      %v615 = vunpack.c.l.s4 1966171168
      %v616 = vunpack.c.0.s8 %v615
      %v617 = vlaneseq
      %v618 = vshrl.u32 %v617, 7
      %v619 = vsub.s32 %v616, %v618
      %v620 = vrot.slane %v242, %v619
      %v621 = vcombine.high %v620, %v620
      %v623 = vunpack.c.l.s4 1966171168
      %v624 = vunpack.c.0.s8 %v623
      %v625 = vlaneseq
      %v626 = vshrl.u32 %v625, 7
      %v627 = vsub.s32 %v624, %v626
      %v628 = vrot.slane %v620, %v627
      %v630 = vunpack.c.l.s4 1966171168
      %v631 = vunpack.c.0.s8 %v630
      %v632 = vlaneseq
      %v633 = vshrl.u32 %v632, 7
      %v634 = vsub.s32 %v631, %v633
      %v635 = vrot.slane %v621, %v634
      %v966 = vunpack.c.l.b16 %v243
      %v967 = vunpack.c.h.b16 %v243
      %v968 = vunpack.c.l.b16 %v244
      %v969 = vunpack.c.h.b16 %v244
      %v970 = vunpack.c.l.b16 %v245
      %v971 = vunpack.c.h.b16 %v245
      %v972 = vunpack.c.l.b16 %v246
      %v973 = vunpack.c.h.b16 %v246
      %v974 = vunpack.c.l.b16 %v247
      %v975 = vunpack.c.h.b16 %v247
      %v976 = vunpack.c.l.b16 %v248
      %v977 = vunpack.c.h.b16 %v248
      %v978 = vunpack.c.l.b16 %v249
      %v979 = vunpack.c.h.b16 %v249
      %v980 = vunpack.c.l.b16 %v250
      %v981 = vunpack.c.h.b16 %v250
      %v982 = vunpack.c.l.b16 %v251
      %v983 = vunpack.c.h.b16 %v251
      %v984 = vunpack.c.l.b16 %v252
      %v985 = vunpack.c.h.b16 %v252
      %v986 = vunpack.c.l.b16 %v253
      %v987 = vunpack.c.h.b16 %v253
      %v988 = vunpack.c.l.b16 %v254
      %v989 = vunpack.c.h.b16 %v254
      %v990 = vunpack.c.l.b16 %v255
      %v991 = vunpack.c.h.b16 %v255
      %v992 = vunpack.c.l.b16 %v256
      %v993 = vunpack.c.h.b16 %v256
      %v994 = vunpack.c.l.b16 %v257
      %v995 = vunpack.c.h.b16 %v257
      %v996 = vunpack.c.l.b16 %v258
      %v997 = vunpack.c.h.b16 %v258
      %v998 = vunpack.c.l.b16 %v259
      %v999 = vunpack.c.h.b16 %v259
      %v1000 = vunpack.c.l.b16 %v260
      %v1001 = vunpack.c.h.b16 %v260
      %v1002 = vunpack.c.l.b16 %v261
      %v1003 = vunpack.c.h.b16 %v261
      %v1004 = vunpack.c.l.b16 %v262
      %v1005 = vunpack.c.h.b16 %v262
      %v1006 = vunpack.c.l.b16 %v263
      %v1007 = vunpack.c.h.b16 %v263
      %v1008 = vunpack.c.l.b16 %v264
      %v1009 = vunpack.c.h.b16 %v264
      %v1010 = vunpack.c.l.b16 %v265
      %v1011 = vunpack.c.h.b16 %v265
      %v1012 = vunpack.c.l.b16 %v266
      %v1013 = vunpack.c.h.b16 %v266
      %v1014 = vunpack.c.l.b16 %v267
      %v1015 = vunpack.c.h.b16 %v267
      %v1016 = vunpack.c.l.b16 %v268
      %v1017 = vunpack.c.h.b16 %v268
      %v1018 = vunpack.c.l.b16 %v269
      %v1019 = vunpack.c.h.b16 %v269
      %v1020 = vunpack.c.l.b16 %v270
      %v1021 = vunpack.c.h.b16 %v270
      %v1022 = vunpack.c.l.b16 %v271
      %v1023 = vunpack.c.h.b16 %v271
      %v1024 = vunpack.c.l.b16 %v272
      %v1025 = vunpack.c.h.b16 %v272
      %v1026 = vunpack.c.l.b16 %v273
      %v1027 = vunpack.c.h.b16 %v273
      %v1028 = vunpack.c.l.b16 %v274
      %v1029 = vunpack.c.h.b16 %v274
      %v1030 = vunpack.c.l.b16 %v275
      %v1031 = vunpack.c.h.b16 %v275
      %v1032 = vunpack.c.l.b16 %v276
      %v1033 = vunpack.c.h.b16 %v276
      %v1034 = vunpack.c.l.b16 %v277
      %v1035 = vunpack.c.h.b16 %v277
      %v1036 = vunpack.c.l.b16 %v278
      %v1037 = vunpack.c.h.b16 %v278
      %v1038 = vunpack.c.l.b16 %v279
      %v1039 = vunpack.c.h.b16 %v279
      %v1040 = vunpack.c.l.b16 %v280
      %v1041 = vunpack.c.h.b16 %v280
      %v1042 = vunpack.c.l.b16 %v281
      %v1043 = vunpack.c.h.b16 %v281
      %v1044 = vunpack.c.l.b16 %v282
      %v1045 = vunpack.c.h.b16 %v282
      %v1046 = vunpack.c.l.b16 %v283
      %v1047 = vunpack.c.h.b16 %v283
      %v1048 = vunpack.c.l.b16 %v284
      %v1049 = vunpack.c.h.b16 %v284
      %v1050 = vunpack.c.l.b16 %v285
      %v1051 = vunpack.c.h.b16 %v285
      %v1052 = vunpack.c.l.b16 %v286
      %v1053 = vunpack.c.h.b16 %v286
      %v1054 = vunpack.c.l.b16 %v287
      %v1055 = vunpack.c.h.b16 %v287
      %v1056 = vunpack.c.l.b16 %v288
      %v1057 = vunpack.c.h.b16 %v288
      %v1058 = vunpack.c.l.b16 %v289
      %v1059 = vunpack.c.h.b16 %v289
      %v1060 = vunpack.c.l.b16 %v290
      %v1061 = vunpack.c.h.b16 %v290
      %v1062 = vunpack.c.l.b16 %v291
      %v1063 = vunpack.c.h.b16 %v291
      %v1064 = vunpack.c.l.b16 %v292
      %v1065 = vunpack.c.h.b16 %v292
      %v1066 = vunpack.c.l.b16 %v293
      %v1067 = vunpack.c.h.b16 %v293
      %v1068 = vunpack.c.l.b16 %v294
      %v1069 = vunpack.c.h.b16 %v294
      %v1070 = vunpack.c.l.b16 %v295
      %v1071 = vunpack.c.h.b16 %v295
      %v1072 = vunpack.c.l.b16 %v296
      %v1073 = vunpack.c.h.b16 %v296
      %v1074 = vunpack.c.l.b16 %v297
      %v1075 = vunpack.c.h.b16 %v297
      %v1076 = vunpack.c.l.b16 %v298
      %v1077 = vunpack.c.h.b16 %v298
      %v1078 = vunpack.c.l.b16 %v299
      %v1079 = vunpack.c.h.b16 %v299
      %v1080 = vunpack.c.l.b16 %v300
      %v1081 = vunpack.c.h.b16 %v300
      %v1082 = vunpack.c.l.b16 %v301
      %v1083 = vunpack.c.h.b16 %v301
      %v1084 = vunpack.c.l.b16 %v302
      %v1085 = vunpack.c.h.b16 %v302
      %v1086 = vunpack.c.l.b16 %v303
      %v1087 = vunpack.c.h.b16 %v303
      %v1088 = vunpack.c.l.b16 %v304
      %v1089 = vunpack.c.h.b16 %v304
      %v1090 = vunpack.c.l.b16 %v305
      %v1091 = vunpack.c.h.b16 %v305
      %v1092 = vunpack.c.l.b16 %v306
      %v1093 = vunpack.c.h.b16 %v306
      %v1094 = vunpack.c.l.b16 %v307
      %v1095 = vunpack.c.h.b16 %v307
      %v1096 = vunpack.c.l.b16 %v308
      %v1097 = vunpack.c.h.b16 %v308
      %v1098 = vunpack.c.l.b16 %v309
      %v1099 = vunpack.c.h.b16 %v309
      %v1100 = vunpack.c.l.b16 %v310
      %v1101 = vunpack.c.h.b16 %v310
      %v1102 = vunpack.c.l.b16 %v311
      %v1103 = vunpack.c.h.b16 %v311
      %v1104 = vunpack.c.l.b16 %v312
      %v1105 = vunpack.c.h.b16 %v312
      %v1106 = vunpack.c.l.b16 %v313
      %v1107 = vunpack.c.h.b16 %v313
      %v1108 = vunpack.c.l.b16 %v314
      %v1109 = vunpack.c.h.b16 %v314
      %v1110 = vunpack.c.l.b16 %v315
      %v1111 = vunpack.c.h.b16 %v315
      %v1112 = vunpack.c.l.b16 %v316
      %v1113 = vunpack.c.h.b16 %v316
      %v1114 = vunpack.c.l.b16 %v317
      %v1115 = vunpack.c.h.b16 %v317
      %v1116 = vunpack.c.l.b16 %v318
      %v1117 = vunpack.c.h.b16 %v318
      %v1118 = vunpack.c.l.b16 %v319
      %v1119 = vunpack.c.h.b16 %v319
      %v1120 = vunpack.c.l.b16 %v320
      %v1121 = vunpack.c.h.b16 %v320
      %v1122 = vunpack.c.l.b16 %v321
      %v1123 = vunpack.c.h.b16 %v321
      %v1124 = vunpack.c.l.b16 %v322
      %v1125 = vunpack.c.h.b16 %v322
      %v1126 = vunpack.c.l.b16 %v323
      %v1127 = vunpack.c.h.b16 %v323
      %v1128 = vunpack.c.l.b16 %v324
      %v1129 = vunpack.c.h.b16 %v324
      %v1130 = vunpack.c.l.b16 %v325
      %v1131 = vunpack.c.h.b16 %v325
      %v1132 = vunpack.c.l.b16 %v326
      %v1133 = vunpack.c.h.b16 %v326
      %v1134 = vunpack.c.l.b16 %v327
      %v1135 = vunpack.c.h.b16 %v327
      %v1136 = vunpack.c.l.b16 %v328
      %v1137 = vunpack.c.h.b16 %v328
      %v1138 = vunpack.c.l.b16 %v329
      %v1139 = vunpack.c.h.b16 %v329
      %v1140 = vunpack.c.l.b16 %v330
      %v1141 = vunpack.c.h.b16 %v330
      %v1142 = vunpack.c.l.b16 %v331
      %v1143 = vunpack.c.h.b16 %v331
      %v1144 = vunpack.c.l.b16 %v332
      %v1145 = vunpack.c.h.b16 %v332
      %v1146 = vunpack.c.l.b16 %v333
      %v1147 = vunpack.c.h.b16 %v333
      %v1148 = vunpack.c.l.b16 %v334
      %v1149 = vunpack.c.h.b16 %v334
      %v1150 = vunpack.c.l.b16 %v335
      %v1151 = vunpack.c.h.b16 %v335
      %v1152 = vunpack.c.l.b16 %v336
      %v1153 = vunpack.c.h.b16 %v336
      %v1154 = vunpack.c.l.b16 %v337
      %v1155 = vunpack.c.h.b16 %v337
      %v1156 = vunpack.c.l.b16 %v338
      %v1157 = vunpack.c.h.b16 %v338
      %v1158 = vunpack.c.l.b16 %v339
      %v1159 = vunpack.c.h.b16 %v339
      %v1160 = vunpack.c.l.b16 %v340
      %v1161 = vunpack.c.h.b16 %v340
      %v1162 = vunpack.c.l.b16 %v341
      %v1163 = vunpack.c.h.b16 %v341
      %v1164 = vunpack.c.l.b16 %v342
      %v1165 = vunpack.c.h.b16 %v342
      %v1166 = vunpack.c.l.b16 %v343
      %v1167 = vunpack.c.h.b16 %v343
      %v1168 = vunpack.c.l.b16 %v344
      %v1169 = vunpack.c.h.b16 %v344
      %v1170 = vunpack.c.l.b16 %v345
      %v1171 = vunpack.c.h.b16 %v345
      %v1172 = vunpack.c.l.b16 %v346
      %v1173 = vunpack.c.h.b16 %v346
      %v1174 = vunpack.c.l.b16 %v347
      %v1175 = vunpack.c.h.b16 %v347
      %v1176 = vunpack.c.l.b16 %v348
      %v1177 = vunpack.c.h.b16 %v348
      %v1178 = vunpack.c.l.b16 %v349
      %v1179 = vunpack.c.h.b16 %v349
      %v1180 = vunpack.c.l.b16 %v350
      %v1181 = vunpack.c.h.b16 %v350
      %v1182 = vunpack.c.l.b16 %v351
      %v1183 = vunpack.c.h.b16 %v351
      %v1184 = vunpack.c.l.b16 %v352
      %v1185 = vunpack.c.h.b16 %v352
      %v1186 = vunpack.c.l.b16 %v353
      %v1187 = vunpack.c.h.b16 %v353
      %v1188 = vunpack.c.l.b16 %v354
      %v1189 = vunpack.c.h.b16 %v354
      %v1190 = vunpack.c.l.b16 %v355
      %v1191 = vunpack.c.h.b16 %v355
      %v1192 = vunpack.c.l.b16 %v356
      %v1193 = vunpack.c.h.b16 %v356
      %v1194 = vunpack.c.l.b16 %v357
      %v1195 = vunpack.c.h.b16 %v357
      %v1196 = vunpack.c.l.b16 %v358
      %v1197 = vunpack.c.h.b16 %v358
      %v1198 = vunpack.c.l.b16 %v359
      %v1199 = vunpack.c.h.b16 %v359
      %v1200 = vunpack.c.l.b16 %v360
      %v1201 = vunpack.c.h.b16 %v360
      %v1202 = vunpack.c.l.b16 %v361
      %v1203 = vunpack.c.h.b16 %v361
      %v1204 = vunpack.c.l.b16 %v362
      %v1205 = vunpack.c.h.b16 %v362
      %v1206 = vunpack.c.l.b16 %v363
      %v1207 = vunpack.c.h.b16 %v363
      %v1208 = vunpack.c.l.b16 %v364
      %v1209 = vunpack.c.h.b16 %v364
      %v1210 = vunpack.c.l.b16 %v365
      %v1211 = vunpack.c.h.b16 %v365
      %v1212 = vunpack.c.l.b16 %v366
      %v1213 = vunpack.c.h.b16 %v366
      %v1214 = vunpack.c.l.b16 %v367
      %v1215 = vunpack.c.h.b16 %v367
      %v1216 = vunpack.c.l.b16 %v368
      %v1217 = vunpack.c.h.b16 %v368
      %v1218 = vunpack.c.l.b16 %v369
      %v1219 = vunpack.c.h.b16 %v369
      %v1220 = vunpack.c.l.b16 %v370
      %v1221 = vunpack.c.h.b16 %v370
      %v1222 = vunpack.c.l.b16 %v371
      %v1223 = vunpack.c.h.b16 %v371
      %v1224 = vunpack.c.l.b16 %v372
      %v1225 = vunpack.c.h.b16 %v372
      %v1226 = vunpack.c.l.b16 %v373
      %v1227 = vunpack.c.h.b16 %v373
      %v1228 = vunpack.c.l.b16 %v374
      %v1229 = vunpack.c.h.b16 %v374
      %v1230 = vunpack.c.l.b16 %v375
      %v1231 = vunpack.c.h.b16 %v375
      %v1232 = vunpack.c.l.b16 %v376
      %v1233 = vunpack.c.h.b16 %v376
      %v1234 = vunpack.c.l.b16 %v377
      %v1235 = vunpack.c.h.b16 %v377
      %v1236 = vunpack.c.l.b16 %v378
      %v1237 = vunpack.c.h.b16 %v378
      %v1238 = vunpack.c.l.b16 %v379
      %v1239 = vunpack.c.h.b16 %v379
      %v1240 = vunpack.c.l.b16 %v380
      %v1241 = vunpack.c.h.b16 %v380
      %v1242 = vunpack.c.l.b16 %v381
      %v1243 = vunpack.c.h.b16 %v381
      %v1244 = vunpack.c.l.b16 %v382
      %v1245 = vunpack.c.h.b16 %v382
      %v1246 = vunpack.c.l.b16 %v383
      %v1247 = vunpack.c.h.b16 %v383
      %v1248 = vunpack.c.l.b16 %v384
      %v1249 = vunpack.c.h.b16 %v384
      %v1250 = vunpack.c.l.b16 %v385
      %v1251 = vunpack.c.h.b16 %v385
      %v1252 = vunpack.c.l.b16 %v386
      %v1253 = vunpack.c.h.b16 %v386
      %v1254 = vunpack.c.l.b16 %v387
      %v1255 = vunpack.c.h.b16 %v387
      %v1256 = vunpack.c.l.b16 %v388
      %v1257 = vunpack.c.h.b16 %v388
      %v1258 = vunpack.c.l.b16 %v389
      %v1259 = vunpack.c.h.b16 %v389
      %v1260 = vunpack.c.l.b16 %v390
      %v1261 = vunpack.c.h.b16 %v390
      %v1262 = vunpack.c.l.b16 %v391
      %v1263 = vunpack.c.h.b16 %v391
      %v1264 = vunpack.c.l.b16 %v392
      %v1265 = vunpack.c.h.b16 %v392
      %v1266 = vunpack.c.l.b16 %v393
      %v1267 = vunpack.c.h.b16 %v393
      %v1268 = vunpack.c.l.b16 %v394
      %v1269 = vunpack.c.h.b16 %v394
      %v1270 = vunpack.c.l.b16 %v395
      %v1271 = vunpack.c.h.b16 %v395
      %v1272 = vunpack.c.l.b16 %v396
      %v1273 = vunpack.c.h.b16 %v396
      %v1274 = vunpack.c.l.b16 %v397
      %v1275 = vunpack.c.h.b16 %v397
      %v1276 = vunpack.c.l.b16 %v398
      %v1277 = vunpack.c.h.b16 %v398
      %v1278 = vunpack.c.l.b16 %v399
      %v1279 = vunpack.c.h.b16 %v399
      %v1280 = vunpack.c.l.b16 %v400
      %v1281 = vunpack.c.h.b16 %v400
      %v1282 = vunpack.c.l.b16 %v401
      %v1283 = vunpack.c.h.b16 %v401
      %v1284 = vunpack.c.l.b16 %v402
      %v1285 = vunpack.c.h.b16 %v402
      %v1286 = vunpack.c.l.b16 %v403
      %v1287 = vunpack.c.h.b16 %v403
      %v1288 = vunpack.c.l.b16 %v404
      %v1289 = vunpack.c.h.b16 %v404
      %v1290 = vunpack.c.l.b16 %v405
      %v1291 = vunpack.c.h.b16 %v405
      %v1292 = vunpack.c.l.b16 %v406
      %v1293 = vunpack.c.h.b16 %v406
      %v1294 = vunpack.c.l.b16 %v407
      %v1295 = vunpack.c.h.b16 %v407
      %v1296 = vunpack.c.l.b16 %v408
      %v1297 = vunpack.c.h.b16 %v408
      %v1298 = vunpack.c.l.b16 %v409
      %v1299 = vunpack.c.h.b16 %v409
      %v1300 = vunpack.c.l.b16 %v410
      %v1301 = vunpack.c.h.b16 %v410
      %v1302 = vunpack.c.l.b16 %v411
      %v1303 = vunpack.c.h.b16 %v411
      %v1304 = vunpack.c.l.b16 %v412
      %v1305 = vunpack.c.h.b16 %v412
      %v1306 = vunpack.c.l.b16 %v413
      %v1307 = vunpack.c.h.b16 %v413
      %v1308 = vunpack.c.l.b16 %v414
      %v1309 = vunpack.c.h.b16 %v414
      %v1310 = vunpack.c.l.b16 %v415
      %v1311 = vunpack.c.h.b16 %v415
      %v1312 = vunpack.c.l.b16 %v416
      %v1313 = vunpack.c.h.b16 %v416
      %v1314 = vunpack.c.l.b16 %v417
      %v1315 = vunpack.c.h.b16 %v417
      %v1316 = vunpack.c.l.b16 %v418
      %v1317 = vunpack.c.h.b16 %v418
      %v1318 = vunpack.c.l.b16 %v419
      %v1319 = vunpack.c.h.b16 %v419
      %v1320 = vunpack.c.l.b16 %v420
      %v1321 = vunpack.c.h.b16 %v420
      %v1322 = vunpack.c.l.b16 %v421
      %v1323 = vunpack.c.h.b16 %v421
      %v1324 = vunpack.c.l.b16 %v422
      %v1325 = vunpack.c.h.b16 %v422
      %v1326 = vunpack.c.l.b16 %v423
      %v1327 = vunpack.c.h.b16 %v423
      %v1328 = vunpack.c.l.b16 %v424
      %v1329 = vunpack.c.h.b16 %v424
      %v1330 = vunpack.c.l.b16 %v425
      %v1331 = vunpack.c.h.b16 %v425
      %v1332 = vunpack.c.l.b16 %v426
      %v1333 = vunpack.c.h.b16 %v426
      %v1334 = vunpack.c.l.b16 %v427
      %v1335 = vunpack.c.h.b16 %v427
      %v1336 = vunpack.c.l.b16 %v428
      %v1337 = vunpack.c.h.b16 %v428
      %v1338 = vunpack.c.l.b16 %v429
      %v1339 = vunpack.c.h.b16 %v429
      %v1340 = vunpack.c.l.b16 %v430
      %v1341 = vunpack.c.h.b16 %v430
      %v1342 = vunpack.c.l.b16 %v431
      %v1343 = vunpack.c.h.b16 %v431
      %v1344 = vunpack.c.l.b16 %v432
      %v1345 = vunpack.c.h.b16 %v432
      %v1346 = vunpack.c.l.b16 %v433
      %v1347 = vunpack.c.h.b16 %v433
      %v1348 = vunpack.c.l.b16 %v434
      %v1349 = vunpack.c.h.b16 %v434
      %v1350 = vunpack.c.l.b16 %v435
      %v1351 = vunpack.c.h.b16 %v435
      %v1352 = vunpack.c.l.b16 %v436
      %v1353 = vunpack.c.h.b16 %v436
      %v1354 = vunpack.c.l.b16 %v437
      %v1355 = vunpack.c.h.b16 %v437
      %v1356 = vunpack.c.l.b16 %v438
      %v1357 = vunpack.c.h.b16 %v438
      %v1358 = vunpack.c.l.b16 %v439
      %v1359 = vunpack.c.h.b16 %v439
      %v1360 = vunpack.c.l.b16 %v440
      %v1361 = vunpack.c.h.b16 %v440
      %v1362 = vunpack.c.l.b16 %v441
      %v1363 = vunpack.c.h.b16 %v441
      %v1364 = vunpack.c.l.b16 %v442
      %v1365 = vunpack.c.h.b16 %v442
      %v1366 = vunpack.c.l.b16 %v443
      %v1367 = vunpack.c.h.b16 %v443
      %v1368 = vunpack.c.l.b16 %v444
      %v1369 = vunpack.c.h.b16 %v444
      %v1370 = vunpack.c.l.b16 %v445
      %v1371 = vunpack.c.h.b16 %v445
      %v1372 = vunpack.c.l.b16 %v446
      %v1373 = vunpack.c.h.b16 %v446
      %v1374 = vunpack.c.l.b16 %v447
      %v1375 = vunpack.c.h.b16 %v447
      %v1376 = vunpack.c.l.b16 %v448
      %v1377 = vunpack.c.h.b16 %v448
      %v1378 = vunpack.c.l.b16 %v449
      %v1379 = vunpack.c.h.b16 %v449
      %v1380 = vunpack.c.l.b16 %v450
      %v1381 = vunpack.c.h.b16 %v450
      %v1382 = vunpack.c.l.b16 %v451
      %v1383 = vunpack.c.h.b16 %v451
      %v1384 = vunpack.c.l.b16 %v452
      %v1385 = vunpack.c.h.b16 %v452
      %v1386 = vunpack.c.l.b16 %v453
      %v1387 = vunpack.c.h.b16 %v453
      %v1388 = vunpack.c.l.b16 %v454
      %v1389 = vunpack.c.h.b16 %v454
      %v1390 = vunpack.c.l.b16 %v455
      %v1391 = vunpack.c.h.b16 %v455
      %v1392 = vunpack.c.l.b16 %v456
      %v1393 = vunpack.c.h.b16 %v456
      %v1394 = vunpack.c.l.b16 %v457
      %v1395 = vunpack.c.h.b16 %v457
      %v1396 = vunpack.c.l.b16 %v458
      %v1397 = vunpack.c.h.b16 %v458
      %v1398 = vunpack.c.l.b16 %v459
      %v1399 = vunpack.c.h.b16 %v459
      %v1400 = vunpack.c.l.b16 %v460
      %v1401 = vunpack.c.h.b16 %v460
      %v1402 = vunpack.c.l.b16 %v461
      %v1403 = vunpack.c.h.b16 %v461
      %v1404 = vunpack.c.l.b16 %v462
      %v1405 = vunpack.c.h.b16 %v462
      %v1406 = vunpack.c.l.b16 %v463
      %v1407 = vunpack.c.h.b16 %v463
      %v1408 = vunpack.c.l.b16 %v464
      %v1409 = vunpack.c.h.b16 %v464
      %v1410 = vunpack.c.l.b16 %v465
      %v1411 = vunpack.c.h.b16 %v465
      %v1412 = vunpack.c.l.b16 %v466
      %v1413 = vunpack.c.h.b16 %v466
      %v1414 = vunpack.c.l.b16 %v467
      %v1415 = vunpack.c.h.b16 %v467
      %v1416 = vunpack.c.l.b16 %v468
      %v1417 = vunpack.c.h.b16 %v468
      %v1418 = vunpack.c.l.b16 %v469
      %v1419 = vunpack.c.h.b16 %v469
      %v1420 = vunpack.c.l.b16 %v470
      %v1421 = vunpack.c.h.b16 %v470
      %v1422 = vunpack.c.l.b16 %v471
      %v1423 = vunpack.c.h.b16 %v471
      %v1424 = vunpack.c.l.b16 %v472
      %v1425 = vunpack.c.h.b16 %v472
      %v1426 = vunpack.c.l.b16 %v473
      %v1427 = vunpack.c.h.b16 %v473
      %v1428 = vunpack.c.l.b16 %v474
      %v1429 = vunpack.c.h.b16 %v474
      %v1430 = vunpack.c.l.b16 %v475
      %v1431 = vunpack.c.h.b16 %v475
      %v1432 = vunpack.c.l.b16 %v476
      %v1433 = vunpack.c.h.b16 %v476
      %v1434 = vunpack.c.l.b16 %v477
      %v1435 = vunpack.c.h.b16 %v477
      %v1436 = vunpack.c.l.b16 %v478
      %v1437 = vunpack.c.h.b16 %v478
      %v1438 = vunpack.c.l.b16 %v479
      %v1439 = vunpack.c.h.b16 %v479
      %v1440 = vunpack.c.l.b16 %v480
      %v1441 = vunpack.c.h.b16 %v480
      %v1442 = vunpack.c.l.b16 %v481
      %v1443 = vunpack.c.h.b16 %v481
      %v1444 = vunpack.c.l.b16 %v482
      %v1445 = vunpack.c.h.b16 %v482
      %v1446 = vunpack.c.l.b16 %v483
      %v1447 = vunpack.c.h.b16 %v483
      %v1448 = vunpack.c.l.b16 %v484
      %v1449 = vunpack.c.h.b16 %v484
      %v1450 = vunpack.c.l.b16 %v485
      %v1451 = vunpack.c.h.b16 %v485
      %v1452 = vunpack.c.l.b16 %v486
      %v1453 = vunpack.c.h.b16 %v486
      %v1454 = vunpack.c.l.b16 %v487
      %v1455 = vunpack.c.h.b16 %v487
      %v1456 = vunpack.c.l.b16 %v488
      %v1457 = vunpack.c.h.b16 %v488
      %v1458 = vunpack.c.l.b16 %v489
      %v1459 = vunpack.c.h.b16 %v489
      %v1460 = vunpack.c.l.b16 %v490
      %v1461 = vunpack.c.h.b16 %v490
      %v1462 = vunpack.c.l.b16 %v491
      %v1463 = vunpack.c.h.b16 %v491
      %v1464 = vunpack.c.l.b16 %v492
      %v1465 = vunpack.c.h.b16 %v492
      %v1466 = vunpack.c.l.b16 %v493
      %v1467 = vunpack.c.h.b16 %v493
      %v1468 = vunpack.c.l.b16 %v494
      %v1469 = vunpack.c.h.b16 %v494
      %v1470 = vunpack.c.l.b16 %v495
      %v1471 = vunpack.c.h.b16 %v495
      %v1472 = vunpack.c.l.b16 %v496
      %v1473 = vunpack.c.h.b16 %v496
      %v1474 = vunpack.c.l.b16 %v497
      %v1475 = vunpack.c.h.b16 %v497
      %v1476 = vunpack.c.l.b16 %v498
      %v1477 = vunpack.c.h.b16 %v498
      %v1478 = vunpack.c.l.b16 %v499
      %v1479 = vunpack.c.h.b16 %v499
      %v1480 = vunpack.c.l.b16 %v500
      %v1481 = vunpack.c.h.b16 %v500
      %v1482 = vunpack.c.l.b16 %v501
      %v1483 = vunpack.c.h.b16 %v501
      %v1484 = vunpack.c.l.b16 %v502
      %v1485 = vunpack.c.h.b16 %v502
      %v1486 = vunpack.c.l.b16 %v503
      %v1487 = vunpack.c.h.b16 %v503
      %v1488 = vunpack.c.l.b16 %v504
      %v1489 = vunpack.c.h.b16 %v504
      %v1490 = vunpack.c.l.b16 %v505
      %v1491 = vunpack.c.h.b16 %v505
      %v1492 = vunpack.c.l.b16 %v506
      %v1493 = vunpack.c.h.b16 %v506
      %v1494 = vunpack.c.l.b16 %v507
      %v1495 = vunpack.c.h.b16 %v507
      %v1496 = vunpack.c.l.b16 %v508
      %v1497 = vunpack.c.h.b16 %v508
      %v1498 = vunpack.c.l.b16 %v509
      %v1499 = vunpack.c.h.b16 %v509
      %v1500 = vunpack.c.l.b16 %v510
      %v1501 = vunpack.c.h.b16 %v510
      %v1502 = vunpack.c.l.b16 %v511
      %v1503 = vunpack.c.h.b16 %v511
      %v1504 = vunpack.c.l.b16 %v512
      %v1505 = vunpack.c.h.b16 %v512
      %v1506 = vunpack.c.l.b16 %v513
      %v1507 = vunpack.c.h.b16 %v513
      %v1508 = vunpack.c.l.b16 %v514
      %v1509 = vunpack.c.h.b16 %v514
      %v1510 = vunpack.c.l.b16 %v515
      %v1511 = vunpack.c.h.b16 %v515
      %v1512 = vunpack.c.l.b16 %v516
      %v1513 = vunpack.c.h.b16 %v516
      %v1514 = vunpack.c.l.b16 %v517
      %v1515 = vunpack.c.h.b16 %v517
      %v1516 = vunpack.c.l.b16 %v518
      %v1517 = vunpack.c.h.b16 %v518
      %v1518 = vunpack.c.l.b16 %v519
      %v1519 = vunpack.c.h.b16 %v519
      %v1520 = vunpack.c.l.b16 %v520
      %v1521 = vunpack.c.h.b16 %v520
      %v1522 = vunpack.c.l.b16 %v521
      %v1523 = vunpack.c.h.b16 %v521
      %v1524 = vunpack.c.l.b16 %v522
      %v1525 = vunpack.c.h.b16 %v522
      %v1526 = vunpack.c.l.b16 %v523
      %v1527 = vunpack.c.h.b16 %v523
      %v1528 = vunpack.c.l.b16 %v524
      %v1529 = vunpack.c.h.b16 %v524
      %v1530 = vunpack.c.l.b16 %v525
      %v1531 = vunpack.c.h.b16 %v525
      %v1532 = vunpack.c.l.b16 %v526
      %v1533 = vunpack.c.h.b16 %v526
      %v1534 = vunpack.c.l.b16 %v527
      %v1535 = vunpack.c.h.b16 %v527
      %v1536 = vunpack.c.l.b16 %v528
      %v1537 = vunpack.c.h.b16 %v528
      %v1538 = vunpack.c.l.b16 %v529
      %v1539 = vunpack.c.h.b16 %v529
      %v1540 = vunpack.c.l.b16 %v530
      %v1541 = vunpack.c.h.b16 %v530
      %v1542 = vunpack.c.l.b16 %v531
      %v1543 = vunpack.c.h.b16 %v531
      %v1544 = vunpack.c.l.b16 %v532
      %v1545 = vunpack.c.h.b16 %v532
      %v1546 = vunpack.c.l.b16 %v533
      %v1547 = vunpack.c.h.b16 %v533
      %v1548 = vunpack.c.l.b16 %v534
      %v1549 = vunpack.c.h.b16 %v534
      %v1550 = vunpack.c.l.b16 %v535
      %v1551 = vunpack.c.h.b16 %v535
      %v1552 = vunpack.c.l.b16 %v536
      %v1553 = vunpack.c.h.b16 %v536
      %v1554 = vunpack.c.l.b16 %v537
      %v1555 = vunpack.c.h.b16 %v537
      %v1556 = vunpack.c.l.b16 %v538
      %v1557 = vunpack.c.h.b16 %v538
      %v1558 = vunpack.c.l.b16 %v539
      %v1559 = vunpack.c.h.b16 %v539
      %v1560 = vunpack.c.l.b16 %v540
      %v1561 = vunpack.c.h.b16 %v540
      %v1562 = vunpack.c.l.b16 %v541
      %v1563 = vunpack.c.h.b16 %v541
      %v1564 = vunpack.c.l.b16 %v542
      %v1565 = vunpack.c.h.b16 %v542
      %v1566 = vunpack.c.l.b16 %v543
      %v1567 = vunpack.c.h.b16 %v543
      %v1568 = vunpack.c.l.b16 %v544
      %v1569 = vunpack.c.h.b16 %v544
      %v1570 = vunpack.c.l.b16 %v545
      %v1571 = vunpack.c.h.b16 %v545
      %v1572 = vunpack.c.l.b16 %v546
      %v1573 = vunpack.c.h.b16 %v546
      %v1574 = vunpack.c.l.b16 %v547
      %v1575 = vunpack.c.h.b16 %v547
      %v1576 = vunpack.c.l.b16 %v548
      %v1577 = vunpack.c.h.b16 %v548
      %v1578 = vunpack.c.l.b16 %v549
      %v1579 = vunpack.c.h.b16 %v549
      %v1580 = vunpack.c.l.b16 %v550
      %v1581 = vunpack.c.h.b16 %v550
      %v1582 = vunpack.c.l.b16 %v551
      %v1583 = vunpack.c.h.b16 %v551
      %v1584 = vunpack.c.l.b16 %v552
      %v1585 = vunpack.c.h.b16 %v552
      %v1586 = vunpack.c.l.b16 %v553
      %v1587 = vunpack.c.h.b16 %v553
      %v1588 = vunpack.c.l.b16 %v554
      %v1589 = vunpack.c.h.b16 %v554
      %v1590 = vunpack.c.l.b16 %v555
      %v1591 = vunpack.c.h.b16 %v555
      %v1592 = vunpack.c.l.b16 %v556
      %v1593 = vunpack.c.h.b16 %v556
      %v1594 = vunpack.c.l.b16 %v557
      %v1595 = vunpack.c.h.b16 %v557
      %v1596 = vunpack.c.l.b16 %v558
      %v1597 = vunpack.c.h.b16 %v558
      %v1598 = vunpack.c.l.b16 %v559
      %v1599 = vunpack.c.h.b16 %v559
      %v1600 = vunpack.c.l.b16 %v560
      %v1601 = vunpack.c.h.b16 %v560
      %v1602 = vunpack.c.l.b16 %v561
      %v1603 = vunpack.c.h.b16 %v561
      %v1604 = vunpack.c.l.b16 %v562
      %v1605 = vunpack.c.h.b16 %v562
      %v1606 = vpack.c.b16 %v970, %v966
      %v1607 = vpack.c.b16 %v971, %v967
      %v1608 = vpack.c.b16 %v972, %v968
      %v1609 = vpack.c.b16 %v973, %v969
      %v1610 = vpack.c.b16 %v978, %v974
      %v1611 = vpack.c.b16 %v979, %v975
      %v1612 = vpack.c.b16 %v980, %v976
      %v1613 = vpack.c.b16 %v981, %v977
      %v1614 = vpack.c.b16 %v986, %v982
      %v1615 = vpack.c.b16 %v987, %v983
      %v1616 = vpack.c.b16 %v988, %v984
      %v1617 = vpack.c.b16 %v989, %v985
      %v1618 = vpack.c.b16 %v994, %v990
      %v1619 = vpack.c.b16 %v995, %v991
      %v1620 = vpack.c.b16 %v996, %v992
      %v1621 = vpack.c.b16 %v997, %v993
      %v1622 = vpack.c.b16 %v1002, %v998
      %v1623 = vpack.c.b16 %v1003, %v999
      %v1624 = vpack.c.b16 %v1004, %v1000
      %v1625 = vpack.c.b16 %v1005, %v1001
      %v1626 = vpack.c.b16 %v1010, %v1006
      %v1627 = vpack.c.b16 %v1011, %v1007
      %v1628 = vpack.c.b16 %v1012, %v1008
      %v1629 = vpack.c.b16 %v1013, %v1009
      %v1630 = vpack.c.b16 %v1018, %v1014
      %v1631 = vpack.c.b16 %v1019, %v1015
      %v1632 = vpack.c.b16 %v1020, %v1016
      %v1633 = vpack.c.b16 %v1021, %v1017
      %v1634 = vpack.c.b16 %v1026, %v1022
      %v1635 = vpack.c.b16 %v1027, %v1023
      %v1636 = vpack.c.b16 %v1028, %v1024
      %v1637 = vpack.c.b16 %v1029, %v1025
      %v1638 = vpack.c.b16 %v1034, %v1030
      %v1639 = vpack.c.b16 %v1035, %v1031
      %v1640 = vpack.c.b16 %v1036, %v1032
      %v1641 = vpack.c.b16 %v1037, %v1033
      %v1642 = vpack.c.b16 %v1042, %v1038
      %v1643 = vpack.c.b16 %v1043, %v1039
      %v1644 = vpack.c.b16 %v1044, %v1040
      %v1645 = vpack.c.b16 %v1045, %v1041
      %v1646 = vpack.c.b16 %v1050, %v1046
      %v1647 = vpack.c.b16 %v1051, %v1047
      %v1648 = vpack.c.b16 %v1052, %v1048
      %v1649 = vpack.c.b16 %v1053, %v1049
      %v1650 = vpack.c.b16 %v1058, %v1054
      %v1651 = vpack.c.b16 %v1059, %v1055
      %v1652 = vpack.c.b16 %v1060, %v1056
      %v1653 = vpack.c.b16 %v1061, %v1057
      %v1654 = vpack.c.b16 %v1066, %v1062
      %v1655 = vpack.c.b16 %v1067, %v1063
      %v1656 = vpack.c.b16 %v1068, %v1064
      %v1657 = vpack.c.b16 %v1069, %v1065
      %v1658 = vpack.c.b16 %v1074, %v1070
      %v1659 = vpack.c.b16 %v1075, %v1071
      %v1660 = vpack.c.b16 %v1076, %v1072
      %v1661 = vpack.c.b16 %v1077, %v1073
      %v1662 = vpack.c.b16 %v1082, %v1078
      %v1663 = vpack.c.b16 %v1083, %v1079
      %v1664 = vpack.c.b16 %v1084, %v1080
      %v1665 = vpack.c.b16 %v1085, %v1081
      %v1666 = vpack.c.b16 %v1090, %v1086
      %v1667 = vpack.c.b16 %v1091, %v1087
      %v1668 = vpack.c.b16 %v1092, %v1088
      %v1669 = vpack.c.b16 %v1093, %v1089
      %v1670 = vpack.c.b16 %v1098, %v1094
      %v1671 = vpack.c.b16 %v1099, %v1095
      %v1672 = vpack.c.b16 %v1100, %v1096
      %v1673 = vpack.c.b16 %v1101, %v1097
      %v1674 = vpack.c.b16 %v1106, %v1102
      %v1675 = vpack.c.b16 %v1107, %v1103
      %v1676 = vpack.c.b16 %v1108, %v1104
      %v1677 = vpack.c.b16 %v1109, %v1105
      %v1678 = vpack.c.b16 %v1114, %v1110
      %v1679 = vpack.c.b16 %v1115, %v1111
      %v1680 = vpack.c.b16 %v1116, %v1112
      %v1681 = vpack.c.b16 %v1117, %v1113
      %v1682 = vpack.c.b16 %v1122, %v1118
      %v1683 = vpack.c.b16 %v1123, %v1119
      %v1684 = vpack.c.b16 %v1124, %v1120
      %v1685 = vpack.c.b16 %v1125, %v1121
      %v1686 = vpack.c.b16 %v1130, %v1126
      %v1687 = vpack.c.b16 %v1131, %v1127
      %v1688 = vpack.c.b16 %v1132, %v1128
      %v1689 = vpack.c.b16 %v1133, %v1129
      %v1690 = vpack.c.b16 %v1138, %v1134
      %v1691 = vpack.c.b16 %v1139, %v1135
      %v1692 = vpack.c.b16 %v1140, %v1136
      %v1693 = vpack.c.b16 %v1141, %v1137
      %v1694 = vpack.c.b16 %v1146, %v1142
      %v1695 = vpack.c.b16 %v1147, %v1143
      %v1696 = vpack.c.b16 %v1148, %v1144
      %v1697 = vpack.c.b16 %v1149, %v1145
      %v1698 = vpack.c.b16 %v1154, %v1150
      %v1699 = vpack.c.b16 %v1155, %v1151
      %v1700 = vpack.c.b16 %v1156, %v1152
      %v1701 = vpack.c.b16 %v1157, %v1153
      %v1702 = vpack.c.b16 %v1162, %v1158
      %v1703 = vpack.c.b16 %v1163, %v1159
      %v1704 = vpack.c.b16 %v1164, %v1160
      %v1705 = vpack.c.b16 %v1165, %v1161
      %v1706 = vpack.c.b16 %v1170, %v1166
      %v1707 = vpack.c.b16 %v1171, %v1167
      %v1708 = vpack.c.b16 %v1172, %v1168
      %v1709 = vpack.c.b16 %v1173, %v1169
      %v1710 = vpack.c.b16 %v1178, %v1174
      %v1711 = vpack.c.b16 %v1179, %v1175
      %v1712 = vpack.c.b16 %v1180, %v1176
      %v1713 = vpack.c.b16 %v1181, %v1177
      %v1714 = vpack.c.b16 %v1186, %v1182
      %v1715 = vpack.c.b16 %v1187, %v1183
      %v1716 = vpack.c.b16 %v1188, %v1184
      %v1717 = vpack.c.b16 %v1189, %v1185
      %v1718 = vpack.c.b16 %v1194, %v1190
      %v1719 = vpack.c.b16 %v1195, %v1191
      %v1720 = vpack.c.b16 %v1196, %v1192
      %v1721 = vpack.c.b16 %v1197, %v1193
      %v1722 = vpack.c.b16 %v1202, %v1198
      %v1723 = vpack.c.b16 %v1203, %v1199
      %v1724 = vpack.c.b16 %v1204, %v1200
      %v1725 = vpack.c.b16 %v1205, %v1201
      %v1726 = vpack.c.b16 %v1210, %v1206
      %v1727 = vpack.c.b16 %v1211, %v1207
      %v1728 = vpack.c.b16 %v1212, %v1208
      %v1729 = vpack.c.b16 %v1213, %v1209
      %v1730 = vpack.c.b16 %v1218, %v1214
      %v1731 = vpack.c.b16 %v1219, %v1215
      %v1732 = vpack.c.b16 %v1220, %v1216
      %v1733 = vpack.c.b16 %v1221, %v1217
      %v1734 = vpack.c.b16 %v1226, %v1222
      %v1735 = vpack.c.b16 %v1227, %v1223
      %v1736 = vpack.c.b16 %v1228, %v1224
      %v1737 = vpack.c.b16 %v1229, %v1225
      %v1738 = vpack.c.b16 %v1234, %v1230
      %v1739 = vpack.c.b16 %v1235, %v1231
      %v1740 = vpack.c.b16 %v1236, %v1232
      %v1741 = vpack.c.b16 %v1237, %v1233
      %v1742 = vpack.c.b16 %v1242, %v1238
      %v1743 = vpack.c.b16 %v1243, %v1239
      %v1744 = vpack.c.b16 %v1244, %v1240
      %v1745 = vpack.c.b16 %v1245, %v1241
      %v1746 = vpack.c.b16 %v1250, %v1246
      %v1747 = vpack.c.b16 %v1251, %v1247
      %v1748 = vpack.c.b16 %v1252, %v1248
      %v1749 = vpack.c.b16 %v1253, %v1249
      %v1750 = vpack.c.b16 %v1258, %v1254
      %v1751 = vpack.c.b16 %v1259, %v1255
      %v1752 = vpack.c.b16 %v1260, %v1256
      %v1753 = vpack.c.b16 %v1261, %v1257
      %v1754 = vpack.c.b16 %v1266, %v1262
      %v1755 = vpack.c.b16 %v1267, %v1263
      %v1756 = vpack.c.b16 %v1268, %v1264
      %v1757 = vpack.c.b16 %v1269, %v1265
      %v1758 = vpack.c.b16 %v1274, %v1270
      %v1759 = vpack.c.b16 %v1275, %v1271
      %v1760 = vpack.c.b16 %v1276, %v1272
      %v1761 = vpack.c.b16 %v1277, %v1273
      %v1762 = vpack.c.b16 %v1282, %v1278
      %v1763 = vpack.c.b16 %v1283, %v1279
      %v1764 = vpack.c.b16 %v1284, %v1280
      %v1765 = vpack.c.b16 %v1285, %v1281
      %v1766 = vpack.c.b16 %v1290, %v1286
      %v1767 = vpack.c.b16 %v1291, %v1287
      %v1768 = vpack.c.b16 %v1292, %v1288
      %v1769 = vpack.c.b16 %v1293, %v1289
      %v1770 = vpack.c.b16 %v1298, %v1294
      %v1771 = vpack.c.b16 %v1299, %v1295
      %v1772 = vpack.c.b16 %v1300, %v1296
      %v1773 = vpack.c.b16 %v1301, %v1297
      %v1774 = vpack.c.b16 %v1306, %v1302
      %v1775 = vpack.c.b16 %v1307, %v1303
      %v1776 = vpack.c.b16 %v1308, %v1304
      %v1777 = vpack.c.b16 %v1309, %v1305
      %v1778 = vpack.c.b16 %v1314, %v1310
      %v1779 = vpack.c.b16 %v1315, %v1311
      %v1780 = vpack.c.b16 %v1316, %v1312
      %v1781 = vpack.c.b16 %v1317, %v1313
      %v1782 = vpack.c.b16 %v1322, %v1318
      %v1783 = vpack.c.b16 %v1323, %v1319
      %v1784 = vpack.c.b16 %v1324, %v1320
      %v1785 = vpack.c.b16 %v1325, %v1321
      %v1786 = vpack.c.b16 %v1330, %v1326
      %v1787 = vpack.c.b16 %v1331, %v1327
      %v1788 = vpack.c.b16 %v1332, %v1328
      %v1789 = vpack.c.b16 %v1333, %v1329
      %v1790 = vpack.c.b16 %v1338, %v1334
      %v1791 = vpack.c.b16 %v1339, %v1335
      %v1792 = vpack.c.b16 %v1340, %v1336
      %v1793 = vpack.c.b16 %v1341, %v1337
      %v1794 = vpack.c.b16 %v1346, %v1342
      %v1795 = vpack.c.b16 %v1347, %v1343
      %v1796 = vpack.c.b16 %v1348, %v1344
      %v1797 = vpack.c.b16 %v1349, %v1345
      %v1798 = vpack.c.b16 %v1354, %v1350
      %v1799 = vpack.c.b16 %v1355, %v1351
      %v1800 = vpack.c.b16 %v1356, %v1352
      %v1801 = vpack.c.b16 %v1357, %v1353
      %v1802 = vpack.c.b16 %v1362, %v1358
      %v1803 = vpack.c.b16 %v1363, %v1359
      %v1804 = vpack.c.b16 %v1364, %v1360
      %v1805 = vpack.c.b16 %v1365, %v1361
      %v1806 = vpack.c.b16 %v1370, %v1366
      %v1807 = vpack.c.b16 %v1371, %v1367
      %v1808 = vpack.c.b16 %v1372, %v1368
      %v1809 = vpack.c.b16 %v1373, %v1369
      %v1810 = vpack.c.b16 %v1378, %v1374
      %v1811 = vpack.c.b16 %v1379, %v1375
      %v1812 = vpack.c.b16 %v1380, %v1376
      %v1813 = vpack.c.b16 %v1381, %v1377
      %v1814 = vpack.c.b16 %v1386, %v1382
      %v1815 = vpack.c.b16 %v1387, %v1383
      %v1816 = vpack.c.b16 %v1388, %v1384
      %v1817 = vpack.c.b16 %v1389, %v1385
      %v1818 = vpack.c.b16 %v1394, %v1390
      %v1819 = vpack.c.b16 %v1395, %v1391
      %v1820 = vpack.c.b16 %v1396, %v1392
      %v1821 = vpack.c.b16 %v1397, %v1393
      %v1822 = vpack.c.b16 %v1402, %v1398
      %v1823 = vpack.c.b16 %v1403, %v1399
      %v1824 = vpack.c.b16 %v1404, %v1400
      %v1825 = vpack.c.b16 %v1405, %v1401
      %v1826 = vpack.c.b16 %v1410, %v1406
      %v1827 = vpack.c.b16 %v1411, %v1407
      %v1828 = vpack.c.b16 %v1412, %v1408
      %v1829 = vpack.c.b16 %v1413, %v1409
      %v1830 = vpack.c.b16 %v1418, %v1414
      %v1831 = vpack.c.b16 %v1419, %v1415
      %v1832 = vpack.c.b16 %v1420, %v1416
      %v1833 = vpack.c.b16 %v1421, %v1417
      %v1834 = vpack.c.b16 %v1426, %v1422
      %v1835 = vpack.c.b16 %v1427, %v1423
      %v1836 = vpack.c.b16 %v1428, %v1424
      %v1837 = vpack.c.b16 %v1429, %v1425
      %v1838 = vpack.c.b16 %v1434, %v1430
      %v1839 = vpack.c.b16 %v1435, %v1431
      %v1840 = vpack.c.b16 %v1436, %v1432
      %v1841 = vpack.c.b16 %v1437, %v1433
      %v1842 = vpack.c.b16 %v1442, %v1438
      %v1843 = vpack.c.b16 %v1443, %v1439
      %v1844 = vpack.c.b16 %v1444, %v1440
      %v1845 = vpack.c.b16 %v1445, %v1441
      %v1846 = vpack.c.b16 %v1450, %v1446
      %v1847 = vpack.c.b16 %v1451, %v1447
      %v1848 = vpack.c.b16 %v1452, %v1448
      %v1849 = vpack.c.b16 %v1453, %v1449
      %v1850 = vpack.c.b16 %v1458, %v1454
      %v1851 = vpack.c.b16 %v1459, %v1455
      %v1852 = vpack.c.b16 %v1460, %v1456
      %v1853 = vpack.c.b16 %v1461, %v1457
      %v1854 = vpack.c.b16 %v1466, %v1462
      %v1855 = vpack.c.b16 %v1467, %v1463
      %v1856 = vpack.c.b16 %v1468, %v1464
      %v1857 = vpack.c.b16 %v1469, %v1465
      %v1858 = vpack.c.b16 %v1474, %v1470
      %v1859 = vpack.c.b16 %v1475, %v1471
      %v1860 = vpack.c.b16 %v1476, %v1472
      %v1861 = vpack.c.b16 %v1477, %v1473
      %v1862 = vpack.c.b16 %v1482, %v1478
      %v1863 = vpack.c.b16 %v1483, %v1479
      %v1864 = vpack.c.b16 %v1484, %v1480
      %v1865 = vpack.c.b16 %v1485, %v1481
      %v1866 = vpack.c.b16 %v1490, %v1486
      %v1867 = vpack.c.b16 %v1491, %v1487
      %v1868 = vpack.c.b16 %v1492, %v1488
      %v1869 = vpack.c.b16 %v1493, %v1489
      %v1870 = vpack.c.b16 %v1498, %v1494
      %v1871 = vpack.c.b16 %v1499, %v1495
      %v1872 = vpack.c.b16 %v1500, %v1496
      %v1873 = vpack.c.b16 %v1501, %v1497
      %v1874 = vpack.c.b16 %v1506, %v1502
      %v1875 = vpack.c.b16 %v1507, %v1503
      %v1876 = vpack.c.b16 %v1508, %v1504
      %v1877 = vpack.c.b16 %v1509, %v1505
      %v1878 = vpack.c.b16 %v1514, %v1510
      %v1879 = vpack.c.b16 %v1515, %v1511
      %v1880 = vpack.c.b16 %v1516, %v1512
      %v1881 = vpack.c.b16 %v1517, %v1513
      %v1882 = vpack.c.b16 %v1522, %v1518
      %v1883 = vpack.c.b16 %v1523, %v1519
      %v1884 = vpack.c.b16 %v1524, %v1520
      %v1885 = vpack.c.b16 %v1525, %v1521
      %v1886 = vpack.c.b16 %v1530, %v1526
      %v1887 = vpack.c.b16 %v1531, %v1527
      %v1888 = vpack.c.b16 %v1532, %v1528
      %v1889 = vpack.c.b16 %v1533, %v1529
      %v1890 = vpack.c.b16 %v1538, %v1534
      %v1891 = vpack.c.b16 %v1539, %v1535
      %v1892 = vpack.c.b16 %v1540, %v1536
      %v1893 = vpack.c.b16 %v1541, %v1537
      %v1894 = vpack.c.b16 %v1546, %v1542
      %v1895 = vpack.c.b16 %v1547, %v1543
      %v1896 = vpack.c.b16 %v1548, %v1544
      %v1897 = vpack.c.b16 %v1549, %v1545
      %v1898 = vpack.c.b16 %v1554, %v1550
      %v1899 = vpack.c.b16 %v1555, %v1551
      %v1900 = vpack.c.b16 %v1556, %v1552
      %v1901 = vpack.c.b16 %v1557, %v1553
      %v1902 = vpack.c.b16 %v1562, %v1558
      %v1903 = vpack.c.b16 %v1563, %v1559
      %v1904 = vpack.c.b16 %v1564, %v1560
      %v1905 = vpack.c.b16 %v1565, %v1561
      %v1906 = vpack.c.b16 %v1570, %v1566
      %v1907 = vpack.c.b16 %v1571, %v1567
      %v1908 = vpack.c.b16 %v1572, %v1568
      %v1909 = vpack.c.b16 %v1573, %v1569
      %v1910 = vpack.c.b16 %v1578, %v1574
      %v1911 = vpack.c.b16 %v1579, %v1575
      %v1912 = vpack.c.b16 %v1580, %v1576
      %v1913 = vpack.c.b16 %v1581, %v1577
      %v1914 = vpack.c.b16 %v1586, %v1582
      %v1915 = vpack.c.b16 %v1587, %v1583
      %v1916 = vpack.c.b16 %v1588, %v1584
      %v1917 = vpack.c.b16 %v1589, %v1585
      %v1918 = vpack.c.b16 %v1594, %v1590
      %v1919 = vpack.c.b16 %v1595, %v1591
      %v1920 = vpack.c.b16 %v1596, %v1592
      %v1921 = vpack.c.b16 %v1597, %v1593
      %v1922 = vpack.c.b16 %v1602, %v1598
      %v1923 = vpack.c.b16 %v1603, %v1599
      %v1924 = vpack.c.b16 %v1604, %v1600
      %v1925 = vpack.c.b16 %v1605, %v1601
      %2246 = vmatprep.subr.bf16.mxu0 %v1635
      %2247 = vmatpush1.bf16.msra.mxu0 %v1634
      %2248 = vmatprep.subr.bf16.mxu0 %v1631
      %2249 = vmatpush1.bf16.msra.mxu0 %v1630
      %2250 = vmatprep.subr.bf16.mxu0 %v1627
      %2251 = vmatpush1.bf16.msra.mxu0 %v1626
      %2252 = vmatprep.subr.bf16.mxu0 %v1623
      %2253 = vmatpush1.bf16.msra.mxu0 %v1622
      %2254 = vmatprep.subr.bf16.mxu0 %v1619
      %2255 = vmatpush1.bf16.msra.mxu0 %v1618
      %2256 = vmatprep.subr.bf16.mxu0 %v1615
      %2257 = vmatpush1.bf16.msra.mxu0 %v1614
      %2258 = vmatprep.subr.bf16.mxu0 %v1611
      %2259 = vmatpush1.bf16.msra.mxu0 %v1610
      %2260 = vmatprep.subr.bf16.mxu0 %v1607
      %2261 = vmatpush1.bf16.msra.mxu0 %v1606
      %2262 = vmatprep.subr.bf16.mxu0 %v1667
      %2263 = vmatpush2.bf16.msra.mxu0 %v1666
      %2264 = vmatprep.subr.bf16.mxu0 %v1663
      %2265 = vmatpush2.bf16.msra.mxu0 %v1662
      %2266 = vmatprep.subr.bf16.mxu0 %v1659
      %2267 = vmatpush2.bf16.msra.mxu0 %v1658
      %2268 = vmatprep.subr.bf16.mxu0 %v1655
      %2269 = vmatpush2.bf16.msra.mxu0 %v1654
      %2270 = vmatprep.subr.bf16.mxu0 %v1651
      %2271 = vmatpush2.bf16.msra.mxu0 %v1650
      %2272 = vmatprep.subr.bf16.mxu0 %v1647
      %2273 = vmatpush2.bf16.msra.mxu0 %v1646
      %2274 = vmatprep.subr.bf16.mxu0 %v1643
      %2275 = vmatpush2.bf16.msra.mxu0 %v1642
      %2276 = vmatprep.subr.bf16.mxu0 %v1639
      %2277 = vmatpush2.bf16.msra.mxu0 %v1638
      %2278 = vmatprep.mubr.bf16.mxu0 %v602
      %2279 = vmatmul.mubr.bf16.gmra.mxu0 %v588
      %v2280 = vpop.f32.mrf.mxu0
      %v2281 = vadd.f32 0.0, %v2280
      %v2282 = vpop.f32.mrf.mxu0
      %v2283 = vadd.f32 0.0, %v2282
      %v2284 = vpop.f32.mrf.mxu0
      %v2285 = vpop.f32.mrf.mxu0
      %2286 = vdwg.mxu0
      %2287 = vmatprep.subr.bf16.mxu0 %v1699
      %2288 = vmatpush1.bf16.msra.mxu0 %v1698
      %2289 = vmatprep.subr.bf16.mxu0 %v1695
      %2290 = vmatpush1.bf16.msra.mxu0 %v1694
      %2291 = vmatprep.subr.bf16.mxu0 %v1691
      %2292 = vmatpush1.bf16.msra.mxu0 %v1690
      %2293 = vmatprep.subr.bf16.mxu0 %v1687
      %2294 = vmatpush1.bf16.msra.mxu0 %v1686
      %2295 = vmatprep.subr.bf16.mxu0 %v1683
      %2296 = vmatpush1.bf16.msra.mxu0 %v1682
      %2297 = vmatprep.subr.bf16.mxu0 %v1679
      %2298 = vmatpush1.bf16.msra.mxu0 %v1678
      %2299 = vmatprep.subr.bf16.mxu0 %v1675
      %2300 = vmatpush1.bf16.msra.mxu0 %v1674
      %2301 = vmatprep.subr.bf16.mxu0 %v1671
      %2302 = vmatpush1.bf16.msra.mxu0 %v1670
      %2303 = vmatprep.subr.bf16.mxu0 %v1731
      %2304 = vmatpush2.bf16.msra.mxu0 %v1730
      %2305 = vmatprep.subr.bf16.mxu0 %v1727
      %2306 = vmatpush2.bf16.msra.mxu0 %v1726
      %2307 = vmatprep.subr.bf16.mxu0 %v1723
      %2308 = vmatpush2.bf16.msra.mxu0 %v1722
      %2309 = vmatprep.subr.bf16.mxu0 %v1719
      %2310 = vmatpush2.bf16.msra.mxu0 %v1718
      %2311 = vmatprep.subr.bf16.mxu0 %v1715
      %2312 = vmatpush2.bf16.msra.mxu0 %v1714
      %2313 = vmatprep.subr.bf16.mxu0 %v1711
      %2314 = vmatpush2.bf16.msra.mxu0 %v1710
      %2315 = vmatprep.subr.bf16.mxu0 %v1707
      %2316 = vmatpush2.bf16.msra.mxu0 %v1706
      %2317 = vmatprep.subr.bf16.mxu0 %v1703
      %2318 = vmatpush2.bf16.msra.mxu0 %v1702
      %2319 = vmatprep.mubr.bf16.mxu0 %v612
      %2320 = vmatmul.mubr.bf16.gmra.mxu0 %v610
      %v2321 = vpop.f32.mrf.mxu0
      %v2322 = vadd.f32 %v2281, %v2321
      %v2323 = vpop.f32.mrf.mxu0
      %v2324 = vadd.f32 %v2283, %v2323
      %v2325 = vpop.f32.mrf.mxu0
      %v2326 = vpop.f32.mrf.mxu0
      %2327 = vdwg.mxu0
      %2328 = vmatprep.subr.bf16.mxu0 %v1763
      %2329 = vmatpush1.bf16.msra.mxu0 %v1762
      %2330 = vmatprep.subr.bf16.mxu0 %v1759
      %2331 = vmatpush1.bf16.msra.mxu0 %v1758
      %2332 = vmatprep.subr.bf16.mxu0 %v1755
      %2333 = vmatpush1.bf16.msra.mxu0 %v1754
      %2334 = vmatprep.subr.bf16.mxu0 %v1751
      %2335 = vmatpush1.bf16.msra.mxu0 %v1750
      %2336 = vmatprep.subr.bf16.mxu0 %v1747
      %2337 = vmatpush1.bf16.msra.mxu0 %v1746
      %2338 = vmatprep.subr.bf16.mxu0 %v1743
      %2339 = vmatpush1.bf16.msra.mxu0 %v1742
      %2340 = vmatprep.subr.bf16.mxu0 %v1739
      %2341 = vmatpush1.bf16.msra.mxu0 %v1738
      %2342 = vmatprep.subr.bf16.mxu0 %v1735
      %2343 = vmatpush1.bf16.msra.mxu0 %v1734
      %2344 = vmatprep.subr.bf16.mxu0 %v1795
      %2345 = vmatpush2.bf16.msra.mxu0 %v1794
      %2346 = vmatprep.subr.bf16.mxu0 %v1791
      %2347 = vmatpush2.bf16.msra.mxu0 %v1790
      %2348 = vmatprep.subr.bf16.mxu0 %v1787
      %2349 = vmatpush2.bf16.msra.mxu0 %v1786
      %2350 = vmatprep.subr.bf16.mxu0 %v1783
      %2351 = vmatpush2.bf16.msra.mxu0 %v1782
      %2352 = vmatprep.subr.bf16.mxu0 %v1779
      %2353 = vmatpush2.bf16.msra.mxu0 %v1778
      %2354 = vmatprep.subr.bf16.mxu0 %v1775
      %2355 = vmatpush2.bf16.msra.mxu0 %v1774
      %2356 = vmatprep.subr.bf16.mxu0 %v1771
      %2357 = vmatpush2.bf16.msra.mxu0 %v1770
      %2358 = vmatprep.subr.bf16.mxu0 %v1767
      %2359 = vmatpush2.bf16.msra.mxu0 %v1766
      %2360 = vmatprep.mubr.bf16.mxu0 %v609
      %2361 = vmatmul.mubr.bf16.gmra.mxu0 %v595
      %v2362 = vpop.f32.mrf.mxu0
      %v2363 = vadd.f32 %v2322, %v2362
      %v2364 = vpop.f32.mrf.mxu0
      %v2365 = vadd.f32 %v2324, %v2364
      %v2366 = vpop.f32.mrf.mxu0
      %v2367 = vpop.f32.mrf.mxu0
      %2368 = vdwg.mxu0
      %2369 = vmatprep.subr.bf16.mxu0 %v1827
      %2370 = vmatpush1.bf16.msra.mxu0 %v1826
      %2371 = vmatprep.subr.bf16.mxu0 %v1823
      %2372 = vmatpush1.bf16.msra.mxu0 %v1822
      %2373 = vmatprep.subr.bf16.mxu0 %v1819
      %2374 = vmatpush1.bf16.msra.mxu0 %v1818
      %2375 = vmatprep.subr.bf16.mxu0 %v1815
      %2376 = vmatpush1.bf16.msra.mxu0 %v1814
      %2377 = vmatprep.subr.bf16.mxu0 %v1811
      %2378 = vmatpush1.bf16.msra.mxu0 %v1810
      %2379 = vmatprep.subr.bf16.mxu0 %v1807
      %2380 = vmatpush1.bf16.msra.mxu0 %v1806
      %2381 = vmatprep.subr.bf16.mxu0 %v1803
      %2382 = vmatpush1.bf16.msra.mxu0 %v1802
      %2383 = vmatprep.subr.bf16.mxu0 %v1799
      %2384 = vmatpush1.bf16.msra.mxu0 %v1798
      %2385 = vmatprep.subr.bf16.mxu0 %v1859
      %2386 = vmatpush2.bf16.msra.mxu0 %v1858
      %2387 = vmatprep.subr.bf16.mxu0 %v1855
      %2388 = vmatpush2.bf16.msra.mxu0 %v1854
      %2389 = vmatprep.subr.bf16.mxu0 %v1851
      %2390 = vmatpush2.bf16.msra.mxu0 %v1850
      %2391 = vmatprep.subr.bf16.mxu0 %v1847
      %2392 = vmatpush2.bf16.msra.mxu0 %v1846
      %2393 = vmatprep.subr.bf16.mxu0 %v1843
      %2394 = vmatpush2.bf16.msra.mxu0 %v1842
      %2395 = vmatprep.subr.bf16.mxu0 %v1839
      %2396 = vmatpush2.bf16.msra.mxu0 %v1838
      %2397 = vmatprep.subr.bf16.mxu0 %v1835
      %2398 = vmatpush2.bf16.msra.mxu0 %v1834
      %2399 = vmatprep.subr.bf16.mxu0 %v1831
      %2400 = vmatpush2.bf16.msra.mxu0 %v1830
      %2401 = vmatprep.mubr.bf16.mxu0 %v613
      %2402 = vmatmul.mubr.bf16.gmra.mxu0 %v611
      %v2403 = vpop.f32.mrf.mxu0
      %v2404 = vadd.f32 %v2363, %v2403
      %v2405 = vpop.f32.mrf.mxu0
      %v2406 = vadd.f32 %v2365, %v2405
      %v2407 = vpop.f32.mrf.mxu0
      %v2408 = vpop.f32.mrf.mxu0
      %2409 = vdwg.mxu0
      %2410 = vmatprep.subr.bf16.mxu0 %v1891
      %2411 = vmatpush1.bf16.msra.mxu0 %v1890
      %2412 = vmatprep.subr.bf16.mxu0 %v1887
      %2413 = vmatpush1.bf16.msra.mxu0 %v1886
      %2414 = vmatprep.subr.bf16.mxu0 %v1883
      %2415 = vmatpush1.bf16.msra.mxu0 %v1882
      %2416 = vmatprep.subr.bf16.mxu0 %v1879
      %2417 = vmatpush1.bf16.msra.mxu0 %v1878
      %2418 = vmatprep.subr.bf16.mxu0 %v1875
      %2419 = vmatpush1.bf16.msra.mxu0 %v1874
      %2420 = vmatprep.subr.bf16.mxu0 %v1871
      %2421 = vmatpush1.bf16.msra.mxu0 %v1870
      %2422 = vmatprep.subr.bf16.mxu0 %v1867
      %2423 = vmatpush1.bf16.msra.mxu0 %v1866
      %2424 = vmatprep.subr.bf16.mxu0 %v1863
      %2425 = vmatpush1.bf16.msra.mxu0 %v1862
      %2426 = vmatprep.subr.bf16.mxu0 %v1923
      %2427 = vmatpush2.bf16.msra.mxu0 %v1922
      %2428 = vmatprep.subr.bf16.mxu0 %v1919
      %2429 = vmatpush2.bf16.msra.mxu0 %v1918
      %2430 = vmatprep.subr.bf16.mxu0 %v1915
      %2431 = vmatpush2.bf16.msra.mxu0 %v1914
      %2432 = vmatprep.subr.bf16.mxu0 %v1911
      %2433 = vmatpush2.bf16.msra.mxu0 %v1910
      %2434 = vmatprep.subr.bf16.mxu0 %v1907
      %2435 = vmatpush2.bf16.msra.mxu0 %v1906
      %2436 = vmatprep.subr.bf16.mxu0 %v1903
      %2437 = vmatpush2.bf16.msra.mxu0 %v1902
      %2438 = vmatprep.subr.bf16.mxu0 %v1899
      %2439 = vmatpush2.bf16.msra.mxu0 %v1898
      %2440 = vmatprep.subr.bf16.mxu0 %v1895
      %2441 = vmatpush2.bf16.msra.mxu0 %v1894
      %2442 = vmatprep.mubr.bf16.mxu0 %v635
      %2443 = vmatmul.mubr.bf16.gmra.mxu0 %v628
      %v2444 = vpop.f32.mrf.mxu0
      %v2445 = vadd.f32 %v2404, %v2444
      %v2446 = vpop.f32.mrf.mxu0
      %v2447 = vadd.f32 %v2406, %v2446
      %v2448 = vpop.f32.mrf.mxu0
      %v2449 = vpop.f32.mrf.mxu0
      %2450 = vdwg.mxu0
      %2451 = vmatprep.subr.bf16.mxu0 %v1637
      %2452 = vmatpush1.bf16.msra.mxu0 %v1636
      %2453 = vmatprep.subr.bf16.mxu0 %v1633
      %2454 = vmatpush1.bf16.msra.mxu0 %v1632
      %2455 = vmatprep.subr.bf16.mxu0 %v1629
      %2456 = vmatpush1.bf16.msra.mxu0 %v1628
      %2457 = vmatprep.subr.bf16.mxu0 %v1625
      %2458 = vmatpush1.bf16.msra.mxu0 %v1624
      %2459 = vmatprep.subr.bf16.mxu0 %v1621
      %2460 = vmatpush1.bf16.msra.mxu0 %v1620
      %2461 = vmatprep.subr.bf16.mxu0 %v1617
      %2462 = vmatpush1.bf16.msra.mxu0 %v1616
      %2463 = vmatprep.subr.bf16.mxu0 %v1613
      %2464 = vmatpush1.bf16.msra.mxu0 %v1612
      %2465 = vmatprep.subr.bf16.mxu0 %v1609
      %2466 = vmatpush1.bf16.msra.mxu0 %v1608
      %2467 = vmatprep.subr.bf16.mxu0 %v1669
      %2468 = vmatpush2.bf16.msra.mxu0 %v1668
      %2469 = vmatprep.subr.bf16.mxu0 %v1665
      %2470 = vmatpush2.bf16.msra.mxu0 %v1664
      %2471 = vmatprep.subr.bf16.mxu0 %v1661
      %2472 = vmatpush2.bf16.msra.mxu0 %v1660
      %2473 = vmatprep.subr.bf16.mxu0 %v1657
      %2474 = vmatpush2.bf16.msra.mxu0 %v1656
      %2475 = vmatprep.subr.bf16.mxu0 %v1653
      %2476 = vmatpush2.bf16.msra.mxu0 %v1652
      %2477 = vmatprep.subr.bf16.mxu0 %v1649
      %2478 = vmatpush2.bf16.msra.mxu0 %v1648
      %2479 = vmatprep.subr.bf16.mxu0 %v1645
      %2480 = vmatpush2.bf16.msra.mxu0 %v1644
      %2481 = vmatprep.subr.bf16.mxu0 %v1641
      %2482 = vmatpush2.bf16.msra.mxu0 %v1640
      %2483 = vmatprep.mubr.bf16.mxu0 %v602
      %2484 = vmatmul.mubr.bf16.gmra.mxu0 %v588
      %v2485 = vpop.f32.mrf.mxu0
      %v2486 = vadd.f32 0.0, %v2485
      %v2487 = vpop.f32.mrf.mxu0
      %v2488 = vadd.f32 0.0, %v2487
      %v2489 = vpop.f32.mrf.mxu0
      %v2490 = vpop.f32.mrf.mxu0
      %2491 = vdwg.mxu0
      %2492 = vmatprep.subr.bf16.mxu0 %v1701
      %2493 = vmatpush1.bf16.msra.mxu0 %v1700
      %2494 = vmatprep.subr.bf16.mxu0 %v1697
      %2495 = vmatpush1.bf16.msra.mxu0 %v1696
      %2496 = vmatprep.subr.bf16.mxu0 %v1693
      %2497 = vmatpush1.bf16.msra.mxu0 %v1692
      %2498 = vmatprep.subr.bf16.mxu0 %v1689
      %2499 = vmatpush1.bf16.msra.mxu0 %v1688
      %2500 = vmatprep.subr.bf16.mxu0 %v1685
      %2501 = vmatpush1.bf16.msra.mxu0 %v1684
      %2502 = vmatprep.subr.bf16.mxu0 %v1681
      %2503 = vmatpush1.bf16.msra.mxu0 %v1680
      %2504 = vmatprep.subr.bf16.mxu0 %v1677
      %2505 = vmatpush1.bf16.msra.mxu0 %v1676
      %2506 = vmatprep.subr.bf16.mxu0 %v1673
      %2507 = vmatpush1.bf16.msra.mxu0 %v1672
      %2508 = vmatprep.subr.bf16.mxu0 %v1733
      %2509 = vmatpush2.bf16.msra.mxu0 %v1732
      %2510 = vmatprep.subr.bf16.mxu0 %v1729
      %2511 = vmatpush2.bf16.msra.mxu0 %v1728
      %2512 = vmatprep.subr.bf16.mxu0 %v1725
      %2513 = vmatpush2.bf16.msra.mxu0 %v1724
      %2514 = vmatprep.subr.bf16.mxu0 %v1721
      %2515 = vmatpush2.bf16.msra.mxu0 %v1720
      %2516 = vmatprep.subr.bf16.mxu0 %v1717
      %2517 = vmatpush2.bf16.msra.mxu0 %v1716
      %2518 = vmatprep.subr.bf16.mxu0 %v1713
      %2519 = vmatpush2.bf16.msra.mxu0 %v1712
      %2520 = vmatprep.subr.bf16.mxu0 %v1709
      %2521 = vmatpush2.bf16.msra.mxu0 %v1708
      %2522 = vmatprep.subr.bf16.mxu0 %v1705
      %2523 = vmatpush2.bf16.msra.mxu0 %v1704
      %2524 = vmatprep.mubr.bf16.mxu0 %v612
      %2525 = vmatmul.mubr.bf16.gmra.mxu0 %v610
      %v2526 = vpop.f32.mrf.mxu0
      %v2527 = vadd.f32 %v2486, %v2526
      %v2528 = vpop.f32.mrf.mxu0
      %v2529 = vadd.f32 %v2488, %v2528
      %v2530 = vpop.f32.mrf.mxu0
      %v2531 = vpop.f32.mrf.mxu0
      %2532 = vdwg.mxu0
      %2533 = vmatprep.subr.bf16.mxu0 %v1765
      %2534 = vmatpush1.bf16.msra.mxu0 %v1764
      %2535 = vmatprep.subr.bf16.mxu0 %v1761
      %2536 = vmatpush1.bf16.msra.mxu0 %v1760
      %2537 = vmatprep.subr.bf16.mxu0 %v1757
      %2538 = vmatpush1.bf16.msra.mxu0 %v1756
      %2539 = vmatprep.subr.bf16.mxu0 %v1753
      %2540 = vmatpush1.bf16.msra.mxu0 %v1752
      %2541 = vmatprep.subr.bf16.mxu0 %v1749
      %2542 = vmatpush1.bf16.msra.mxu0 %v1748
      %2543 = vmatprep.subr.bf16.mxu0 %v1745
      %2544 = vmatpush1.bf16.msra.mxu0 %v1744
      %2545 = vmatprep.subr.bf16.mxu0 %v1741
      %2546 = vmatpush1.bf16.msra.mxu0 %v1740
      %2547 = vmatprep.subr.bf16.mxu0 %v1737
      %2548 = vmatpush1.bf16.msra.mxu0 %v1736
      %2549 = vmatprep.subr.bf16.mxu0 %v1797
      %2550 = vmatpush2.bf16.msra.mxu0 %v1796
      %2551 = vmatprep.subr.bf16.mxu0 %v1793
      %2552 = vmatpush2.bf16.msra.mxu0 %v1792
      %2553 = vmatprep.subr.bf16.mxu0 %v1789
      %2554 = vmatpush2.bf16.msra.mxu0 %v1788
      %2555 = vmatprep.subr.bf16.mxu0 %v1785
      %2556 = vmatpush2.bf16.msra.mxu0 %v1784
      %2557 = vmatprep.subr.bf16.mxu0 %v1781
      %2558 = vmatpush2.bf16.msra.mxu0 %v1780
      %2559 = vmatprep.subr.bf16.mxu0 %v1777
      %2560 = vmatpush2.bf16.msra.mxu0 %v1776
      %2561 = vmatprep.subr.bf16.mxu0 %v1773
      %2562 = vmatpush2.bf16.msra.mxu0 %v1772
      %2563 = vmatprep.subr.bf16.mxu0 %v1769
      %2564 = vmatpush2.bf16.msra.mxu0 %v1768
      %2565 = vmatprep.mubr.bf16.mxu0 %v609
      %2566 = vmatmul.mubr.bf16.gmra.mxu0 %v595
      %v2567 = vpop.f32.mrf.mxu0
      %v2568 = vadd.f32 %v2527, %v2567
      %v2569 = vpop.f32.mrf.mxu0
      %v2570 = vadd.f32 %v2529, %v2569
      %v2571 = vpop.f32.mrf.mxu0
      %v2572 = vpop.f32.mrf.mxu0
      %2573 = vdwg.mxu0
      %2574 = vmatprep.subr.bf16.mxu0 %v1829
      %2575 = vmatpush1.bf16.msra.mxu0 %v1828
      %2576 = vmatprep.subr.bf16.mxu0 %v1825
      %2577 = vmatpush1.bf16.msra.mxu0 %v1824
      %2578 = vmatprep.subr.bf16.mxu0 %v1821
      %2579 = vmatpush1.bf16.msra.mxu0 %v1820
      %2580 = vmatprep.subr.bf16.mxu0 %v1817
      %2581 = vmatpush1.bf16.msra.mxu0 %v1816
      %2582 = vmatprep.subr.bf16.mxu0 %v1813
      %2583 = vmatpush1.bf16.msra.mxu0 %v1812
      %2584 = vmatprep.subr.bf16.mxu0 %v1809
      %2585 = vmatpush1.bf16.msra.mxu0 %v1808
      %2586 = vmatprep.subr.bf16.mxu0 %v1805
      %2587 = vmatpush1.bf16.msra.mxu0 %v1804
      %2588 = vmatprep.subr.bf16.mxu0 %v1801
      %2589 = vmatpush1.bf16.msra.mxu0 %v1800
      %2590 = vmatprep.subr.bf16.mxu0 %v1861
      %2591 = vmatpush2.bf16.msra.mxu0 %v1860
      %2592 = vmatprep.subr.bf16.mxu0 %v1857
      %2593 = vmatpush2.bf16.msra.mxu0 %v1856
      %2594 = vmatprep.subr.bf16.mxu0 %v1853
      %2595 = vmatpush2.bf16.msra.mxu0 %v1852
      %2596 = vmatprep.subr.bf16.mxu0 %v1849
      %2597 = vmatpush2.bf16.msra.mxu0 %v1848
      %2598 = vmatprep.subr.bf16.mxu0 %v1845
      %2599 = vmatpush2.bf16.msra.mxu0 %v1844
      %2600 = vmatprep.subr.bf16.mxu0 %v1841
      %2601 = vmatpush2.bf16.msra.mxu0 %v1840
      %2602 = vmatprep.subr.bf16.mxu0 %v1837
      %2603 = vmatpush2.bf16.msra.mxu0 %v1836
      %2604 = vmatprep.subr.bf16.mxu0 %v1833
      %2605 = vmatpush2.bf16.msra.mxu0 %v1832
      %2606 = vmatprep.mubr.bf16.mxu0 %v613
      %2607 = vmatmul.mubr.bf16.gmra.mxu0 %v611
      %v2608 = vpop.f32.mrf.mxu0
      %v2609 = vadd.f32 %v2568, %v2608
      %v2610 = vpop.f32.mrf.mxu0
      %v2611 = vadd.f32 %v2570, %v2610
      %v2612 = vpop.f32.mrf.mxu0
      %v2613 = vpop.f32.mrf.mxu0
      %2614 = vdwg.mxu0
      %2615 = vmatprep.subr.bf16.mxu0 %v1893
      %2616 = vmatpush1.bf16.msra.mxu0 %v1892
      %2617 = vmatprep.subr.bf16.mxu0 %v1889
      %2618 = vmatpush1.bf16.msra.mxu0 %v1888
      %2619 = vmatprep.subr.bf16.mxu0 %v1885
      %2620 = vmatpush1.bf16.msra.mxu0 %v1884
      %2621 = vmatprep.subr.bf16.mxu0 %v1881
      %2622 = vmatpush1.bf16.msra.mxu0 %v1880
      %2623 = vmatprep.subr.bf16.mxu0 %v1877
      %2624 = vmatpush1.bf16.msra.mxu0 %v1876
      %2625 = vmatprep.subr.bf16.mxu0 %v1873
      %2626 = vmatpush1.bf16.msra.mxu0 %v1872
      %2627 = vmatprep.subr.bf16.mxu0 %v1869
      %2628 = vmatpush1.bf16.msra.mxu0 %v1868
      %2629 = vmatprep.subr.bf16.mxu0 %v1865
      %2630 = vmatpush1.bf16.msra.mxu0 %v1864
      %2631 = vmatprep.subr.bf16.mxu0 %v1925
      %2632 = vmatpush2.bf16.msra.mxu0 %v1924
      %2633 = vmatprep.subr.bf16.mxu0 %v1921
      %2634 = vmatpush2.bf16.msra.mxu0 %v1920
      %2635 = vmatprep.subr.bf16.mxu0 %v1917
      %2636 = vmatpush2.bf16.msra.mxu0 %v1916
      %2637 = vmatprep.subr.bf16.mxu0 %v1913
      %2638 = vmatpush2.bf16.msra.mxu0 %v1912
      %2639 = vmatprep.subr.bf16.mxu0 %v1909
      %2640 = vmatpush2.bf16.msra.mxu0 %v1908
      %2641 = vmatprep.subr.bf16.mxu0 %v1905
      %2642 = vmatpush2.bf16.msra.mxu0 %v1904
      %2643 = vmatprep.subr.bf16.mxu0 %v1901
      %2644 = vmatpush2.bf16.msra.mxu0 %v1900
      %2645 = vmatprep.subr.bf16.mxu0 %v1897
      %2646 = vmatpush2.bf16.msra.mxu0 %v1896
      %2647 = vmatprep.mubr.bf16.mxu0 %v635
      %2648 = vmatmul.mubr.bf16.gmra.mxu0 %v628
      %v2649 = vpop.f32.mrf.mxu0
      %v2650 = vadd.f32 %v2609, %v2649
      %v2651 = vpop.f32.mrf.mxu0
      %v2652 = vadd.f32 %v2611, %v2651
      %v2653 = vpop.f32.mrf.mxu0
      %v2654 = vpop.f32.mrf.mxu0
      %2655 = vdwg.mxu0
      %v2660 = vcombine.low %v2445, %v2447
      %v2661 = vcombine.low %v2650, %v2652
      %v2663 = vunpack.c.l.s4 1983009808
      %v2664 = vunpack.c.0.s8 %v2663
      %v2665 = vlaneseq
      %v2666 = vshrl.u32 %v2665, 7
      %v2667 = vsub.s32 %v2664, %v2666
      %v2668 = vrot.slane %v2660, %v2667
      %v2670 = vunpack.c.l.s4 1983009808
      %v2671 = vunpack.c.0.s8 %v2670
      %v2672 = vlaneseq
      %v2673 = vshrl.u32 %v2672, 7
      %v2674 = vsub.s32 %v2671, %v2673
      %v2675 = vrot.slane %v2661, %v2674
      %v2676 = vcombine.low %v2668, %v2675
      %v2678 = vadd.f32 %v240, %v2676
      %2679 = vst [vmem:[#allocation2] sm:$0xff] %v2678
      %p2680 = scmp.eq.s32.totalorder %s16, 4
      // Predicated region
      $region45: #{_ppo_forward.7} parent=39 // pred_check
        %p2681 = pneg %p2680
      $region46: #{_ppo_forward.7} parent=39 // pred_check_branch
        %2683 = sbr.rel (%p2681) target = $region48
      $region47: #{_ppo_forward.7} parent=39 // pred_region
        %v2684 = vld [vmem:[#allocation2] sm:$0xff]
        %v2685 = vld [vmem:[%s2] sm:$0xf]
        %v2687 = vlaneseq
        %v2688 = vshrl.u32 %v2687, 7
        %v2689 = vsub.s32 0, %v2688
        %v2690 = vrot.slane %v2685, %v2689
        %v2691 = vlaneseq
        %v2692 = vshrl.u32 %v2691, 7
        %v2693 = vsub.s32 1, %v2692
        %v2694 = vrot.slane %v2685, %v2693
        %v2695 = vlaneseq
        %v2696 = vshrl.u32 %v2695, 7
        %v2697 = vsub.s32 2, %v2696
        %v2698 = vrot.slane %v2685, %v2697
        %v2699 = vlaneseq
        %v2700 = vshrl.u32 %v2699, 7
        %v2701 = vsub.s32 3, %v2700
        %v2702 = vrot.slane %v2685, %v2701
        %v2703 = vcombine.low %v2690, %v2694
        %v2704 = vcombine.low %v2698, %v2702
        %v2706 = vunpack.c.l.s4 1983009808
        %v2707 = vunpack.c.0.s8 %v2706
        %v2708 = vlaneseq
        %v2709 = vshrl.u32 %v2708, 7
        %v2710 = vsub.s32 %v2707, %v2709
        %v2711 = vrot.slane %v2703, %v2710
        %v2713 = vunpack.c.l.s4 1983009808
        %v2714 = vunpack.c.0.s8 %v2713
        %v2715 = vlaneseq
        %v2716 = vshrl.u32 %v2715, 7
        %v2717 = vsub.s32 %v2714, %v2716
        %v2718 = vrot.slane %v2704, %v2717
        %v2719 = vcombine.low %v2711, %v2718
        %v2721 = vadd.f32 %v2684, %v2719
        %v2722 = vmax.f32 %v2721, 0.0
        %v2724 = vcombine.high %v2722, %v2722
        %v2726 = vunpack.c.l.s4 1983009808
        %v2727 = vunpack.c.0.s8 %v2726
        %v2728 = vlaneseq
        %v2729 = vshrl.u32 %v2728, 7
        %v2730 = vsub.s32 %v2727, %v2729
        %v2731 = vrot.slane %v2722, %v2730
        %v2733 = vunpack.c.l.s4 1983009808
        %v2734 = vunpack.c.0.s8 %v2733
        %v2735 = vlaneseq
        %v2736 = vshrl.u32 %v2735, 7
        %v2737 = vsub.s32 %v2734, %v2736
        %v2738 = vrot.slane %v2724, %v2737
        %v2739 = vcombine.high %v2731, %v2731
        %v2740 = vcombine.high %v2738, %v2738
        %v2745 = vpack.c.bf16 %v2731, %v2731
        %v2746 = vpack.c.bf16 %v2739, %v2739
        %v2747 = vpack.c.bf16 %v2738, %v2738
        %v2748 = vpack.c.bf16 %v2740, %v2740
        %v2749 = vld [vmem:[%s3] sm:$0xf]
        %v2750 = vld [vmem:[%s3 + $0x4] sm:$0xf]
        %v2751 = vld [vmem:[%s3 + $0x8] sm:$0xf]
        %v2752 = vld [vmem:[%s3 + $0xc] sm:$0xf]
        %v2753 = vld [vmem:[%s3 + $0x10] sm:$0xf]
        %v2754 = vld [vmem:[%s3 + $0x14] sm:$0xf]
        %v2755 = vld [vmem:[%s3 + $0x18] sm:$0xf]
        %v2756 = vld [vmem:[%s3 + $0x1c] sm:$0xf]
        %v2757 = vld [vmem:[%s3 + $0x20] sm:$0xf]
        %v2758 = vld [vmem:[%s3 + $0x24] sm:$0xf]
        %v2759 = vld [vmem:[%s3 + $0x28] sm:$0xf]
        %v2760 = vld [vmem:[%s3 + $0x2c] sm:$0xf]
        %v2761 = vld [vmem:[%s3 + $0x30] sm:$0xf]
        %v2762 = vld [vmem:[%s3 + $0x34] sm:$0xf]
        %v2763 = vld [vmem:[%s3 + $0x38] sm:$0xf]
        %v2764 = vld [vmem:[%s3 + $0x3c] sm:$0xf]
        %v2765 = vld [vmem:[%s3 + $0x40] sm:$0xf]
        %v2766 = vld [vmem:[%s3 + $0x44] sm:$0xf]
        %v2767 = vld [vmem:[%s3 + $0x48] sm:$0xf]
        %v2768 = vld [vmem:[%s3 + $0x4c] sm:$0xf]
        %v2769 = vld [vmem:[%s3 + $0x50] sm:$0xf]
        %v2770 = vld [vmem:[%s3 + $0x54] sm:$0xf]
        %v2771 = vld [vmem:[%s3 + $0x58] sm:$0xf]
        %v2772 = vld [vmem:[%s3 + $0x5c] sm:$0xf]
        %v2773 = vld [vmem:[%s3 + $0x60] sm:$0xf]
        %v2774 = vld [vmem:[%s3 + $0x64] sm:$0xf]
        %v2775 = vld [vmem:[%s3 + $0x68] sm:$0xf]
        %v2776 = vld [vmem:[%s3 + $0x6c] sm:$0xf]
        %v2777 = vld [vmem:[%s3 + $0x70] sm:$0xf]
        %v2778 = vld [vmem:[%s3 + $0x74] sm:$0xf]
        %v2779 = vld [vmem:[%s3 + $0x78] sm:$0xf]
        %v2780 = vld [vmem:[%s3 + $0x7c] sm:$0xf]
        %v2781 = vld [vmem:[%s3 + $0x80] sm:$0xf]
        %v2782 = vld [vmem:[%s3 + $0x84] sm:$0xf]
        %v2783 = vld [vmem:[%s3 + $0x88] sm:$0xf]
        %v2784 = vld [vmem:[%s3 + $0x8c] sm:$0xf]
        %v2785 = vld [vmem:[%s3 + $0x90] sm:$0xf]
        %v2786 = vld [vmem:[%s3 + $0x94] sm:$0xf]
        %v2787 = vld [vmem:[%s3 + $0x98] sm:$0xf]
        %v2788 = vld [vmem:[%s3 + $0x9c] sm:$0xf]
        %v2789 = vld [vmem:[%s3 + $0xa0] sm:$0xf]
        %v2790 = vld [vmem:[%s3 + $0xa4] sm:$0xf]
        %v2791 = vld [vmem:[%s3 + $0xa8] sm:$0xf]
        %v2792 = vld [vmem:[%s3 + $0xac] sm:$0xf]
        %v2793 = vld [vmem:[%s3 + $0xb0] sm:$0xf]
        %v2794 = vld [vmem:[%s3 + $0xb4] sm:$0xf]
        %v2795 = vld [vmem:[%s3 + $0xb8] sm:$0xf]
        %v2796 = vld [vmem:[%s3 + $0xbc] sm:$0xf]
        %v2797 = vld [vmem:[%s3 + $0xc0] sm:$0xf]
        %v2798 = vld [vmem:[%s3 + $0xc4] sm:$0xf]
        %v2799 = vld [vmem:[%s3 + $0xc8] sm:$0xf]
        %v2800 = vld [vmem:[%s3 + $0xcc] sm:$0xf]
        %v2801 = vld [vmem:[%s3 + $0xd0] sm:$0xf]
        %v2802 = vld [vmem:[%s3 + $0xd4] sm:$0xf]
        %v2803 = vld [vmem:[%s3 + $0xd8] sm:$0xf]
        %v2804 = vld [vmem:[%s3 + $0xdc] sm:$0xf]
        %v2805 = vld [vmem:[%s3 + $0xe0] sm:$0xf]
        %v2806 = vld [vmem:[%s3 + $0xe4] sm:$0xf]
        %v2807 = vld [vmem:[%s3 + $0xe8] sm:$0xf]
        %v2808 = vld [vmem:[%s3 + $0xec] sm:$0xf]
        %v2809 = vld [vmem:[%s3 + $0xf0] sm:$0xf]
        %v2810 = vld [vmem:[%s3 + $0xf4] sm:$0xf]
        %v2811 = vld [vmem:[%s3 + $0xf8] sm:$0xf]
        %v2812 = vld [vmem:[%s3 + $0xfc] sm:$0xf]
        %v2813 = vld [vmem:[%s4] sm:$0x1]
        %v2815 = vlaneseq
        %v2816 = vshrl.u32 %v2815, 7
        %v2817 = vsub.s32 0, %v2816
        %v2818 = vrot.slane %v2813, %v2817
        %v2884 = vunpack.c.l.b16 %v2749
        %v2885 = vunpack.c.l.b16 %v2750
        %v2886 = vunpack.c.l.b16 %v2751
        %v2887 = vunpack.c.l.b16 %v2752
        %v2888 = vunpack.c.l.b16 %v2753
        %v2889 = vunpack.c.l.b16 %v2754
        %v2890 = vunpack.c.l.b16 %v2755
        %v2891 = vunpack.c.l.b16 %v2756
        %v2892 = vunpack.c.l.b16 %v2757
        %v2893 = vunpack.c.l.b16 %v2758
        %v2894 = vunpack.c.l.b16 %v2759
        %v2895 = vunpack.c.l.b16 %v2760
        %v2896 = vunpack.c.l.b16 %v2761
        %v2897 = vunpack.c.l.b16 %v2762
        %v2898 = vunpack.c.l.b16 %v2763
        %v2899 = vunpack.c.l.b16 %v2764
        %v2900 = vunpack.c.l.b16 %v2765
        %v2901 = vunpack.c.l.b16 %v2766
        %v2902 = vunpack.c.l.b16 %v2767
        %v2903 = vunpack.c.l.b16 %v2768
        %v2904 = vunpack.c.l.b16 %v2769
        %v2905 = vunpack.c.l.b16 %v2770
        %v2906 = vunpack.c.l.b16 %v2771
        %v2907 = vunpack.c.l.b16 %v2772
        %v2908 = vunpack.c.l.b16 %v2773
        %v2909 = vunpack.c.l.b16 %v2774
        %v2910 = vunpack.c.l.b16 %v2775
        %v2911 = vunpack.c.l.b16 %v2776
        %v2912 = vunpack.c.l.b16 %v2777
        %v2913 = vunpack.c.l.b16 %v2778
        %v2914 = vunpack.c.l.b16 %v2779
        %v2915 = vunpack.c.l.b16 %v2780
        %v2916 = vunpack.c.l.b16 %v2781
        %v2917 = vunpack.c.l.b16 %v2782
        %v2918 = vunpack.c.l.b16 %v2783
        %v2919 = vunpack.c.l.b16 %v2784
        %v2920 = vunpack.c.l.b16 %v2785
        %v2921 = vunpack.c.l.b16 %v2786
        %v2922 = vunpack.c.l.b16 %v2787
        %v2923 = vunpack.c.l.b16 %v2788
        %v2924 = vunpack.c.l.b16 %v2789
        %v2925 = vunpack.c.l.b16 %v2790
        %v2926 = vunpack.c.l.b16 %v2791
        %v2927 = vunpack.c.l.b16 %v2792
        %v2928 = vunpack.c.l.b16 %v2793
        %v2929 = vunpack.c.l.b16 %v2794
        %v2930 = vunpack.c.l.b16 %v2795
        %v2931 = vunpack.c.l.b16 %v2796
        %v2932 = vunpack.c.l.b16 %v2797
        %v2933 = vunpack.c.l.b16 %v2798
        %v2934 = vunpack.c.l.b16 %v2799
        %v2935 = vunpack.c.l.b16 %v2800
        %v2936 = vunpack.c.l.b16 %v2801
        %v2937 = vunpack.c.l.b16 %v2802
        %v2938 = vunpack.c.l.b16 %v2803
        %v2939 = vunpack.c.l.b16 %v2804
        %v2940 = vunpack.c.l.b16 %v2805
        %v2941 = vunpack.c.l.b16 %v2806
        %v2942 = vunpack.c.l.b16 %v2807
        %v2943 = vunpack.c.l.b16 %v2808
        %v2944 = vunpack.c.l.b16 %v2809
        %v2945 = vunpack.c.l.b16 %v2810
        %v2946 = vunpack.c.l.b16 %v2811
        %v2947 = vunpack.c.l.b16 %v2812
        %v2948 = vpack.c.b16 %v2885, %v2884
        %v2949 = vpack.c.b16 %v2887, %v2886
        %v2950 = vpack.c.b16 %v2889, %v2888
        %v2951 = vpack.c.b16 %v2891, %v2890
        %v2952 = vpack.c.b16 %v2893, %v2892
        %v2953 = vpack.c.b16 %v2895, %v2894
        %v2954 = vpack.c.b16 %v2897, %v2896
        %v2955 = vpack.c.b16 %v2899, %v2898
        %v2956 = vpack.c.b16 %v2901, %v2900
        %v2957 = vpack.c.b16 %v2903, %v2902
        %v2958 = vpack.c.b16 %v2905, %v2904
        %v2959 = vpack.c.b16 %v2907, %v2906
        %v2960 = vpack.c.b16 %v2909, %v2908
        %v2961 = vpack.c.b16 %v2911, %v2910
        %v2962 = vpack.c.b16 %v2913, %v2912
        %v2963 = vpack.c.b16 %v2915, %v2914
        %v2964 = vpack.c.b16 %v2917, %v2916
        %v2965 = vpack.c.b16 %v2919, %v2918
        %v2966 = vpack.c.b16 %v2921, %v2920
        %v2967 = vpack.c.b16 %v2923, %v2922
        %v2968 = vpack.c.b16 %v2925, %v2924
        %v2969 = vpack.c.b16 %v2927, %v2926
        %v2970 = vpack.c.b16 %v2929, %v2928
        %v2971 = vpack.c.b16 %v2931, %v2930
        %v2972 = vpack.c.b16 %v2933, %v2932
        %v2973 = vpack.c.b16 %v2935, %v2934
        %v2974 = vpack.c.b16 %v2937, %v2936
        %v2975 = vpack.c.b16 %v2939, %v2938
        %v2976 = vpack.c.b16 %v2941, %v2940
        %v2977 = vpack.c.b16 %v2943, %v2942
        %v2978 = vpack.c.b16 %v2945, %v2944
        %v2979 = vpack.c.b16 %v2947, %v2946
        %3012 = vmatprep.subr.bf16.mxu0 0
        %3013 = vmatpush1.bf16.msra.mxu0 %v2955
        %3014 = vmatprep.subr.bf16.mxu0 0
        %3015 = vmatpush1.bf16.msra.mxu0 %v2954
        %3016 = vmatprep.subr.bf16.mxu0 0
        %3017 = vmatpush1.bf16.msra.mxu0 %v2953
        %3018 = vmatprep.subr.bf16.mxu0 0
        %3019 = vmatpush1.bf16.msra.mxu0 %v2952
        %3020 = vmatprep.subr.bf16.mxu0 0
        %3021 = vmatpush1.bf16.msra.mxu0 %v2951
        %3022 = vmatprep.subr.bf16.mxu0 0
        %3023 = vmatpush1.bf16.msra.mxu0 %v2950
        %3024 = vmatprep.subr.bf16.mxu0 0
        %3025 = vmatpush1.bf16.msra.mxu0 %v2949
        %3026 = vmatprep.subr.bf16.mxu0 0
        %3027 = vmatpush1.bf16.msra.mxu0 %v2948
        %3028 = vmatprep.subr.bf16.mxu0 0
        %3029 = vmatpush2.bf16.msra.mxu0 %v2963
        %3030 = vmatprep.subr.bf16.mxu0 0
        %3031 = vmatpush2.bf16.msra.mxu0 %v2962
        %3032 = vmatprep.subr.bf16.mxu0 0
        %3033 = vmatpush2.bf16.msra.mxu0 %v2961
        %3034 = vmatprep.subr.bf16.mxu0 0
        %3035 = vmatpush2.bf16.msra.mxu0 %v2960
        %3036 = vmatprep.subr.bf16.mxu0 0
        %3037 = vmatpush2.bf16.msra.mxu0 %v2959
        %3038 = vmatprep.subr.bf16.mxu0 0
        %3039 = vmatpush2.bf16.msra.mxu0 %v2958
        %3040 = vmatprep.subr.bf16.mxu0 0
        %3041 = vmatpush2.bf16.msra.mxu0 %v2957
        %3042 = vmatprep.subr.bf16.mxu0 0
        %3043 = vmatpush2.bf16.msra.mxu0 %v2956
        %3044 = vmatprep.mubr.bf16.mxu0 %v2746
        %3045 = vmatmul.mubr.bf16.gmra.mxu0 %v2745
        %v3046 = vpop.f32.mrf.mxu0
        %v3047 = vadd.f32 %v2818, %v3046
        %v3048 = vpop.f32.mrf.mxu0
        %v3049 = vpop.f32.mrf.mxu0
        %v3050 = vpop.f32.mrf.mxu0
        %3051 = vdwg.mxu0
        %3052 = vmatprep.subr.bf16.mxu0 0
        %3053 = vmatpush1.bf16.msra.mxu0 %v2971
        %3054 = vmatprep.subr.bf16.mxu0 0
        %3055 = vmatpush1.bf16.msra.mxu0 %v2970
        %3056 = vmatprep.subr.bf16.mxu0 0
        %3057 = vmatpush1.bf16.msra.mxu0 %v2969
        %3058 = vmatprep.subr.bf16.mxu0 0
        %3059 = vmatpush1.bf16.msra.mxu0 %v2968
        %3060 = vmatprep.subr.bf16.mxu0 0
        %3061 = vmatpush1.bf16.msra.mxu0 %v2967
        %3062 = vmatprep.subr.bf16.mxu0 0
        %3063 = vmatpush1.bf16.msra.mxu0 %v2966
        %3064 = vmatprep.subr.bf16.mxu0 0
        %3065 = vmatpush1.bf16.msra.mxu0 %v2965
        %3066 = vmatprep.subr.bf16.mxu0 0
        %3067 = vmatpush1.bf16.msra.mxu0 %v2964
        %3068 = vmatprep.subr.bf16.mxu0 0
        %3069 = vmatpush2.bf16.msra.mxu0 %v2979
        %3070 = vmatprep.subr.bf16.mxu0 0
        %3071 = vmatpush2.bf16.msra.mxu0 %v2978
        %3072 = vmatprep.subr.bf16.mxu0 0
        %3073 = vmatpush2.bf16.msra.mxu0 %v2977
        %3074 = vmatprep.subr.bf16.mxu0 0
        %3075 = vmatpush2.bf16.msra.mxu0 %v2976
        %3076 = vmatprep.subr.bf16.mxu0 0
        %3077 = vmatpush2.bf16.msra.mxu0 %v2975
        %3078 = vmatprep.subr.bf16.mxu0 0
        %3079 = vmatpush2.bf16.msra.mxu0 %v2974
        %3080 = vmatprep.subr.bf16.mxu0 0
        %3081 = vmatpush2.bf16.msra.mxu0 %v2973
        %3082 = vmatprep.subr.bf16.mxu0 0
        %3083 = vmatpush2.bf16.msra.mxu0 %v2972
        %3084 = vmatprep.mubr.bf16.mxu0 %v2748
        %3085 = vmatmul.mubr.bf16.gmra.mxu0 %v2747
        %v3086 = vpop.f32.mrf.mxu0
        %v3087 = vadd.f32 %v3047, %v3086
        %v3088 = vpop.f32.mrf.mxu0
        %v3089 = vpop.f32.mrf.mxu0
        %v3090 = vpop.f32.mrf.mxu0
        %3091 = vdwg.mxu0
        %3092 = vst [vmem:[%s5] sm:$0x3] %v3087
      $region48: #{_ppo_forward.7} parent=39 // pred_fallthru
        _
      // Predicated region
      $region49: #{_ppo_forward.7} parent=39 // pred_check
        %p3093 = pneg %p144
      $region50: #{_ppo_forward.7} parent=39 // pred_check_branch
        %3095 = sbr.rel (%p3093) target = $region52
      $region51: #{_ppo_forward.7} parent=39 // pred_region
        _
      $region52: #{_ppo_forward.7} parent=39 // pred_fallthru
        _
      // Predicated region
      $region53: #{_ppo_forward.7} parent=39 // pred_check
        %p3096 = pneg %p144
      $region54: #{_ppo_forward.7} parent=39 // pred_check_branch
        %3098 = sbr.rel (%p3096) target = $region56
      $region55: #{_ppo_forward.7} parent=39 // pred_region
        _
      $region56: #{_ppo_forward.7} parent=39 // pred_fallthru
        _
    $region40: #{_ppo_forward.7} parent=5 // pred_fallthru
      _
    %p3099 = scmp.le.s32.totalorder 2, %s11
    // Predicated region
    $region57: #{_ppo_forward.7} parent=5 // pred_check
      %p3100 = pneg %p3099
    $region58: #{_ppo_forward.7} parent=5 // pred_check_branch
      %3102 = sbr.rel (%p3100) target = $region60
    $region59: #{_ppo_forward.7} parent=5 // pred_region
      %s3103 = ssub.s32 %s11, 2
    $region60: #{_ppo_forward.7} parent=5 // pred_fallthru
      _
  $region6: #{_ppo_forward.7} parent=0 // loop_footer
    %s15 = sadd.s32 1, %s11
  $region7: #{_ppo_forward.7} parent=0 // loop_footer_branch
    %10 = sbr.rel target = $region3
  $region8: #{_ppo_forward.7} parent=0 // loop_exit
    _

</llo_original>
